<compile_context>
chip_gen: v7x
topology: tpu7x:2x2x1
jax: 0.10.0
libtpu: 0.0.40
codegen_flags: <defaults>
</compile_context>

<pallas_src>
import functools

import jax
import jax.numpy as jnp
from jax.experimental import pallas as pl
from jax.experimental.pallas import tpu as pltpu


def _round_up(x, m):
    return ((x + m - 1) // m) * m


# --------------------------------------------------------------------------
# Pallas GEMM with fused bias + ReLU (single grid axis over M)
# --------------------------------------------------------------------------

def _matmul_bias_kernel(x_ref, w_ref, b_ref, o_ref, *, relu):
    r = jnp.dot(x_ref[...], w_ref[...], preferred_element_type=jnp.float32)
    r = r + b_ref[...]                      # (tm, N) + (1, N), f32 epilogue
    if relu:
        r = jnp.maximum(r, 0.0)
    o_ref[...] = r.astype(o_ref.dtype)


def _pick_tm(m):
    """Row-tile: big tiles for big M; >=2 blocks when feasible (v7x megacore).

    Always a multiple of 16 so bf16 (16,128) sublane packing is satisfied."""
    if m >= 4096:
        return 1024
    if m >= 32:
        return min(1024, _round_up((m + 1) // 2, 16))
    return _round_up(max(m, 1), 16)


def matmul_bias(x, w, b, *, relu, tm=None):
    """out = [relu](x @ w + b).  x:(M,K), w:(K,N), b:(N,).  K/N are untiled
    (full-extent blocks); only M is tiled, with masked boundary stores."""
    m, k = x.shape
    k2, n = w.shape
    assert k == k2
    if tm is None:
        tm = _pick_tm(m)
    grid = (pl.cdiv(m, tm),)
    b2 = b.reshape(1, n).astype(jnp.float32)

    return pl.pallas_call(
        functools.partial(_matmul_bias_kernel, relu=relu),
        out_shape=jax.ShapeDtypeStruct((m, n), jnp.float32),
        grid_spec=pltpu.PrefetchScalarGridSpec(
            num_scalar_prefetch=0,
            grid=grid,
            in_specs=[
                pl.BlockSpec((tm, k), lambda i: (i, 0)),   # row tile of patches
                pl.BlockSpec((k, n), lambda i: (0, 0)),    # whole weight, resident
                pl.BlockSpec((1, n), lambda i: (0, 0)),    # bias row
            ],
            out_specs=pl.BlockSpec((tm, n), lambda i: (i, 0)),
        ),
        compiler_params=pltpu.CompilerParams(
            dimension_semantics=("parallel",)),
    )(x, w, b2)


# --------------------------------------------------------------------------
# Fused tail: AvgPool2d((2,4)) + flatten + fc1 + ReLU + fc2 in one kernel
# --------------------------------------------------------------------------

def _head_kernel(x_ref, w1_ref, b1_ref, w2_ref, b2_ref, o_ref):
    feat = jnp.mean(x_ref[...], axis=1)                         # (N, 256)
    h = jnp.dot(feat, w1_ref[...], preferred_element_type=jnp.float32)
    h = jnp.maximum(h + b1_ref[...], 0.0)                       # fc1 + ReLU
    o = jnp.dot(h, w2_ref[...], preferred_element_type=jnp.float32)
    o_ref[...] = (o + b2_ref[...]).astype(o_ref.dtype)


def head_avgpool_fc(x, w1, b1, w2, b2):
    """x: (N, 2, 4, 256); w1: (256, 64); w2: (64, 2) (pre-transposed)."""
    n, h, w, c = x.shape
    xr = x.reshape(n, h * w, c)
    out_f = w2.shape[1]
    return pl.pallas_call(
        _head_kernel,
        out_shape=jax.ShapeDtypeStruct((n, out_f), jnp.float32),
    )(xr, w1, b1.reshape(1, -1), w2, b2.reshape(1, -1))


# --------------------------------------------------------------------------
# Convolution via im2col (glue) + Pallas GEMM (hot path), pooling glue
# --------------------------------------------------------------------------

def im2col(x, kh, kw, stride, pad, out_dtype=jnp.bfloat16):
    """x: (N,H,W,C) -> patches (N*OH*OW, KH*KW*C), last dim in (kh,kw,cin) order."""
    if pad:
        x = jnp.pad(x, ((0, 0), (pad, pad), (pad, pad), (0, 0)))
    n, h, w, c = x.shape
    oh = (h - kh) // stride + 1
    ow = (w - kw) // stride + 1
    cols = []
    for i in range(kh):
        for j in range(kw):
            cols.append(
                x[:, i:i + stride * oh:stride, j:j + stride * ow:stride, :])
    patches = jnp.concatenate(cols, axis=-1)        # (N, OH, OW, KH*KW*C)
    # TODO(synk): larger refactor -- fuse im2col into the GEMM (keep an input
    # slab in VMEM and do 9 shifted dot-accumulations) to remove the 9x HBM
    # patch blowup entirely.
    return patches.reshape(n * oh * ow, kh * kw * c).astype(out_dtype), oh, ow


def conv2d_relu(x, w_oihw, b, *, stride, pad, relu=True):
    """x NHWC f32; w_oihw in PyTorch (Cout, Cin, KH, KW) layout."""
    cout, cin, kh, kw = w_oihw.shape
    n = x.shape[0]
    patches, oh, ow = im2col(x, kh, kw, stride, pad)
    # Match im2col last-dim ordering (kh, kw, cin).
    w_mat = jnp.transpose(w_oihw, (2, 3, 1, 0)).reshape(kh * kw * cin, cout)
    out = matmul_bias(patches, w_mat.astype(jnp.bfloat16), b, relu=relu)
    return out.reshape(n, oh, ow, cout)


def maxpool2x2(x):
    """MaxPool2d(2,2).  Memory-bound glue; XLA fuses the reshape+max."""
    n, h, w, c = x.shape
    assert h % 2 == 0 and w % 2 == 0, (h, w)
    return jnp.max(x.reshape(n, h // 2, 2, w // 2, 2, c), axis=(2, 4))


# --------------------------------------------------------------------------
# Parameters & forward
# --------------------------------------------------------------------------

def init_params(key):
    def conv_init(k, cout, cin, kh, kw):
        k1, k2 = jax.random.split(k)
        bound = 1.0 / float(cin * kh * kw) ** 0.5
        w = jax.random.uniform(k1, (cout, cin, kh, kw), jnp.float32,
                               minval=-bound, maxval=bound)
        b = jax.random.uniform(k2, (cout,), jnp.float32,
                               minval=-bound, maxval=bound)
        return w, b

    def lin_init(k, out_f, in_f):
        k1, k2 = jax.random.split(k)
        bound = 1.0 / float(in_f) ** 0.5
        # Stored pre-transposed, i.e. nn.Linear.weight.T -> shape (in_f, out_f).
        w = jax.random.uniform(k1, (in_f, out_f), jnp.float32,
                               minval=-bound, maxval=bound)
        b = jax.random.uniform(k2, (out_f,), jnp.float32,
                               minval=-bound, maxval=bound)
        return w, b

    keys = jax.random.split(key, 8)
    return {
        "conv1": conv_init(keys[0], 8, 1, 3, 3),
        "conv_extra": conv_init(keys[1], 16, 8, 3, 3),
        "conv2": conv_init(keys[2], 32, 16, 3, 3),
        "conv3": conv_init(keys[3], 64, 32, 3, 3),
        "conv4": conv_init(keys[4], 128, 64, 3, 3),
        "conv5": conv_init(keys[5], 256, 128, 3, 3),
        "fc1": lin_init(keys[6], 64, 256),
        "fc2": lin_init(keys[7], 2, 64),
    }


def pupilnet_v2_forward(params, x_nchw):
    x = jnp.transpose(x_nchw, (0, 2, 3, 1))                 # NCHW -> NHWC

    w, b = params["conv1"]
    x = conv2d_relu(x, w, b, stride=1, pad=0)                # (N,94,158,8)
    x = maxpool2x2(x)                                        # (N,47,79,8)

    w, b = params["conv_extra"]
    x = conv2d_relu(x, w, b, stride=1, pad=1)                # (N,47,79,16)

    w, b = params["conv2"]
    x = conv2d_relu(x, w, b, stride=2, pad=0)                # (N,23,39,32)
    # Dropout2d (drop1): identity in eval/inference mode.

    w, b = params["conv3"]
    x = conv2d_relu(x, w, b, stride=2, pad=0)                # (N,11,19,64)

    w, b = params["conv4"]
    x = conv2d_relu(x, w, b, stride=2, pad=0)                # (N,5,9,128)
    # Dropout2d (drop2): identity in eval/inference mode.

    w, b = params["conv5"]
    x = conv2d_relu(x, w, b, stride=2, pad=0)                # (N,2,4,256)

    w1, b1 = params["fc1"]
    w2, b2 = params["fc2"]
    return head_avgpool_fc(x, w1, b1, w2, b2)                # (N,2)


if __name__ == "__main__":
    key = jax.random.PRNGKey(0)
    pkey, xkey = jax.random.split(key)
    params = init_params(pkey)

    # Smallest input consistent with the architecture: (N=2, C=1, H=96, W=160).
    x = jax.random.normal(xkey, (2, 1, 96, 160), dtype=jnp.float32)

    fwd = jax.jit(pupilnet_v2_forward)
    out = jax.block_until_ready(fwd(params, x))
    assert out.shape == (2, 2), out.shape
    assert bool(jnp.all(jnp.isfinite(out)))
    print("KERNEL_OK")
</pallas_src>

<mosaic_0001>
module attributes {stable_mosaic.version = 11 : i64} {
  func.func @_matmul_bias_kernel(%arg0: i32, %arg1: memref<1024x9xbf16, #tpu.memory_space<vmem>>, %arg2: memref<9x8xbf16, #tpu.memory_space<vmem>>, %arg3: memref<1x8xf32, #tpu.memory_space<vmem>>, %arg4: memref<1024x8xf32, #tpu.memory_space<vmem>>) attributes {dimension_semantics = [#tpu.dimension_semantics<parallel>], iteration_bounds = array<i64: 30>, scalar_prefetch = 0 : i64, scratch_operands = 0 : i64, tpu.core_type = #tpu.core_type<tc>, window_params = [{transform_indices = @transform_0, window_bounds = array<i64: 1024, 9>}, {pipeline_mode = #tpu.pipeline_mode<synchronous>, transform_indices = @transform_1, window_bounds = array<i64: 9, 8>}, {pipeline_mode = #tpu.pipeline_mode<synchronous>, transform_indices = @transform_2, window_bounds = array<i64: 1, 8>}, {transform_indices = @transform_3, window_bounds = array<i64: 1024, 8>}]} {
    %c0 = arith.constant 0 : index
    %c0_0 = arith.constant 0 : index
    %0 = vector.load %arg1[%c0, %c0_0] : memref<1024x9xbf16, #tpu.memory_space<vmem>>, vector<1024x9xbf16>
    %c0_1 = arith.constant 0 : index
    %c0_2 = arith.constant 0 : index
    %1 = vector.load %arg2[%c0_1, %c0_2] : memref<9x8xbf16, #tpu.memory_space<vmem>>, vector<9x8xbf16>
    %cst = arith.constant dense<0.000000e+00> : vector<1024x8xf32>
    %2 = tpu.matmul %0, %1, %cst {dimension_numbers = #tpu.dot_dimension_numbers<[1], [0], [0], [1], [0, 0, 1, 1], [], []>} : vector<1024x9xbf16>, vector<9x8xbf16>, vector<1024x8xf32> -> vector<1024x8xf32>
    %c0_3 = arith.constant 0 : index
    %c0_4 = arith.constant 0 : index
    %3 = vector.load %arg3[%c0_3, %c0_4] : memref<1x8xf32, #tpu.memory_space<vmem>>, vector<1x8xf32>
    %4 = vector.broadcast %3 : vector<1x8xf32> to vector<1024x8xf32>
    %5 = arith.addf %2, %4 : vector<1024x8xf32>
    %cst_5 = arith.constant 0.000000e+00 : f32
    %6 = vector.broadcast %cst_5 : f32 to vector<1024x8xf32>
    %7 = arith.maximumf %5, %6 : vector<1024x8xf32>
    %c0_6 = arith.constant 0 : index
    %c0_7 = arith.constant 0 : index
    %8 = vector.load %arg4[%c0_6, %c0_7] : memref<1024x8xf32, #tpu.memory_space<vmem>>, vector<1024x8xf32>
    tpu.vector_store %arg4[%c0_6, %c0_7], %7 {strides = array<i32>} : memref<1024x8xf32, #tpu.memory_space<vmem>>, vector<1024x8xf32>,
    return
  }
  func.func @transform_0(%arg0: i32) -> (i32, i32) {
    %c0_i32 = arith.constant 0 : i32
    %c0_i32_0 = arith.constant 0 : i32
    return %arg0, %c0_i32 : i32, i32
  }
  func.func @transform_1(%arg0: i32) -> (i32, i32) {
    %c0_i32 = arith.constant 0 : i32
    %c0_i32_0 = arith.constant 0 : i32
    %c0_i32_1 = arith.constant 0 : i32
    return %c0_i32, %c0_i32_0 : i32, i32
  }
  func.func @transform_2(%arg0: i32) -> (i32, i32) {
    %c0_i32 = arith.constant 0 : i32
    %c0_i32_0 = arith.constant 0 : i32
    %c0_i32_1 = arith.constant 0 : i32
    return %c0_i32, %c0_i32_0 : i32, i32
  }
  func.func @transform_3(%arg0: i32) -> (i32, i32) {
    %c0_i32 = arith.constant 0 : i32
    %c0_i32_0 = arith.constant 0 : i32
    return %arg0, %c0_i32 : i32, i32
  }
}

module attributes {stable_mosaic.version = 11 : i64} {
  func.func @_matmul_bias_kernel(%arg0: i32, %arg1: memref<1024x72xbf16, #tpu.memory_space<vmem>>, %arg2: memref<72x16xbf16, #tpu.memory_space<vmem>>, %arg3: memref<1x16xf32, #tpu.memory_space<vmem>>, %arg4: memref<1024x16xf32, #tpu.memory_space<vmem>>) attributes {dimension_semantics = [#tpu.dimension_semantics<parallel>], iteration_bounds = array<i64: 8>, scalar_prefetch = 0 : i64, scratch_operands = 0 : i64, tpu.core_type = #tpu.core_type<tc>, window_params = [{transform_indices = @transform_0, window_bounds = array<i64: 1024, 72>}, {pipeline_mode = #tpu.pipeline_mode<synchronous>, transform_indices = @transform_1, window_bounds = array<i64: 72, 16>}, {pipeline_mode = #tpu.pipeline_mode<synchronous>, transform_indices = @transform_2, window_bounds = array<i64: 1, 16>}, {transform_indices = @transform_3, window_bounds = array<i64: 1024, 16>}]} {
    %c0 = arith.constant 0 : index
    %c0_0 = arith.constant 0 : index
    %0 = vector.load %arg1[%c0, %c0_0] : memref<1024x72xbf16, #tpu.memory_space<vmem>>, vector<1024x72xbf16>
    %c0_1 = arith.constant 0 : index
    %c0_2 = arith.constant 0 : index
    %1 = vector.load %arg2[%c0_1, %c0_2] : memref<72x16xbf16, #tpu.memory_space<vmem>>, vector<72x16xbf16>
    %cst = arith.constant dense<0.000000e+00> : vector<1024x16xf32>
    %2 = tpu.matmul %0, %1, %cst {dimension_numbers = #tpu.dot_dimension_numbers<[1], [0], [0], [1], [0, 0, 1, 1], [], []>} : vector<1024x72xbf16>, vector<72x16xbf16>, vector<1024x16xf32> -> vector<1024x16xf32>
    %c0_3 = arith.constant 0 : index
    %c0_4 = arith.constant 0 : index
    %3 = vector.load %arg3[%c0_3, %c0_4] : memref<1x16xf32, #tpu.memory_space<vmem>>, vector<1x16xf32>
    %4 = vector.broadcast %3 : vector<1x16xf32> to vector<1024x16xf32>
    %5 = arith.addf %2, %4 : vector<1024x16xf32>
    %cst_5 = arith.constant 0.000000e+00 : f32
    %6 = vector.broadcast %cst_5 : f32 to vector<1024x16xf32>
    %7 = arith.maximumf %5, %6 : vector<1024x16xf32>
    %c0_6 = arith.constant 0 : index
    %c0_7 = arith.constant 0 : index
    %8 = vector.load %arg4[%c0_6, %c0_7] : memref<1024x16xf32, #tpu.memory_space<vmem>>, vector<1024x16xf32>
    tpu.vector_store %arg4[%c0_6, %c0_7], %7 {strides = array<i32>} : memref<1024x16xf32, #tpu.memory_space<vmem>>, vector<1024x16xf32>,
    return
  }
  func.func @transform_0(%arg0: i32) -> (i32, i32) {
    %c0_i32 = arith.constant 0 : i32
    %c0_i32_0 = arith.constant 0 : i32
    return %arg0, %c0_i32 : i32, i32
  }
  func.func @transform_1(%arg0: i32) -> (i32, i32) {
    %c0_i32 = arith.constant 0 : i32
    %c0_i32_0 = arith.constant 0 : i32
    %c0_i32_1 = arith.constant 0 : i32
    return %c0_i32, %c0_i32_0 : i32, i32
  }
  func.func @transform_2(%arg0: i32) -> (i32, i32) {
    %c0_i32 = arith.constant 0 : i32
    %c0_i32_0 = arith.constant 0 : i32
    %c0_i32_1 = arith.constant 0 : i32
    return %c0_i32, %c0_i32_0 : i32, i32
  }
  func.func @transform_3(%arg0: i32) -> (i32, i32) {
    %c0_i32 = arith.constant 0 : i32
    %c0_i32_0 = arith.constant 0 : i32
    return %arg0, %c0_i32 : i32, i32
  }
}

module attributes {stable_mosaic.version = 11 : i64} {
  func.func @_matmul_bias_kernel(%arg0: i32, %arg1: memref<912x144xbf16, #tpu.memory_space<vmem>>, %arg2: memref<144x32xbf16, #tpu.memory_space<vmem>>, %arg3: memref<1x32xf32, #tpu.memory_space<vmem>>, %arg4: memref<912x32xf32, #tpu.memory_space<vmem>>) attributes {dimension_semantics = [#tpu.dimension_semantics<parallel>], iteration_bounds = array<i64: 2>, scalar_prefetch = 0 : i64, scratch_operands = 0 : i64, tpu.core_type = #tpu.core_type<tc>, window_params = [{transform_indices = @transform_0, window_bounds = array<i64: 912, 144>}, {pipeline_mode = #tpu.pipeline_mode<synchronous>, transform_indices = @transform_1, window_bounds = array<i64: 144, 32>}, {pipeline_mode = #tpu.pipeline_mode<synchronous>, transform_indices = @transform_2, window_bounds = array<i64: 1, 32>}, {transform_indices = @transform_3, window_bounds = array<i64: 912, 32>}]} {
    %c0 = arith.constant 0 : index
    %c0_0 = arith.constant 0 : index
    %0 = vector.load %arg1[%c0, %c0_0] : memref<912x144xbf16, #tpu.memory_space<vmem>>, vector<912x144xbf16>
    %c0_1 = arith.constant 0 : index
    %c0_2 = arith.constant 0 : index
    %1 = vector.load %arg2[%c0_1, %c0_2] : memref<144x32xbf16, #tpu.memory_space<vmem>>, vector<144x32xbf16>
    %cst = arith.constant dense<0.000000e+00> : vector<912x32xf32>
    %2 = tpu.matmul %0, %1, %cst {dimension_numbers = #tpu.dot_dimension_numbers<[1], [0], [0], [1], [0, 0, 1, 1], [], []>} : vector<912x144xbf16>, vector<144x32xbf16>, vector<912x32xf32> -> vector<912x32xf32>
    %c0_3 = arith.constant 0 : index
    %c0_4 = arith.constant 0 : index
    %3 = vector.load %arg3[%c0_3, %c0_4] : memref<1x32xf32, #tpu.memory_space<vmem>>, vector<1x32xf32>
    %4 = vector.broadcast %3 : vector<1x32xf32> to vector<912x32xf32>
    %5 = arith.addf %2, %4 : vector<912x32xf32>
    %cst_5 = arith.constant 0.000000e+00 : f32
    %6 = vector.broadcast %cst_5 : f32 to vector<912x32xf32>
    %7 = arith.maximumf %5, %6 : vector<912x32xf32>
    %c0_6 = arith.constant 0 : index
    %c0_7 = arith.constant 0 : index
    %8 = vector.load %arg4[%c0_6, %c0_7] : memref<912x32xf32, #tpu.memory_space<vmem>>, vector<912x32xf32>
    tpu.vector_store %arg4[%c0_6, %c0_7], %7 {strides = array<i32>} : memref<912x32xf32, #tpu.memory_space<vmem>>, vector<912x32xf32>,
    return
  }
  func.func @transform_0(%arg0: i32) -> (i32, i32) {
    %c0_i32 = arith.constant 0 : i32
    %c0_i32_0 = arith.constant 0 : i32
    return %arg0, %c0_i32 : i32, i32
  }
  func.func @transform_1(%arg0: i32) -> (i32, i32) {
    %c0_i32 = arith.constant 0 : i32
    %c0_i32_0 = arith.constant 0 : i32
    %c0_i32_1 = arith.constant 0 : i32
    return %c0_i32, %c0_i32_0 : i32, i32
  }
  func.func @transform_2(%arg0: i32) -> (i32, i32) {
    %c0_i32 = arith.constant 0 : i32
    %c0_i32_0 = arith.constant 0 : i32
    %c0_i32_1 = arith.constant 0 : i32
    return %c0_i32, %c0_i32_0 : i32, i32
  }
  func.func @transform_3(%arg0: i32) -> (i32, i32) {
    %c0_i32 = arith.constant 0 : i32
    %c0_i32_0 = arith.constant 0 : i32
    return %arg0, %c0_i32 : i32, i32
  }
}

module attributes {stable_mosaic.version = 11 : i64} {
  func.func @_matmul_bias_kernel(%arg0: i32, %arg1: memref<224x288xbf16, #tpu.memory_space<vmem>>, %arg2: memref<288x64xbf16, #tpu.memory_space<vmem>>, %arg3: memref<1x64xf32, #tpu.memory_space<vmem>>, %arg4: memref<224x64xf32, #tpu.memory_space<vmem>>) attributes {dimension_semantics = [#tpu.dimension_semantics<parallel>], iteration_bounds = array<i64: 2>, scalar_prefetch = 0 : i64, scratch_operands = 0 : i64, tpu.core_type = #tpu.core_type<tc>, window_params = [{transform_indices = @transform_0, window_bounds = array<i64: 224, 288>}, {pipeline_mode = #tpu.pipeline_mode<synchronous>, transform_indices = @transform_1, window_bounds = array<i64: 288, 64>}, {pipeline_mode = #tpu.pipeline_mode<synchronous>, transform_indices = @transform_2, window_bounds = array<i64: 1, 64>}, {transform_indices = @transform_3, window_bounds = array<i64: 224, 64>}]} {
    %c0 = arith.constant 0 : index
    %c0_0 = arith.constant 0 : index
    %0 = vector.load %arg1[%c0, %c0_0] : memref<224x288xbf16, #tpu.memory_space<vmem>>, vector<224x288xbf16>
    %c0_1 = arith.constant 0 : index
    %c0_2 = arith.constant 0 : index
    %1 = vector.load %arg2[%c0_1, %c0_2] : memref<288x64xbf16, #tpu.memory_space<vmem>>, vector<288x64xbf16>
    %cst = arith.constant dense<0.000000e+00> : vector<224x64xf32>
    %2 = tpu.matmul %0, %1, %cst {dimension_numbers = #tpu.dot_dimension_numbers<[1], [0], [0], [1], [0, 0, 1, 1], [], []>} : vector<224x288xbf16>, vector<288x64xbf16>, vector<224x64xf32> -> vector<224x64xf32>
    %c0_3 = arith.constant 0 : index
    %c0_4 = arith.constant 0 : index
    %3 = vector.load %arg3[%c0_3, %c0_4] : memref<1x64xf32, #tpu.memory_space<vmem>>, vector<1x64xf32>
    %4 = vector.broadcast %3 : vector<1x64xf32> to vector<224x64xf32>
    %5 = arith.addf %2, %4 : vector<224x64xf32>
    %cst_5 = arith.constant 0.000000e+00 : f32
    %6 = vector.broadcast %cst_5 : f32 to vector<224x64xf32>
    %7 = arith.maximumf %5, %6 : vector<224x64xf32>
    %c0_6 = arith.constant 0 : index
    %c0_7 = arith.constant 0 : index
    %8 = vector.load %arg4[%c0_6, %c0_7] : memref<224x64xf32, #tpu.memory_space<vmem>>, vector<224x64xf32>
    tpu.vector_store %arg4[%c0_6, %c0_7], %7 {strides = array<i32>} : memref<224x64xf32, #tpu.memory_space<vmem>>, vector<224x64xf32>,
    return
  }
  func.func @transform_0(%arg0: i32) -> (i32, i32) {
    %c0_i32 = arith.constant 0 : i32
    %c0_i32_0 = arith.constant 0 : i32
    return %arg0, %c0_i32 : i32, i32
  }
  func.func @transform_1(%arg0: i32) -> (i32, i32) {
    %c0_i32 = arith.constant 0 : i32
    %c0_i32_0 = arith.constant 0 : i32
    %c0_i32_1 = arith.constant 0 : i32
    return %c0_i32, %c0_i32_0 : i32, i32
  }
  func.func @transform_2(%arg0: i32) -> (i32, i32) {
    %c0_i32 = arith.constant 0 : i32
    %c0_i32_0 = arith.constant 0 : i32
    %c0_i32_1 = arith.constant 0 : i32
    return %c0_i32, %c0_i32_0 : i32, i32
  }
  func.func @transform_3(%arg0: i32) -> (i32, i32) {
    %c0_i32 = arith.constant 0 : i32
    %c0_i32_0 = arith.constant 0 : i32
    return %arg0, %c0_i32 : i32, i32
  }
}

module attributes {stable_mosaic.version = 11 : i64} {
  func.func @_matmul_bias_kernel(%arg0: i32, %arg1: memref<48x576xbf16, #tpu.memory_space<vmem>>, %arg2: memref<576x128xbf16, #tpu.memory_space<vmem>>, %arg3: memref<1x128xf32, #tpu.memory_space<vmem>>, %arg4: memref<48x128xf32, #tpu.memory_space<vmem>>) attributes {dimension_semantics = [#tpu.dimension_semantics<parallel>], iteration_bounds = array<i64: 2>, scalar_prefetch = 0 : i64, scratch_operands = 0 : i64, tpu.core_type = #tpu.core_type<tc>, window_params = [{transform_indices = @transform_0, window_bounds = array<i64: 48, 576>}, {pipeline_mode = #tpu.pipeline_mode<synchronous>, transform_indices = @transform_1, window_bounds = array<i64: 576, 128>}, {pipeline_mode = #tpu.pipeline_mode<synchronous>, transform_indices = @transform_2, window_bounds = array<i64: 1, 128>}, {transform_indices = @transform_3, window_bounds = array<i64: 48, 128>}]} {
    %c0 = arith.constant 0 : index
    %c0_0 = arith.constant 0 : index
    %0 = vector.load %arg1[%c0, %c0_0] : memref<48x576xbf16, #tpu.memory_space<vmem>>, vector<48x576xbf16>
    %c0_1 = arith.constant 0 : index
    %c0_2 = arith.constant 0 : index
    %1 = vector.load %arg2[%c0_1, %c0_2] : memref<576x128xbf16, #tpu.memory_space<vmem>>, vector<576x128xbf16>
    %cst = arith.constant dense<0.000000e+00> : vector<48x128xf32>
    %2 = tpu.matmul %0, %1, %cst {dimension_numbers = #tpu.dot_dimension_numbers<[1], [0], [0], [1], [0, 0, 1, 1], [], []>} : vector<48x576xbf16>, vector<576x128xbf16>, vector<48x128xf32> -> vector<48x128xf32>
    %c0_3 = arith.constant 0 : index
    %c0_4 = arith.constant 0 : index
    %3 = vector.load %arg3[%c0_3, %c0_4] : memref<1x128xf32, #tpu.memory_space<vmem>>, vector<1x128xf32>
    %4 = vector.broadcast %3 : vector<1x128xf32> to vector<48x128xf32>
    %5 = arith.addf %2, %4 : vector<48x128xf32>
    %cst_5 = arith.constant 0.000000e+00 : f32
    %6 = vector.broadcast %cst_5 : f32 to vector<48x128xf32>
    %7 = arith.maximumf %5, %6 : vector<48x128xf32>
    %c0_6 = arith.constant 0 : index
    %c0_7 = arith.constant 0 : index
    %8 = vector.load %arg4[%c0_6, %c0_7] : memref<48x128xf32, #tpu.memory_space<vmem>>, vector<48x128xf32>
    tpu.vector_store %arg4[%c0_6, %c0_7], %7 {strides = array<i32>} : memref<48x128xf32, #tpu.memory_space<vmem>>, vector<48x128xf32>,
    return
  }
  func.func @transform_0(%arg0: i32) -> (i32, i32) {
    %c0_i32 = arith.constant 0 : i32
    %c0_i32_0 = arith.constant 0 : i32
    return %arg0, %c0_i32 : i32, i32
  }
  func.func @transform_1(%arg0: i32) -> (i32, i32) {
    %c0_i32 = arith.constant 0 : i32
    %c0_i32_0 = arith.constant 0 : i32
    %c0_i32_1 = arith.constant 0 : i32
    return %c0_i32, %c0_i32_0 : i32, i32
  }
  func.func @transform_2(%arg0: i32) -> (i32, i32) {
    %c0_i32 = arith.constant 0 : i32
    %c0_i32_0 = arith.constant 0 : i32
    %c0_i32_1 = arith.constant 0 : i32
    return %c0_i32, %c0_i32_0 : i32, i32
  }
  func.func @transform_3(%arg0: i32) -> (i32, i32) {
    %c0_i32 = arith.constant 0 : i32
    %c0_i32_0 = arith.constant 0 : i32
    return %arg0, %c0_i32 : i32, i32
  }
}

module attributes {stable_mosaic.version = 11 : i64} {
  func.func @_matmul_bias_kernel(%arg0: i32, %arg1: memref<16x1152xbf16, #tpu.memory_space<vmem>>, %arg2: memref<1152x256xbf16, #tpu.memory_space<vmem>>, %arg3: memref<1x256xf32, #tpu.memory_space<vmem>>, %arg4: memref<16x256xf32, #tpu.memory_space<vmem>>) attributes {dimension_semantics = [#tpu.dimension_semantics<parallel>], iteration_bounds = array<i64: 1>, scalar_prefetch = 0 : i64, scratch_operands = 0 : i64, tpu.core_type = #tpu.core_type<tc>, window_params = [{transform_indices = @transform_0, window_bounds = array<i64: 16, 1152>}, {pipeline_mode = #tpu.pipeline_mode<synchronous>, transform_indices = @transform_1, window_bounds = array<i64: 1152, 256>}, {pipeline_mode = #tpu.pipeline_mode<synchronous>, transform_indices = @transform_2, window_bounds = array<i64: 1, 256>}, {transform_indices = @transform_3, window_bounds = array<i64: 16, 256>}]} {
    %c0 = arith.constant 0 : index
    %c0_0 = arith.constant 0 : index
    %0 = vector.load %arg1[%c0, %c0_0] : memref<16x1152xbf16, #tpu.memory_space<vmem>>, vector<16x1152xbf16>
    %c0_1 = arith.constant 0 : index
    %c0_2 = arith.constant 0 : index
    %1 = vector.load %arg2[%c0_1, %c0_2] : memref<1152x256xbf16, #tpu.memory_space<vmem>>, vector<1152x256xbf16>
    %cst = arith.constant dense<0.000000e+00> : vector<16x256xf32>
    %2 = tpu.matmul %0, %1, %cst {dimension_numbers = #tpu.dot_dimension_numbers<[1], [0], [0], [1], [0, 0, 1, 1], [], []>} : vector<16x1152xbf16>, vector<1152x256xbf16>, vector<16x256xf32> -> vector<16x256xf32>
    %c0_3 = arith.constant 0 : index
    %c0_4 = arith.constant 0 : index
    %3 = vector.load %arg3[%c0_3, %c0_4] : memref<1x256xf32, #tpu.memory_space<vmem>>, vector<1x256xf32>
    %4 = vector.broadcast %3 : vector<1x256xf32> to vector<16x256xf32>
    %5 = arith.addf %2, %4 : vector<16x256xf32>
    %cst_5 = arith.constant 0.000000e+00 : f32
    %6 = vector.broadcast %cst_5 : f32 to vector<16x256xf32>
    %7 = arith.maximumf %5, %6 : vector<16x256xf32>
    %c0_6 = arith.constant 0 : index
    %c0_7 = arith.constant 0 : index
    %8 = vector.load %arg4[%c0_6, %c0_7] : memref<16x256xf32, #tpu.memory_space<vmem>>, vector<16x256xf32>
    tpu.vector_store %arg4[%c0_6, %c0_7], %7 {strides = array<i32>} : memref<16x256xf32, #tpu.memory_space<vmem>>, vector<16x256xf32>,
    return
  }
  func.func @transform_0(%arg0: i32) -> (i32, i32) {
    %c0_i32 = arith.constant 0 : i32
    %c0_i32_0 = arith.constant 0 : i32
    return %arg0, %c0_i32 : i32, i32
  }
  func.func @transform_1(%arg0: i32) -> (i32, i32) {
    %c0_i32 = arith.constant 0 : i32
    %c0_i32_0 = arith.constant 0 : i32
    %c0_i32_1 = arith.constant 0 : i32
    return %c0_i32, %c0_i32_0 : i32, i32
  }
  func.func @transform_2(%arg0: i32) -> (i32, i32) {
    %c0_i32 = arith.constant 0 : i32
    %c0_i32_0 = arith.constant 0 : i32
    %c0_i32_1 = arith.constant 0 : i32
    return %c0_i32, %c0_i32_0 : i32, i32
  }
  func.func @transform_3(%arg0: i32) -> (i32, i32) {
    %c0_i32 = arith.constant 0 : i32
    %c0_i32_0 = arith.constant 0 : i32
    return %arg0, %c0_i32 : i32, i32
  }
}

module attributes {stable_mosaic.version = 11 : i64} {
  func.func @_head_kernel(%arg0: memref<2x8x256xf32, #tpu.memory_space<vmem>>, %arg1: memref<256x64xf32, #tpu.memory_space<vmem>>, %arg2: memref<1x64xf32, #tpu.memory_space<vmem>>, %arg3: memref<64x2xf32, #tpu.memory_space<vmem>>, %arg4: memref<1x2xf32, #tpu.memory_space<vmem>>, %arg5: memref<2x2xf32, #tpu.memory_space<vmem>>) attributes {dimension_semantics = [], scalar_prefetch = 0 : i64, scratch_operands = 0 : i64, tpu.core_type = #tpu.core_type<tc>} {
    %c0 = arith.constant 0 : index
    %c0_0 = arith.constant 0 : index
    %c0_1 = arith.constant 0 : index
    %0 = vector.load %arg0[%c0, %c0_0, %c0_1] : memref<2x8x256xf32, #tpu.memory_space<vmem>>, vector<2x8x256xf32>
    %cst = arith.constant dense<0.000000e+00> : vector<2x256xf32>
    %1 = vector.multi_reduction <add>, %0, %cst [1] : vector<2x8x256xf32> to vector<2x256xf32>
    %cst_2 = arith.constant 8.000000e+00 : f32
    %2 = vector.broadcast %cst_2 : f32 to vector<2x256xf32>
    %3 = arith.divf %1, %2 : vector<2x256xf32>
    %c0_3 = arith.constant 0 : index
    %c0_4 = arith.constant 0 : index
    %4 = vector.load %arg1[%c0_3, %c0_4] : memref<256x64xf32, #tpu.memory_space<vmem>>, vector<256x64xf32>
    %cst_5 = arith.constant dense<0.000000e+00> : vector<2x64xf32>
    %5 = tpu.matmul %3, %4, %cst_5 {dimension_numbers = #tpu.dot_dimension_numbers<[1], [0], [0], [1], [0, 0, 1, 1], [], []>} : vector<2x256xf32>, vector<256x64xf32>, vector<2x64xf32> -> vector<2x64xf32>
    %c0_6 = arith.constant 0 : index
    %c0_7 = arith.constant 0 : index
    %6 = vector.load %arg2[%c0_6, %c0_7] : memref<1x64xf32, #tpu.memory_space<vmem>>, vector<1x64xf32>
    %7 = vector.broadcast %6 : vector<1x64xf32> to vector<2x64xf32>
    %8 = arith.addf %5, %7 : vector<2x64xf32>
    %cst_8 = arith.constant 0.000000e+00 : f32
    %9 = vector.broadcast %cst_8 : f32 to vector<2x64xf32>
    %10 = arith.maximumf %8, %9 : vector<2x64xf32>
    %c0_9 = arith.constant 0 : index
    %c0_10 = arith.constant 0 : index
    %11 = vector.load %arg3[%c0_9, %c0_10] : memref<64x2xf32, #tpu.memory_space<vmem>>, vector<64x2xf32>
    %cst_11 = arith.constant dense<0.000000e+00> : vector<2x2xf32>
    %12 = tpu.matmul %10, %11, %cst_11 {dimension_numbers = #tpu.dot_dimension_numbers<[1], [0], [0], [1], [0, 0, 1, 1], [], []>} : vector<2x64xf32>, vector<64x2xf32>, vector<2x2xf32> -> vector<2x2xf32>
    %c0_12 = arith.constant 0 : index
    %c0_13 = arith.constant 0 : index
    %13 = vector.load %arg4[%c0_12, %c0_13] : memref<1x2xf32, #tpu.memory_space<vmem>>, vector<1x2xf32>
    %14 = vector.broadcast %13 : vector<1x2xf32> to vector<2x2xf32>
    %15 = arith.addf %12, %14 : vector<2x2xf32>
    %c0_14 = arith.constant 0 : index
    %c0_15 = arith.constant 0 : index
    %16 = vector.load %arg5[%c0_14, %c0_15] : memref<2x2xf32, #tpu.memory_space<vmem>>, vector<2x2xf32>
    tpu.vector_store %arg5[%c0_14, %c0_15], %15 {strides = array<i32>} : memref<2x2xf32, #tpu.memory_space<vmem>>, vector<2x2xf32>,
    return
  }
}

</mosaic_0001>

<llo_original>
// kernel: pupilnet_v2_forward.7
$region0: #{pupilnet_v2_forward.7}
  #allocation0 [shape = 'u32[]', space=smem, size = 0x4, offset = 0x4, fixed_abs, tag = 'smem constant byte address 0x4 - core index']
  #allocation1 [shape = 'u32[144,128]{1,0:T(1,128)}', space=vmem, size = 0x12000, scoped, tag = 'internal scratch']
  %s0 = inlined_call_operand.vmem [shape: bf16[29704,9], index: 0, kind: input, shape index: {}]
  %s1 = inlined_call_operand.vmem [shape: bf16[9,8], index: 1, kind: input, shape index: {}]
  %s2 = inlined_call_operand.vmem [shape: f32[1,8], index: 2, kind: input, shape index: {}]
  %s3 = inlined_call_operand.vmem [shape: f32[29704,8], index: 3, kind: output, shape index: {}]
  %s4 = sld [smem:[#allocation0]]
  $region93: #{pupilnet_v2_forward.7} parent=0
    _
  %s6 = ssub.s32 1, %s4
  %s7 = scalar_select 0, %s6, %s4
  $region1: #{pupilnet_v2_forward.7} parent=0
    #allocation2 [shape = 'u8[1048576]{0}', space=vmem, size = 0x100000, scoped, tag = 'output window, operand 0']
    loop: start=0, step=1, limit=32
    $region2: #{pupilnet_v2_forward.7} parent=1 // loop_pre_header
      _
    $region3: #{pupilnet_v2_forward.7} parent=1 // loop_header
      %s9 = sphi 0, %s13
      %p10 = scmp.ge.s32.totalorder %s9, 32
      %s19 = sphi 0, %s21
      %s22 = sphi 0, %s19
      %s23 = sphi 0, %s22
      %s39 = sphi 0, %s23
      %s43 = sphi 0, %s43
      %s45 = sphi 0, %s43
      %s46 = sphi 0, %s45
      %s60 = sphi 0, %s46
      %s64 = sphi 0, %s64
      %s66 = sphi 0, %s64
      %s67 = sphi 0, %s66
      %s81 = sphi 0, %s67
      %s87 = sphi 0, %s89
      %s90 = sphi 0, %s87
      %s91 = sphi 0, %s90
      %s107 = sphi 0, %s91
    $region4: #{pupilnet_v2_forward.7} parent=1 // loop_header_branch
      %12 = sbr.rel (%p10) target = $region8
    $region5: #{pupilnet_v2_forward.7} parent=1 // loop_body
      %s14 = ssub.s32 %s9, 1
      %s15 = ssub.s32 %s9, 2
      %s16 = sadd.s32 %s9, 1
      %s17 = ssub.s32 %s9, %s16
      %p18 = scmp.eq.s32.totalorder %s17, 0
      %s20 = sadd.s32 %s19, 1
      %s21 = scalar_select %p18, %s19, %s20
      %p24 = pneg %p18
      %p25 = scmp.eq.s32.totalorder %s9, 29
      %p26 = por %p24, %p25
      %p27 = scmp.ne.s32.totalorder %s19, %s22
      %p28 = scmp.eq.s32.totalorder %s9, 0
      %p29 = por %p27, %p28
      %p30 = scmp.ne.s32.totalorder %s19, %s22
      %p31 = scmp.eq.s32.totalorder %s14, 29
      %p32 = por %p30, %p31
      %p33 = scmp.ne.s32.totalorder %s22, %s23
      %p34 = scmp.eq.s32.totalorder %s14, 0
      %p35 = por %p33, %p34
      %p36 = scmp.ne.s32.totalorder %s22, %s23
      %p37 = scmp.eq.s32.totalorder %s15, 29
      %p38 = por %p36, %p37
      %p40 = scmp.ne.s32.totalorder %s23, %s39
      %p41 = scmp.eq.s32.totalorder %s15, 0
      %p42 = por %p40, %p41
      %s44 = sadd.s32 %s43, 1
      %p47 = scmp.eq.s32.totalorder %s9, 29
      %p48 = scmp.ne.s32.totalorder %s43, %s45
      %p49 = scmp.eq.s32.totalorder %s9, 0
      %p50 = por %p48, %p49
      %p51 = scmp.ne.s32.totalorder %s43, %s45
      %p52 = scmp.eq.s32.totalorder %s14, 29
      %p53 = por %p51, %p52
      %p54 = scmp.ne.s32.totalorder %s45, %s46
      %p55 = scmp.eq.s32.totalorder %s14, 0
      %p56 = por %p54, %p55
      %p57 = scmp.ne.s32.totalorder %s45, %s46
      %p58 = scmp.eq.s32.totalorder %s15, 29
      %p59 = por %p57, %p58
      %p61 = scmp.ne.s32.totalorder %s46, %s60
      %p62 = scmp.eq.s32.totalorder %s15, 0
      %p63 = por %p61, %p62
      %s65 = sadd.s32 %s64, 1
      %p68 = scmp.eq.s32.totalorder %s9, 29
      %p69 = scmp.ne.s32.totalorder %s64, %s66
      %p70 = scmp.eq.s32.totalorder %s9, 0
      %p71 = por %p69, %p70
      %p72 = scmp.ne.s32.totalorder %s64, %s66
      %p73 = scmp.eq.s32.totalorder %s14, 29
      %p74 = por %p72, %p73
      %p75 = scmp.ne.s32.totalorder %s66, %s67
      %p76 = scmp.eq.s32.totalorder %s14, 0
      %p77 = por %p75, %p76
      %p78 = scmp.ne.s32.totalorder %s66, %s67
      %p79 = scmp.eq.s32.totalorder %s15, 29
      %p80 = por %p78, %p79
      %p82 = scmp.ne.s32.totalorder %s67, %s81
      %p83 = scmp.eq.s32.totalorder %s15, 0
      %p84 = por %p82, %p83
      %s85 = ssub.s32 %s9, %s16
      %p86 = scmp.eq.s32.totalorder %s85, 0
      %s88 = sadd.s32 %s87, 1
      %s89 = scalar_select %p86, %s87, %s88
      %p92 = pneg %p86
      %p93 = scmp.eq.s32.totalorder %s9, 29
      %p94 = por %p92, %p93
      %p95 = scmp.ne.s32.totalorder %s87, %s90
      %p96 = scmp.eq.s32.totalorder %s9, 0
      %p97 = por %p95, %p96
      %p98 = scmp.ne.s32.totalorder %s87, %s90
      %p99 = scmp.eq.s32.totalorder %s14, 29
      %p100 = por %p98, %p99
      %p101 = scmp.ne.s32.totalorder %s90, %s91
      %p102 = scmp.eq.s32.totalorder %s14, 0
      %p103 = por %p101, %p102
      %p104 = scmp.ne.s32.totalorder %s90, %s91
      %p105 = scmp.eq.s32.totalorder %s15, 29
      %p106 = por %p104, %p105
      %p108 = scmp.ne.s32.totalorder %s91, %s107
      %p109 = scmp.eq.s32.totalorder %s15, 0
      %p110 = por %p108, %p109
      %p111 = scmp.le.s32.totalorder 1, %s9
      %p112 = scmp.lt.s32.totalorder %s9, 31
      %p113 = pnand %p111, %p112
      %p114 = pneg %p113
      // Predicated region
      $region9: #{pupilnet_v2_forward.7} parent=5 // pred_check
        _
      $region10: #{pupilnet_v2_forward.7} parent=5 // pred_check_branch
        %116 = sbr.rel (%p113) target = $region12
      $region11: #{pupilnet_v2_forward.7} parent=5 // pred_region
        %s117 = ssub.s32 %s9, 1
        // Predicated region
        $region13: #{pupilnet_v2_forward.7} parent=11 // pred_check
          %p118 = pneg %p56
        $region14: #{pupilnet_v2_forward.7} parent=11 // pred_check_branch
          %120 = sbr.rel (%p118) target = $region16
        $region15: #{pupilnet_v2_forward.7} parent=11 // pred_region
          _
        $region16: #{pupilnet_v2_forward.7} parent=11 // pred_fallthru
          _
        // Predicated region
        $region17: #{pupilnet_v2_forward.7} parent=11 // pred_check
          %p121 = pneg %p77
        $region18: #{pupilnet_v2_forward.7} parent=11 // pred_check_branch
          %123 = sbr.rel (%p121) target = $region20
        $region19: #{pupilnet_v2_forward.7} parent=11 // pred_region
          _
        $region20: #{pupilnet_v2_forward.7} parent=11 // pred_fallthru
          _
      $region12: #{pupilnet_v2_forward.7} parent=5 // pred_fallthru
        _
      %p124 = scmp.lt.s32.totalorder %s9, 30
      // Predicated region
      $region21: #{pupilnet_v2_forward.7} parent=5 // pred_check
        %p125 = pneg %p124
      $region22: #{pupilnet_v2_forward.7} parent=5 // pred_check_branch
        %127 = sbr.rel (%p125) target = $region24
      $region23: #{pupilnet_v2_forward.7} parent=5 // pred_region
        // Predicated region
        $region25: #{pupilnet_v2_forward.7} parent=23 // pred_check
          %p128 = pneg %p29
        $region26: #{pupilnet_v2_forward.7} parent=23 // pred_check_branch
          %130 = sbr.rel (%p128) target = $region28
        $region27: #{pupilnet_v2_forward.7} parent=23 // pred_region
          %s131 = smul.u32 128, %s9
          %s132 = ssub.s32 3713, %s131
          %p133 = scmp.lt.s32.totalorder %s132, 128
          %s134 = scalar_select %p133, %s132, 128
          %s135 = smul.u32 64, %s134
          %p136 = scmp.lt.s32.totalorder %s131, 3712
          %s137 = scalar_select %p136, %s131, 3712
          %s138 = smul.addr %s137, 4
          %s139 = scalar_lea.vmem %s0, %s138
          %s140 = smul.u32 128, %s9
          %s141 = ssub.s32 3713, %s140
          %p142 = scmp.lt.s32.totalorder %s141, 128
          %s143 = scalar_select %p142, %s141, 128
          %s144 = smul.u32 64, %s143
        $region28: #{pupilnet_v2_forward.7} parent=23 // pred_fallthru
          _
      $region24: #{pupilnet_v2_forward.7} parent=5 // pred_fallthru
        _
      %p145 = scmp.le.s32.totalorder 1, %s9
      %p146 = scmp.lt.s32.totalorder %s9, 31
      %p147 = pnand %p145, %p146
      %p148 = pneg %p147
      // Predicated region
      $region29: #{pupilnet_v2_forward.7} parent=5 // pred_check
        _
      $region30: #{pupilnet_v2_forward.7} parent=5 // pred_check_branch
        %150 = sbr.rel (%p147) target = $region32
      $region31: #{pupilnet_v2_forward.7} parent=5 // pred_region
        %s151 = ssub.s32 %s9, 1
        %s152 = smul.u32 128, %s14
        %s153 = ssub.s32 3713, %s152
        %p154 = scmp.lt.s32.totalorder %s153, 128
        %s155 = scalar_select %p154, %s153, 128
        %s156 = smul.u32 64, %s155
        %p157 = scmp.lt.s32.totalorder %s152, 3712
        %s158 = scalar_select %p157, %s152, 3712
        %s159 = smul.addr %s158, 4
        %s160 = scalar_lea.vmem %s0, %s159
        %p161 = pneg %p35
        %p162 = pneg %p32
        %p163 = pneg %p56
        %p164 = pneg %p53
        %p165 = pneg %p77
        %p166 = pneg %p74
        %p167 = pneg %p103
        %p168 = pneg %p100
        %s169 = sand.u32 %s90, 1
        %s170 = sand.u32 %s90, 1
        %s171 = smul.addr %s170, 1024
        %s172 = scalar_lea.vmem [#allocation2], %s171
        %s173 = smul.u32 128, %s14
        %s174 = ssub.s32 3713, %s173
        %p175 = scmp.lt.s32.totalorder %s174, 128
        %s176 = scalar_select %p175, %s174, 128
        %s177 = smul.u32 64, %s176
        %p178 = scmp.lt.s32.totalorder %s173, 3712
        %s179 = scalar_select %p178, %s173, 3712
        %s180 = smul.addr %s179, 4
        %s181 = scalar_lea.vmem %s0, %s180
        %s182 = smul.u32 128, %s14
        %s183 = ssub.s32 3713, %s182
        %p184 = scmp.lt.s32.totalorder %s183, 128
        %s185 = scalar_select %p184, %s183, 128
        %s186 = smul.u32 64, %s185
        %s187 = smul.u32 128, %s14
        %s188 = ssub.s32 3713, %s187
        %p189 = scmp.lt.s32.totalorder %s188, 128
        %s190 = scalar_select %p189, %s188, 128
        %s191 = smul.u32 128, %s190
        %v193 = vld [vmem:[%s181] sm:$0xf]
        %v194 = vld [vmem:[%s181 + $0x4] sm:$0xf]
        %v195 = vld [vmem:[%s181 + $0x8] sm:$0xf]
        %v196 = vld [vmem:[%s181 + $0xc] sm:$0xf]
        %v197 = vld [vmem:[%s181 + $0x10] sm:$0xf]
        %v198 = vld [vmem:[%s181 + $0x14] sm:$0xf]
        %v199 = vld [vmem:[%s181 + $0x18] sm:$0xf]
        %v200 = vld [vmem:[%s181 + $0x1c] sm:$0xf]
        %v201 = vld [vmem:[%s181 + $0x20] sm:$0xf]
        %v202 = vld [vmem:[%s181 + $0x24] sm:$0xf]
        %v203 = vld [vmem:[%s181 + $0x28] sm:$0xf]
        %v204 = vld [vmem:[%s181 + $0x2c] sm:$0xf]
        %v205 = vld [vmem:[%s181 + $0x30] sm:$0xf]
        %v206 = vld [vmem:[%s181 + $0x34] sm:$0xf]
        %v207 = vld [vmem:[%s181 + $0x38] sm:$0xf]
        %v208 = vld [vmem:[%s181 + $0x3c] sm:$0xf]
        %v209 = vld [vmem:[%s181 + $0x40] sm:$0xf]
        %v210 = vld [vmem:[%s181 + $0x44] sm:$0xf]
        %v211 = vld [vmem:[%s181 + $0x48] sm:$0xf]
        %v212 = vld [vmem:[%s181 + $0x4c] sm:$0xf]
        %v213 = vld [vmem:[%s181 + $0x50] sm:$0xf]
        %v214 = vld [vmem:[%s181 + $0x54] sm:$0xf]
        %v215 = vld [vmem:[%s181 + $0x58] sm:$0xf]
        %v216 = vld [vmem:[%s181 + $0x5c] sm:$0xf]
        %v217 = vld [vmem:[%s181 + $0x60] sm:$0xf]
        %v218 = vld [vmem:[%s181 + $0x64] sm:$0xf]
        %v219 = vld [vmem:[%s181 + $0x68] sm:$0xf]
        %v220 = vld [vmem:[%s181 + $0x6c] sm:$0xf]
        %v221 = vld [vmem:[%s181 + $0x70] sm:$0xf]
        %v222 = vld [vmem:[%s181 + $0x74] sm:$0xf]
        %v223 = vld [vmem:[%s181 + $0x78] sm:$0xf]
        %v224 = vld [vmem:[%s181 + $0x7c] sm:$0xf]
        %v225 = vld [vmem:[%s181 + $0x80] sm:$0xf]
        %v226 = vld [vmem:[%s181 + $0x84] sm:$0xf]
        %v227 = vld [vmem:[%s181 + $0x88] sm:$0xf]
        %v228 = vld [vmem:[%s181 + $0x8c] sm:$0xf]
        %v229 = vld [vmem:[%s181 + $0x90] sm:$0xf]
        %v230 = vld [vmem:[%s181 + $0x94] sm:$0xf]
        %v231 = vld [vmem:[%s181 + $0x98] sm:$0xf]
        %v232 = vld [vmem:[%s181 + $0x9c] sm:$0xf]
        %v233 = vld [vmem:[%s181 + $0xa0] sm:$0xf]
        %v234 = vld [vmem:[%s181 + $0xa4] sm:$0xf]
        %v235 = vld [vmem:[%s181 + $0xa8] sm:$0xf]
        %v236 = vld [vmem:[%s181 + $0xac] sm:$0xf]
        %v237 = vld [vmem:[%s181 + $0xb0] sm:$0xf]
        %v238 = vld [vmem:[%s181 + $0xb4] sm:$0xf]
        %v239 = vld [vmem:[%s181 + $0xb8] sm:$0xf]
        %v240 = vld [vmem:[%s181 + $0xbc] sm:$0xf]
        %v241 = vld [vmem:[%s181 + $0xc0] sm:$0xf]
        %v242 = vld [vmem:[%s181 + $0xc4] sm:$0xf]
        %v243 = vld [vmem:[%s181 + $0xc8] sm:$0xf]
        %v244 = vld [vmem:[%s181 + $0xcc] sm:$0xf]
        %v245 = vld [vmem:[%s181 + $0xd0] sm:$0xf]
        %v246 = vld [vmem:[%s181 + $0xd4] sm:$0xf]
        %v247 = vld [vmem:[%s181 + $0xd8] sm:$0xf]
        %v248 = vld [vmem:[%s181 + $0xdc] sm:$0xf]
        %v249 = vld [vmem:[%s181 + $0xe0] sm:$0xf]
        %v250 = vld [vmem:[%s181 + $0xe4] sm:$0xf]
        %v251 = vld [vmem:[%s181 + $0xe8] sm:$0xf]
        %v252 = vld [vmem:[%s181 + $0xec] sm:$0xf]
        %v253 = vld [vmem:[%s181 + $0xf0] sm:$0xf]
        %v254 = vld [vmem:[%s181 + $0xf4] sm:$0xf]
        %v255 = vld [vmem:[%s181 + $0xf8] sm:$0xf]
        %v256 = vld [vmem:[%s181 + $0xfc] sm:$0xf]
        %v257 = vld [vmem:[%s181 + $0x100] sm:$0xf]
        %v258 = vld [vmem:[%s181 + $0x104] sm:$0xf]
        %v259 = vld [vmem:[%s181 + $0x108] sm:$0xf]
        %v260 = vld [vmem:[%s181 + $0x10c] sm:$0xf]
        %v261 = vld [vmem:[%s181 + $0x110] sm:$0xf]
        %v262 = vld [vmem:[%s181 + $0x114] sm:$0xf]
        %v263 = vld [vmem:[%s181 + $0x118] sm:$0xf]
        %v264 = vld [vmem:[%s181 + $0x11c] sm:$0xf]
        %v265 = vld [vmem:[%s181 + $0x120] sm:$0xf]
        %v266 = vld [vmem:[%s181 + $0x124] sm:$0xf]
        %v267 = vld [vmem:[%s181 + $0x128] sm:$0xf]
        %v268 = vld [vmem:[%s181 + $0x12c] sm:$0xf]
        %v269 = vld [vmem:[%s181 + $0x130] sm:$0xf]
        %v270 = vld [vmem:[%s181 + $0x134] sm:$0xf]
        %v271 = vld [vmem:[%s181 + $0x138] sm:$0xf]
        %v272 = vld [vmem:[%s181 + $0x13c] sm:$0xf]
        %v273 = vld [vmem:[%s181 + $0x140] sm:$0xf]
        %v274 = vld [vmem:[%s181 + $0x144] sm:$0xf]
        %v275 = vld [vmem:[%s181 + $0x148] sm:$0xf]
        %v276 = vld [vmem:[%s181 + $0x14c] sm:$0xf]
        %v277 = vld [vmem:[%s181 + $0x150] sm:$0xf]
        %v278 = vld [vmem:[%s181 + $0x154] sm:$0xf]
        %v279 = vld [vmem:[%s181 + $0x158] sm:$0xf]
        %v280 = vld [vmem:[%s181 + $0x15c] sm:$0xf]
        %v281 = vld [vmem:[%s181 + $0x160] sm:$0xf]
        %v282 = vld [vmem:[%s181 + $0x164] sm:$0xf]
        %v283 = vld [vmem:[%s181 + $0x168] sm:$0xf]
        %v284 = vld [vmem:[%s181 + $0x16c] sm:$0xf]
        %v285 = vld [vmem:[%s181 + $0x170] sm:$0xf]
        %v286 = vld [vmem:[%s181 + $0x174] sm:$0xf]
        %v287 = vld [vmem:[%s181 + $0x178] sm:$0xf]
        %v288 = vld [vmem:[%s181 + $0x17c] sm:$0xf]
        %v289 = vld [vmem:[%s181 + $0x180] sm:$0xf]
        %v290 = vld [vmem:[%s181 + $0x184] sm:$0xf]
        %v291 = vld [vmem:[%s181 + $0x188] sm:$0xf]
        %v292 = vld [vmem:[%s181 + $0x18c] sm:$0xf]
        %v293 = vld [vmem:[%s181 + $0x190] sm:$0xf]
        %v294 = vld [vmem:[%s181 + $0x194] sm:$0xf]
        %v295 = vld [vmem:[%s181 + $0x198] sm:$0xf]
        %v296 = vld [vmem:[%s181 + $0x19c] sm:$0xf]
        %v297 = vld [vmem:[%s181 + $0x1a0] sm:$0xf]
        %v298 = vld [vmem:[%s181 + $0x1a4] sm:$0xf]
        %v299 = vld [vmem:[%s181 + $0x1a8] sm:$0xf]
        %v300 = vld [vmem:[%s181 + $0x1ac] sm:$0xf]
        %v301 = vld [vmem:[%s181 + $0x1b0] sm:$0xf]
        %v302 = vld [vmem:[%s181 + $0x1b4] sm:$0xf]
        %v303 = vld [vmem:[%s181 + $0x1b8] sm:$0xf]
        %v304 = vld [vmem:[%s181 + $0x1bc] sm:$0xf]
        %v305 = vld [vmem:[%s181 + $0x1c0] sm:$0xf]
        %v306 = vld [vmem:[%s181 + $0x1c4] sm:$0xf]
        %v307 = vld [vmem:[%s181 + $0x1c8] sm:$0xf]
        %v308 = vld [vmem:[%s181 + $0x1cc] sm:$0xf]
        %v309 = vld [vmem:[%s181 + $0x1d0] sm:$0xf]
        %v310 = vld [vmem:[%s181 + $0x1d4] sm:$0xf]
        %v311 = vld [vmem:[%s181 + $0x1d8] sm:$0xf]
        %v312 = vld [vmem:[%s181 + $0x1dc] sm:$0xf]
        %v313 = vld [vmem:[%s181 + $0x1e0] sm:$0xf]
        %v314 = vld [vmem:[%s181 + $0x1e4] sm:$0xf]
        %v315 = vld [vmem:[%s181 + $0x1e8] sm:$0xf]
        %v316 = vld [vmem:[%s181 + $0x1ec] sm:$0xf]
        %v317 = vld [vmem:[%s181 + $0x1f0] sm:$0xf]
        %v318 = vld [vmem:[%s181 + $0x1f4] sm:$0xf]
        %v319 = vld [vmem:[%s181 + $0x1f8] sm:$0xf]
        %v320 = vld [vmem:[%s181 + $0x1fc] sm:$0xf]
        %v321 = vld [vmem:[%s1] sm:$0xf]
        %v322 = vld [vmem:[%s1 + $0x4] sm:$0x1]
        %v323 = vld [vmem:[%s2] sm:$0x1]
        %v325 = vlaneseq
        %v326 = vshrl.u32 %v325, 7
        %v327 = vsub.s32 0, %v326
        %v328 = vrot.slane %v323, %v327
        %v458 = vunpack.c.l.b16 %v193
        %v459 = vunpack.c.l.b16 %v194
        %v460 = vunpack.c.l.b16 %v195
        %v461 = vunpack.c.l.b16 %v196
        %v462 = vunpack.c.l.b16 %v197
        %v463 = vunpack.c.l.b16 %v198
        %v464 = vunpack.c.l.b16 %v199
        %v465 = vunpack.c.l.b16 %v200
        %v466 = vunpack.c.l.b16 %v201
        %v467 = vunpack.c.l.b16 %v202
        %v468 = vunpack.c.l.b16 %v203
        %v469 = vunpack.c.l.b16 %v204
        %v470 = vunpack.c.l.b16 %v205
        %v471 = vunpack.c.l.b16 %v206
        %v472 = vunpack.c.l.b16 %v207
        %v473 = vunpack.c.l.b16 %v208
        %v474 = vunpack.c.l.b16 %v209
        %v475 = vunpack.c.l.b16 %v210
        %v476 = vunpack.c.l.b16 %v211
        %v477 = vunpack.c.l.b16 %v212
        %v478 = vunpack.c.l.b16 %v213
        %v479 = vunpack.c.l.b16 %v214
        %v480 = vunpack.c.l.b16 %v215
        %v481 = vunpack.c.l.b16 %v216
        %v482 = vunpack.c.l.b16 %v217
        %v483 = vunpack.c.l.b16 %v218
        %v484 = vunpack.c.l.b16 %v219
        %v485 = vunpack.c.l.b16 %v220
        %v486 = vunpack.c.l.b16 %v221
        %v487 = vunpack.c.l.b16 %v222
        %v488 = vunpack.c.l.b16 %v223
        %v489 = vunpack.c.l.b16 %v224
        %v490 = vunpack.c.l.b16 %v225
        %v491 = vunpack.c.l.b16 %v226
        %v492 = vunpack.c.l.b16 %v227
        %v493 = vunpack.c.l.b16 %v228
        %v494 = vunpack.c.l.b16 %v229
        %v495 = vunpack.c.l.b16 %v230
        %v496 = vunpack.c.l.b16 %v231
        %v497 = vunpack.c.l.b16 %v232
        %v498 = vunpack.c.l.b16 %v233
        %v499 = vunpack.c.l.b16 %v234
        %v500 = vunpack.c.l.b16 %v235
        %v501 = vunpack.c.l.b16 %v236
        %v502 = vunpack.c.l.b16 %v237
        %v503 = vunpack.c.l.b16 %v238
        %v504 = vunpack.c.l.b16 %v239
        %v505 = vunpack.c.l.b16 %v240
        %v506 = vunpack.c.l.b16 %v241
        %v507 = vunpack.c.l.b16 %v242
        %v508 = vunpack.c.l.b16 %v243
        %v509 = vunpack.c.l.b16 %v244
        %v510 = vunpack.c.l.b16 %v245
        %v511 = vunpack.c.l.b16 %v246
        %v512 = vunpack.c.l.b16 %v247
        %v513 = vunpack.c.l.b16 %v248
        %v514 = vunpack.c.l.b16 %v249
        %v515 = vunpack.c.l.b16 %v250
        %v516 = vunpack.c.l.b16 %v251
        %v517 = vunpack.c.l.b16 %v252
        %v518 = vunpack.c.l.b16 %v253
        %v519 = vunpack.c.l.b16 %v254
        %v520 = vunpack.c.l.b16 %v255
        %v521 = vunpack.c.l.b16 %v256
        %v522 = vunpack.c.l.b16 %v257
        %v523 = vunpack.c.l.b16 %v258
        %v524 = vunpack.c.l.b16 %v259
        %v525 = vunpack.c.l.b16 %v260
        %v526 = vunpack.c.l.b16 %v261
        %v527 = vunpack.c.l.b16 %v262
        %v528 = vunpack.c.l.b16 %v263
        %v529 = vunpack.c.l.b16 %v264
        %v530 = vunpack.c.l.b16 %v265
        %v531 = vunpack.c.l.b16 %v266
        %v532 = vunpack.c.l.b16 %v267
        %v533 = vunpack.c.l.b16 %v268
        %v534 = vunpack.c.l.b16 %v269
        %v535 = vunpack.c.l.b16 %v270
        %v536 = vunpack.c.l.b16 %v271
        %v537 = vunpack.c.l.b16 %v272
        %v538 = vunpack.c.l.b16 %v273
        %v539 = vunpack.c.l.b16 %v274
        %v540 = vunpack.c.l.b16 %v275
        %v541 = vunpack.c.l.b16 %v276
        %v542 = vunpack.c.l.b16 %v277
        %v543 = vunpack.c.l.b16 %v278
        %v544 = vunpack.c.l.b16 %v279
        %v545 = vunpack.c.l.b16 %v280
        %v546 = vunpack.c.l.b16 %v281
        %v547 = vunpack.c.l.b16 %v282
        %v548 = vunpack.c.l.b16 %v283
        %v549 = vunpack.c.l.b16 %v284
        %v550 = vunpack.c.l.b16 %v285
        %v551 = vunpack.c.l.b16 %v286
        %v552 = vunpack.c.l.b16 %v287
        %v553 = vunpack.c.l.b16 %v288
        %v554 = vunpack.c.l.b16 %v289
        %v555 = vunpack.c.l.b16 %v290
        %v556 = vunpack.c.l.b16 %v291
        %v557 = vunpack.c.l.b16 %v292
        %v558 = vunpack.c.l.b16 %v293
        %v559 = vunpack.c.l.b16 %v294
        %v560 = vunpack.c.l.b16 %v295
        %v561 = vunpack.c.l.b16 %v296
        %v562 = vunpack.c.l.b16 %v297
        %v563 = vunpack.c.l.b16 %v298
        %v564 = vunpack.c.l.b16 %v299
        %v565 = vunpack.c.l.b16 %v300
        %v566 = vunpack.c.l.b16 %v301
        %v567 = vunpack.c.l.b16 %v302
        %v568 = vunpack.c.l.b16 %v303
        %v569 = vunpack.c.l.b16 %v304
        %v570 = vunpack.c.l.b16 %v305
        %v571 = vunpack.c.l.b16 %v306
        %v572 = vunpack.c.l.b16 %v307
        %v573 = vunpack.c.l.b16 %v308
        %v574 = vunpack.c.l.b16 %v309
        %v575 = vunpack.c.l.b16 %v310
        %v576 = vunpack.c.l.b16 %v311
        %v577 = vunpack.c.l.b16 %v312
        %v578 = vunpack.c.l.b16 %v313
        %v579 = vunpack.c.l.b16 %v314
        %v580 = vunpack.c.l.b16 %v315
        %v581 = vunpack.c.l.b16 %v316
        %v582 = vunpack.c.l.b16 %v317
        %v583 = vunpack.c.l.b16 %v318
        %v584 = vunpack.c.l.b16 %v319
        %v585 = vunpack.c.l.b16 %v320
        %v586 = vpack.c.b16 %v459, %v458
        %v587 = vpack.c.b16 %v461, %v460
        %v588 = vpack.c.b16 %v463, %v462
        %v589 = vpack.c.b16 %v465, %v464
        %v590 = vpack.c.b16 %v467, %v466
        %v591 = vpack.c.b16 %v469, %v468
        %v592 = vpack.c.b16 %v471, %v470
        %v593 = vpack.c.b16 %v473, %v472
        %v594 = vpack.c.b16 %v475, %v474
        %v595 = vpack.c.b16 %v477, %v476
        %v596 = vpack.c.b16 %v479, %v478
        %v597 = vpack.c.b16 %v481, %v480
        %v598 = vpack.c.b16 %v483, %v482
        %v599 = vpack.c.b16 %v485, %v484
        %v600 = vpack.c.b16 %v487, %v486
        %v601 = vpack.c.b16 %v489, %v488
        %v602 = vpack.c.b16 %v491, %v490
        %v603 = vpack.c.b16 %v493, %v492
        %v604 = vpack.c.b16 %v495, %v494
        %v605 = vpack.c.b16 %v497, %v496
        %v606 = vpack.c.b16 %v499, %v498
        %v607 = vpack.c.b16 %v501, %v500
        %v608 = vpack.c.b16 %v503, %v502
        %v609 = vpack.c.b16 %v505, %v504
        %v610 = vpack.c.b16 %v507, %v506
        %v611 = vpack.c.b16 %v509, %v508
        %v612 = vpack.c.b16 %v511, %v510
        %v613 = vpack.c.b16 %v513, %v512
        %v614 = vpack.c.b16 %v515, %v514
        %v615 = vpack.c.b16 %v517, %v516
        %v616 = vpack.c.b16 %v519, %v518
        %v617 = vpack.c.b16 %v521, %v520
        %v618 = vpack.c.b16 %v523, %v522
        %v619 = vpack.c.b16 %v525, %v524
        %v620 = vpack.c.b16 %v527, %v526
        %v621 = vpack.c.b16 %v529, %v528
        %v622 = vpack.c.b16 %v531, %v530
        %v623 = vpack.c.b16 %v533, %v532
        %v624 = vpack.c.b16 %v535, %v534
        %v625 = vpack.c.b16 %v537, %v536
        %v626 = vpack.c.b16 %v539, %v538
        %v627 = vpack.c.b16 %v541, %v540
        %v628 = vpack.c.b16 %v543, %v542
        %v629 = vpack.c.b16 %v545, %v544
        %v630 = vpack.c.b16 %v547, %v546
        %v631 = vpack.c.b16 %v549, %v548
        %v632 = vpack.c.b16 %v551, %v550
        %v633 = vpack.c.b16 %v553, %v552
        %v634 = vpack.c.b16 %v555, %v554
        %v635 = vpack.c.b16 %v557, %v556
        %v636 = vpack.c.b16 %v559, %v558
        %v637 = vpack.c.b16 %v561, %v560
        %v638 = vpack.c.b16 %v563, %v562
        %v639 = vpack.c.b16 %v565, %v564
        %v640 = vpack.c.b16 %v567, %v566
        %v641 = vpack.c.b16 %v569, %v568
        %v642 = vpack.c.b16 %v571, %v570
        %v643 = vpack.c.b16 %v573, %v572
        %v644 = vpack.c.b16 %v575, %v574
        %v645 = vpack.c.b16 %v577, %v576
        %v646 = vpack.c.b16 %v579, %v578
        %v647 = vpack.c.b16 %v581, %v580
        %v648 = vpack.c.b16 %v583, %v582
        %v649 = vpack.c.b16 %v585, %v584
        %v652 = vunpack.c.l.b16 %v321
        %v653 = vunpack.c.l.b16 %v322
        %v654 = vpack.c.b16 %v653, %v652
        %vm655 = vcmask 72704
        %v657 = vsel %vm655, %v586, 0
        %v660 = vsel %vm655, %v587, 0
        %v663 = vsel %vm655, %v588, 0
        %v666 = vsel %vm655, %v589, 0
        %v669 = vsel %vm655, %v590, 0
        %v672 = vsel %vm655, %v591, 0
        %v675 = vsel %vm655, %v592, 0
        %v678 = vsel %vm655, %v593, 0
        %v681 = vsel %vm655, %v594, 0
        %v684 = vsel %vm655, %v595, 0
        %v687 = vsel %vm655, %v596, 0
        %v690 = vsel %vm655, %v597, 0
        %v693 = vsel %vm655, %v598, 0
        %v696 = vsel %vm655, %v599, 0
        %v699 = vsel %vm655, %v600, 0
        %v702 = vsel %vm655, %v601, 0
        %v705 = vsel %vm655, %v602, 0
        %v708 = vsel %vm655, %v603, 0
        %v711 = vsel %vm655, %v604, 0
        %v714 = vsel %vm655, %v605, 0
        %v717 = vsel %vm655, %v606, 0
        %v720 = vsel %vm655, %v607, 0
        %v723 = vsel %vm655, %v608, 0
        %v726 = vsel %vm655, %v609, 0
        %v729 = vsel %vm655, %v610, 0
        %v732 = vsel %vm655, %v611, 0
        %v735 = vsel %vm655, %v612, 0
        %v738 = vsel %vm655, %v613, 0
        %v741 = vsel %vm655, %v614, 0
        %v744 = vsel %vm655, %v615, 0
        %v747 = vsel %vm655, %v616, 0
        %v750 = vsel %vm655, %v617, 0
        %v753 = vsel %vm655, %v618, 0
        %v756 = vsel %vm655, %v619, 0
        %v759 = vsel %vm655, %v620, 0
        %v762 = vsel %vm655, %v621, 0
        %v765 = vsel %vm655, %v622, 0
        %v768 = vsel %vm655, %v623, 0
        %v771 = vsel %vm655, %v624, 0
        %v774 = vsel %vm655, %v625, 0
        %v777 = vsel %vm655, %v626, 0
        %v780 = vsel %vm655, %v627, 0
        %v783 = vsel %vm655, %v628, 0
        %v786 = vsel %vm655, %v629, 0
        %v789 = vsel %vm655, %v630, 0
        %v792 = vsel %vm655, %v631, 0
        %v795 = vsel %vm655, %v632, 0
        %v798 = vsel %vm655, %v633, 0
        %v801 = vsel %vm655, %v634, 0
        %v804 = vsel %vm655, %v635, 0
        %v807 = vsel %vm655, %v636, 0
        %v810 = vsel %vm655, %v637, 0
        %v813 = vsel %vm655, %v638, 0
        %v816 = vsel %vm655, %v639, 0
        %v819 = vsel %vm655, %v640, 0
        %v822 = vsel %vm655, %v641, 0
        %v825 = vsel %vm655, %v642, 0
        %v828 = vsel %vm655, %v643, 0
        %v831 = vsel %vm655, %v644, 0
        %v834 = vsel %vm655, %v645, 0
        %v837 = vsel %vm655, %v646, 0
        %v840 = vsel %vm655, %v647, 0
        %v843 = vsel %vm655, %v648, 0
        %v846 = vsel %vm655, %v649, 0
        %vm848 = vcmask 1043456
        %vm849 = vcmask 1044480
        %v850 = vsel %vm848, 4294967295, 65535
        %v851 = vsel %vm849, %v850, 0
        %v853 = vand.u32 %v654, %v851
        %855 = vmatprep.subr.bf16.mxu0 0
        %856 = vmatpush1.bf16.msra.mxu0 %v853
        %857 = vmatprep.subr.bf16.mxu0 0
        %858 = vmatpush1.bf16.msra.mxu0 0
        %859 = vmatprep.subr.bf16.mxu0 0
        %860 = vmatpush1.bf16.msra.mxu0 0
        %861 = vmatprep.subr.bf16.mxu0 0
        %862 = vmatpush1.bf16.msra.mxu0 0
        %863 = vmatprep.subr.bf16.mxu0 0
        %864 = vmatpush1.bf16.msra.mxu0 0
        %865 = vmatprep.subr.bf16.mxu0 0
        %866 = vmatpush1.bf16.msra.mxu0 0
        %867 = vmatprep.subr.bf16.mxu0 0
        %868 = vmatpush1.bf16.msra.mxu0 0
        %869 = vmatprep.subr.bf16.mxu0 0
        %870 = vmatpush1.bf16.msra.mxu0 0
        %871 = vmatprep.subr.bf16.mxu0 0
        %872 = vmatpush1.bf16.msra.mxu0 0
        %873 = vmatprep.subr.bf16.mxu0 0
        %874 = vmatpush1.bf16.msra.mxu0 0
        %875 = vmatprep.subr.bf16.mxu0 0
        %876 = vmatpush1.bf16.msra.mxu0 0
        %877 = vmatprep.subr.bf16.mxu0 0
        %878 = vmatpush1.bf16.msra.mxu0 0
        %879 = vmatprep.subr.bf16.mxu0 0
        %880 = vmatpush1.bf16.msra.mxu0 0
        %881 = vmatprep.subr.bf16.mxu0 0
        %882 = vmatpush1.bf16.msra.mxu0 0
        %883 = vmatprep.subr.bf16.mxu0 0
        %884 = vmatpush1.bf16.msra.mxu0 0
        %885 = vmatprep.subr.bf16.mxu0 0
        %886 = vmatpush1.bf16.msra.mxu0 0
        %887 = vmatprep.mubr.bf16.mxu0 0
        %888 = vmatmul.mubr.bf16.gmra.mrb[0].mxu0 %v657
        %v889 = vpop.f32.mrb[0].mxu0
        %v890 = vadd.f32 %v328, %v889
        %v891 = vpop.f32.mrb[0].mxu0
        %v892 = vpop.f32.mrb[0].mxu0
        %v893 = vadd.f32 %v328, %v892
        %v894 = vpop.f32.mrb[0].mxu0
        %895 = vmatprep.mubr.bf16.mxu0 0
        %896 = vmatmul.mubr.bf16.gmra.mrb[0].mxu0 %v660
        %v897 = vpop.f32.mrb[0].mxu0
        %v898 = vadd.f32 %v328, %v897
        %v899 = vpop.f32.mrb[0].mxu0
        %v900 = vpop.f32.mrb[0].mxu0
        %v901 = vadd.f32 %v328, %v900
        %v902 = vpop.f32.mrb[0].mxu0
        %903 = vmatprep.mubr.bf16.mxu0 0
        %904 = vmatmul.mubr.bf16.gmra.mrb[0].mxu0 %v663
        %v905 = vpop.f32.mrb[0].mxu0
        %v906 = vadd.f32 %v328, %v905
        %v907 = vpop.f32.mrb[0].mxu0
        %v908 = vpop.f32.mrb[0].mxu0
        %v909 = vadd.f32 %v328, %v908
        %v910 = vpop.f32.mrb[0].mxu0
        %911 = vmatprep.mubr.bf16.mxu0 0
        %912 = vmatmul.mubr.bf16.gmra.mrb[0].mxu0 %v666
        %v913 = vpop.f32.mrb[0].mxu0
        %v914 = vadd.f32 %v328, %v913
        %v915 = vpop.f32.mrb[0].mxu0
        %v916 = vpop.f32.mrb[0].mxu0
        %v917 = vadd.f32 %v328, %v916
        %v918 = vpop.f32.mrb[0].mxu0
        %919 = vmatprep.mubr.bf16.mxu0 0
        %920 = vmatmul.mubr.bf16.gmra.mrb[0].mxu0 %v669
        %v921 = vpop.f32.mrb[0].mxu0
        %v922 = vadd.f32 %v328, %v921
        %v923 = vpop.f32.mrb[0].mxu0
        %v924 = vpop.f32.mrb[0].mxu0
        %v925 = vadd.f32 %v328, %v924
        %v926 = vpop.f32.mrb[0].mxu0
        %927 = vmatprep.mubr.bf16.mxu0 0
        %928 = vmatmul.mubr.bf16.gmra.mrb[0].mxu0 %v672
        %v929 = vpop.f32.mrb[0].mxu0
        %v930 = vadd.f32 %v328, %v929
        %v931 = vpop.f32.mrb[0].mxu0
        %v932 = vpop.f32.mrb[0].mxu0
        %v933 = vadd.f32 %v328, %v932
        %v934 = vpop.f32.mrb[0].mxu0
        %935 = vmatprep.mubr.bf16.mxu0 0
        %936 = vmatmul.mubr.bf16.gmra.mrb[0].mxu0 %v675
        %v937 = vpop.f32.mrb[0].mxu0
        %v938 = vadd.f32 %v328, %v937
        %v939 = vpop.f32.mrb[0].mxu0
        %v940 = vpop.f32.mrb[0].mxu0
        %v941 = vadd.f32 %v328, %v940
        %v942 = vpop.f32.mrb[0].mxu0
        %943 = vmatprep.mubr.bf16.mxu0 0
        %944 = vmatmul.mubr.bf16.gmra.mrb[0].mxu0 %v678
        %v945 = vpop.f32.mrb[0].mxu0
        %v946 = vadd.f32 %v328, %v945
        %v947 = vpop.f32.mrb[0].mxu0
        %v948 = vpop.f32.mrb[0].mxu0
        %v949 = vadd.f32 %v328, %v948
        %v950 = vpop.f32.mrb[0].mxu0
        %951 = vmatprep.mubr.bf16.mxu0 0
        %952 = vmatmul.mubr.bf16.gmra.mrb[0].mxu0 %v681
        %v953 = vpop.f32.mrb[0].mxu0
        %v954 = vadd.f32 %v328, %v953
        %v955 = vpop.f32.mrb[0].mxu0
        %v956 = vpop.f32.mrb[0].mxu0
        %v957 = vadd.f32 %v328, %v956
        %v958 = vpop.f32.mrb[0].mxu0
        %959 = vmatprep.mubr.bf16.mxu0 0
        %960 = vmatmul.mubr.bf16.gmra.mrb[0].mxu0 %v684
        %v961 = vpop.f32.mrb[0].mxu0
        %v962 = vadd.f32 %v328, %v961
        %v963 = vpop.f32.mrb[0].mxu0
        %v964 = vpop.f32.mrb[0].mxu0
        %v965 = vadd.f32 %v328, %v964
        %v966 = vpop.f32.mrb[0].mxu0
        %967 = vmatprep.mubr.bf16.mxu0 0
        %968 = vmatmul.mubr.bf16.gmra.mrb[0].mxu0 %v687
        %v969 = vpop.f32.mrb[0].mxu0
        %v970 = vadd.f32 %v328, %v969
        %v971 = vpop.f32.mrb[0].mxu0
        %v972 = vpop.f32.mrb[0].mxu0
        %v973 = vadd.f32 %v328, %v972
        %v974 = vpop.f32.mrb[0].mxu0
        %975 = vmatprep.mubr.bf16.mxu0 0
        %976 = vmatmul.mubr.bf16.gmra.mrb[0].mxu0 %v690
        %v977 = vpop.f32.mrb[0].mxu0
        %v978 = vadd.f32 %v328, %v977
        %v979 = vpop.f32.mrb[0].mxu0
        %v980 = vpop.f32.mrb[0].mxu0
        %v981 = vadd.f32 %v328, %v980
        %v982 = vpop.f32.mrb[0].mxu0
        %983 = vmatprep.mubr.bf16.mxu0 0
        %984 = vmatmul.mubr.bf16.gmra.mrb[0].mxu0 %v693
        %v985 = vpop.f32.mrb[0].mxu0
        %v986 = vadd.f32 %v328, %v985
        %v987 = vpop.f32.mrb[0].mxu0
        %v988 = vpop.f32.mrb[0].mxu0
        %v989 = vadd.f32 %v328, %v988
        %v990 = vpop.f32.mrb[0].mxu0
        %991 = vmatprep.mubr.bf16.mxu0 0
        %992 = vmatmul.mubr.bf16.gmra.mrb[0].mxu0 %v696
        %v993 = vpop.f32.mrb[0].mxu0
        %v994 = vadd.f32 %v328, %v993
        %v995 = vpop.f32.mrb[0].mxu0
        %v996 = vpop.f32.mrb[0].mxu0
        %v997 = vadd.f32 %v328, %v996
        %v998 = vpop.f32.mrb[0].mxu0
        %999 = vmatprep.mubr.bf16.mxu0 0
        %1000 = vmatmul.mubr.bf16.gmra.mrb[0].mxu0 %v699
        %v1001 = vpop.f32.mrb[0].mxu0
        %v1002 = vadd.f32 %v328, %v1001
        %v1003 = vpop.f32.mrb[0].mxu0
        %v1004 = vpop.f32.mrb[0].mxu0
        %v1005 = vadd.f32 %v328, %v1004
        %v1006 = vpop.f32.mrb[0].mxu0
        %1007 = vmatprep.mubr.bf16.mxu0 0
        %1008 = vmatmul.mubr.bf16.gmra.mrb[0].mxu0 %v702
        %v1009 = vpop.f32.mrb[0].mxu0
        %v1010 = vadd.f32 %v328, %v1009
        %v1011 = vpop.f32.mrb[0].mxu0
        %v1012 = vpop.f32.mrb[0].mxu0
        %v1013 = vadd.f32 %v328, %v1012
        %v1014 = vpop.f32.mrb[0].mxu0
        %1015 = vmatprep.mubr.bf16.mxu0 0
        %1016 = vmatmul.mubr.bf16.gmra.mrb[0].mxu0 %v705
        %v1017 = vpop.f32.mrb[0].mxu0
        %v1018 = vadd.f32 %v328, %v1017
        %v1019 = vpop.f32.mrb[0].mxu0
        %v1020 = vpop.f32.mrb[0].mxu0
        %v1021 = vadd.f32 %v328, %v1020
        %v1022 = vpop.f32.mrb[0].mxu0
        %1023 = vmatprep.mubr.bf16.mxu0 0
        %1024 = vmatmul.mubr.bf16.gmra.mrb[0].mxu0 %v708
        %v1025 = vpop.f32.mrb[0].mxu0
        %v1026 = vadd.f32 %v328, %v1025
        %v1027 = vpop.f32.mrb[0].mxu0
        %v1028 = vpop.f32.mrb[0].mxu0
        %v1029 = vadd.f32 %v328, %v1028
        %v1030 = vpop.f32.mrb[0].mxu0
        %1031 = vmatprep.mubr.bf16.mxu0 0
        %1032 = vmatmul.mubr.bf16.gmra.mrb[0].mxu0 %v711
        %v1033 = vpop.f32.mrb[0].mxu0
        %v1034 = vadd.f32 %v328, %v1033
        %v1035 = vpop.f32.mrb[0].mxu0
        %v1036 = vpop.f32.mrb[0].mxu0
        %v1037 = vadd.f32 %v328, %v1036
        %v1038 = vpop.f32.mrb[0].mxu0
        %1039 = vmatprep.mubr.bf16.mxu0 0
        %1040 = vmatmul.mubr.bf16.gmra.mrb[0].mxu0 %v714
        %v1041 = vpop.f32.mrb[0].mxu0
        %v1042 = vadd.f32 %v328, %v1041
        %v1043 = vpop.f32.mrb[0].mxu0
        %v1044 = vpop.f32.mrb[0].mxu0
        %v1045 = vadd.f32 %v328, %v1044
        %v1046 = vpop.f32.mrb[0].mxu0
        %1047 = vmatprep.mubr.bf16.mxu0 0
        %1048 = vmatmul.mubr.bf16.gmra.mrb[0].mxu0 %v717
        %v1049 = vpop.f32.mrb[0].mxu0
        %v1050 = vadd.f32 %v328, %v1049
        %v1051 = vpop.f32.mrb[0].mxu0
        %v1052 = vpop.f32.mrb[0].mxu0
        %v1053 = vadd.f32 %v328, %v1052
        %v1054 = vpop.f32.mrb[0].mxu0
        %1055 = vmatprep.mubr.bf16.mxu0 0
        %1056 = vmatmul.mubr.bf16.gmra.mrb[0].mxu0 %v720
        %v1057 = vpop.f32.mrb[0].mxu0
        %v1058 = vadd.f32 %v328, %v1057
        %v1059 = vpop.f32.mrb[0].mxu0
        %v1060 = vpop.f32.mrb[0].mxu0
        %v1061 = vadd.f32 %v328, %v1060
        %v1062 = vpop.f32.mrb[0].mxu0
        %1063 = vmatprep.mubr.bf16.mxu0 0
        %1064 = vmatmul.mubr.bf16.gmra.mrb[0].mxu0 %v723
        %v1065 = vpop.f32.mrb[0].mxu0
        %v1066 = vadd.f32 %v328, %v1065
        %v1067 = vpop.f32.mrb[0].mxu0
        %v1068 = vpop.f32.mrb[0].mxu0
        %v1069 = vadd.f32 %v328, %v1068
        %v1070 = vpop.f32.mrb[0].mxu0
        %1071 = vmatprep.mubr.bf16.mxu0 0
        %1072 = vmatmul.mubr.bf16.gmra.mrb[0].mxu0 %v726
        %v1073 = vpop.f32.mrb[0].mxu0
        %v1074 = vadd.f32 %v328, %v1073
        %v1075 = vpop.f32.mrb[0].mxu0
        %v1076 = vpop.f32.mrb[0].mxu0
        %v1077 = vadd.f32 %v328, %v1076
        %v1078 = vpop.f32.mrb[0].mxu0
        %1079 = vmatprep.mubr.bf16.mxu0 0
        %1080 = vmatmul.mubr.bf16.gmra.mrb[0].mxu0 %v729
        %v1081 = vpop.f32.mrb[0].mxu0
        %v1082 = vadd.f32 %v328, %v1081
        %v1083 = vpop.f32.mrb[0].mxu0
        %v1084 = vpop.f32.mrb[0].mxu0
        %v1085 = vadd.f32 %v328, %v1084
        %v1086 = vpop.f32.mrb[0].mxu0
        %1087 = vmatprep.mubr.bf16.mxu0 0
        %1088 = vmatmul.mubr.bf16.gmra.mrb[0].mxu0 %v732
        %v1089 = vpop.f32.mrb[0].mxu0
        %v1090 = vadd.f32 %v328, %v1089
        %v1091 = vpop.f32.mrb[0].mxu0
        %v1092 = vpop.f32.mrb[0].mxu0
        %v1093 = vadd.f32 %v328, %v1092
        %v1094 = vpop.f32.mrb[0].mxu0
        %1095 = vmatprep.mubr.bf16.mxu0 0
        %1096 = vmatmul.mubr.bf16.gmra.mrb[0].mxu0 %v735
        %v1097 = vpop.f32.mrb[0].mxu0
        %v1098 = vadd.f32 %v328, %v1097
        %v1099 = vpop.f32.mrb[0].mxu0
        %v1100 = vpop.f32.mrb[0].mxu0
        %v1101 = vadd.f32 %v328, %v1100
        %v1102 = vpop.f32.mrb[0].mxu0
        %1103 = vmatprep.mubr.bf16.mxu0 0
        %1104 = vmatmul.mubr.bf16.gmra.mrb[0].mxu0 %v738
        %v1105 = vpop.f32.mrb[0].mxu0
        %v1106 = vadd.f32 %v328, %v1105
        %v1107 = vpop.f32.mrb[0].mxu0
        %v1108 = vpop.f32.mrb[0].mxu0
        %v1109 = vadd.f32 %v328, %v1108
        %v1110 = vpop.f32.mrb[0].mxu0
        %1111 = vmatprep.mubr.bf16.mxu0 0
        %1112 = vmatmul.mubr.bf16.gmra.mrb[0].mxu0 %v741
        %v1113 = vpop.f32.mrb[0].mxu0
        %v1114 = vadd.f32 %v328, %v1113
        %v1115 = vpop.f32.mrb[0].mxu0
        %v1116 = vpop.f32.mrb[0].mxu0
        %v1117 = vadd.f32 %v328, %v1116
        %v1118 = vpop.f32.mrb[0].mxu0
        %1119 = vmatprep.mubr.bf16.mxu0 0
        %1120 = vmatmul.mubr.bf16.gmra.mrb[0].mxu0 %v744
        %v1121 = vpop.f32.mrb[0].mxu0
        %v1122 = vadd.f32 %v328, %v1121
        %v1123 = vpop.f32.mrb[0].mxu0
        %v1124 = vpop.f32.mrb[0].mxu0
        %v1125 = vadd.f32 %v328, %v1124
        %v1126 = vpop.f32.mrb[0].mxu0
        %1127 = vmatprep.mubr.bf16.mxu0 0
        %1128 = vmatmul.mubr.bf16.gmra.mrb[0].mxu0 %v747
        %v1129 = vpop.f32.mrb[0].mxu0
        %v1130 = vadd.f32 %v328, %v1129
        %v1131 = vpop.f32.mrb[0].mxu0
        %v1132 = vpop.f32.mrb[0].mxu0
        %v1133 = vadd.f32 %v328, %v1132
        %v1134 = vpop.f32.mrb[0].mxu0
        %1135 = vmatprep.mubr.bf16.mxu0 0
        %1136 = vmatmul.mubr.bf16.gmra.mrb[0].mxu0 %v750
        %v1137 = vpop.f32.mrb[0].mxu0
        %v1138 = vadd.f32 %v328, %v1137
        %v1139 = vpop.f32.mrb[0].mxu0
        %v1140 = vpop.f32.mrb[0].mxu0
        %v1141 = vadd.f32 %v328, %v1140
        %v1142 = vpop.f32.mrb[0].mxu0
        %1143 = vmatprep.mubr.bf16.mxu0 0
        %1144 = vmatmul.mubr.bf16.gmra.mrb[0].mxu0 %v753
        %v1145 = vpop.f32.mrb[0].mxu0
        %v1146 = vadd.f32 %v328, %v1145
        %v1147 = vpop.f32.mrb[0].mxu0
        %v1148 = vpop.f32.mrb[0].mxu0
        %v1149 = vadd.f32 %v328, %v1148
        %v1150 = vpop.f32.mrb[0].mxu0
        %1151 = vmatprep.mubr.bf16.mxu0 0
        %1152 = vmatmul.mubr.bf16.gmra.mrb[0].mxu0 %v756
        %v1153 = vpop.f32.mrb[0].mxu0
        %v1154 = vadd.f32 %v328, %v1153
        %v1155 = vpop.f32.mrb[0].mxu0
        %v1156 = vpop.f32.mrb[0].mxu0
        %v1157 = vadd.f32 %v328, %v1156
        %v1158 = vpop.f32.mrb[0].mxu0
        %1159 = vmatprep.mubr.bf16.mxu0 0
        %1160 = vmatmul.mubr.bf16.gmra.mrb[0].mxu0 %v759
        %v1161 = vpop.f32.mrb[0].mxu0
        %v1162 = vadd.f32 %v328, %v1161
        %v1163 = vpop.f32.mrb[0].mxu0
        %v1164 = vpop.f32.mrb[0].mxu0
        %v1165 = vadd.f32 %v328, %v1164
        %v1166 = vpop.f32.mrb[0].mxu0
        %1167 = vmatprep.mubr.bf16.mxu0 0
        %1168 = vmatmul.mubr.bf16.gmra.mrb[0].mxu0 %v762
        %v1169 = vpop.f32.mrb[0].mxu0
        %v1170 = vadd.f32 %v328, %v1169
        %v1171 = vpop.f32.mrb[0].mxu0
        %v1172 = vpop.f32.mrb[0].mxu0
        %v1173 = vadd.f32 %v328, %v1172
        %v1174 = vpop.f32.mrb[0].mxu0
        %1175 = vmatprep.mubr.bf16.mxu0 0
        %1176 = vmatmul.mubr.bf16.gmra.mrb[0].mxu0 %v765
        %v1177 = vpop.f32.mrb[0].mxu0
        %v1178 = vadd.f32 %v328, %v1177
        %v1179 = vpop.f32.mrb[0].mxu0
        %v1180 = vpop.f32.mrb[0].mxu0
        %v1181 = vadd.f32 %v328, %v1180
        %v1182 = vpop.f32.mrb[0].mxu0
        %1183 = vmatprep.mubr.bf16.mxu0 0
        %1184 = vmatmul.mubr.bf16.gmra.mrb[0].mxu0 %v768
        %v1185 = vpop.f32.mrb[0].mxu0
        %v1186 = vadd.f32 %v328, %v1185
        %v1187 = vpop.f32.mrb[0].mxu0
        %v1188 = vpop.f32.mrb[0].mxu0
        %v1189 = vadd.f32 %v328, %v1188
        %v1190 = vpop.f32.mrb[0].mxu0
        %1191 = vmatprep.mubr.bf16.mxu0 0
        %1192 = vmatmul.mubr.bf16.gmra.mrb[0].mxu0 %v771
        %v1193 = vpop.f32.mrb[0].mxu0
        %v1194 = vadd.f32 %v328, %v1193
        %v1195 = vpop.f32.mrb[0].mxu0
        %v1196 = vpop.f32.mrb[0].mxu0
        %v1197 = vadd.f32 %v328, %v1196
        %v1198 = vpop.f32.mrb[0].mxu0
        %1199 = vmatprep.mubr.bf16.mxu0 0
        %1200 = vmatmul.mubr.bf16.gmra.mrb[0].mxu0 %v774
        %v1201 = vpop.f32.mrb[0].mxu0
        %v1202 = vadd.f32 %v328, %v1201
        %v1203 = vpop.f32.mrb[0].mxu0
        %v1204 = vpop.f32.mrb[0].mxu0
        %v1205 = vadd.f32 %v328, %v1204
        %v1206 = vpop.f32.mrb[0].mxu0
        %1207 = vmatprep.mubr.bf16.mxu0 0
        %1208 = vmatmul.mubr.bf16.gmra.mrb[0].mxu0 %v777
        %v1209 = vpop.f32.mrb[0].mxu0
        %v1210 = vadd.f32 %v328, %v1209
        %v1211 = vpop.f32.mrb[0].mxu0
        %v1212 = vpop.f32.mrb[0].mxu0
        %v1213 = vadd.f32 %v328, %v1212
        %v1214 = vpop.f32.mrb[0].mxu0
        %1215 = vmatprep.mubr.bf16.mxu0 0
        %1216 = vmatmul.mubr.bf16.gmra.mrb[0].mxu0 %v780
        %v1217 = vpop.f32.mrb[0].mxu0
        %v1218 = vadd.f32 %v328, %v1217
        %v1219 = vpop.f32.mrb[0].mxu0
        %v1220 = vpop.f32.mrb[0].mxu0
        %v1221 = vadd.f32 %v328, %v1220
        %v1222 = vpop.f32.mrb[0].mxu0
        %1223 = vmatprep.mubr.bf16.mxu0 0
        %1224 = vmatmul.mubr.bf16.gmra.mrb[0].mxu0 %v783
        %v1225 = vpop.f32.mrb[0].mxu0
        %v1226 = vadd.f32 %v328, %v1225
        %v1227 = vpop.f32.mrb[0].mxu0
        %v1228 = vpop.f32.mrb[0].mxu0
        %v1229 = vadd.f32 %v328, %v1228
        %v1230 = vpop.f32.mrb[0].mxu0
        %1231 = vmatprep.mubr.bf16.mxu0 0
        %1232 = vmatmul.mubr.bf16.gmra.mrb[0].mxu0 %v786
        %v1233 = vpop.f32.mrb[0].mxu0
        %v1234 = vadd.f32 %v328, %v1233
        %v1235 = vpop.f32.mrb[0].mxu0
        %v1236 = vpop.f32.mrb[0].mxu0
        %v1237 = vadd.f32 %v328, %v1236
        %v1238 = vpop.f32.mrb[0].mxu0
        %1239 = vmatprep.mubr.bf16.mxu0 0
        %1240 = vmatmul.mubr.bf16.gmra.mrb[0].mxu0 %v789
        %v1241 = vpop.f32.mrb[0].mxu0
        %v1242 = vadd.f32 %v328, %v1241
        %v1243 = vpop.f32.mrb[0].mxu0
        %v1244 = vpop.f32.mrb[0].mxu0
        %v1245 = vadd.f32 %v328, %v1244
        %v1246 = vpop.f32.mrb[0].mxu0
        %1247 = vmatprep.mubr.bf16.mxu0 0
        %1248 = vmatmul.mubr.bf16.gmra.mrb[0].mxu0 %v792
        %v1249 = vpop.f32.mrb[0].mxu0
        %v1250 = vadd.f32 %v328, %v1249
        %v1251 = vpop.f32.mrb[0].mxu0
        %v1252 = vpop.f32.mrb[0].mxu0
        %v1253 = vadd.f32 %v328, %v1252
        %v1254 = vpop.f32.mrb[0].mxu0
        %1255 = vmatprep.mubr.bf16.mxu0 0
        %1256 = vmatmul.mubr.bf16.gmra.mrb[0].mxu0 %v795
        %v1257 = vpop.f32.mrb[0].mxu0
        %v1258 = vadd.f32 %v328, %v1257
        %v1259 = vpop.f32.mrb[0].mxu0
        %v1260 = vpop.f32.mrb[0].mxu0
        %v1261 = vadd.f32 %v328, %v1260
        %v1262 = vpop.f32.mrb[0].mxu0
        %1263 = vmatprep.mubr.bf16.mxu0 0
        %1264 = vmatmul.mubr.bf16.gmra.mrb[0].mxu0 %v798
        %v1265 = vpop.f32.mrb[0].mxu0
        %v1266 = vadd.f32 %v328, %v1265
        %v1267 = vpop.f32.mrb[0].mxu0
        %v1268 = vpop.f32.mrb[0].mxu0
        %v1269 = vadd.f32 %v328, %v1268
        %v1270 = vpop.f32.mrb[0].mxu0
        %1271 = vmatprep.mubr.bf16.mxu0 0
        %1272 = vmatmul.mubr.bf16.gmra.mrb[0].mxu0 %v801
        %v1273 = vpop.f32.mrb[0].mxu0
        %v1274 = vadd.f32 %v328, %v1273
        %v1275 = vpop.f32.mrb[0].mxu0
        %v1276 = vpop.f32.mrb[0].mxu0
        %v1277 = vadd.f32 %v328, %v1276
        %v1278 = vpop.f32.mrb[0].mxu0
        %1279 = vmatprep.mubr.bf16.mxu0 0
        %1280 = vmatmul.mubr.bf16.gmra.mrb[0].mxu0 %v804
        %v1281 = vpop.f32.mrb[0].mxu0
        %v1282 = vadd.f32 %v328, %v1281
        %v1283 = vpop.f32.mrb[0].mxu0
        %v1284 = vpop.f32.mrb[0].mxu0
        %v1285 = vadd.f32 %v328, %v1284
        %v1286 = vpop.f32.mrb[0].mxu0
        %1287 = vmatprep.mubr.bf16.mxu0 0
        %1288 = vmatmul.mubr.bf16.gmra.mrb[0].mxu0 %v807
        %v1289 = vpop.f32.mrb[0].mxu0
        %v1290 = vadd.f32 %v328, %v1289
        %v1291 = vpop.f32.mrb[0].mxu0
        %v1292 = vpop.f32.mrb[0].mxu0
        %v1293 = vadd.f32 %v328, %v1292
        %v1294 = vpop.f32.mrb[0].mxu0
        %1295 = vmatprep.mubr.bf16.mxu0 0
        %1296 = vmatmul.mubr.bf16.gmra.mrb[0].mxu0 %v810
        %v1297 = vpop.f32.mrb[0].mxu0
        %v1298 = vadd.f32 %v328, %v1297
        %v1299 = vpop.f32.mrb[0].mxu0
        %v1300 = vpop.f32.mrb[0].mxu0
        %v1301 = vadd.f32 %v328, %v1300
        %v1302 = vpop.f32.mrb[0].mxu0
        %1303 = vmatprep.mubr.bf16.mxu0 0
        %1304 = vmatmul.mubr.bf16.gmra.mrb[0].mxu0 %v813
        %v1305 = vpop.f32.mrb[0].mxu0
        %v1306 = vadd.f32 %v328, %v1305
        %v1307 = vpop.f32.mrb[0].mxu0
        %v1308 = vpop.f32.mrb[0].mxu0
        %v1309 = vadd.f32 %v328, %v1308
        %v1310 = vpop.f32.mrb[0].mxu0
        %1311 = vmatprep.mubr.bf16.mxu0 0
        %1312 = vmatmul.mubr.bf16.gmra.mrb[0].mxu0 %v816
        %v1313 = vpop.f32.mrb[0].mxu0
        %v1314 = vadd.f32 %v328, %v1313
        %v1315 = vpop.f32.mrb[0].mxu0
        %v1316 = vpop.f32.mrb[0].mxu0
        %v1317 = vadd.f32 %v328, %v1316
        %v1318 = vpop.f32.mrb[0].mxu0
        %1319 = vmatprep.mubr.bf16.mxu0 0
        %1320 = vmatmul.mubr.bf16.gmra.mrb[0].mxu0 %v819
        %v1321 = vpop.f32.mrb[0].mxu0
        %v1322 = vadd.f32 %v328, %v1321
        %v1323 = vpop.f32.mrb[0].mxu0
        %v1324 = vpop.f32.mrb[0].mxu0
        %v1325 = vadd.f32 %v328, %v1324
        %v1326 = vpop.f32.mrb[0].mxu0
        %1327 = vmatprep.mubr.bf16.mxu0 0
        %1328 = vmatmul.mubr.bf16.gmra.mrb[0].mxu0 %v822
        %v1329 = vpop.f32.mrb[0].mxu0
        %v1330 = vadd.f32 %v328, %v1329
        %v1331 = vpop.f32.mrb[0].mxu0
        %v1332 = vpop.f32.mrb[0].mxu0
        %v1333 = vadd.f32 %v328, %v1332
        %v1334 = vpop.f32.mrb[0].mxu0
        %1335 = vmatprep.mubr.bf16.mxu0 0
        %1336 = vmatmul.mubr.bf16.gmra.mrb[0].mxu0 %v825
        %v1337 = vpop.f32.mrb[0].mxu0
        %v1338 = vadd.f32 %v328, %v1337
        %v1339 = vpop.f32.mrb[0].mxu0
        %v1340 = vpop.f32.mrb[0].mxu0
        %v1341 = vadd.f32 %v328, %v1340
        %v1342 = vpop.f32.mrb[0].mxu0
        %1343 = vmatprep.mubr.bf16.mxu0 0
        %1344 = vmatmul.mubr.bf16.gmra.mrb[0].mxu0 %v828
        %v1345 = vpop.f32.mrb[0].mxu0
        %v1346 = vadd.f32 %v328, %v1345
        %v1347 = vpop.f32.mrb[0].mxu0
        %v1348 = vpop.f32.mrb[0].mxu0
        %v1349 = vadd.f32 %v328, %v1348
        %v1350 = vpop.f32.mrb[0].mxu0
        %1351 = vmatprep.mubr.bf16.mxu0 0
        %1352 = vmatmul.mubr.bf16.gmra.mrb[0].mxu0 %v831
        %v1353 = vpop.f32.mrb[0].mxu0
        %v1354 = vadd.f32 %v328, %v1353
        %v1355 = vpop.f32.mrb[0].mxu0
        %v1356 = vpop.f32.mrb[0].mxu0
        %v1357 = vadd.f32 %v328, %v1356
        %v1358 = vpop.f32.mrb[0].mxu0
        %1359 = vmatprep.mubr.bf16.mxu0 0
        %1360 = vmatmul.mubr.bf16.gmra.mrb[0].mxu0 %v834
        %v1361 = vpop.f32.mrb[0].mxu0
        %v1362 = vadd.f32 %v328, %v1361
        %v1363 = vpop.f32.mrb[0].mxu0
        %v1364 = vpop.f32.mrb[0].mxu0
        %v1365 = vadd.f32 %v328, %v1364
        %v1366 = vpop.f32.mrb[0].mxu0
        %1367 = vmatprep.mubr.bf16.mxu0 0
        %1368 = vmatmul.mubr.bf16.gmra.mrb[0].mxu0 %v837
        %v1369 = vpop.f32.mrb[0].mxu0
        %v1370 = vadd.f32 %v328, %v1369
        %v1371 = vpop.f32.mrb[0].mxu0
        %v1372 = vpop.f32.mrb[0].mxu0
        %v1373 = vadd.f32 %v328, %v1372
        %v1374 = vpop.f32.mrb[0].mxu0
        %1375 = vmatprep.mubr.bf16.mxu0 0
        %1376 = vmatmul.mubr.bf16.gmra.mrb[0].mxu0 %v840
        %v1377 = vpop.f32.mrb[0].mxu0
        %v1378 = vadd.f32 %v328, %v1377
        %v1379 = vpop.f32.mrb[0].mxu0
        %v1380 = vpop.f32.mrb[0].mxu0
        %v1381 = vadd.f32 %v328, %v1380
        %v1382 = vpop.f32.mrb[0].mxu0
        %1383 = vmatprep.mubr.bf16.mxu0 0
        %1384 = vmatmul.mubr.bf16.gmra.mrb[0].mxu0 %v843
        %v1385 = vpop.f32.mrb[0].mxu0
        %v1386 = vadd.f32 %v328, %v1385
        %v1387 = vpop.f32.mrb[0].mxu0
        %v1388 = vpop.f32.mrb[0].mxu0
        %v1389 = vadd.f32 %v328, %v1388
        %v1390 = vpop.f32.mrb[0].mxu0
        %1391 = vmatprep.mubr.bf16.mxu0 0
        %1392 = vmatmul.mubr.bf16.gmra.mrb[0].mxu0 %v846
        %v1393 = vpop.f32.mrb[0].mxu0
        %v1394 = vadd.f32 %v328, %v1393
        %v1395 = vpop.f32.mrb[0].mxu0
        %v1396 = vpop.f32.mrb[0].mxu0
        %v1397 = vadd.f32 %v328, %v1396
        %v1398 = vpop.f32.mrb[0].mxu0
        %1399 = vdwg.mxu0
        %v1400 = vmax.f32 %v890, 0.0
        %v1401 = vmax.f32 %v893, 0.0
        %v1402 = vmax.f32 %v898, 0.0
        %v1403 = vmax.f32 %v901, 0.0
        %v1404 = vmax.f32 %v906, 0.0
        %v1405 = vmax.f32 %v909, 0.0
        %v1406 = vmax.f32 %v914, 0.0
        %v1407 = vmax.f32 %v917, 0.0
        %v1408 = vmax.f32 %v922, 0.0
        %v1409 = vmax.f32 %v925, 0.0
        %v1410 = vmax.f32 %v930, 0.0
        %v1411 = vmax.f32 %v933, 0.0
        %v1412 = vmax.f32 %v938, 0.0
        %v1413 = vmax.f32 %v941, 0.0
        %v1414 = vmax.f32 %v946, 0.0
        %v1415 = vmax.f32 %v949, 0.0
        %v1416 = vmax.f32 %v954, 0.0
        %v1417 = vmax.f32 %v957, 0.0
        %v1418 = vmax.f32 %v962, 0.0
        %v1419 = vmax.f32 %v965, 0.0
        %v1420 = vmax.f32 %v970, 0.0
        %v1421 = vmax.f32 %v973, 0.0
        %v1422 = vmax.f32 %v978, 0.0
        %v1423 = vmax.f32 %v981, 0.0
        %v1424 = vmax.f32 %v986, 0.0
        %v1425 = vmax.f32 %v989, 0.0
        %v1426 = vmax.f32 %v994, 0.0
        %v1427 = vmax.f32 %v997, 0.0
        %v1428 = vmax.f32 %v1002, 0.0
        %v1429 = vmax.f32 %v1005, 0.0
        %v1430 = vmax.f32 %v1010, 0.0
        %v1431 = vmax.f32 %v1013, 0.0
        %v1432 = vmax.f32 %v1018, 0.0
        %v1433 = vmax.f32 %v1021, 0.0
        %v1434 = vmax.f32 %v1026, 0.0
        %v1435 = vmax.f32 %v1029, 0.0
        %v1436 = vmax.f32 %v1034, 0.0
        %v1437 = vmax.f32 %v1037, 0.0
        %v1438 = vmax.f32 %v1042, 0.0
        %v1439 = vmax.f32 %v1045, 0.0
        %v1440 = vmax.f32 %v1050, 0.0
        %v1441 = vmax.f32 %v1053, 0.0
        %v1442 = vmax.f32 %v1058, 0.0
        %v1443 = vmax.f32 %v1061, 0.0
        %v1444 = vmax.f32 %v1066, 0.0
        %v1445 = vmax.f32 %v1069, 0.0
        %v1446 = vmax.f32 %v1074, 0.0
        %v1447 = vmax.f32 %v1077, 0.0
        %v1448 = vmax.f32 %v1082, 0.0
        %v1449 = vmax.f32 %v1085, 0.0
        %v1450 = vmax.f32 %v1090, 0.0
        %v1451 = vmax.f32 %v1093, 0.0
        %v1452 = vmax.f32 %v1098, 0.0
        %v1453 = vmax.f32 %v1101, 0.0
        %v1454 = vmax.f32 %v1106, 0.0
        %v1455 = vmax.f32 %v1109, 0.0
        %v1456 = vmax.f32 %v1114, 0.0
        %v1457 = vmax.f32 %v1117, 0.0
        %v1458 = vmax.f32 %v1122, 0.0
        %v1459 = vmax.f32 %v1125, 0.0
        %v1460 = vmax.f32 %v1130, 0.0
        %v1461 = vmax.f32 %v1133, 0.0
        %v1462 = vmax.f32 %v1138, 0.0
        %v1463 = vmax.f32 %v1141, 0.0
        %v1464 = vmax.f32 %v1146, 0.0
        %v1465 = vmax.f32 %v1149, 0.0
        %v1466 = vmax.f32 %v1154, 0.0
        %v1467 = vmax.f32 %v1157, 0.0
        %v1468 = vmax.f32 %v1162, 0.0
        %v1469 = vmax.f32 %v1165, 0.0
        %v1470 = vmax.f32 %v1170, 0.0
        %v1471 = vmax.f32 %v1173, 0.0
        %v1472 = vmax.f32 %v1178, 0.0
        %v1473 = vmax.f32 %v1181, 0.0
        %v1474 = vmax.f32 %v1186, 0.0
        %v1475 = vmax.f32 %v1189, 0.0
        %v1476 = vmax.f32 %v1194, 0.0
        %v1477 = vmax.f32 %v1197, 0.0
        %v1478 = vmax.f32 %v1202, 0.0
        %v1479 = vmax.f32 %v1205, 0.0
        %v1480 = vmax.f32 %v1210, 0.0
        %v1481 = vmax.f32 %v1213, 0.0
        %v1482 = vmax.f32 %v1218, 0.0
        %v1483 = vmax.f32 %v1221, 0.0
        %v1484 = vmax.f32 %v1226, 0.0
        %v1485 = vmax.f32 %v1229, 0.0
        %v1486 = vmax.f32 %v1234, 0.0
        %v1487 = vmax.f32 %v1237, 0.0
        %v1488 = vmax.f32 %v1242, 0.0
        %v1489 = vmax.f32 %v1245, 0.0
        %v1490 = vmax.f32 %v1250, 0.0
        %v1491 = vmax.f32 %v1253, 0.0
        %v1492 = vmax.f32 %v1258, 0.0
        %v1493 = vmax.f32 %v1261, 0.0
        %v1494 = vmax.f32 %v1266, 0.0
        %v1495 = vmax.f32 %v1269, 0.0
        %v1496 = vmax.f32 %v1274, 0.0
        %v1497 = vmax.f32 %v1277, 0.0
        %v1498 = vmax.f32 %v1282, 0.0
        %v1499 = vmax.f32 %v1285, 0.0
        %v1500 = vmax.f32 %v1290, 0.0
        %v1501 = vmax.f32 %v1293, 0.0
        %v1502 = vmax.f32 %v1298, 0.0
        %v1503 = vmax.f32 %v1301, 0.0
        %v1504 = vmax.f32 %v1306, 0.0
        %v1505 = vmax.f32 %v1309, 0.0
        %v1506 = vmax.f32 %v1314, 0.0
        %v1507 = vmax.f32 %v1317, 0.0
        %v1508 = vmax.f32 %v1322, 0.0
        %v1509 = vmax.f32 %v1325, 0.0
        %v1510 = vmax.f32 %v1330, 0.0
        %v1511 = vmax.f32 %v1333, 0.0
        %v1512 = vmax.f32 %v1338, 0.0
        %v1513 = vmax.f32 %v1341, 0.0
        %v1514 = vmax.f32 %v1346, 0.0
        %v1515 = vmax.f32 %v1349, 0.0
        %v1516 = vmax.f32 %v1354, 0.0
        %v1517 = vmax.f32 %v1357, 0.0
        %v1518 = vmax.f32 %v1362, 0.0
        %v1519 = vmax.f32 %v1365, 0.0
        %v1520 = vmax.f32 %v1370, 0.0
        %v1521 = vmax.f32 %v1373, 0.0
        %v1522 = vmax.f32 %v1378, 0.0
        %v1523 = vmax.f32 %v1381, 0.0
        %v1524 = vmax.f32 %v1386, 0.0
        %v1525 = vmax.f32 %v1389, 0.0
        %v1526 = vmax.f32 %v1394, 0.0
        %v1527 = vmax.f32 %v1397, 0.0
        %vm1528 = vcmask 64512
        %1529 = vst.msk [vmem:[%s172] sm:$0xff] %vm1528, %v1400
        %1530 = vst.msk [vmem:[%s172 + $0x8] sm:$0xff] %vm1528, %v1401
        %1531 = vst.msk [vmem:[%s172 + $0x10] sm:$0xff] %vm1528, %v1402
        %1532 = vst.msk [vmem:[%s172 + $0x18] sm:$0xff] %vm1528, %v1403
        %1533 = vst.msk [vmem:[%s172 + $0x20] sm:$0xff] %vm1528, %v1404
        %1534 = vst.msk [vmem:[%s172 + $0x28] sm:$0xff] %vm1528, %v1405
        %1535 = vst.msk [vmem:[%s172 + $0x30] sm:$0xff] %vm1528, %v1406
        %1536 = vst.msk [vmem:[%s172 + $0x38] sm:$0xff] %vm1528, %v1407
        %1537 = vst.msk [vmem:[%s172 + $0x40] sm:$0xff] %vm1528, %v1408
        %1538 = vst.msk [vmem:[%s172 + $0x48] sm:$0xff] %vm1528, %v1409
        %1539 = vst.msk [vmem:[%s172 + $0x50] sm:$0xff] %vm1528, %v1410
        %1540 = vst.msk [vmem:[%s172 + $0x58] sm:$0xff] %vm1528, %v1411
        %1541 = vst.msk [vmem:[%s172 + $0x60] sm:$0xff] %vm1528, %v1412
        %1542 = vst.msk [vmem:[%s172 + $0x68] sm:$0xff] %vm1528, %v1413
        %1543 = vst.msk [vmem:[%s172 + $0x70] sm:$0xff] %vm1528, %v1414
        %1544 = vst.msk [vmem:[%s172 + $0x78] sm:$0xff] %vm1528, %v1415
        %1545 = vst.msk [vmem:[%s172 + $0x80] sm:$0xff] %vm1528, %v1416
        %1546 = vst.msk [vmem:[%s172 + $0x88] sm:$0xff] %vm1528, %v1417
        %1547 = vst.msk [vmem:[%s172 + $0x90] sm:$0xff] %vm1528, %v1418
        %1548 = vst.msk [vmem:[%s172 + $0x98] sm:$0xff] %vm1528, %v1419
        %1549 = vst.msk [vmem:[%s172 + $0xa0] sm:$0xff] %vm1528, %v1420
        %1550 = vst.msk [vmem:[%s172 + $0xa8] sm:$0xff] %vm1528, %v1421
        %1551 = vst.msk [vmem:[%s172 + $0xb0] sm:$0xff] %vm1528, %v1422
        %1552 = vst.msk [vmem:[%s172 + $0xb8] sm:$0xff] %vm1528, %v1423
        %1553 = vst.msk [vmem:[%s172 + $0xc0] sm:$0xff] %vm1528, %v1424
        %1554 = vst.msk [vmem:[%s172 + $0xc8] sm:$0xff] %vm1528, %v1425
        %1555 = vst.msk [vmem:[%s172 + $0xd0] sm:$0xff] %vm1528, %v1426
        %1556 = vst.msk [vmem:[%s172 + $0xd8] sm:$0xff] %vm1528, %v1427
        %1557 = vst.msk [vmem:[%s172 + $0xe0] sm:$0xff] %vm1528, %v1428
        %1558 = vst.msk [vmem:[%s172 + $0xe8] sm:$0xff] %vm1528, %v1429
        %1559 = vst.msk [vmem:[%s172 + $0xf0] sm:$0xff] %vm1528, %v1430
        %1560 = vst.msk [vmem:[%s172 + $0xf8] sm:$0xff] %vm1528, %v1431
        %1561 = vst.msk [vmem:[%s172 + $0x100] sm:$0xff] %vm1528, %v1432
        %1562 = vst.msk [vmem:[%s172 + $0x108] sm:$0xff] %vm1528, %v1433
        %1563 = vst.msk [vmem:[%s172 + $0x110] sm:$0xff] %vm1528, %v1434
        %1564 = vst.msk [vmem:[%s172 + $0x118] sm:$0xff] %vm1528, %v1435
        %1565 = vst.msk [vmem:[%s172 + $0x120] sm:$0xff] %vm1528, %v1436
        %1566 = vst.msk [vmem:[%s172 + $0x128] sm:$0xff] %vm1528, %v1437
        %1567 = vst.msk [vmem:[%s172 + $0x130] sm:$0xff] %vm1528, %v1438
        %1568 = vst.msk [vmem:[%s172 + $0x138] sm:$0xff] %vm1528, %v1439
        %1569 = vst.msk [vmem:[%s172 + $0x140] sm:$0xff] %vm1528, %v1440
        %1570 = vst.msk [vmem:[%s172 + $0x148] sm:$0xff] %vm1528, %v1441
        %1571 = vst.msk [vmem:[%s172 + $0x150] sm:$0xff] %vm1528, %v1442
        %1572 = vst.msk [vmem:[%s172 + $0x158] sm:$0xff] %vm1528, %v1443
        %1573 = vst.msk [vmem:[%s172 + $0x160] sm:$0xff] %vm1528, %v1444
        %1574 = vst.msk [vmem:[%s172 + $0x168] sm:$0xff] %vm1528, %v1445
        %1575 = vst.msk [vmem:[%s172 + $0x170] sm:$0xff] %vm1528, %v1446
        %1576 = vst.msk [vmem:[%s172 + $0x178] sm:$0xff] %vm1528, %v1447
        %1577 = vst.msk [vmem:[%s172 + $0x180] sm:$0xff] %vm1528, %v1448
        %1578 = vst.msk [vmem:[%s172 + $0x188] sm:$0xff] %vm1528, %v1449
        %1579 = vst.msk [vmem:[%s172 + $0x190] sm:$0xff] %vm1528, %v1450
        %1580 = vst.msk [vmem:[%s172 + $0x198] sm:$0xff] %vm1528, %v1451
        %1581 = vst.msk [vmem:[%s172 + $0x1a0] sm:$0xff] %vm1528, %v1452
        %1582 = vst.msk [vmem:[%s172 + $0x1a8] sm:$0xff] %vm1528, %v1453
        %1583 = vst.msk [vmem:[%s172 + $0x1b0] sm:$0xff] %vm1528, %v1454
        %1584 = vst.msk [vmem:[%s172 + $0x1b8] sm:$0xff] %vm1528, %v1455
        %1585 = vst.msk [vmem:[%s172 + $0x1c0] sm:$0xff] %vm1528, %v1456
        %1586 = vst.msk [vmem:[%s172 + $0x1c8] sm:$0xff] %vm1528, %v1457
        %1587 = vst.msk [vmem:[%s172 + $0x1d0] sm:$0xff] %vm1528, %v1458
        %1588 = vst.msk [vmem:[%s172 + $0x1d8] sm:$0xff] %vm1528, %v1459
        %1589 = vst.msk [vmem:[%s172 + $0x1e0] sm:$0xff] %vm1528, %v1460
        %1590 = vst.msk [vmem:[%s172 + $0x1e8] sm:$0xff] %vm1528, %v1461
        %1591 = vst.msk [vmem:[%s172 + $0x1f0] sm:$0xff] %vm1528, %v1462
        %1592 = vst.msk [vmem:[%s172 + $0x1f8] sm:$0xff] %vm1528, %v1463
        %1593 = vst.msk [vmem:[%s172 + $0x200] sm:$0xff] %vm1528, %v1464
        %1594 = vst.msk [vmem:[%s172 + $0x208] sm:$0xff] %vm1528, %v1465
        %1595 = vst.msk [vmem:[%s172 + $0x210] sm:$0xff] %vm1528, %v1466
        %1596 = vst.msk [vmem:[%s172 + $0x218] sm:$0xff] %vm1528, %v1467
        %1597 = vst.msk [vmem:[%s172 + $0x220] sm:$0xff] %vm1528, %v1468
        %1598 = vst.msk [vmem:[%s172 + $0x228] sm:$0xff] %vm1528, %v1469
        %1599 = vst.msk [vmem:[%s172 + $0x230] sm:$0xff] %vm1528, %v1470
        %1600 = vst.msk [vmem:[%s172 + $0x238] sm:$0xff] %vm1528, %v1471
        %1601 = vst.msk [vmem:[%s172 + $0x240] sm:$0xff] %vm1528, %v1472
        %1602 = vst.msk [vmem:[%s172 + $0x248] sm:$0xff] %vm1528, %v1473
        %1603 = vst.msk [vmem:[%s172 + $0x250] sm:$0xff] %vm1528, %v1474
        %1604 = vst.msk [vmem:[%s172 + $0x258] sm:$0xff] %vm1528, %v1475
        %1605 = vst.msk [vmem:[%s172 + $0x260] sm:$0xff] %vm1528, %v1476
        %1606 = vst.msk [vmem:[%s172 + $0x268] sm:$0xff] %vm1528, %v1477
        %1607 = vst.msk [vmem:[%s172 + $0x270] sm:$0xff] %vm1528, %v1478
        %1608 = vst.msk [vmem:[%s172 + $0x278] sm:$0xff] %vm1528, %v1479
        %1609 = vst.msk [vmem:[%s172 + $0x280] sm:$0xff] %vm1528, %v1480
        %1610 = vst.msk [vmem:[%s172 + $0x288] sm:$0xff] %vm1528, %v1481
        %1611 = vst.msk [vmem:[%s172 + $0x290] sm:$0xff] %vm1528, %v1482
        %1612 = vst.msk [vmem:[%s172 + $0x298] sm:$0xff] %vm1528, %v1483
        %1613 = vst.msk [vmem:[%s172 + $0x2a0] sm:$0xff] %vm1528, %v1484
        %1614 = vst.msk [vmem:[%s172 + $0x2a8] sm:$0xff] %vm1528, %v1485
        %1615 = vst.msk [vmem:[%s172 + $0x2b0] sm:$0xff] %vm1528, %v1486
        %1616 = vst.msk [vmem:[%s172 + $0x2b8] sm:$0xff] %vm1528, %v1487
        %1617 = vst.msk [vmem:[%s172 + $0x2c0] sm:$0xff] %vm1528, %v1488
        %1618 = vst.msk [vmem:[%s172 + $0x2c8] sm:$0xff] %vm1528, %v1489
        %1619 = vst.msk [vmem:[%s172 + $0x2d0] sm:$0xff] %vm1528, %v1490
        %1620 = vst.msk [vmem:[%s172 + $0x2d8] sm:$0xff] %vm1528, %v1491
        %1621 = vst.msk [vmem:[%s172 + $0x2e0] sm:$0xff] %vm1528, %v1492
        %1622 = vst.msk [vmem:[%s172 + $0x2e8] sm:$0xff] %vm1528, %v1493
        %1623 = vst.msk [vmem:[%s172 + $0x2f0] sm:$0xff] %vm1528, %v1494
        %1624 = vst.msk [vmem:[%s172 + $0x2f8] sm:$0xff] %vm1528, %v1495
        %1625 = vst.msk [vmem:[%s172 + $0x300] sm:$0xff] %vm1528, %v1496
        %1626 = vst.msk [vmem:[%s172 + $0x308] sm:$0xff] %vm1528, %v1497
        %1627 = vst.msk [vmem:[%s172 + $0x310] sm:$0xff] %vm1528, %v1498
        %1628 = vst.msk [vmem:[%s172 + $0x318] sm:$0xff] %vm1528, %v1499
        %1629 = vst.msk [vmem:[%s172 + $0x320] sm:$0xff] %vm1528, %v1500
        %1630 = vst.msk [vmem:[%s172 + $0x328] sm:$0xff] %vm1528, %v1501
        %1631 = vst.msk [vmem:[%s172 + $0x330] sm:$0xff] %vm1528, %v1502
        %1632 = vst.msk [vmem:[%s172 + $0x338] sm:$0xff] %vm1528, %v1503
        %1633 = vst.msk [vmem:[%s172 + $0x340] sm:$0xff] %vm1528, %v1504
        %1634 = vst.msk [vmem:[%s172 + $0x348] sm:$0xff] %vm1528, %v1505
        %1635 = vst.msk [vmem:[%s172 + $0x350] sm:$0xff] %vm1528, %v1506
        %1636 = vst.msk [vmem:[%s172 + $0x358] sm:$0xff] %vm1528, %v1507
        %1637 = vst.msk [vmem:[%s172 + $0x360] sm:$0xff] %vm1528, %v1508
        %1638 = vst.msk [vmem:[%s172 + $0x368] sm:$0xff] %vm1528, %v1509
        %1639 = vst.msk [vmem:[%s172 + $0x370] sm:$0xff] %vm1528, %v1510
        %1640 = vst.msk [vmem:[%s172 + $0x378] sm:$0xff] %vm1528, %v1511
        %1641 = vst.msk [vmem:[%s172 + $0x380] sm:$0xff] %vm1528, %v1512
        %1642 = vst.msk [vmem:[%s172 + $0x388] sm:$0xff] %vm1528, %v1513
        %1643 = vst.msk [vmem:[%s172 + $0x390] sm:$0xff] %vm1528, %v1514
        %1644 = vst.msk [vmem:[%s172 + $0x398] sm:$0xff] %vm1528, %v1515
        %1645 = vst.msk [vmem:[%s172 + $0x3a0] sm:$0xff] %vm1528, %v1516
        %1646 = vst.msk [vmem:[%s172 + $0x3a8] sm:$0xff] %vm1528, %v1517
        %1647 = vst.msk [vmem:[%s172 + $0x3b0] sm:$0xff] %vm1528, %v1518
        %1648 = vst.msk [vmem:[%s172 + $0x3b8] sm:$0xff] %vm1528, %v1519
        %1649 = vst.msk [vmem:[%s172 + $0x3c0] sm:$0xff] %vm1528, %v1520
        %1650 = vst.msk [vmem:[%s172 + $0x3c8] sm:$0xff] %vm1528, %v1521
        %1651 = vst.msk [vmem:[%s172 + $0x3d0] sm:$0xff] %vm1528, %v1522
        %1652 = vst.msk [vmem:[%s172 + $0x3d8] sm:$0xff] %vm1528, %v1523
        %1653 = vst.msk [vmem:[%s172 + $0x3e0] sm:$0xff] %vm1528, %v1524
        %1654 = vst.msk [vmem:[%s172 + $0x3e8] sm:$0xff] %vm1528, %v1525
        %1655 = vst.msk [vmem:[%s172 + $0x3f0] sm:$0xff] %vm1528, %v1526
        %1656 = vst.msk [vmem:[%s172 + $0x3f8] sm:$0xff] %vm1528, %v1527
        %s1657 = sand.u32 %s90, 1
        %s1658 = sand.u32 %s90, 1
        %s1659 = smul.addr %s1658, 1024
        %s1660 = scalar_lea.vmem [#allocation2], %s1659
        // Predicated region
        $region33: #{pupilnet_v2_forward.7} parent=31 // pred_check
          %p1661 = pneg %p100
        $region34: #{pupilnet_v2_forward.7} parent=31 // pred_check_branch
          %1663 = sbr.rel (%p1661) target = $region36
        $region35: #{pupilnet_v2_forward.7} parent=31 // pred_region
          %s1664 = smul.u32 128, %s14
          %s1665 = ssub.s32 3713, %s1664
          %p1666 = scmp.lt.s32.totalorder %s1665, 128
          %s1667 = scalar_select %p1666, %s1665, 128
          %s1668 = smul.u32 128, %s1667
          %p1669 = scmp.ne.s32.totalorder 0, %s1668
          %s1670 = smul.addr %s1664, 8
          %s1671 = scalar_lea.vmem %s3, %s1670
          // Predicated region
          $region37: #{pupilnet_v2_forward.7} parent=35 // pred_check
            %p1672 = pneg %p1669
          $region38: #{pupilnet_v2_forward.7} parent=35 // pred_check_branch
            %1674 = sbr.rel (%p1672) target = $region40
          $region39: #{pupilnet_v2_forward.7} parent=35 // pred_region
            // Predicated region
            $region41: #{pupilnet_v2_forward.7} parent=39 // pred_check
              _
            $region42: #{pupilnet_v2_forward.7} parent=39 // pred_check_branch
              %1676 = sbr.rel (0) target = $region44
            $region43: #{pupilnet_v2_forward.7} parent=39 // pred_region
              // Predicated region
              $region63: #{pupilnet_v2_forward.7} parent=43 // pred_check
                _
              $region64: #{pupilnet_v2_forward.7} parent=43 // pred_check_branch
                %1851 = sbr.rel (0) target = $region66
              $region65: #{pupilnet_v2_forward.7} parent=43 // pred_region
                %s1852 = sshrl.u32 %s1667, 6
                // While loop
                $region67: #{pupilnet_v2_forward.7} parent=65 // loop_pre_header
                  _
                $region68: #{pupilnet_v2_forward.7} parent=65 // loop_header
                  %s1854 = sphi 0, %s1856
                  %p1855 = scmp.ge.s32.totalorder %s1854, %s1852
                  %s1859 = sphi 0, %s1992
                  %s1860 = sphi %s1660, %s1995
                  %s1861 = sphi %s1671, %s1996
                $region69: #{pupilnet_v2_forward.7} parent=65 // loop_header_branch
                  %1858 = sbr.rel (%p1855) target = $region73
                $region70: #{pupilnet_v2_forward.7} parent=65 // loop_body
                  %v1862 = vld [vmem:[%s1860] sm:$0xff]
                  %1863 = vst [vmem:[%s1861] sm:$0xff] %v1862
                  %v1864 = vld [vmem:[%s1860 + $0x8] sm:$0xff]
                  %1865 = vst [vmem:[%s1861 + $0x8] sm:$0xff] %v1864
                  %v1866 = vld [vmem:[%s1860 + $0x10] sm:$0xff]
                  %1867 = vst [vmem:[%s1861 + $0x10] sm:$0xff] %v1866
                  %v1868 = vld [vmem:[%s1860 + $0x18] sm:$0xff]
                  %1869 = vst [vmem:[%s1861 + $0x18] sm:$0xff] %v1868
                  %v1870 = vld [vmem:[%s1860 + $0x20] sm:$0xff]
                  %1871 = vst [vmem:[%s1861 + $0x20] sm:$0xff] %v1870
                  %v1872 = vld [vmem:[%s1860 + $0x28] sm:$0xff]
                  %1873 = vst [vmem:[%s1861 + $0x28] sm:$0xff] %v1872
                  %v1874 = vld [vmem:[%s1860 + $0x30] sm:$0xff]
                  %1875 = vst [vmem:[%s1861 + $0x30] sm:$0xff] %v1874
                  %v1876 = vld [vmem:[%s1860 + $0x38] sm:$0xff]
                  %1877 = vst [vmem:[%s1861 + $0x38] sm:$0xff] %v1876
                  %v1878 = vld [vmem:[%s1860 + $0x40] sm:$0xff]
                  %1879 = vst [vmem:[%s1861 + $0x40] sm:$0xff] %v1878
                  %v1880 = vld [vmem:[%s1860 + $0x48] sm:$0xff]
                  %1881 = vst [vmem:[%s1861 + $0x48] sm:$0xff] %v1880
                  %v1882 = vld [vmem:[%s1860 + $0x50] sm:$0xff]
                  %1883 = vst [vmem:[%s1861 + $0x50] sm:$0xff] %v1882
                  %v1884 = vld [vmem:[%s1860 + $0x58] sm:$0xff]
                  %1885 = vst [vmem:[%s1861 + $0x58] sm:$0xff] %v1884
                  %v1886 = vld [vmem:[%s1860 + $0x60] sm:$0xff]
                  %1887 = vst [vmem:[%s1861 + $0x60] sm:$0xff] %v1886
                  %v1888 = vld [vmem:[%s1860 + $0x68] sm:$0xff]
                  %1889 = vst [vmem:[%s1861 + $0x68] sm:$0xff] %v1888
                  %v1890 = vld [vmem:[%s1860 + $0x70] sm:$0xff]
                  %1891 = vst [vmem:[%s1861 + $0x70] sm:$0xff] %v1890
                  %v1892 = vld [vmem:[%s1860 + $0x78] sm:$0xff]
                  %1893 = vst [vmem:[%s1861 + $0x78] sm:$0xff] %v1892
                  %v1894 = vld [vmem:[%s1860 + $0x80] sm:$0xff]
                  %1895 = vst [vmem:[%s1861 + $0x80] sm:$0xff] %v1894
                  %v1896 = vld [vmem:[%s1860 + $0x88] sm:$0xff]
                  %1897 = vst [vmem:[%s1861 + $0x88] sm:$0xff] %v1896
                  %v1898 = vld [vmem:[%s1860 + $0x90] sm:$0xff]
                  %1899 = vst [vmem:[%s1861 + $0x90] sm:$0xff] %v1898
                  %v1900 = vld [vmem:[%s1860 + $0x98] sm:$0xff]
                  %1901 = vst [vmem:[%s1861 + $0x98] sm:$0xff] %v1900
                  %v1902 = vld [vmem:[%s1860 + $0xa0] sm:$0xff]
                  %1903 = vst [vmem:[%s1861 + $0xa0] sm:$0xff] %v1902
                  %v1904 = vld [vmem:[%s1860 + $0xa8] sm:$0xff]
                  %1905 = vst [vmem:[%s1861 + $0xa8] sm:$0xff] %v1904
                  %v1906 = vld [vmem:[%s1860 + $0xb0] sm:$0xff]
                  %1907 = vst [vmem:[%s1861 + $0xb0] sm:$0xff] %v1906
                  %v1908 = vld [vmem:[%s1860 + $0xb8] sm:$0xff]
                  %1909 = vst [vmem:[%s1861 + $0xb8] sm:$0xff] %v1908
                  %v1910 = vld [vmem:[%s1860 + $0xc0] sm:$0xff]
                  %1911 = vst [vmem:[%s1861 + $0xc0] sm:$0xff] %v1910
                  %v1912 = vld [vmem:[%s1860 + $0xc8] sm:$0xff]
                  %1913 = vst [vmem:[%s1861 + $0xc8] sm:$0xff] %v1912
                  %v1914 = vld [vmem:[%s1860 + $0xd0] sm:$0xff]
                  %1915 = vst [vmem:[%s1861 + $0xd0] sm:$0xff] %v1914
                  %v1916 = vld [vmem:[%s1860 + $0xd8] sm:$0xff]
                  %1917 = vst [vmem:[%s1861 + $0xd8] sm:$0xff] %v1916
                  %v1918 = vld [vmem:[%s1860 + $0xe0] sm:$0xff]
                  %1919 = vst [vmem:[%s1861 + $0xe0] sm:$0xff] %v1918
                  %v1920 = vld [vmem:[%s1860 + $0xe8] sm:$0xff]
                  %1921 = vst [vmem:[%s1861 + $0xe8] sm:$0xff] %v1920
                  %v1922 = vld [vmem:[%s1860 + $0xf0] sm:$0xff]
                  %1923 = vst [vmem:[%s1861 + $0xf0] sm:$0xff] %v1922
                  %v1924 = vld [vmem:[%s1860 + $0xf8] sm:$0xff]
                  %1925 = vst [vmem:[%s1861 + $0xf8] sm:$0xff] %v1924
                  %v1926 = vld [vmem:[%s1860 + $0x100] sm:$0xff]
                  %1927 = vst [vmem:[%s1861 + $0x100] sm:$0xff] %v1926
                  %v1928 = vld [vmem:[%s1860 + $0x108] sm:$0xff]
                  %1929 = vst [vmem:[%s1861 + $0x108] sm:$0xff] %v1928
                  %v1930 = vld [vmem:[%s1860 + $0x110] sm:$0xff]
                  %1931 = vst [vmem:[%s1861 + $0x110] sm:$0xff] %v1930
                  %v1932 = vld [vmem:[%s1860 + $0x118] sm:$0xff]
                  %1933 = vst [vmem:[%s1861 + $0x118] sm:$0xff] %v1932
                  %v1934 = vld [vmem:[%s1860 + $0x120] sm:$0xff]
                  %1935 = vst [vmem:[%s1861 + $0x120] sm:$0xff] %v1934
                  %v1936 = vld [vmem:[%s1860 + $0x128] sm:$0xff]
                  %1937 = vst [vmem:[%s1861 + $0x128] sm:$0xff] %v1936
                  %v1938 = vld [vmem:[%s1860 + $0x130] sm:$0xff]
                  %1939 = vst [vmem:[%s1861 + $0x130] sm:$0xff] %v1938
                  %v1940 = vld [vmem:[%s1860 + $0x138] sm:$0xff]
                  %1941 = vst [vmem:[%s1861 + $0x138] sm:$0xff] %v1940
                  %v1942 = vld [vmem:[%s1860 + $0x140] sm:$0xff]
                  %1943 = vst [vmem:[%s1861 + $0x140] sm:$0xff] %v1942
                  %v1944 = vld [vmem:[%s1860 + $0x148] sm:$0xff]
                  %1945 = vst [vmem:[%s1861 + $0x148] sm:$0xff] %v1944
                  %v1946 = vld [vmem:[%s1860 + $0x150] sm:$0xff]
                  %1947 = vst [vmem:[%s1861 + $0x150] sm:$0xff] %v1946
                  %v1948 = vld [vmem:[%s1860 + $0x158] sm:$0xff]
                  %1949 = vst [vmem:[%s1861 + $0x158] sm:$0xff] %v1948
                  %v1950 = vld [vmem:[%s1860 + $0x160] sm:$0xff]
                  %1951 = vst [vmem:[%s1861 + $0x160] sm:$0xff] %v1950
                  %v1952 = vld [vmem:[%s1860 + $0x168] sm:$0xff]
                  %1953 = vst [vmem:[%s1861 + $0x168] sm:$0xff] %v1952
                  %v1954 = vld [vmem:[%s1860 + $0x170] sm:$0xff]
                  %1955 = vst [vmem:[%s1861 + $0x170] sm:$0xff] %v1954
                  %v1956 = vld [vmem:[%s1860 + $0x178] sm:$0xff]
                  %1957 = vst [vmem:[%s1861 + $0x178] sm:$0xff] %v1956
                  %v1958 = vld [vmem:[%s1860 + $0x180] sm:$0xff]
                  %1959 = vst [vmem:[%s1861 + $0x180] sm:$0xff] %v1958
                  %v1960 = vld [vmem:[%s1860 + $0x188] sm:$0xff]
                  %1961 = vst [vmem:[%s1861 + $0x188] sm:$0xff] %v1960
                  %v1962 = vld [vmem:[%s1860 + $0x190] sm:$0xff]
                  %1963 = vst [vmem:[%s1861 + $0x190] sm:$0xff] %v1962
                  %v1964 = vld [vmem:[%s1860 + $0x198] sm:$0xff]
                  %1965 = vst [vmem:[%s1861 + $0x198] sm:$0xff] %v1964
                  %v1966 = vld [vmem:[%s1860 + $0x1a0] sm:$0xff]
                  %1967 = vst [vmem:[%s1861 + $0x1a0] sm:$0xff] %v1966
                  %v1968 = vld [vmem:[%s1860 + $0x1a8] sm:$0xff]
                  %1969 = vst [vmem:[%s1861 + $0x1a8] sm:$0xff] %v1968
                  %v1970 = vld [vmem:[%s1860 + $0x1b0] sm:$0xff]
                  %1971 = vst [vmem:[%s1861 + $0x1b0] sm:$0xff] %v1970
                  %v1972 = vld [vmem:[%s1860 + $0x1b8] sm:$0xff]
                  %1973 = vst [vmem:[%s1861 + $0x1b8] sm:$0xff] %v1972
                  %v1974 = vld [vmem:[%s1860 + $0x1c0] sm:$0xff]
                  %1975 = vst [vmem:[%s1861 + $0x1c0] sm:$0xff] %v1974
                  %v1976 = vld [vmem:[%s1860 + $0x1c8] sm:$0xff]
                  %1977 = vst [vmem:[%s1861 + $0x1c8] sm:$0xff] %v1976
                  %v1978 = vld [vmem:[%s1860 + $0x1d0] sm:$0xff]
                  %1979 = vst [vmem:[%s1861 + $0x1d0] sm:$0xff] %v1978
                  %v1980 = vld [vmem:[%s1860 + $0x1d8] sm:$0xff]
                  %1981 = vst [vmem:[%s1861 + $0x1d8] sm:$0xff] %v1980
                  %v1982 = vld [vmem:[%s1860 + $0x1e0] sm:$0xff]
                  %1983 = vst [vmem:[%s1861 + $0x1e0] sm:$0xff] %v1982
                  %v1984 = vld [vmem:[%s1860 + $0x1e8] sm:$0xff]
                  %1985 = vst [vmem:[%s1861 + $0x1e8] sm:$0xff] %v1984
                  %v1986 = vld [vmem:[%s1860 + $0x1f0] sm:$0xff]
                  %1987 = vst [vmem:[%s1861 + $0x1f0] sm:$0xff] %v1986
                  %v1988 = vld [vmem:[%s1860 + $0x1f8] sm:$0xff]
                  %1989 = vst [vmem:[%s1861 + $0x1f8] sm:$0xff] %v1988
                  %s1990 = sadd.s32 1, %s1859
                  %p1991 = scmp.ge.s32.totalorder %s1990, %s1852
                  %s1992 = scalar_select %p1991, 0, %s1990
                  %s1993 = smul.u32 %s1992, 512
                  %s1994 = smul.u32 %s1992, 512
                  %s1995 = scalar_lea.vmem %s1660, %s1993 [#allocation2]
                  %s1996 = scalar_lea.vmem %s1671, %s1994
                $region71: #{pupilnet_v2_forward.7} parent=65 // loop_footer
                  %s1856 = sadd.s32 %s1854, 1
                $region72: #{pupilnet_v2_forward.7} parent=65 // loop_footer_branch
                  %1853 = sbr.rel target = $region68
                $region73: #{pupilnet_v2_forward.7} parent=65 // loop_exit
                  _
                %s1997 = sshrl.u32 %s1667, 6
                %s1998 = sand.u32 %s1667, 63
                %s1999 = smul.u32 %s1997, 64
                %s2000 = smul.u32 8, %s1999
                %s2001 = scalar_lea.vmem %s1660, %s2000 [#allocation2]
                %s2002 = smul.u32 8, %s1999
                %s2003 = scalar_lea.vmem %s1671, %s2002
                // While loop
                $region74: #{pupilnet_v2_forward.7} parent=65 // loop_pre_header
                  _
                $region75: #{pupilnet_v2_forward.7} parent=65 // loop_header
                  %s2005 = sphi 0, %s2007
                  %p2006 = scmp.ge.s32.totalorder %s2005, %s1998
                  %s2010 = sphi 0, %s2017
                  %s2011 = sphi %s2001, %s2020
                  %s2012 = sphi %s2003, %s2021
                $region76: #{pupilnet_v2_forward.7} parent=65 // loop_header_branch
                  %2009 = sbr.rel (%p2006) target = $region80
                $region77: #{pupilnet_v2_forward.7} parent=65 // loop_body
                  %v2013 = vld [vmem:[%s2011] sm:$0xff]
                  %2014 = vst [vmem:[%s2012] sm:$0xff] %v2013
                  %s2015 = sadd.s32 1, %s2010
                  %p2016 = scmp.ge.s32.totalorder %s2015, %s1998
                  %s2017 = scalar_select %p2016, 0, %s2015
                  %s2018 = smul.u32 %s2017, 8
                  %s2019 = smul.u32 %s2017, 8
                  %s2020 = scalar_lea.vmem %s2001, %s2018 [#allocation2]
                  %s2021 = scalar_lea.vmem %s2003, %s2019
                $region78: #{pupilnet_v2_forward.7} parent=65 // loop_footer
                  %s2007 = sadd.s32 %s2005, 1
                $region79: #{pupilnet_v2_forward.7} parent=65 // loop_footer_branch
                  %2004 = sbr.rel target = $region75
                $region80: #{pupilnet_v2_forward.7} parent=65 // loop_exit
                  _
              $region66: #{pupilnet_v2_forward.7} parent=43 // pred_fallthru
                _
              // Predicated region
              $region81: #{pupilnet_v2_forward.7} parent=43 // pred_check
                _
              $region82: #{pupilnet_v2_forward.7} parent=43 // pred_check_branch
                %2023 = sbr.rel target = $region84
              $region83: #{pupilnet_v2_forward.7} parent=43 // pred_region
                _
              $region84: #{pupilnet_v2_forward.7} parent=43 // pred_fallthru
                _
            $region44: #{pupilnet_v2_forward.7} parent=39 // pred_fallthru
              _
            // Predicated region
            $region45: #{pupilnet_v2_forward.7} parent=39 // pred_check
              _
            $region46: #{pupilnet_v2_forward.7} parent=39 // pred_check_branch
              %1678 = sbr.rel target = $region48
            $region47: #{pupilnet_v2_forward.7} parent=39 // pred_region
              %s1680 = sshrl.u32 %s1667, 6
              // While loop
              $region49: #{pupilnet_v2_forward.7} parent=47 // loop_pre_header
                _
              $region50: #{pupilnet_v2_forward.7} parent=47 // loop_header
                %s1682 = sphi 0, %s1684
                %p1683 = scmp.ge.s32.totalorder %s1682, %s1680
                %s1687 = sphi 0, %s1820
                %s1688 = sphi %s1660, %s1823
                %s1689 = sphi %s1671, %s1824
              $region51: #{pupilnet_v2_forward.7} parent=47 // loop_header_branch
                %1686 = sbr.rel (%p1683) target = $region55
              $region52: #{pupilnet_v2_forward.7} parent=47 // loop_body
                %v1690 = vld [vmem:[%s1688] sm:$0xff]
                %1691 = vst [vmem:[%s1689] sm:$0xff] %v1690
                %v1692 = vld [vmem:[%s1688 + $0x8] sm:$0xff]
                %1693 = vst [vmem:[%s1689 + $0x8] sm:$0xff] %v1692
                %v1694 = vld [vmem:[%s1688 + $0x10] sm:$0xff]
                %1695 = vst [vmem:[%s1689 + $0x10] sm:$0xff] %v1694
                %v1696 = vld [vmem:[%s1688 + $0x18] sm:$0xff]
                %1697 = vst [vmem:[%s1689 + $0x18] sm:$0xff] %v1696
                %v1698 = vld [vmem:[%s1688 + $0x20] sm:$0xff]
                %1699 = vst [vmem:[%s1689 + $0x20] sm:$0xff] %v1698
                %v1700 = vld [vmem:[%s1688 + $0x28] sm:$0xff]
                %1701 = vst [vmem:[%s1689 + $0x28] sm:$0xff] %v1700
                %v1702 = vld [vmem:[%s1688 + $0x30] sm:$0xff]
                %1703 = vst [vmem:[%s1689 + $0x30] sm:$0xff] %v1702
                %v1704 = vld [vmem:[%s1688 + $0x38] sm:$0xff]
                %1705 = vst [vmem:[%s1689 + $0x38] sm:$0xff] %v1704
                %v1706 = vld [vmem:[%s1688 + $0x40] sm:$0xff]
                %1707 = vst [vmem:[%s1689 + $0x40] sm:$0xff] %v1706
                %v1708 = vld [vmem:[%s1688 + $0x48] sm:$0xff]
                %1709 = vst [vmem:[%s1689 + $0x48] sm:$0xff] %v1708
                %v1710 = vld [vmem:[%s1688 + $0x50] sm:$0xff]
                %1711 = vst [vmem:[%s1689 + $0x50] sm:$0xff] %v1710
                %v1712 = vld [vmem:[%s1688 + $0x58] sm:$0xff]
                %1713 = vst [vmem:[%s1689 + $0x58] sm:$0xff] %v1712
                %v1714 = vld [vmem:[%s1688 + $0x60] sm:$0xff]
                %1715 = vst [vmem:[%s1689 + $0x60] sm:$0xff] %v1714
                %v1716 = vld [vmem:[%s1688 + $0x68] sm:$0xff]
                %1717 = vst [vmem:[%s1689 + $0x68] sm:$0xff] %v1716
                %v1718 = vld [vmem:[%s1688 + $0x70] sm:$0xff]
                %1719 = vst [vmem:[%s1689 + $0x70] sm:$0xff] %v1718
                %v1720 = vld [vmem:[%s1688 + $0x78] sm:$0xff]
                %1721 = vst [vmem:[%s1689 + $0x78] sm:$0xff] %v1720
                %v1722 = vld [vmem:[%s1688 + $0x80] sm:$0xff]
                %1723 = vst [vmem:[%s1689 + $0x80] sm:$0xff] %v1722
                %v1724 = vld [vmem:[%s1688 + $0x88] sm:$0xff]
                %1725 = vst [vmem:[%s1689 + $0x88] sm:$0xff] %v1724
                %v1726 = vld [vmem:[%s1688 + $0x90] sm:$0xff]
                %1727 = vst [vmem:[%s1689 + $0x90] sm:$0xff] %v1726
                %v1728 = vld [vmem:[%s1688 + $0x98] sm:$0xff]
                %1729 = vst [vmem:[%s1689 + $0x98] sm:$0xff] %v1728
                %v1730 = vld [vmem:[%s1688 + $0xa0] sm:$0xff]
                %1731 = vst [vmem:[%s1689 + $0xa0] sm:$0xff] %v1730
                %v1732 = vld [vmem:[%s1688 + $0xa8] sm:$0xff]
                %1733 = vst [vmem:[%s1689 + $0xa8] sm:$0xff] %v1732
                %v1734 = vld [vmem:[%s1688 + $0xb0] sm:$0xff]
                %1735 = vst [vmem:[%s1689 + $0xb0] sm:$0xff] %v1734
                %v1736 = vld [vmem:[%s1688 + $0xb8] sm:$0xff]
                %1737 = vst [vmem:[%s1689 + $0xb8] sm:$0xff] %v1736
                %v1738 = vld [vmem:[%s1688 + $0xc0] sm:$0xff]
                %1739 = vst [vmem:[%s1689 + $0xc0] sm:$0xff] %v1738
                %v1740 = vld [vmem:[%s1688 + $0xc8] sm:$0xff]
                %1741 = vst [vmem:[%s1689 + $0xc8] sm:$0xff] %v1740
                %v1742 = vld [vmem:[%s1688 + $0xd0] sm:$0xff]
                %1743 = vst [vmem:[%s1689 + $0xd0] sm:$0xff] %v1742
                %v1744 = vld [vmem:[%s1688 + $0xd8] sm:$0xff]
                %1745 = vst [vmem:[%s1689 + $0xd8] sm:$0xff] %v1744
                %v1746 = vld [vmem:[%s1688 + $0xe0] sm:$0xff]
                %1747 = vst [vmem:[%s1689 + $0xe0] sm:$0xff] %v1746
                %v1748 = vld [vmem:[%s1688 + $0xe8] sm:$0xff]
                %1749 = vst [vmem:[%s1689 + $0xe8] sm:$0xff] %v1748
                %v1750 = vld [vmem:[%s1688 + $0xf0] sm:$0xff]
                %1751 = vst [vmem:[%s1689 + $0xf0] sm:$0xff] %v1750
                %v1752 = vld [vmem:[%s1688 + $0xf8] sm:$0xff]
                %1753 = vst [vmem:[%s1689 + $0xf8] sm:$0xff] %v1752
                %v1754 = vld [vmem:[%s1688 + $0x100] sm:$0xff]
                %1755 = vst [vmem:[%s1689 + $0x100] sm:$0xff] %v1754
                %v1756 = vld [vmem:[%s1688 + $0x108] sm:$0xff]
                %1757 = vst [vmem:[%s1689 + $0x108] sm:$0xff] %v1756
                %v1758 = vld [vmem:[%s1688 + $0x110] sm:$0xff]
                %1759 = vst [vmem:[%s1689 + $0x110] sm:$0xff] %v1758
                %v1760 = vld [vmem:[%s1688 + $0x118] sm:$0xff]
                %1761 = vst [vmem:[%s1689 + $0x118] sm:$0xff] %v1760
                %v1762 = vld [vmem:[%s1688 + $0x120] sm:$0xff]
                %1763 = vst [vmem:[%s1689 + $0x120] sm:$0xff] %v1762
                %v1764 = vld [vmem:[%s1688 + $0x128] sm:$0xff]
                %1765 = vst [vmem:[%s1689 + $0x128] sm:$0xff] %v1764
                %v1766 = vld [vmem:[%s1688 + $0x130] sm:$0xff]
                %1767 = vst [vmem:[%s1689 + $0x130] sm:$0xff] %v1766
                %v1768 = vld [vmem:[%s1688 + $0x138] sm:$0xff]
                %1769 = vst [vmem:[%s1689 + $0x138] sm:$0xff] %v1768
                %v1770 = vld [vmem:[%s1688 + $0x140] sm:$0xff]
                %1771 = vst [vmem:[%s1689 + $0x140] sm:$0xff] %v1770
                %v1772 = vld [vmem:[%s1688 + $0x148] sm:$0xff]
                %1773 = vst [vmem:[%s1689 + $0x148] sm:$0xff] %v1772
                %v1774 = vld [vmem:[%s1688 + $0x150] sm:$0xff]
                %1775 = vst [vmem:[%s1689 + $0x150] sm:$0xff] %v1774
                %v1776 = vld [vmem:[%s1688 + $0x158] sm:$0xff]
                %1777 = vst [vmem:[%s1689 + $0x158] sm:$0xff] %v1776
                %v1778 = vld [vmem:[%s1688 + $0x160] sm:$0xff]
                %1779 = vst [vmem:[%s1689 + $0x160] sm:$0xff] %v1778
                %v1780 = vld [vmem:[%s1688 + $0x168] sm:$0xff]
                %1781 = vst [vmem:[%s1689 + $0x168] sm:$0xff] %v1780
                %v1782 = vld [vmem:[%s1688 + $0x170] sm:$0xff]
                %1783 = vst [vmem:[%s1689 + $0x170] sm:$0xff] %v1782
                %v1784 = vld [vmem:[%s1688 + $0x178] sm:$0xff]
                %1785 = vst [vmem:[%s1689 + $0x178] sm:$0xff] %v1784
                %v1786 = vld [vmem:[%s1688 + $0x180] sm:$0xff]
                %1787 = vst [vmem:[%s1689 + $0x180] sm:$0xff] %v1786
                %v1788 = vld [vmem:[%s1688 + $0x188] sm:$0xff]
                %1789 = vst [vmem:[%s1689 + $0x188] sm:$0xff] %v1788
                %v1790 = vld [vmem:[%s1688 + $0x190] sm:$0xff]
                %1791 = vst [vmem:[%s1689 + $0x190] sm:$0xff] %v1790
                %v1792 = vld [vmem:[%s1688 + $0x198] sm:$0xff]
                %1793 = vst [vmem:[%s1689 + $0x198] sm:$0xff] %v1792
                %v1794 = vld [vmem:[%s1688 + $0x1a0] sm:$0xff]
                %1795 = vst [vmem:[%s1689 + $0x1a0] sm:$0xff] %v1794
                %v1796 = vld [vmem:[%s1688 + $0x1a8] sm:$0xff]
                %1797 = vst [vmem:[%s1689 + $0x1a8] sm:$0xff] %v1796
                %v1798 = vld [vmem:[%s1688 + $0x1b0] sm:$0xff]
                %1799 = vst [vmem:[%s1689 + $0x1b0] sm:$0xff] %v1798
                %v1800 = vld [vmem:[%s1688 + $0x1b8] sm:$0xff]
                %1801 = vst [vmem:[%s1689 + $0x1b8] sm:$0xff] %v1800
                %v1802 = vld [vmem:[%s1688 + $0x1c0] sm:$0xff]
                %1803 = vst [vmem:[%s1689 + $0x1c0] sm:$0xff] %v1802
                %v1804 = vld [vmem:[%s1688 + $0x1c8] sm:$0xff]
                %1805 = vst [vmem:[%s1689 + $0x1c8] sm:$0xff] %v1804
                %v1806 = vld [vmem:[%s1688 + $0x1d0] sm:$0xff]
                %1807 = vst [vmem:[%s1689 + $0x1d0] sm:$0xff] %v1806
                %v1808 = vld [vmem:[%s1688 + $0x1d8] sm:$0xff]
                %1809 = vst [vmem:[%s1689 + $0x1d8] sm:$0xff] %v1808
                %v1810 = vld [vmem:[%s1688 + $0x1e0] sm:$0xff]
                %1811 = vst [vmem:[%s1689 + $0x1e0] sm:$0xff] %v1810
                %v1812 = vld [vmem:[%s1688 + $0x1e8] sm:$0xff]
                %1813 = vst [vmem:[%s1689 + $0x1e8] sm:$0xff] %v1812
                %v1814 = vld [vmem:[%s1688 + $0x1f0] sm:$0xff]
                %1815 = vst [vmem:[%s1689 + $0x1f0] sm:$0xff] %v1814
                %v1816 = vld [vmem:[%s1688 + $0x1f8] sm:$0xff]
                %1817 = vst [vmem:[%s1689 + $0x1f8] sm:$0xff] %v1816
                %s1818 = sadd.s32 1, %s1687
                %p1819 = scmp.ge.s32.totalorder %s1818, %s1680
                %s1820 = scalar_select %p1819, 0, %s1818
                %s1821 = smul.u32 %s1820, 512
                %s1822 = smul.u32 %s1820, 512
                %s1823 = scalar_lea.vmem %s1660, %s1821 [#allocation2]
                %s1824 = scalar_lea.vmem %s1671, %s1822
              $region53: #{pupilnet_v2_forward.7} parent=47 // loop_footer
                %s1684 = sadd.s32 %s1682, 1
              $region54: #{pupilnet_v2_forward.7} parent=47 // loop_footer_branch
                %1681 = sbr.rel target = $region50
              $region55: #{pupilnet_v2_forward.7} parent=47 // loop_exit
                _
              %s1825 = sshrl.u32 %s1667, 6
              %s1826 = sand.u32 %s1667, 63
              %s1827 = smul.u32 %s1825, 64
              %s1828 = smul.u32 8, %s1827
              %s1829 = scalar_lea.vmem %s1660, %s1828 [#allocation2]
              %s1830 = smul.u32 8, %s1827
              %s1831 = scalar_lea.vmem %s1671, %s1830
              // While loop
              $region56: #{pupilnet_v2_forward.7} parent=47 // loop_pre_header
                _
              $region57: #{pupilnet_v2_forward.7} parent=47 // loop_header
                %s1833 = sphi 0, %s1835
                %p1834 = scmp.ge.s32.totalorder %s1833, %s1826
                %s1838 = sphi 0, %s1845
                %s1839 = sphi %s1829, %s1848
                %s1840 = sphi %s1831, %s1849
              $region58: #{pupilnet_v2_forward.7} parent=47 // loop_header_branch
                %1837 = sbr.rel (%p1834) target = $region62
              $region59: #{pupilnet_v2_forward.7} parent=47 // loop_body
                %v1841 = vld [vmem:[%s1839] sm:$0xff]
                %1842 = vst [vmem:[%s1840] sm:$0xff] %v1841
                %s1843 = sadd.s32 1, %s1838
                %p1844 = scmp.ge.s32.totalorder %s1843, %s1826
                %s1845 = scalar_select %p1844, 0, %s1843
                %s1846 = smul.u32 %s1845, 8
                %s1847 = smul.u32 %s1845, 8
                %s1848 = scalar_lea.vmem %s1829, %s1846 [#allocation2]
                %s1849 = scalar_lea.vmem %s1831, %s1847
              $region60: #{pupilnet_v2_forward.7} parent=47 // loop_footer
                %s1835 = sadd.s32 %s1833, 1
              $region61: #{pupilnet_v2_forward.7} parent=47 // loop_footer_branch
                %1832 = sbr.rel target = $region57
              $region62: #{pupilnet_v2_forward.7} parent=47 // loop_exit
                _
            $region48: #{pupilnet_v2_forward.7} parent=39 // pred_fallthru
              _
          $region40: #{pupilnet_v2_forward.7} parent=35 // pred_fallthru
            _
          %2024 = vnop
        $region36: #{pupilnet_v2_forward.7} parent=31 // pred_fallthru
          _
      $region32: #{pupilnet_v2_forward.7} parent=5 // pred_fallthru
        _
      %p2025 = scmp.le.s32.totalorder 2, %s9
      // Predicated region
      $region85: #{pupilnet_v2_forward.7} parent=5 // pred_check
        %p2026 = pneg %p2025
      $region86: #{pupilnet_v2_forward.7} parent=5 // pred_check_branch
        %2028 = sbr.rel (%p2026) target = $region88
      $region87: #{pupilnet_v2_forward.7} parent=5 // pred_region
        %s2029 = ssub.s32 %s9, 2
        // Predicated region
        $region89: #{pupilnet_v2_forward.7} parent=87 // pred_check
          %p2030 = pneg %p106
        $region90: #{pupilnet_v2_forward.7} parent=87 // pred_check_branch
          %2032 = sbr.rel (%p2030) target = $region92
        $region91: #{pupilnet_v2_forward.7} parent=87 // pred_region
          %s2033 = sand.u32 %s91, 1
          %s2034 = sand.u32 %s91, 1
          %s2035 = smul.addr %s2034, 1024
          %s2036 = scalar_lea.vmem [#allocation2], %s2035
        $region92: #{pupilnet_v2_forward.7} parent=87 // pred_fallthru
          _
      $region88: #{pupilnet_v2_forward.7} parent=5 // pred_fallthru
        _
    $region6: #{pupilnet_v2_forward.7} parent=1 // loop_footer
      %s13 = sadd.s32 1, %s9
    $region7: #{pupilnet_v2_forward.7} parent=1 // loop_footer_branch
      %8 = sbr.rel target = $region3
    $region8: #{pupilnet_v2_forward.7} parent=1 // loop_exit
      _

// kernel: pupilnet_v2_forward.8
$region0: #{pupilnet_v2_forward.8}
  #allocation0 [shape = 'u32[]', space=smem, size = 0x4, offset = 0x4, fixed_abs, tag = 'smem constant byte address 0x4 - core index']
  #allocation1 [shape = 'u32[144,128]{1,0:T(1,128)}', space=vmem, size = 0x12000, scoped, tag = 'internal scratch']
  %s0 = inlined_call_operand.vmem [shape: bf16[7426,72], index: 0, kind: input, shape index: {}]
  %s1 = inlined_call_operand.vmem [shape: bf16[72,16], index: 1, kind: input, shape index: {}]
  %s2 = inlined_call_operand.vmem [shape: f32[1,16], index: 2, kind: input, shape index: {}]
  %s3 = inlined_call_operand.vmem [shape: f32[7426,16], index: 3, kind: output, shape index: {}]
  %s4 = sld [smem:[#allocation0]]
  $region93: #{pupilnet_v2_forward.8} parent=0
    _
  %s6 = ssub.s32 1, %s4
  %s7 = scalar_select 0, %s6, %s4
  $region1: #{pupilnet_v2_forward.8} parent=0
    #allocation2 [shape = 'u8[1048576]{0}', space=vmem, size = 0x100000, scoped, tag = 'output window, operand 0']
    loop: start=0, step=1, limit=10
    $region2: #{pupilnet_v2_forward.8} parent=1 // loop_pre_header
      _
    $region3: #{pupilnet_v2_forward.8} parent=1 // loop_header
      %s9 = sphi 0, %s13
      %p10 = scmp.ge.s32.totalorder %s9, 10
      %s19 = sphi 0, %s21
      %s22 = sphi 0, %s19
      %s23 = sphi 0, %s22
      %s39 = sphi 0, %s23
      %s43 = sphi 0, %s43
      %s45 = sphi 0, %s43
      %s46 = sphi 0, %s45
      %s60 = sphi 0, %s46
      %s64 = sphi 0, %s64
      %s66 = sphi 0, %s64
      %s67 = sphi 0, %s66
      %s81 = sphi 0, %s67
      %s87 = sphi 0, %s89
      %s90 = sphi 0, %s87
      %s91 = sphi 0, %s90
      %s107 = sphi 0, %s91
    $region4: #{pupilnet_v2_forward.8} parent=1 // loop_header_branch
      %12 = sbr.rel (%p10) target = $region8
    $region5: #{pupilnet_v2_forward.8} parent=1 // loop_body
      %s14 = ssub.s32 %s9, 1
      %s15 = ssub.s32 %s9, 2
      %s16 = sadd.s32 %s9, 1
      %s17 = ssub.s32 %s9, %s16
      %p18 = scmp.eq.s32.totalorder %s17, 0
      %s20 = sadd.s32 %s19, 1
      %s21 = scalar_select %p18, %s19, %s20
      %p24 = pneg %p18
      %p25 = scmp.eq.s32.totalorder %s9, 7
      %p26 = por %p24, %p25
      %p27 = scmp.ne.s32.totalorder %s19, %s22
      %p28 = scmp.eq.s32.totalorder %s9, 0
      %p29 = por %p27, %p28
      %p30 = scmp.ne.s32.totalorder %s19, %s22
      %p31 = scmp.eq.s32.totalorder %s14, 7
      %p32 = por %p30, %p31
      %p33 = scmp.ne.s32.totalorder %s22, %s23
      %p34 = scmp.eq.s32.totalorder %s14, 0
      %p35 = por %p33, %p34
      %p36 = scmp.ne.s32.totalorder %s22, %s23
      %p37 = scmp.eq.s32.totalorder %s15, 7
      %p38 = por %p36, %p37
      %p40 = scmp.ne.s32.totalorder %s23, %s39
      %p41 = scmp.eq.s32.totalorder %s15, 0
      %p42 = por %p40, %p41
      %s44 = sadd.s32 %s43, 1
      %p47 = scmp.eq.s32.totalorder %s9, 7
      %p48 = scmp.ne.s32.totalorder %s43, %s45
      %p49 = scmp.eq.s32.totalorder %s9, 0
      %p50 = por %p48, %p49
      %p51 = scmp.ne.s32.totalorder %s43, %s45
      %p52 = scmp.eq.s32.totalorder %s14, 7
      %p53 = por %p51, %p52
      %p54 = scmp.ne.s32.totalorder %s45, %s46
      %p55 = scmp.eq.s32.totalorder %s14, 0
      %p56 = por %p54, %p55
      %p57 = scmp.ne.s32.totalorder %s45, %s46
      %p58 = scmp.eq.s32.totalorder %s15, 7
      %p59 = por %p57, %p58
      %p61 = scmp.ne.s32.totalorder %s46, %s60
      %p62 = scmp.eq.s32.totalorder %s15, 0
      %p63 = por %p61, %p62
      %s65 = sadd.s32 %s64, 1
      %p68 = scmp.eq.s32.totalorder %s9, 7
      %p69 = scmp.ne.s32.totalorder %s64, %s66
      %p70 = scmp.eq.s32.totalorder %s9, 0
      %p71 = por %p69, %p70
      %p72 = scmp.ne.s32.totalorder %s64, %s66
      %p73 = scmp.eq.s32.totalorder %s14, 7
      %p74 = por %p72, %p73
      %p75 = scmp.ne.s32.totalorder %s66, %s67
      %p76 = scmp.eq.s32.totalorder %s14, 0
      %p77 = por %p75, %p76
      %p78 = scmp.ne.s32.totalorder %s66, %s67
      %p79 = scmp.eq.s32.totalorder %s15, 7
      %p80 = por %p78, %p79
      %p82 = scmp.ne.s32.totalorder %s67, %s81
      %p83 = scmp.eq.s32.totalorder %s15, 0
      %p84 = por %p82, %p83
      %s85 = ssub.s32 %s9, %s16
      %p86 = scmp.eq.s32.totalorder %s85, 0
      %s88 = sadd.s32 %s87, 1
      %s89 = scalar_select %p86, %s87, %s88
      %p92 = pneg %p86
      %p93 = scmp.eq.s32.totalorder %s9, 7
      %p94 = por %p92, %p93
      %p95 = scmp.ne.s32.totalorder %s87, %s90
      %p96 = scmp.eq.s32.totalorder %s9, 0
      %p97 = por %p95, %p96
      %p98 = scmp.ne.s32.totalorder %s87, %s90
      %p99 = scmp.eq.s32.totalorder %s14, 7
      %p100 = por %p98, %p99
      %p101 = scmp.ne.s32.totalorder %s90, %s91
      %p102 = scmp.eq.s32.totalorder %s14, 0
      %p103 = por %p101, %p102
      %p104 = scmp.ne.s32.totalorder %s90, %s91
      %p105 = scmp.eq.s32.totalorder %s15, 7
      %p106 = por %p104, %p105
      %p108 = scmp.ne.s32.totalorder %s91, %s107
      %p109 = scmp.eq.s32.totalorder %s15, 0
      %p110 = por %p108, %p109
      %p111 = scmp.le.s32.totalorder 1, %s9
      %p112 = scmp.lt.s32.totalorder %s9, 9
      %p113 = pnand %p111, %p112
      %p114 = pneg %p113
      // Predicated region
      $region9: #{pupilnet_v2_forward.8} parent=5 // pred_check
        _
      $region10: #{pupilnet_v2_forward.8} parent=5 // pred_check_branch
        %116 = sbr.rel (%p113) target = $region12
      $region11: #{pupilnet_v2_forward.8} parent=5 // pred_region
        %s117 = ssub.s32 %s9, 1
        // Predicated region
        $region13: #{pupilnet_v2_forward.8} parent=11 // pred_check
          %p118 = pneg %p56
        $region14: #{pupilnet_v2_forward.8} parent=11 // pred_check_branch
          %120 = sbr.rel (%p118) target = $region16
        $region15: #{pupilnet_v2_forward.8} parent=11 // pred_region
          _
        $region16: #{pupilnet_v2_forward.8} parent=11 // pred_fallthru
          _
        // Predicated region
        $region17: #{pupilnet_v2_forward.8} parent=11 // pred_check
          %p121 = pneg %p77
        $region18: #{pupilnet_v2_forward.8} parent=11 // pred_check_branch
          %123 = sbr.rel (%p121) target = $region20
        $region19: #{pupilnet_v2_forward.8} parent=11 // pred_region
          _
        $region20: #{pupilnet_v2_forward.8} parent=11 // pred_fallthru
          _
      $region12: #{pupilnet_v2_forward.8} parent=5 // pred_fallthru
        _
      %p124 = scmp.lt.s32.totalorder %s9, 8
      // Predicated region
      $region21: #{pupilnet_v2_forward.8} parent=5 // pred_check
        %p125 = pneg %p124
      $region22: #{pupilnet_v2_forward.8} parent=5 // pred_check_branch
        %127 = sbr.rel (%p125) target = $region24
      $region23: #{pupilnet_v2_forward.8} parent=5 // pred_region
        // Predicated region
        $region25: #{pupilnet_v2_forward.8} parent=23 // pred_check
          %p128 = pneg %p29
        $region26: #{pupilnet_v2_forward.8} parent=23 // pred_check_branch
          %130 = sbr.rel (%p128) target = $region28
        $region27: #{pupilnet_v2_forward.8} parent=23 // pred_region
          %s131 = smul.u32 128, %s9
          %s132 = ssub.s32 929, %s131
          %p133 = scmp.lt.s32.totalorder %s132, 128
          %s134 = scalar_select %p133, %s132, 128
          %s135 = smul.u32 64, %s134
          %p136 = scmp.lt.s32.totalorder %s131, 928
          %s137 = scalar_select %p136, %s131, 928
          %s138 = smul.addr %s137, 4
          %s139 = scalar_lea.vmem %s0, %s138
          %s140 = smul.u32 128, %s9
          %s141 = ssub.s32 929, %s140
          %p142 = scmp.lt.s32.totalorder %s141, 128
          %s143 = scalar_select %p142, %s141, 128
          %s144 = smul.u32 64, %s143
        $region28: #{pupilnet_v2_forward.8} parent=23 // pred_fallthru
          _
      $region24: #{pupilnet_v2_forward.8} parent=5 // pred_fallthru
        _
      %p145 = scmp.le.s32.totalorder 1, %s9
      %p146 = scmp.lt.s32.totalorder %s9, 9
      %p147 = pnand %p145, %p146
      %p148 = pneg %p147
      // Predicated region
      $region29: #{pupilnet_v2_forward.8} parent=5 // pred_check
        _
      $region30: #{pupilnet_v2_forward.8} parent=5 // pred_check_branch
        %150 = sbr.rel (%p147) target = $region32
      $region31: #{pupilnet_v2_forward.8} parent=5 // pred_region
        %s151 = ssub.s32 %s9, 1
        %s152 = smul.u32 128, %s14
        %s153 = ssub.s32 929, %s152
        %p154 = scmp.lt.s32.totalorder %s153, 128
        %s155 = scalar_select %p154, %s153, 128
        %s156 = smul.u32 64, %s155
        %p157 = scmp.lt.s32.totalorder %s152, 928
        %s158 = scalar_select %p157, %s152, 928
        %s159 = smul.addr %s158, 4
        %s160 = scalar_lea.vmem %s0, %s159
        %p161 = pneg %p35
        %p162 = pneg %p32
        %p163 = pneg %p56
        %p164 = pneg %p53
        %p165 = pneg %p77
        %p166 = pneg %p74
        %p167 = pneg %p103
        %p168 = pneg %p100
        %s169 = sand.u32 %s90, 1
        %s170 = sand.u32 %s90, 1
        %s171 = smul.addr %s170, 1024
        %s172 = scalar_lea.vmem [#allocation2], %s171
        %s173 = smul.u32 128, %s14
        %s174 = ssub.s32 929, %s173
        %p175 = scmp.lt.s32.totalorder %s174, 128
        %s176 = scalar_select %p175, %s174, 128
        %s177 = smul.u32 64, %s176
        %p178 = scmp.lt.s32.totalorder %s173, 928
        %s179 = scalar_select %p178, %s173, 928
        %s180 = smul.addr %s179, 4
        %s181 = scalar_lea.vmem %s0, %s180
        %s182 = smul.u32 128, %s14
        %s183 = ssub.s32 929, %s182
        %p184 = scmp.lt.s32.totalorder %s183, 128
        %s185 = scalar_select %p184, %s183, 128
        %s186 = smul.u32 64, %s185
        %s187 = smul.u32 128, %s14
        %s188 = ssub.s32 929, %s187
        %p189 = scmp.lt.s32.totalorder %s188, 128
        %s190 = scalar_select %p189, %s188, 128
        %s191 = smul.u32 128, %s190
        %v193 = vld [vmem:[%s181] sm:$0xf]
        %v194 = vld [vmem:[%s181 + $0x4] sm:$0xf]
        %v195 = vld [vmem:[%s181 + $0x8] sm:$0xf]
        %v196 = vld [vmem:[%s181 + $0xc] sm:$0xf]
        %v197 = vld [vmem:[%s181 + $0x10] sm:$0xf]
        %v198 = vld [vmem:[%s181 + $0x14] sm:$0xf]
        %v199 = vld [vmem:[%s181 + $0x18] sm:$0xf]
        %v200 = vld [vmem:[%s181 + $0x1c] sm:$0xf]
        %v201 = vld [vmem:[%s181 + $0x20] sm:$0xf]
        %v202 = vld [vmem:[%s181 + $0x24] sm:$0xf]
        %v203 = vld [vmem:[%s181 + $0x28] sm:$0xf]
        %v204 = vld [vmem:[%s181 + $0x2c] sm:$0xf]
        %v205 = vld [vmem:[%s181 + $0x30] sm:$0xf]
        %v206 = vld [vmem:[%s181 + $0x34] sm:$0xf]
        %v207 = vld [vmem:[%s181 + $0x38] sm:$0xf]
        %v208 = vld [vmem:[%s181 + $0x3c] sm:$0xf]
        %v209 = vld [vmem:[%s181 + $0x40] sm:$0xf]
        %v210 = vld [vmem:[%s181 + $0x44] sm:$0xf]
        %v211 = vld [vmem:[%s181 + $0x48] sm:$0xf]
        %v212 = vld [vmem:[%s181 + $0x4c] sm:$0xf]
        %v213 = vld [vmem:[%s181 + $0x50] sm:$0xf]
        %v214 = vld [vmem:[%s181 + $0x54] sm:$0xf]
        %v215 = vld [vmem:[%s181 + $0x58] sm:$0xf]
        %v216 = vld [vmem:[%s181 + $0x5c] sm:$0xf]
        %v217 = vld [vmem:[%s181 + $0x60] sm:$0xf]
        %v218 = vld [vmem:[%s181 + $0x64] sm:$0xf]
        %v219 = vld [vmem:[%s181 + $0x68] sm:$0xf]
        %v220 = vld [vmem:[%s181 + $0x6c] sm:$0xf]
        %v221 = vld [vmem:[%s181 + $0x70] sm:$0xf]
        %v222 = vld [vmem:[%s181 + $0x74] sm:$0xf]
        %v223 = vld [vmem:[%s181 + $0x78] sm:$0xf]
        %v224 = vld [vmem:[%s181 + $0x7c] sm:$0xf]
        %v225 = vld [vmem:[%s181 + $0x80] sm:$0xf]
        %v226 = vld [vmem:[%s181 + $0x84] sm:$0xf]
        %v227 = vld [vmem:[%s181 + $0x88] sm:$0xf]
        %v228 = vld [vmem:[%s181 + $0x8c] sm:$0xf]
        %v229 = vld [vmem:[%s181 + $0x90] sm:$0xf]
        %v230 = vld [vmem:[%s181 + $0x94] sm:$0xf]
        %v231 = vld [vmem:[%s181 + $0x98] sm:$0xf]
        %v232 = vld [vmem:[%s181 + $0x9c] sm:$0xf]
        %v233 = vld [vmem:[%s181 + $0xa0] sm:$0xf]
        %v234 = vld [vmem:[%s181 + $0xa4] sm:$0xf]
        %v235 = vld [vmem:[%s181 + $0xa8] sm:$0xf]
        %v236 = vld [vmem:[%s181 + $0xac] sm:$0xf]
        %v237 = vld [vmem:[%s181 + $0xb0] sm:$0xf]
        %v238 = vld [vmem:[%s181 + $0xb4] sm:$0xf]
        %v239 = vld [vmem:[%s181 + $0xb8] sm:$0xf]
        %v240 = vld [vmem:[%s181 + $0xbc] sm:$0xf]
        %v241 = vld [vmem:[%s181 + $0xc0] sm:$0xf]
        %v242 = vld [vmem:[%s181 + $0xc4] sm:$0xf]
        %v243 = vld [vmem:[%s181 + $0xc8] sm:$0xf]
        %v244 = vld [vmem:[%s181 + $0xcc] sm:$0xf]
        %v245 = vld [vmem:[%s181 + $0xd0] sm:$0xf]
        %v246 = vld [vmem:[%s181 + $0xd4] sm:$0xf]
        %v247 = vld [vmem:[%s181 + $0xd8] sm:$0xf]
        %v248 = vld [vmem:[%s181 + $0xdc] sm:$0xf]
        %v249 = vld [vmem:[%s181 + $0xe0] sm:$0xf]
        %v250 = vld [vmem:[%s181 + $0xe4] sm:$0xf]
        %v251 = vld [vmem:[%s181 + $0xe8] sm:$0xf]
        %v252 = vld [vmem:[%s181 + $0xec] sm:$0xf]
        %v253 = vld [vmem:[%s181 + $0xf0] sm:$0xf]
        %v254 = vld [vmem:[%s181 + $0xf4] sm:$0xf]
        %v255 = vld [vmem:[%s181 + $0xf8] sm:$0xf]
        %v256 = vld [vmem:[%s181 + $0xfc] sm:$0xf]
        %v257 = vld [vmem:[%s181 + $0x100] sm:$0xf]
        %v258 = vld [vmem:[%s181 + $0x104] sm:$0xf]
        %v259 = vld [vmem:[%s181 + $0x108] sm:$0xf]
        %v260 = vld [vmem:[%s181 + $0x10c] sm:$0xf]
        %v261 = vld [vmem:[%s181 + $0x110] sm:$0xf]
        %v262 = vld [vmem:[%s181 + $0x114] sm:$0xf]
        %v263 = vld [vmem:[%s181 + $0x118] sm:$0xf]
        %v264 = vld [vmem:[%s181 + $0x11c] sm:$0xf]
        %v265 = vld [vmem:[%s181 + $0x120] sm:$0xf]
        %v266 = vld [vmem:[%s181 + $0x124] sm:$0xf]
        %v267 = vld [vmem:[%s181 + $0x128] sm:$0xf]
        %v268 = vld [vmem:[%s181 + $0x12c] sm:$0xf]
        %v269 = vld [vmem:[%s181 + $0x130] sm:$0xf]
        %v270 = vld [vmem:[%s181 + $0x134] sm:$0xf]
        %v271 = vld [vmem:[%s181 + $0x138] sm:$0xf]
        %v272 = vld [vmem:[%s181 + $0x13c] sm:$0xf]
        %v273 = vld [vmem:[%s181 + $0x140] sm:$0xf]
        %v274 = vld [vmem:[%s181 + $0x144] sm:$0xf]
        %v275 = vld [vmem:[%s181 + $0x148] sm:$0xf]
        %v276 = vld [vmem:[%s181 + $0x14c] sm:$0xf]
        %v277 = vld [vmem:[%s181 + $0x150] sm:$0xf]
        %v278 = vld [vmem:[%s181 + $0x154] sm:$0xf]
        %v279 = vld [vmem:[%s181 + $0x158] sm:$0xf]
        %v280 = vld [vmem:[%s181 + $0x15c] sm:$0xf]
        %v281 = vld [vmem:[%s181 + $0x160] sm:$0xf]
        %v282 = vld [vmem:[%s181 + $0x164] sm:$0xf]
        %v283 = vld [vmem:[%s181 + $0x168] sm:$0xf]
        %v284 = vld [vmem:[%s181 + $0x16c] sm:$0xf]
        %v285 = vld [vmem:[%s181 + $0x170] sm:$0xf]
        %v286 = vld [vmem:[%s181 + $0x174] sm:$0xf]
        %v287 = vld [vmem:[%s181 + $0x178] sm:$0xf]
        %v288 = vld [vmem:[%s181 + $0x17c] sm:$0xf]
        %v289 = vld [vmem:[%s181 + $0x180] sm:$0xf]
        %v290 = vld [vmem:[%s181 + $0x184] sm:$0xf]
        %v291 = vld [vmem:[%s181 + $0x188] sm:$0xf]
        %v292 = vld [vmem:[%s181 + $0x18c] sm:$0xf]
        %v293 = vld [vmem:[%s181 + $0x190] sm:$0xf]
        %v294 = vld [vmem:[%s181 + $0x194] sm:$0xf]
        %v295 = vld [vmem:[%s181 + $0x198] sm:$0xf]
        %v296 = vld [vmem:[%s181 + $0x19c] sm:$0xf]
        %v297 = vld [vmem:[%s181 + $0x1a0] sm:$0xf]
        %v298 = vld [vmem:[%s181 + $0x1a4] sm:$0xf]
        %v299 = vld [vmem:[%s181 + $0x1a8] sm:$0xf]
        %v300 = vld [vmem:[%s181 + $0x1ac] sm:$0xf]
        %v301 = vld [vmem:[%s181 + $0x1b0] sm:$0xf]
        %v302 = vld [vmem:[%s181 + $0x1b4] sm:$0xf]
        %v303 = vld [vmem:[%s181 + $0x1b8] sm:$0xf]
        %v304 = vld [vmem:[%s181 + $0x1bc] sm:$0xf]
        %v305 = vld [vmem:[%s181 + $0x1c0] sm:$0xf]
        %v306 = vld [vmem:[%s181 + $0x1c4] sm:$0xf]
        %v307 = vld [vmem:[%s181 + $0x1c8] sm:$0xf]
        %v308 = vld [vmem:[%s181 + $0x1cc] sm:$0xf]
        %v309 = vld [vmem:[%s181 + $0x1d0] sm:$0xf]
        %v310 = vld [vmem:[%s181 + $0x1d4] sm:$0xf]
        %v311 = vld [vmem:[%s181 + $0x1d8] sm:$0xf]
        %v312 = vld [vmem:[%s181 + $0x1dc] sm:$0xf]
        %v313 = vld [vmem:[%s181 + $0x1e0] sm:$0xf]
        %v314 = vld [vmem:[%s181 + $0x1e4] sm:$0xf]
        %v315 = vld [vmem:[%s181 + $0x1e8] sm:$0xf]
        %v316 = vld [vmem:[%s181 + $0x1ec] sm:$0xf]
        %v317 = vld [vmem:[%s181 + $0x1f0] sm:$0xf]
        %v318 = vld [vmem:[%s181 + $0x1f4] sm:$0xf]
        %v319 = vld [vmem:[%s181 + $0x1f8] sm:$0xf]
        %v320 = vld [vmem:[%s181 + $0x1fc] sm:$0xf]
        %v321 = vld [vmem:[%s1] sm:$0xf]
        %v322 = vld [vmem:[%s1 + $0x4] sm:$0xf]
        %v323 = vld [vmem:[%s1 + $0x8] sm:$0xf]
        %v324 = vld [vmem:[%s1 + $0xc] sm:$0xf]
        %v325 = vld [vmem:[%s1 + $0x10] sm:$0xf]
        %v326 = vld [vmem:[%s1 + $0x14] sm:$0xf]
        %v327 = vld [vmem:[%s1 + $0x18] sm:$0xf]
        %v328 = vld [vmem:[%s1 + $0x1c] sm:$0xf]
        %v329 = vld [vmem:[%s1 + $0x20] sm:$0xf]
        %v330 = vld [vmem:[%s2] sm:$0x1]
        %v332 = vlaneseq
        %v333 = vshrl.u32 %v332, 7
        %v334 = vsub.s32 0, %v333
        %v335 = vrot.slane %v330, %v334
        %v465 = vunpack.c.l.b16 %v193
        %v466 = vunpack.c.l.b16 %v194
        %v467 = vunpack.c.l.b16 %v195
        %v468 = vunpack.c.l.b16 %v196
        %v469 = vunpack.c.l.b16 %v197
        %v470 = vunpack.c.l.b16 %v198
        %v471 = vunpack.c.l.b16 %v199
        %v472 = vunpack.c.l.b16 %v200
        %v473 = vunpack.c.l.b16 %v201
        %v474 = vunpack.c.l.b16 %v202
        %v475 = vunpack.c.l.b16 %v203
        %v476 = vunpack.c.l.b16 %v204
        %v477 = vunpack.c.l.b16 %v205
        %v478 = vunpack.c.l.b16 %v206
        %v479 = vunpack.c.l.b16 %v207
        %v480 = vunpack.c.l.b16 %v208
        %v481 = vunpack.c.l.b16 %v209
        %v482 = vunpack.c.l.b16 %v210
        %v483 = vunpack.c.l.b16 %v211
        %v484 = vunpack.c.l.b16 %v212
        %v485 = vunpack.c.l.b16 %v213
        %v486 = vunpack.c.l.b16 %v214
        %v487 = vunpack.c.l.b16 %v215
        %v488 = vunpack.c.l.b16 %v216
        %v489 = vunpack.c.l.b16 %v217
        %v490 = vunpack.c.l.b16 %v218
        %v491 = vunpack.c.l.b16 %v219
        %v492 = vunpack.c.l.b16 %v220
        %v493 = vunpack.c.l.b16 %v221
        %v494 = vunpack.c.l.b16 %v222
        %v495 = vunpack.c.l.b16 %v223
        %v496 = vunpack.c.l.b16 %v224
        %v497 = vunpack.c.l.b16 %v225
        %v498 = vunpack.c.l.b16 %v226
        %v499 = vunpack.c.l.b16 %v227
        %v500 = vunpack.c.l.b16 %v228
        %v501 = vunpack.c.l.b16 %v229
        %v502 = vunpack.c.l.b16 %v230
        %v503 = vunpack.c.l.b16 %v231
        %v504 = vunpack.c.l.b16 %v232
        %v505 = vunpack.c.l.b16 %v233
        %v506 = vunpack.c.l.b16 %v234
        %v507 = vunpack.c.l.b16 %v235
        %v508 = vunpack.c.l.b16 %v236
        %v509 = vunpack.c.l.b16 %v237
        %v510 = vunpack.c.l.b16 %v238
        %v511 = vunpack.c.l.b16 %v239
        %v512 = vunpack.c.l.b16 %v240
        %v513 = vunpack.c.l.b16 %v241
        %v514 = vunpack.c.l.b16 %v242
        %v515 = vunpack.c.l.b16 %v243
        %v516 = vunpack.c.l.b16 %v244
        %v517 = vunpack.c.l.b16 %v245
        %v518 = vunpack.c.l.b16 %v246
        %v519 = vunpack.c.l.b16 %v247
        %v520 = vunpack.c.l.b16 %v248
        %v521 = vunpack.c.l.b16 %v249
        %v522 = vunpack.c.l.b16 %v250
        %v523 = vunpack.c.l.b16 %v251
        %v524 = vunpack.c.l.b16 %v252
        %v525 = vunpack.c.l.b16 %v253
        %v526 = vunpack.c.l.b16 %v254
        %v527 = vunpack.c.l.b16 %v255
        %v528 = vunpack.c.l.b16 %v256
        %v529 = vunpack.c.l.b16 %v257
        %v530 = vunpack.c.l.b16 %v258
        %v531 = vunpack.c.l.b16 %v259
        %v532 = vunpack.c.l.b16 %v260
        %v533 = vunpack.c.l.b16 %v261
        %v534 = vunpack.c.l.b16 %v262
        %v535 = vunpack.c.l.b16 %v263
        %v536 = vunpack.c.l.b16 %v264
        %v537 = vunpack.c.l.b16 %v265
        %v538 = vunpack.c.l.b16 %v266
        %v539 = vunpack.c.l.b16 %v267
        %v540 = vunpack.c.l.b16 %v268
        %v541 = vunpack.c.l.b16 %v269
        %v542 = vunpack.c.l.b16 %v270
        %v543 = vunpack.c.l.b16 %v271
        %v544 = vunpack.c.l.b16 %v272
        %v545 = vunpack.c.l.b16 %v273
        %v546 = vunpack.c.l.b16 %v274
        %v547 = vunpack.c.l.b16 %v275
        %v548 = vunpack.c.l.b16 %v276
        %v549 = vunpack.c.l.b16 %v277
        %v550 = vunpack.c.l.b16 %v278
        %v551 = vunpack.c.l.b16 %v279
        %v552 = vunpack.c.l.b16 %v280
        %v553 = vunpack.c.l.b16 %v281
        %v554 = vunpack.c.l.b16 %v282
        %v555 = vunpack.c.l.b16 %v283
        %v556 = vunpack.c.l.b16 %v284
        %v557 = vunpack.c.l.b16 %v285
        %v558 = vunpack.c.l.b16 %v286
        %v559 = vunpack.c.l.b16 %v287
        %v560 = vunpack.c.l.b16 %v288
        %v561 = vunpack.c.l.b16 %v289
        %v562 = vunpack.c.l.b16 %v290
        %v563 = vunpack.c.l.b16 %v291
        %v564 = vunpack.c.l.b16 %v292
        %v565 = vunpack.c.l.b16 %v293
        %v566 = vunpack.c.l.b16 %v294
        %v567 = vunpack.c.l.b16 %v295
        %v568 = vunpack.c.l.b16 %v296
        %v569 = vunpack.c.l.b16 %v297
        %v570 = vunpack.c.l.b16 %v298
        %v571 = vunpack.c.l.b16 %v299
        %v572 = vunpack.c.l.b16 %v300
        %v573 = vunpack.c.l.b16 %v301
        %v574 = vunpack.c.l.b16 %v302
        %v575 = vunpack.c.l.b16 %v303
        %v576 = vunpack.c.l.b16 %v304
        %v577 = vunpack.c.l.b16 %v305
        %v578 = vunpack.c.l.b16 %v306
        %v579 = vunpack.c.l.b16 %v307
        %v580 = vunpack.c.l.b16 %v308
        %v581 = vunpack.c.l.b16 %v309
        %v582 = vunpack.c.l.b16 %v310
        %v583 = vunpack.c.l.b16 %v311
        %v584 = vunpack.c.l.b16 %v312
        %v585 = vunpack.c.l.b16 %v313
        %v586 = vunpack.c.l.b16 %v314
        %v587 = vunpack.c.l.b16 %v315
        %v588 = vunpack.c.l.b16 %v316
        %v589 = vunpack.c.l.b16 %v317
        %v590 = vunpack.c.l.b16 %v318
        %v591 = vunpack.c.l.b16 %v319
        %v592 = vunpack.c.l.b16 %v320
        %v593 = vpack.c.b16 %v466, %v465
        %v594 = vpack.c.b16 %v468, %v467
        %v595 = vpack.c.b16 %v470, %v469
        %v596 = vpack.c.b16 %v472, %v471
        %v597 = vpack.c.b16 %v474, %v473
        %v598 = vpack.c.b16 %v476, %v475
        %v599 = vpack.c.b16 %v478, %v477
        %v600 = vpack.c.b16 %v480, %v479
        %v601 = vpack.c.b16 %v482, %v481
        %v602 = vpack.c.b16 %v484, %v483
        %v603 = vpack.c.b16 %v486, %v485
        %v604 = vpack.c.b16 %v488, %v487
        %v605 = vpack.c.b16 %v490, %v489
        %v606 = vpack.c.b16 %v492, %v491
        %v607 = vpack.c.b16 %v494, %v493
        %v608 = vpack.c.b16 %v496, %v495
        %v609 = vpack.c.b16 %v498, %v497
        %v610 = vpack.c.b16 %v500, %v499
        %v611 = vpack.c.b16 %v502, %v501
        %v612 = vpack.c.b16 %v504, %v503
        %v613 = vpack.c.b16 %v506, %v505
        %v614 = vpack.c.b16 %v508, %v507
        %v615 = vpack.c.b16 %v510, %v509
        %v616 = vpack.c.b16 %v512, %v511
        %v617 = vpack.c.b16 %v514, %v513
        %v618 = vpack.c.b16 %v516, %v515
        %v619 = vpack.c.b16 %v518, %v517
        %v620 = vpack.c.b16 %v520, %v519
        %v621 = vpack.c.b16 %v522, %v521
        %v622 = vpack.c.b16 %v524, %v523
        %v623 = vpack.c.b16 %v526, %v525
        %v624 = vpack.c.b16 %v528, %v527
        %v625 = vpack.c.b16 %v530, %v529
        %v626 = vpack.c.b16 %v532, %v531
        %v627 = vpack.c.b16 %v534, %v533
        %v628 = vpack.c.b16 %v536, %v535
        %v629 = vpack.c.b16 %v538, %v537
        %v630 = vpack.c.b16 %v540, %v539
        %v631 = vpack.c.b16 %v542, %v541
        %v632 = vpack.c.b16 %v544, %v543
        %v633 = vpack.c.b16 %v546, %v545
        %v634 = vpack.c.b16 %v548, %v547
        %v635 = vpack.c.b16 %v550, %v549
        %v636 = vpack.c.b16 %v552, %v551
        %v637 = vpack.c.b16 %v554, %v553
        %v638 = vpack.c.b16 %v556, %v555
        %v639 = vpack.c.b16 %v558, %v557
        %v640 = vpack.c.b16 %v560, %v559
        %v641 = vpack.c.b16 %v562, %v561
        %v642 = vpack.c.b16 %v564, %v563
        %v643 = vpack.c.b16 %v566, %v565
        %v644 = vpack.c.b16 %v568, %v567
        %v645 = vpack.c.b16 %v570, %v569
        %v646 = vpack.c.b16 %v572, %v571
        %v647 = vpack.c.b16 %v574, %v573
        %v648 = vpack.c.b16 %v576, %v575
        %v649 = vpack.c.b16 %v578, %v577
        %v650 = vpack.c.b16 %v580, %v579
        %v651 = vpack.c.b16 %v582, %v581
        %v652 = vpack.c.b16 %v584, %v583
        %v653 = vpack.c.b16 %v586, %v585
        %v654 = vpack.c.b16 %v588, %v587
        %v655 = vpack.c.b16 %v590, %v589
        %v656 = vpack.c.b16 %v592, %v591
        %v666 = vunpack.c.l.b16 %v321
        %v667 = vunpack.c.l.b16 %v322
        %v668 = vunpack.c.l.b16 %v323
        %v669 = vunpack.c.l.b16 %v324
        %v670 = vunpack.c.l.b16 %v325
        %v671 = vunpack.c.l.b16 %v326
        %v672 = vunpack.c.l.b16 %v327
        %v673 = vunpack.c.l.b16 %v328
        %v674 = vunpack.c.l.b16 %v329
        %v675 = vpack.c.b16 %v667, %v666
        %v676 = vpack.c.b16 %v669, %v668
        %v677 = vpack.c.b16 %v671, %v670
        %v678 = vpack.c.b16 %v673, %v672
        %v679 = vpack.c.b16 %v674, %v674
        %vm684 = vcmask 588800
        %v686 = vsel %vm684, %v593, 0
        %v689 = vsel %vm684, %v594, 0
        %v692 = vsel %vm684, %v595, 0
        %v695 = vsel %vm684, %v596, 0
        %v698 = vsel %vm684, %v597, 0
        %v701 = vsel %vm684, %v598, 0
        %v704 = vsel %vm684, %v599, 0
        %v707 = vsel %vm684, %v600, 0
        %v710 = vsel %vm684, %v601, 0
        %v713 = vsel %vm684, %v602, 0
        %v716 = vsel %vm684, %v603, 0
        %v719 = vsel %vm684, %v604, 0
        %v722 = vsel %vm684, %v605, 0
        %v725 = vsel %vm684, %v606, 0
        %v728 = vsel %vm684, %v607, 0
        %v731 = vsel %vm684, %v608, 0
        %v734 = vsel %vm684, %v609, 0
        %v737 = vsel %vm684, %v610, 0
        %v740 = vsel %vm684, %v611, 0
        %v743 = vsel %vm684, %v612, 0
        %v746 = vsel %vm684, %v613, 0
        %v749 = vsel %vm684, %v614, 0
        %v752 = vsel %vm684, %v615, 0
        %v755 = vsel %vm684, %v616, 0
        %v758 = vsel %vm684, %v617, 0
        %v761 = vsel %vm684, %v618, 0
        %v764 = vsel %vm684, %v619, 0
        %v767 = vsel %vm684, %v620, 0
        %v770 = vsel %vm684, %v621, 0
        %v773 = vsel %vm684, %v622, 0
        %v776 = vsel %vm684, %v623, 0
        %v779 = vsel %vm684, %v624, 0
        %v782 = vsel %vm684, %v625, 0
        %v785 = vsel %vm684, %v626, 0
        %v788 = vsel %vm684, %v627, 0
        %v791 = vsel %vm684, %v628, 0
        %v794 = vsel %vm684, %v629, 0
        %v797 = vsel %vm684, %v630, 0
        %v800 = vsel %vm684, %v631, 0
        %v803 = vsel %vm684, %v632, 0
        %v806 = vsel %vm684, %v633, 0
        %v809 = vsel %vm684, %v634, 0
        %v812 = vsel %vm684, %v635, 0
        %v815 = vsel %vm684, %v636, 0
        %v818 = vsel %vm684, %v637, 0
        %v821 = vsel %vm684, %v638, 0
        %v824 = vsel %vm684, %v639, 0
        %v827 = vsel %vm684, %v640, 0
        %v830 = vsel %vm684, %v641, 0
        %v833 = vsel %vm684, %v642, 0
        %v836 = vsel %vm684, %v643, 0
        %v839 = vsel %vm684, %v644, 0
        %v842 = vsel %vm684, %v645, 0
        %v845 = vsel %vm684, %v646, 0
        %v848 = vsel %vm684, %v647, 0
        %v851 = vsel %vm684, %v648, 0
        %v854 = vsel %vm684, %v649, 0
        %v857 = vsel %vm684, %v650, 0
        %v860 = vsel %vm684, %v651, 0
        %v863 = vsel %vm684, %v652, 0
        %v866 = vsel %vm684, %v653, 0
        %v869 = vsel %vm684, %v654, 0
        %v872 = vsel %vm684, %v655, 0
        %v875 = vsel %vm684, %v656, 0
        %vm877 = vcmask 1043456
        %v879 = vsel %vm877, %v679, 0
        %881 = vmatprep.subr.bf16.mxu0 0
        %882 = vmatpush1.bf16.msra.mxu0 %v675
        %883 = vmatprep.subr.bf16.mxu0 0
        %884 = vmatpush1.bf16.msra.mxu0 %v676
        %885 = vmatprep.subr.bf16.mxu0 0
        %886 = vmatpush1.bf16.msra.mxu0 %v677
        %887 = vmatprep.subr.bf16.mxu0 0
        %888 = vmatpush1.bf16.msra.mxu0 %v678
        %889 = vmatprep.subr.bf16.mxu0 0
        %890 = vmatpush1.bf16.msra.mxu0 %v879
        %891 = vmatprep.subr.bf16.mxu0 0
        %892 = vmatpush1.bf16.msra.mxu0 0
        %893 = vmatprep.subr.bf16.mxu0 0
        %894 = vmatpush1.bf16.msra.mxu0 0
        %895 = vmatprep.subr.bf16.mxu0 0
        %896 = vmatpush1.bf16.msra.mxu0 0
        %897 = vmatprep.subr.bf16.mxu0 0
        %898 = vmatpush1.bf16.msra.mxu0 0
        %899 = vmatprep.subr.bf16.mxu0 0
        %900 = vmatpush1.bf16.msra.mxu0 0
        %901 = vmatprep.subr.bf16.mxu0 0
        %902 = vmatpush1.bf16.msra.mxu0 0
        %903 = vmatprep.subr.bf16.mxu0 0
        %904 = vmatpush1.bf16.msra.mxu0 0
        %905 = vmatprep.subr.bf16.mxu0 0
        %906 = vmatpush1.bf16.msra.mxu0 0
        %907 = vmatprep.subr.bf16.mxu0 0
        %908 = vmatpush1.bf16.msra.mxu0 0
        %909 = vmatprep.subr.bf16.mxu0 0
        %910 = vmatpush1.bf16.msra.mxu0 0
        %911 = vmatprep.subr.bf16.mxu0 0
        %912 = vmatpush1.bf16.msra.mxu0 0
        %913 = vmatprep.mubr.bf16.mxu0 0
        %914 = vmatmul.mubr.bf16.gmra.mrb[0].mxu0 %v686
        %v915 = vpop.f32.mrb[0].mxu0
        %v916 = vadd.f32 %v335, %v915
        %v917 = vpop.f32.mrb[0].mxu0
        %v918 = vpop.f32.mrb[0].mxu0
        %v919 = vadd.f32 %v335, %v918
        %v920 = vpop.f32.mrb[0].mxu0
        %921 = vmatprep.mubr.bf16.mxu0 0
        %922 = vmatmul.mubr.bf16.gmra.mrb[0].mxu0 %v689
        %v923 = vpop.f32.mrb[0].mxu0
        %v924 = vadd.f32 %v335, %v923
        %v925 = vpop.f32.mrb[0].mxu0
        %v926 = vpop.f32.mrb[0].mxu0
        %v927 = vadd.f32 %v335, %v926
        %v928 = vpop.f32.mrb[0].mxu0
        %929 = vmatprep.mubr.bf16.mxu0 0
        %930 = vmatmul.mubr.bf16.gmra.mrb[0].mxu0 %v692
        %v931 = vpop.f32.mrb[0].mxu0
        %v932 = vadd.f32 %v335, %v931
        %v933 = vpop.f32.mrb[0].mxu0
        %v934 = vpop.f32.mrb[0].mxu0
        %v935 = vadd.f32 %v335, %v934
        %v936 = vpop.f32.mrb[0].mxu0
        %937 = vmatprep.mubr.bf16.mxu0 0
        %938 = vmatmul.mubr.bf16.gmra.mrb[0].mxu0 %v695
        %v939 = vpop.f32.mrb[0].mxu0
        %v940 = vadd.f32 %v335, %v939
        %v941 = vpop.f32.mrb[0].mxu0
        %v942 = vpop.f32.mrb[0].mxu0
        %v943 = vadd.f32 %v335, %v942
        %v944 = vpop.f32.mrb[0].mxu0
        %945 = vmatprep.mubr.bf16.mxu0 0
        %946 = vmatmul.mubr.bf16.gmra.mrb[0].mxu0 %v698
        %v947 = vpop.f32.mrb[0].mxu0
        %v948 = vadd.f32 %v335, %v947
        %v949 = vpop.f32.mrb[0].mxu0
        %v950 = vpop.f32.mrb[0].mxu0
        %v951 = vadd.f32 %v335, %v950
        %v952 = vpop.f32.mrb[0].mxu0
        %953 = vmatprep.mubr.bf16.mxu0 0
        %954 = vmatmul.mubr.bf16.gmra.mrb[0].mxu0 %v701
        %v955 = vpop.f32.mrb[0].mxu0
        %v956 = vadd.f32 %v335, %v955
        %v957 = vpop.f32.mrb[0].mxu0
        %v958 = vpop.f32.mrb[0].mxu0
        %v959 = vadd.f32 %v335, %v958
        %v960 = vpop.f32.mrb[0].mxu0
        %961 = vmatprep.mubr.bf16.mxu0 0
        %962 = vmatmul.mubr.bf16.gmra.mrb[0].mxu0 %v704
        %v963 = vpop.f32.mrb[0].mxu0
        %v964 = vadd.f32 %v335, %v963
        %v965 = vpop.f32.mrb[0].mxu0
        %v966 = vpop.f32.mrb[0].mxu0
        %v967 = vadd.f32 %v335, %v966
        %v968 = vpop.f32.mrb[0].mxu0
        %969 = vmatprep.mubr.bf16.mxu0 0
        %970 = vmatmul.mubr.bf16.gmra.mrb[0].mxu0 %v707
        %v971 = vpop.f32.mrb[0].mxu0
        %v972 = vadd.f32 %v335, %v971
        %v973 = vpop.f32.mrb[0].mxu0
        %v974 = vpop.f32.mrb[0].mxu0
        %v975 = vadd.f32 %v335, %v974
        %v976 = vpop.f32.mrb[0].mxu0
        %977 = vmatprep.mubr.bf16.mxu0 0
        %978 = vmatmul.mubr.bf16.gmra.mrb[0].mxu0 %v710
        %v979 = vpop.f32.mrb[0].mxu0
        %v980 = vadd.f32 %v335, %v979
        %v981 = vpop.f32.mrb[0].mxu0
        %v982 = vpop.f32.mrb[0].mxu0
        %v983 = vadd.f32 %v335, %v982
        %v984 = vpop.f32.mrb[0].mxu0
        %985 = vmatprep.mubr.bf16.mxu0 0
        %986 = vmatmul.mubr.bf16.gmra.mrb[0].mxu0 %v713
        %v987 = vpop.f32.mrb[0].mxu0
        %v988 = vadd.f32 %v335, %v987
        %v989 = vpop.f32.mrb[0].mxu0
        %v990 = vpop.f32.mrb[0].mxu0
        %v991 = vadd.f32 %v335, %v990
        %v992 = vpop.f32.mrb[0].mxu0
        %993 = vmatprep.mubr.bf16.mxu0 0
        %994 = vmatmul.mubr.bf16.gmra.mrb[0].mxu0 %v716
        %v995 = vpop.f32.mrb[0].mxu0
        %v996 = vadd.f32 %v335, %v995
        %v997 = vpop.f32.mrb[0].mxu0
        %v998 = vpop.f32.mrb[0].mxu0
        %v999 = vadd.f32 %v335, %v998
        %v1000 = vpop.f32.mrb[0].mxu0
        %1001 = vmatprep.mubr.bf16.mxu0 0
        %1002 = vmatmul.mubr.bf16.gmra.mrb[0].mxu0 %v719
        %v1003 = vpop.f32.mrb[0].mxu0
        %v1004 = vadd.f32 %v335, %v1003
        %v1005 = vpop.f32.mrb[0].mxu0
        %v1006 = vpop.f32.mrb[0].mxu0
        %v1007 = vadd.f32 %v335, %v1006
        %v1008 = vpop.f32.mrb[0].mxu0
        %1009 = vmatprep.mubr.bf16.mxu0 0
        %1010 = vmatmul.mubr.bf16.gmra.mrb[0].mxu0 %v722
        %v1011 = vpop.f32.mrb[0].mxu0
        %v1012 = vadd.f32 %v335, %v1011
        %v1013 = vpop.f32.mrb[0].mxu0
        %v1014 = vpop.f32.mrb[0].mxu0
        %v1015 = vadd.f32 %v335, %v1014
        %v1016 = vpop.f32.mrb[0].mxu0
        %1017 = vmatprep.mubr.bf16.mxu0 0
        %1018 = vmatmul.mubr.bf16.gmra.mrb[0].mxu0 %v725
        %v1019 = vpop.f32.mrb[0].mxu0
        %v1020 = vadd.f32 %v335, %v1019
        %v1021 = vpop.f32.mrb[0].mxu0
        %v1022 = vpop.f32.mrb[0].mxu0
        %v1023 = vadd.f32 %v335, %v1022
        %v1024 = vpop.f32.mrb[0].mxu0
        %1025 = vmatprep.mubr.bf16.mxu0 0
        %1026 = vmatmul.mubr.bf16.gmra.mrb[0].mxu0 %v728
        %v1027 = vpop.f32.mrb[0].mxu0
        %v1028 = vadd.f32 %v335, %v1027
        %v1029 = vpop.f32.mrb[0].mxu0
        %v1030 = vpop.f32.mrb[0].mxu0
        %v1031 = vadd.f32 %v335, %v1030
        %v1032 = vpop.f32.mrb[0].mxu0
        %1033 = vmatprep.mubr.bf16.mxu0 0
        %1034 = vmatmul.mubr.bf16.gmra.mrb[0].mxu0 %v731
        %v1035 = vpop.f32.mrb[0].mxu0
        %v1036 = vadd.f32 %v335, %v1035
        %v1037 = vpop.f32.mrb[0].mxu0
        %v1038 = vpop.f32.mrb[0].mxu0
        %v1039 = vadd.f32 %v335, %v1038
        %v1040 = vpop.f32.mrb[0].mxu0
        %1041 = vmatprep.mubr.bf16.mxu0 0
        %1042 = vmatmul.mubr.bf16.gmra.mrb[0].mxu0 %v734
        %v1043 = vpop.f32.mrb[0].mxu0
        %v1044 = vadd.f32 %v335, %v1043
        %v1045 = vpop.f32.mrb[0].mxu0
        %v1046 = vpop.f32.mrb[0].mxu0
        %v1047 = vadd.f32 %v335, %v1046
        %v1048 = vpop.f32.mrb[0].mxu0
        %1049 = vmatprep.mubr.bf16.mxu0 0
        %1050 = vmatmul.mubr.bf16.gmra.mrb[0].mxu0 %v737
        %v1051 = vpop.f32.mrb[0].mxu0
        %v1052 = vadd.f32 %v335, %v1051
        %v1053 = vpop.f32.mrb[0].mxu0
        %v1054 = vpop.f32.mrb[0].mxu0
        %v1055 = vadd.f32 %v335, %v1054
        %v1056 = vpop.f32.mrb[0].mxu0
        %1057 = vmatprep.mubr.bf16.mxu0 0
        %1058 = vmatmul.mubr.bf16.gmra.mrb[0].mxu0 %v740
        %v1059 = vpop.f32.mrb[0].mxu0
        %v1060 = vadd.f32 %v335, %v1059
        %v1061 = vpop.f32.mrb[0].mxu0
        %v1062 = vpop.f32.mrb[0].mxu0
        %v1063 = vadd.f32 %v335, %v1062
        %v1064 = vpop.f32.mrb[0].mxu0
        %1065 = vmatprep.mubr.bf16.mxu0 0
        %1066 = vmatmul.mubr.bf16.gmra.mrb[0].mxu0 %v743
        %v1067 = vpop.f32.mrb[0].mxu0
        %v1068 = vadd.f32 %v335, %v1067
        %v1069 = vpop.f32.mrb[0].mxu0
        %v1070 = vpop.f32.mrb[0].mxu0
        %v1071 = vadd.f32 %v335, %v1070
        %v1072 = vpop.f32.mrb[0].mxu0
        %1073 = vmatprep.mubr.bf16.mxu0 0
        %1074 = vmatmul.mubr.bf16.gmra.mrb[0].mxu0 %v746
        %v1075 = vpop.f32.mrb[0].mxu0
        %v1076 = vadd.f32 %v335, %v1075
        %v1077 = vpop.f32.mrb[0].mxu0
        %v1078 = vpop.f32.mrb[0].mxu0
        %v1079 = vadd.f32 %v335, %v1078
        %v1080 = vpop.f32.mrb[0].mxu0
        %1081 = vmatprep.mubr.bf16.mxu0 0
        %1082 = vmatmul.mubr.bf16.gmra.mrb[0].mxu0 %v749
        %v1083 = vpop.f32.mrb[0].mxu0
        %v1084 = vadd.f32 %v335, %v1083
        %v1085 = vpop.f32.mrb[0].mxu0
        %v1086 = vpop.f32.mrb[0].mxu0
        %v1087 = vadd.f32 %v335, %v1086
        %v1088 = vpop.f32.mrb[0].mxu0
        %1089 = vmatprep.mubr.bf16.mxu0 0
        %1090 = vmatmul.mubr.bf16.gmra.mrb[0].mxu0 %v752
        %v1091 = vpop.f32.mrb[0].mxu0
        %v1092 = vadd.f32 %v335, %v1091
        %v1093 = vpop.f32.mrb[0].mxu0
        %v1094 = vpop.f32.mrb[0].mxu0
        %v1095 = vadd.f32 %v335, %v1094
        %v1096 = vpop.f32.mrb[0].mxu0
        %1097 = vmatprep.mubr.bf16.mxu0 0
        %1098 = vmatmul.mubr.bf16.gmra.mrb[0].mxu0 %v755
        %v1099 = vpop.f32.mrb[0].mxu0
        %v1100 = vadd.f32 %v335, %v1099
        %v1101 = vpop.f32.mrb[0].mxu0
        %v1102 = vpop.f32.mrb[0].mxu0
        %v1103 = vadd.f32 %v335, %v1102
        %v1104 = vpop.f32.mrb[0].mxu0
        %1105 = vmatprep.mubr.bf16.mxu0 0
        %1106 = vmatmul.mubr.bf16.gmra.mrb[0].mxu0 %v758
        %v1107 = vpop.f32.mrb[0].mxu0
        %v1108 = vadd.f32 %v335, %v1107
        %v1109 = vpop.f32.mrb[0].mxu0
        %v1110 = vpop.f32.mrb[0].mxu0
        %v1111 = vadd.f32 %v335, %v1110
        %v1112 = vpop.f32.mrb[0].mxu0
        %1113 = vmatprep.mubr.bf16.mxu0 0
        %1114 = vmatmul.mubr.bf16.gmra.mrb[0].mxu0 %v761
        %v1115 = vpop.f32.mrb[0].mxu0
        %v1116 = vadd.f32 %v335, %v1115
        %v1117 = vpop.f32.mrb[0].mxu0
        %v1118 = vpop.f32.mrb[0].mxu0
        %v1119 = vadd.f32 %v335, %v1118
        %v1120 = vpop.f32.mrb[0].mxu0
        %1121 = vmatprep.mubr.bf16.mxu0 0
        %1122 = vmatmul.mubr.bf16.gmra.mrb[0].mxu0 %v764
        %v1123 = vpop.f32.mrb[0].mxu0
        %v1124 = vadd.f32 %v335, %v1123
        %v1125 = vpop.f32.mrb[0].mxu0
        %v1126 = vpop.f32.mrb[0].mxu0
        %v1127 = vadd.f32 %v335, %v1126
        %v1128 = vpop.f32.mrb[0].mxu0
        %1129 = vmatprep.mubr.bf16.mxu0 0
        %1130 = vmatmul.mubr.bf16.gmra.mrb[0].mxu0 %v767
        %v1131 = vpop.f32.mrb[0].mxu0
        %v1132 = vadd.f32 %v335, %v1131
        %v1133 = vpop.f32.mrb[0].mxu0
        %v1134 = vpop.f32.mrb[0].mxu0
        %v1135 = vadd.f32 %v335, %v1134
        %v1136 = vpop.f32.mrb[0].mxu0
        %1137 = vmatprep.mubr.bf16.mxu0 0
        %1138 = vmatmul.mubr.bf16.gmra.mrb[0].mxu0 %v770
        %v1139 = vpop.f32.mrb[0].mxu0
        %v1140 = vadd.f32 %v335, %v1139
        %v1141 = vpop.f32.mrb[0].mxu0
        %v1142 = vpop.f32.mrb[0].mxu0
        %v1143 = vadd.f32 %v335, %v1142
        %v1144 = vpop.f32.mrb[0].mxu0
        %1145 = vmatprep.mubr.bf16.mxu0 0
        %1146 = vmatmul.mubr.bf16.gmra.mrb[0].mxu0 %v773
        %v1147 = vpop.f32.mrb[0].mxu0
        %v1148 = vadd.f32 %v335, %v1147
        %v1149 = vpop.f32.mrb[0].mxu0
        %v1150 = vpop.f32.mrb[0].mxu0
        %v1151 = vadd.f32 %v335, %v1150
        %v1152 = vpop.f32.mrb[0].mxu0
        %1153 = vmatprep.mubr.bf16.mxu0 0
        %1154 = vmatmul.mubr.bf16.gmra.mrb[0].mxu0 %v776
        %v1155 = vpop.f32.mrb[0].mxu0
        %v1156 = vadd.f32 %v335, %v1155
        %v1157 = vpop.f32.mrb[0].mxu0
        %v1158 = vpop.f32.mrb[0].mxu0
        %v1159 = vadd.f32 %v335, %v1158
        %v1160 = vpop.f32.mrb[0].mxu0
        %1161 = vmatprep.mubr.bf16.mxu0 0
        %1162 = vmatmul.mubr.bf16.gmra.mrb[0].mxu0 %v779
        %v1163 = vpop.f32.mrb[0].mxu0
        %v1164 = vadd.f32 %v335, %v1163
        %v1165 = vpop.f32.mrb[0].mxu0
        %v1166 = vpop.f32.mrb[0].mxu0
        %v1167 = vadd.f32 %v335, %v1166
        %v1168 = vpop.f32.mrb[0].mxu0
        %1169 = vmatprep.mubr.bf16.mxu0 0
        %1170 = vmatmul.mubr.bf16.gmra.mrb[0].mxu0 %v782
        %v1171 = vpop.f32.mrb[0].mxu0
        %v1172 = vadd.f32 %v335, %v1171
        %v1173 = vpop.f32.mrb[0].mxu0
        %v1174 = vpop.f32.mrb[0].mxu0
        %v1175 = vadd.f32 %v335, %v1174
        %v1176 = vpop.f32.mrb[0].mxu0
        %1177 = vmatprep.mubr.bf16.mxu0 0
        %1178 = vmatmul.mubr.bf16.gmra.mrb[0].mxu0 %v785
        %v1179 = vpop.f32.mrb[0].mxu0
        %v1180 = vadd.f32 %v335, %v1179
        %v1181 = vpop.f32.mrb[0].mxu0
        %v1182 = vpop.f32.mrb[0].mxu0
        %v1183 = vadd.f32 %v335, %v1182
        %v1184 = vpop.f32.mrb[0].mxu0
        %1185 = vmatprep.mubr.bf16.mxu0 0
        %1186 = vmatmul.mubr.bf16.gmra.mrb[0].mxu0 %v788
        %v1187 = vpop.f32.mrb[0].mxu0
        %v1188 = vadd.f32 %v335, %v1187
        %v1189 = vpop.f32.mrb[0].mxu0
        %v1190 = vpop.f32.mrb[0].mxu0
        %v1191 = vadd.f32 %v335, %v1190
        %v1192 = vpop.f32.mrb[0].mxu0
        %1193 = vmatprep.mubr.bf16.mxu0 0
        %1194 = vmatmul.mubr.bf16.gmra.mrb[0].mxu0 %v791
        %v1195 = vpop.f32.mrb[0].mxu0
        %v1196 = vadd.f32 %v335, %v1195
        %v1197 = vpop.f32.mrb[0].mxu0
        %v1198 = vpop.f32.mrb[0].mxu0
        %v1199 = vadd.f32 %v335, %v1198
        %v1200 = vpop.f32.mrb[0].mxu0
        %1201 = vmatprep.mubr.bf16.mxu0 0
        %1202 = vmatmul.mubr.bf16.gmra.mrb[0].mxu0 %v794
        %v1203 = vpop.f32.mrb[0].mxu0
        %v1204 = vadd.f32 %v335, %v1203
        %v1205 = vpop.f32.mrb[0].mxu0
        %v1206 = vpop.f32.mrb[0].mxu0
        %v1207 = vadd.f32 %v335, %v1206
        %v1208 = vpop.f32.mrb[0].mxu0
        %1209 = vmatprep.mubr.bf16.mxu0 0
        %1210 = vmatmul.mubr.bf16.gmra.mrb[0].mxu0 %v797
        %v1211 = vpop.f32.mrb[0].mxu0
        %v1212 = vadd.f32 %v335, %v1211
        %v1213 = vpop.f32.mrb[0].mxu0
        %v1214 = vpop.f32.mrb[0].mxu0
        %v1215 = vadd.f32 %v335, %v1214
        %v1216 = vpop.f32.mrb[0].mxu0
        %1217 = vmatprep.mubr.bf16.mxu0 0
        %1218 = vmatmul.mubr.bf16.gmra.mrb[0].mxu0 %v800
        %v1219 = vpop.f32.mrb[0].mxu0
        %v1220 = vadd.f32 %v335, %v1219
        %v1221 = vpop.f32.mrb[0].mxu0
        %v1222 = vpop.f32.mrb[0].mxu0
        %v1223 = vadd.f32 %v335, %v1222
        %v1224 = vpop.f32.mrb[0].mxu0
        %1225 = vmatprep.mubr.bf16.mxu0 0
        %1226 = vmatmul.mubr.bf16.gmra.mrb[0].mxu0 %v803
        %v1227 = vpop.f32.mrb[0].mxu0
        %v1228 = vadd.f32 %v335, %v1227
        %v1229 = vpop.f32.mrb[0].mxu0
        %v1230 = vpop.f32.mrb[0].mxu0
        %v1231 = vadd.f32 %v335, %v1230
        %v1232 = vpop.f32.mrb[0].mxu0
        %1233 = vmatprep.mubr.bf16.mxu0 0
        %1234 = vmatmul.mubr.bf16.gmra.mrb[0].mxu0 %v806
        %v1235 = vpop.f32.mrb[0].mxu0
        %v1236 = vadd.f32 %v335, %v1235
        %v1237 = vpop.f32.mrb[0].mxu0
        %v1238 = vpop.f32.mrb[0].mxu0
        %v1239 = vadd.f32 %v335, %v1238
        %v1240 = vpop.f32.mrb[0].mxu0
        %1241 = vmatprep.mubr.bf16.mxu0 0
        %1242 = vmatmul.mubr.bf16.gmra.mrb[0].mxu0 %v809
        %v1243 = vpop.f32.mrb[0].mxu0
        %v1244 = vadd.f32 %v335, %v1243
        %v1245 = vpop.f32.mrb[0].mxu0
        %v1246 = vpop.f32.mrb[0].mxu0
        %v1247 = vadd.f32 %v335, %v1246
        %v1248 = vpop.f32.mrb[0].mxu0
        %1249 = vmatprep.mubr.bf16.mxu0 0
        %1250 = vmatmul.mubr.bf16.gmra.mrb[0].mxu0 %v812
        %v1251 = vpop.f32.mrb[0].mxu0
        %v1252 = vadd.f32 %v335, %v1251
        %v1253 = vpop.f32.mrb[0].mxu0
        %v1254 = vpop.f32.mrb[0].mxu0
        %v1255 = vadd.f32 %v335, %v1254
        %v1256 = vpop.f32.mrb[0].mxu0
        %1257 = vmatprep.mubr.bf16.mxu0 0
        %1258 = vmatmul.mubr.bf16.gmra.mrb[0].mxu0 %v815
        %v1259 = vpop.f32.mrb[0].mxu0
        %v1260 = vadd.f32 %v335, %v1259
        %v1261 = vpop.f32.mrb[0].mxu0
        %v1262 = vpop.f32.mrb[0].mxu0
        %v1263 = vadd.f32 %v335, %v1262
        %v1264 = vpop.f32.mrb[0].mxu0
        %1265 = vmatprep.mubr.bf16.mxu0 0
        %1266 = vmatmul.mubr.bf16.gmra.mrb[0].mxu0 %v818
        %v1267 = vpop.f32.mrb[0].mxu0
        %v1268 = vadd.f32 %v335, %v1267
        %v1269 = vpop.f32.mrb[0].mxu0
        %v1270 = vpop.f32.mrb[0].mxu0
        %v1271 = vadd.f32 %v335, %v1270
        %v1272 = vpop.f32.mrb[0].mxu0
        %1273 = vmatprep.mubr.bf16.mxu0 0
        %1274 = vmatmul.mubr.bf16.gmra.mrb[0].mxu0 %v821
        %v1275 = vpop.f32.mrb[0].mxu0
        %v1276 = vadd.f32 %v335, %v1275
        %v1277 = vpop.f32.mrb[0].mxu0
        %v1278 = vpop.f32.mrb[0].mxu0
        %v1279 = vadd.f32 %v335, %v1278
        %v1280 = vpop.f32.mrb[0].mxu0
        %1281 = vmatprep.mubr.bf16.mxu0 0
        %1282 = vmatmul.mubr.bf16.gmra.mrb[0].mxu0 %v824
        %v1283 = vpop.f32.mrb[0].mxu0
        %v1284 = vadd.f32 %v335, %v1283
        %v1285 = vpop.f32.mrb[0].mxu0
        %v1286 = vpop.f32.mrb[0].mxu0
        %v1287 = vadd.f32 %v335, %v1286
        %v1288 = vpop.f32.mrb[0].mxu0
        %1289 = vmatprep.mubr.bf16.mxu0 0
        %1290 = vmatmul.mubr.bf16.gmra.mrb[0].mxu0 %v827
        %v1291 = vpop.f32.mrb[0].mxu0
        %v1292 = vadd.f32 %v335, %v1291
        %v1293 = vpop.f32.mrb[0].mxu0
        %v1294 = vpop.f32.mrb[0].mxu0
        %v1295 = vadd.f32 %v335, %v1294
        %v1296 = vpop.f32.mrb[0].mxu0
        %1297 = vmatprep.mubr.bf16.mxu0 0
        %1298 = vmatmul.mubr.bf16.gmra.mrb[0].mxu0 %v830
        %v1299 = vpop.f32.mrb[0].mxu0
        %v1300 = vadd.f32 %v335, %v1299
        %v1301 = vpop.f32.mrb[0].mxu0
        %v1302 = vpop.f32.mrb[0].mxu0
        %v1303 = vadd.f32 %v335, %v1302
        %v1304 = vpop.f32.mrb[0].mxu0
        %1305 = vmatprep.mubr.bf16.mxu0 0
        %1306 = vmatmul.mubr.bf16.gmra.mrb[0].mxu0 %v833
        %v1307 = vpop.f32.mrb[0].mxu0
        %v1308 = vadd.f32 %v335, %v1307
        %v1309 = vpop.f32.mrb[0].mxu0
        %v1310 = vpop.f32.mrb[0].mxu0
        %v1311 = vadd.f32 %v335, %v1310
        %v1312 = vpop.f32.mrb[0].mxu0
        %1313 = vmatprep.mubr.bf16.mxu0 0
        %1314 = vmatmul.mubr.bf16.gmra.mrb[0].mxu0 %v836
        %v1315 = vpop.f32.mrb[0].mxu0
        %v1316 = vadd.f32 %v335, %v1315
        %v1317 = vpop.f32.mrb[0].mxu0
        %v1318 = vpop.f32.mrb[0].mxu0
        %v1319 = vadd.f32 %v335, %v1318
        %v1320 = vpop.f32.mrb[0].mxu0
        %1321 = vmatprep.mubr.bf16.mxu0 0
        %1322 = vmatmul.mubr.bf16.gmra.mrb[0].mxu0 %v839
        %v1323 = vpop.f32.mrb[0].mxu0
        %v1324 = vadd.f32 %v335, %v1323
        %v1325 = vpop.f32.mrb[0].mxu0
        %v1326 = vpop.f32.mrb[0].mxu0
        %v1327 = vadd.f32 %v335, %v1326
        %v1328 = vpop.f32.mrb[0].mxu0
        %1329 = vmatprep.mubr.bf16.mxu0 0
        %1330 = vmatmul.mubr.bf16.gmra.mrb[0].mxu0 %v842
        %v1331 = vpop.f32.mrb[0].mxu0
        %v1332 = vadd.f32 %v335, %v1331
        %v1333 = vpop.f32.mrb[0].mxu0
        %v1334 = vpop.f32.mrb[0].mxu0
        %v1335 = vadd.f32 %v335, %v1334
        %v1336 = vpop.f32.mrb[0].mxu0
        %1337 = vmatprep.mubr.bf16.mxu0 0
        %1338 = vmatmul.mubr.bf16.gmra.mrb[0].mxu0 %v845
        %v1339 = vpop.f32.mrb[0].mxu0
        %v1340 = vadd.f32 %v335, %v1339
        %v1341 = vpop.f32.mrb[0].mxu0
        %v1342 = vpop.f32.mrb[0].mxu0
        %v1343 = vadd.f32 %v335, %v1342
        %v1344 = vpop.f32.mrb[0].mxu0
        %1345 = vmatprep.mubr.bf16.mxu0 0
        %1346 = vmatmul.mubr.bf16.gmra.mrb[0].mxu0 %v848
        %v1347 = vpop.f32.mrb[0].mxu0
        %v1348 = vadd.f32 %v335, %v1347
        %v1349 = vpop.f32.mrb[0].mxu0
        %v1350 = vpop.f32.mrb[0].mxu0
        %v1351 = vadd.f32 %v335, %v1350
        %v1352 = vpop.f32.mrb[0].mxu0
        %1353 = vmatprep.mubr.bf16.mxu0 0
        %1354 = vmatmul.mubr.bf16.gmra.mrb[0].mxu0 %v851
        %v1355 = vpop.f32.mrb[0].mxu0
        %v1356 = vadd.f32 %v335, %v1355
        %v1357 = vpop.f32.mrb[0].mxu0
        %v1358 = vpop.f32.mrb[0].mxu0
        %v1359 = vadd.f32 %v335, %v1358
        %v1360 = vpop.f32.mrb[0].mxu0
        %1361 = vmatprep.mubr.bf16.mxu0 0
        %1362 = vmatmul.mubr.bf16.gmra.mrb[0].mxu0 %v854
        %v1363 = vpop.f32.mrb[0].mxu0
        %v1364 = vadd.f32 %v335, %v1363
        %v1365 = vpop.f32.mrb[0].mxu0
        %v1366 = vpop.f32.mrb[0].mxu0
        %v1367 = vadd.f32 %v335, %v1366
        %v1368 = vpop.f32.mrb[0].mxu0
        %1369 = vmatprep.mubr.bf16.mxu0 0
        %1370 = vmatmul.mubr.bf16.gmra.mrb[0].mxu0 %v857
        %v1371 = vpop.f32.mrb[0].mxu0
        %v1372 = vadd.f32 %v335, %v1371
        %v1373 = vpop.f32.mrb[0].mxu0
        %v1374 = vpop.f32.mrb[0].mxu0
        %v1375 = vadd.f32 %v335, %v1374
        %v1376 = vpop.f32.mrb[0].mxu0
        %1377 = vmatprep.mubr.bf16.mxu0 0
        %1378 = vmatmul.mubr.bf16.gmra.mrb[0].mxu0 %v860
        %v1379 = vpop.f32.mrb[0].mxu0
        %v1380 = vadd.f32 %v335, %v1379
        %v1381 = vpop.f32.mrb[0].mxu0
        %v1382 = vpop.f32.mrb[0].mxu0
        %v1383 = vadd.f32 %v335, %v1382
        %v1384 = vpop.f32.mrb[0].mxu0
        %1385 = vmatprep.mubr.bf16.mxu0 0
        %1386 = vmatmul.mubr.bf16.gmra.mrb[0].mxu0 %v863
        %v1387 = vpop.f32.mrb[0].mxu0
        %v1388 = vadd.f32 %v335, %v1387
        %v1389 = vpop.f32.mrb[0].mxu0
        %v1390 = vpop.f32.mrb[0].mxu0
        %v1391 = vadd.f32 %v335, %v1390
        %v1392 = vpop.f32.mrb[0].mxu0
        %1393 = vmatprep.mubr.bf16.mxu0 0
        %1394 = vmatmul.mubr.bf16.gmra.mrb[0].mxu0 %v866
        %v1395 = vpop.f32.mrb[0].mxu0
        %v1396 = vadd.f32 %v335, %v1395
        %v1397 = vpop.f32.mrb[0].mxu0
        %v1398 = vpop.f32.mrb[0].mxu0
        %v1399 = vadd.f32 %v335, %v1398
        %v1400 = vpop.f32.mrb[0].mxu0
        %1401 = vmatprep.mubr.bf16.mxu0 0
        %1402 = vmatmul.mubr.bf16.gmra.mrb[0].mxu0 %v869
        %v1403 = vpop.f32.mrb[0].mxu0
        %v1404 = vadd.f32 %v335, %v1403
        %v1405 = vpop.f32.mrb[0].mxu0
        %v1406 = vpop.f32.mrb[0].mxu0
        %v1407 = vadd.f32 %v335, %v1406
        %v1408 = vpop.f32.mrb[0].mxu0
        %1409 = vmatprep.mubr.bf16.mxu0 0
        %1410 = vmatmul.mubr.bf16.gmra.mrb[0].mxu0 %v872
        %v1411 = vpop.f32.mrb[0].mxu0
        %v1412 = vadd.f32 %v335, %v1411
        %v1413 = vpop.f32.mrb[0].mxu0
        %v1414 = vpop.f32.mrb[0].mxu0
        %v1415 = vadd.f32 %v335, %v1414
        %v1416 = vpop.f32.mrb[0].mxu0
        %1417 = vmatprep.mubr.bf16.mxu0 0
        %1418 = vmatmul.mubr.bf16.gmra.mrb[0].mxu0 %v875
        %v1419 = vpop.f32.mrb[0].mxu0
        %v1420 = vadd.f32 %v335, %v1419
        %v1421 = vpop.f32.mrb[0].mxu0
        %v1422 = vpop.f32.mrb[0].mxu0
        %v1423 = vadd.f32 %v335, %v1422
        %v1424 = vpop.f32.mrb[0].mxu0
        %1425 = vdwg.mxu0
        %v1426 = vmax.f32 %v916, 0.0
        %v1427 = vmax.f32 %v919, 0.0
        %v1428 = vmax.f32 %v924, 0.0
        %v1429 = vmax.f32 %v927, 0.0
        %v1430 = vmax.f32 %v932, 0.0
        %v1431 = vmax.f32 %v935, 0.0
        %v1432 = vmax.f32 %v940, 0.0
        %v1433 = vmax.f32 %v943, 0.0
        %v1434 = vmax.f32 %v948, 0.0
        %v1435 = vmax.f32 %v951, 0.0
        %v1436 = vmax.f32 %v956, 0.0
        %v1437 = vmax.f32 %v959, 0.0
        %v1438 = vmax.f32 %v964, 0.0
        %v1439 = vmax.f32 %v967, 0.0
        %v1440 = vmax.f32 %v972, 0.0
        %v1441 = vmax.f32 %v975, 0.0
        %v1442 = vmax.f32 %v980, 0.0
        %v1443 = vmax.f32 %v983, 0.0
        %v1444 = vmax.f32 %v988, 0.0
        %v1445 = vmax.f32 %v991, 0.0
        %v1446 = vmax.f32 %v996, 0.0
        %v1447 = vmax.f32 %v999, 0.0
        %v1448 = vmax.f32 %v1004, 0.0
        %v1449 = vmax.f32 %v1007, 0.0
        %v1450 = vmax.f32 %v1012, 0.0
        %v1451 = vmax.f32 %v1015, 0.0
        %v1452 = vmax.f32 %v1020, 0.0
        %v1453 = vmax.f32 %v1023, 0.0
        %v1454 = vmax.f32 %v1028, 0.0
        %v1455 = vmax.f32 %v1031, 0.0
        %v1456 = vmax.f32 %v1036, 0.0
        %v1457 = vmax.f32 %v1039, 0.0
        %v1458 = vmax.f32 %v1044, 0.0
        %v1459 = vmax.f32 %v1047, 0.0
        %v1460 = vmax.f32 %v1052, 0.0
        %v1461 = vmax.f32 %v1055, 0.0
        %v1462 = vmax.f32 %v1060, 0.0
        %v1463 = vmax.f32 %v1063, 0.0
        %v1464 = vmax.f32 %v1068, 0.0
        %v1465 = vmax.f32 %v1071, 0.0
        %v1466 = vmax.f32 %v1076, 0.0
        %v1467 = vmax.f32 %v1079, 0.0
        %v1468 = vmax.f32 %v1084, 0.0
        %v1469 = vmax.f32 %v1087, 0.0
        %v1470 = vmax.f32 %v1092, 0.0
        %v1471 = vmax.f32 %v1095, 0.0
        %v1472 = vmax.f32 %v1100, 0.0
        %v1473 = vmax.f32 %v1103, 0.0
        %v1474 = vmax.f32 %v1108, 0.0
        %v1475 = vmax.f32 %v1111, 0.0
        %v1476 = vmax.f32 %v1116, 0.0
        %v1477 = vmax.f32 %v1119, 0.0
        %v1478 = vmax.f32 %v1124, 0.0
        %v1479 = vmax.f32 %v1127, 0.0
        %v1480 = vmax.f32 %v1132, 0.0
        %v1481 = vmax.f32 %v1135, 0.0
        %v1482 = vmax.f32 %v1140, 0.0
        %v1483 = vmax.f32 %v1143, 0.0
        %v1484 = vmax.f32 %v1148, 0.0
        %v1485 = vmax.f32 %v1151, 0.0
        %v1486 = vmax.f32 %v1156, 0.0
        %v1487 = vmax.f32 %v1159, 0.0
        %v1488 = vmax.f32 %v1164, 0.0
        %v1489 = vmax.f32 %v1167, 0.0
        %v1490 = vmax.f32 %v1172, 0.0
        %v1491 = vmax.f32 %v1175, 0.0
        %v1492 = vmax.f32 %v1180, 0.0
        %v1493 = vmax.f32 %v1183, 0.0
        %v1494 = vmax.f32 %v1188, 0.0
        %v1495 = vmax.f32 %v1191, 0.0
        %v1496 = vmax.f32 %v1196, 0.0
        %v1497 = vmax.f32 %v1199, 0.0
        %v1498 = vmax.f32 %v1204, 0.0
        %v1499 = vmax.f32 %v1207, 0.0
        %v1500 = vmax.f32 %v1212, 0.0
        %v1501 = vmax.f32 %v1215, 0.0
        %v1502 = vmax.f32 %v1220, 0.0
        %v1503 = vmax.f32 %v1223, 0.0
        %v1504 = vmax.f32 %v1228, 0.0
        %v1505 = vmax.f32 %v1231, 0.0
        %v1506 = vmax.f32 %v1236, 0.0
        %v1507 = vmax.f32 %v1239, 0.0
        %v1508 = vmax.f32 %v1244, 0.0
        %v1509 = vmax.f32 %v1247, 0.0
        %v1510 = vmax.f32 %v1252, 0.0
        %v1511 = vmax.f32 %v1255, 0.0
        %v1512 = vmax.f32 %v1260, 0.0
        %v1513 = vmax.f32 %v1263, 0.0
        %v1514 = vmax.f32 %v1268, 0.0
        %v1515 = vmax.f32 %v1271, 0.0
        %v1516 = vmax.f32 %v1276, 0.0
        %v1517 = vmax.f32 %v1279, 0.0
        %v1518 = vmax.f32 %v1284, 0.0
        %v1519 = vmax.f32 %v1287, 0.0
        %v1520 = vmax.f32 %v1292, 0.0
        %v1521 = vmax.f32 %v1295, 0.0
        %v1522 = vmax.f32 %v1300, 0.0
        %v1523 = vmax.f32 %v1303, 0.0
        %v1524 = vmax.f32 %v1308, 0.0
        %v1525 = vmax.f32 %v1311, 0.0
        %v1526 = vmax.f32 %v1316, 0.0
        %v1527 = vmax.f32 %v1319, 0.0
        %v1528 = vmax.f32 %v1324, 0.0
        %v1529 = vmax.f32 %v1327, 0.0
        %v1530 = vmax.f32 %v1332, 0.0
        %v1531 = vmax.f32 %v1335, 0.0
        %v1532 = vmax.f32 %v1340, 0.0
        %v1533 = vmax.f32 %v1343, 0.0
        %v1534 = vmax.f32 %v1348, 0.0
        %v1535 = vmax.f32 %v1351, 0.0
        %v1536 = vmax.f32 %v1356, 0.0
        %v1537 = vmax.f32 %v1359, 0.0
        %v1538 = vmax.f32 %v1364, 0.0
        %v1539 = vmax.f32 %v1367, 0.0
        %v1540 = vmax.f32 %v1372, 0.0
        %v1541 = vmax.f32 %v1375, 0.0
        %v1542 = vmax.f32 %v1380, 0.0
        %v1543 = vmax.f32 %v1383, 0.0
        %v1544 = vmax.f32 %v1388, 0.0
        %v1545 = vmax.f32 %v1391, 0.0
        %v1546 = vmax.f32 %v1396, 0.0
        %v1547 = vmax.f32 %v1399, 0.0
        %v1548 = vmax.f32 %v1404, 0.0
        %v1549 = vmax.f32 %v1407, 0.0
        %v1550 = vmax.f32 %v1412, 0.0
        %v1551 = vmax.f32 %v1415, 0.0
        %v1552 = vmax.f32 %v1420, 0.0
        %v1553 = vmax.f32 %v1423, 0.0
        %vm1554 = vcmask 130048
        %1555 = vst.msk [vmem:[%s172] sm:$0xff] %vm1554, %v1426
        %1556 = vst.msk [vmem:[%s172 + $0x8] sm:$0xff] %vm1554, %v1427
        %1557 = vst.msk [vmem:[%s172 + $0x10] sm:$0xff] %vm1554, %v1428
        %1558 = vst.msk [vmem:[%s172 + $0x18] sm:$0xff] %vm1554, %v1429
        %1559 = vst.msk [vmem:[%s172 + $0x20] sm:$0xff] %vm1554, %v1430
        %1560 = vst.msk [vmem:[%s172 + $0x28] sm:$0xff] %vm1554, %v1431
        %1561 = vst.msk [vmem:[%s172 + $0x30] sm:$0xff] %vm1554, %v1432
        %1562 = vst.msk [vmem:[%s172 + $0x38] sm:$0xff] %vm1554, %v1433
        %1563 = vst.msk [vmem:[%s172 + $0x40] sm:$0xff] %vm1554, %v1434
        %1564 = vst.msk [vmem:[%s172 + $0x48] sm:$0xff] %vm1554, %v1435
        %1565 = vst.msk [vmem:[%s172 + $0x50] sm:$0xff] %vm1554, %v1436
        %1566 = vst.msk [vmem:[%s172 + $0x58] sm:$0xff] %vm1554, %v1437
        %1567 = vst.msk [vmem:[%s172 + $0x60] sm:$0xff] %vm1554, %v1438
        %1568 = vst.msk [vmem:[%s172 + $0x68] sm:$0xff] %vm1554, %v1439
        %1569 = vst.msk [vmem:[%s172 + $0x70] sm:$0xff] %vm1554, %v1440
        %1570 = vst.msk [vmem:[%s172 + $0x78] sm:$0xff] %vm1554, %v1441
        %1571 = vst.msk [vmem:[%s172 + $0x80] sm:$0xff] %vm1554, %v1442
        %1572 = vst.msk [vmem:[%s172 + $0x88] sm:$0xff] %vm1554, %v1443
        %1573 = vst.msk [vmem:[%s172 + $0x90] sm:$0xff] %vm1554, %v1444
        %1574 = vst.msk [vmem:[%s172 + $0x98] sm:$0xff] %vm1554, %v1445
        %1575 = vst.msk [vmem:[%s172 + $0xa0] sm:$0xff] %vm1554, %v1446
        %1576 = vst.msk [vmem:[%s172 + $0xa8] sm:$0xff] %vm1554, %v1447
        %1577 = vst.msk [vmem:[%s172 + $0xb0] sm:$0xff] %vm1554, %v1448
        %1578 = vst.msk [vmem:[%s172 + $0xb8] sm:$0xff] %vm1554, %v1449
        %1579 = vst.msk [vmem:[%s172 + $0xc0] sm:$0xff] %vm1554, %v1450
        %1580 = vst.msk [vmem:[%s172 + $0xc8] sm:$0xff] %vm1554, %v1451
        %1581 = vst.msk [vmem:[%s172 + $0xd0] sm:$0xff] %vm1554, %v1452
        %1582 = vst.msk [vmem:[%s172 + $0xd8] sm:$0xff] %vm1554, %v1453
        %1583 = vst.msk [vmem:[%s172 + $0xe0] sm:$0xff] %vm1554, %v1454
        %1584 = vst.msk [vmem:[%s172 + $0xe8] sm:$0xff] %vm1554, %v1455
        %1585 = vst.msk [vmem:[%s172 + $0xf0] sm:$0xff] %vm1554, %v1456
        %1586 = vst.msk [vmem:[%s172 + $0xf8] sm:$0xff] %vm1554, %v1457
        %1587 = vst.msk [vmem:[%s172 + $0x100] sm:$0xff] %vm1554, %v1458
        %1588 = vst.msk [vmem:[%s172 + $0x108] sm:$0xff] %vm1554, %v1459
        %1589 = vst.msk [vmem:[%s172 + $0x110] sm:$0xff] %vm1554, %v1460
        %1590 = vst.msk [vmem:[%s172 + $0x118] sm:$0xff] %vm1554, %v1461
        %1591 = vst.msk [vmem:[%s172 + $0x120] sm:$0xff] %vm1554, %v1462
        %1592 = vst.msk [vmem:[%s172 + $0x128] sm:$0xff] %vm1554, %v1463
        %1593 = vst.msk [vmem:[%s172 + $0x130] sm:$0xff] %vm1554, %v1464
        %1594 = vst.msk [vmem:[%s172 + $0x138] sm:$0xff] %vm1554, %v1465
        %1595 = vst.msk [vmem:[%s172 + $0x140] sm:$0xff] %vm1554, %v1466
        %1596 = vst.msk [vmem:[%s172 + $0x148] sm:$0xff] %vm1554, %v1467
        %1597 = vst.msk [vmem:[%s172 + $0x150] sm:$0xff] %vm1554, %v1468
        %1598 = vst.msk [vmem:[%s172 + $0x158] sm:$0xff] %vm1554, %v1469
        %1599 = vst.msk [vmem:[%s172 + $0x160] sm:$0xff] %vm1554, %v1470
        %1600 = vst.msk [vmem:[%s172 + $0x168] sm:$0xff] %vm1554, %v1471
        %1601 = vst.msk [vmem:[%s172 + $0x170] sm:$0xff] %vm1554, %v1472
        %1602 = vst.msk [vmem:[%s172 + $0x178] sm:$0xff] %vm1554, %v1473
        %1603 = vst.msk [vmem:[%s172 + $0x180] sm:$0xff] %vm1554, %v1474
        %1604 = vst.msk [vmem:[%s172 + $0x188] sm:$0xff] %vm1554, %v1475
        %1605 = vst.msk [vmem:[%s172 + $0x190] sm:$0xff] %vm1554, %v1476
        %1606 = vst.msk [vmem:[%s172 + $0x198] sm:$0xff] %vm1554, %v1477
        %1607 = vst.msk [vmem:[%s172 + $0x1a0] sm:$0xff] %vm1554, %v1478
        %1608 = vst.msk [vmem:[%s172 + $0x1a8] sm:$0xff] %vm1554, %v1479
        %1609 = vst.msk [vmem:[%s172 + $0x1b0] sm:$0xff] %vm1554, %v1480
        %1610 = vst.msk [vmem:[%s172 + $0x1b8] sm:$0xff] %vm1554, %v1481
        %1611 = vst.msk [vmem:[%s172 + $0x1c0] sm:$0xff] %vm1554, %v1482
        %1612 = vst.msk [vmem:[%s172 + $0x1c8] sm:$0xff] %vm1554, %v1483
        %1613 = vst.msk [vmem:[%s172 + $0x1d0] sm:$0xff] %vm1554, %v1484
        %1614 = vst.msk [vmem:[%s172 + $0x1d8] sm:$0xff] %vm1554, %v1485
        %1615 = vst.msk [vmem:[%s172 + $0x1e0] sm:$0xff] %vm1554, %v1486
        %1616 = vst.msk [vmem:[%s172 + $0x1e8] sm:$0xff] %vm1554, %v1487
        %1617 = vst.msk [vmem:[%s172 + $0x1f0] sm:$0xff] %vm1554, %v1488
        %1618 = vst.msk [vmem:[%s172 + $0x1f8] sm:$0xff] %vm1554, %v1489
        %1619 = vst.msk [vmem:[%s172 + $0x200] sm:$0xff] %vm1554, %v1490
        %1620 = vst.msk [vmem:[%s172 + $0x208] sm:$0xff] %vm1554, %v1491
        %1621 = vst.msk [vmem:[%s172 + $0x210] sm:$0xff] %vm1554, %v1492
        %1622 = vst.msk [vmem:[%s172 + $0x218] sm:$0xff] %vm1554, %v1493
        %1623 = vst.msk [vmem:[%s172 + $0x220] sm:$0xff] %vm1554, %v1494
        %1624 = vst.msk [vmem:[%s172 + $0x228] sm:$0xff] %vm1554, %v1495
        %1625 = vst.msk [vmem:[%s172 + $0x230] sm:$0xff] %vm1554, %v1496
        %1626 = vst.msk [vmem:[%s172 + $0x238] sm:$0xff] %vm1554, %v1497
        %1627 = vst.msk [vmem:[%s172 + $0x240] sm:$0xff] %vm1554, %v1498
        %1628 = vst.msk [vmem:[%s172 + $0x248] sm:$0xff] %vm1554, %v1499
        %1629 = vst.msk [vmem:[%s172 + $0x250] sm:$0xff] %vm1554, %v1500
        %1630 = vst.msk [vmem:[%s172 + $0x258] sm:$0xff] %vm1554, %v1501
        %1631 = vst.msk [vmem:[%s172 + $0x260] sm:$0xff] %vm1554, %v1502
        %1632 = vst.msk [vmem:[%s172 + $0x268] sm:$0xff] %vm1554, %v1503
        %1633 = vst.msk [vmem:[%s172 + $0x270] sm:$0xff] %vm1554, %v1504
        %1634 = vst.msk [vmem:[%s172 + $0x278] sm:$0xff] %vm1554, %v1505
        %1635 = vst.msk [vmem:[%s172 + $0x280] sm:$0xff] %vm1554, %v1506
        %1636 = vst.msk [vmem:[%s172 + $0x288] sm:$0xff] %vm1554, %v1507
        %1637 = vst.msk [vmem:[%s172 + $0x290] sm:$0xff] %vm1554, %v1508
        %1638 = vst.msk [vmem:[%s172 + $0x298] sm:$0xff] %vm1554, %v1509
        %1639 = vst.msk [vmem:[%s172 + $0x2a0] sm:$0xff] %vm1554, %v1510
        %1640 = vst.msk [vmem:[%s172 + $0x2a8] sm:$0xff] %vm1554, %v1511
        %1641 = vst.msk [vmem:[%s172 + $0x2b0] sm:$0xff] %vm1554, %v1512
        %1642 = vst.msk [vmem:[%s172 + $0x2b8] sm:$0xff] %vm1554, %v1513
        %1643 = vst.msk [vmem:[%s172 + $0x2c0] sm:$0xff] %vm1554, %v1514
        %1644 = vst.msk [vmem:[%s172 + $0x2c8] sm:$0xff] %vm1554, %v1515
        %1645 = vst.msk [vmem:[%s172 + $0x2d0] sm:$0xff] %vm1554, %v1516
        %1646 = vst.msk [vmem:[%s172 + $0x2d8] sm:$0xff] %vm1554, %v1517
        %1647 = vst.msk [vmem:[%s172 + $0x2e0] sm:$0xff] %vm1554, %v1518
        %1648 = vst.msk [vmem:[%s172 + $0x2e8] sm:$0xff] %vm1554, %v1519
        %1649 = vst.msk [vmem:[%s172 + $0x2f0] sm:$0xff] %vm1554, %v1520
        %1650 = vst.msk [vmem:[%s172 + $0x2f8] sm:$0xff] %vm1554, %v1521
        %1651 = vst.msk [vmem:[%s172 + $0x300] sm:$0xff] %vm1554, %v1522
        %1652 = vst.msk [vmem:[%s172 + $0x308] sm:$0xff] %vm1554, %v1523
        %1653 = vst.msk [vmem:[%s172 + $0x310] sm:$0xff] %vm1554, %v1524
        %1654 = vst.msk [vmem:[%s172 + $0x318] sm:$0xff] %vm1554, %v1525
        %1655 = vst.msk [vmem:[%s172 + $0x320] sm:$0xff] %vm1554, %v1526
        %1656 = vst.msk [vmem:[%s172 + $0x328] sm:$0xff] %vm1554, %v1527
        %1657 = vst.msk [vmem:[%s172 + $0x330] sm:$0xff] %vm1554, %v1528
        %1658 = vst.msk [vmem:[%s172 + $0x338] sm:$0xff] %vm1554, %v1529
        %1659 = vst.msk [vmem:[%s172 + $0x340] sm:$0xff] %vm1554, %v1530
        %1660 = vst.msk [vmem:[%s172 + $0x348] sm:$0xff] %vm1554, %v1531
        %1661 = vst.msk [vmem:[%s172 + $0x350] sm:$0xff] %vm1554, %v1532
        %1662 = vst.msk [vmem:[%s172 + $0x358] sm:$0xff] %vm1554, %v1533
        %1663 = vst.msk [vmem:[%s172 + $0x360] sm:$0xff] %vm1554, %v1534
        %1664 = vst.msk [vmem:[%s172 + $0x368] sm:$0xff] %vm1554, %v1535
        %1665 = vst.msk [vmem:[%s172 + $0x370] sm:$0xff] %vm1554, %v1536
        %1666 = vst.msk [vmem:[%s172 + $0x378] sm:$0xff] %vm1554, %v1537
        %1667 = vst.msk [vmem:[%s172 + $0x380] sm:$0xff] %vm1554, %v1538
        %1668 = vst.msk [vmem:[%s172 + $0x388] sm:$0xff] %vm1554, %v1539
        %1669 = vst.msk [vmem:[%s172 + $0x390] sm:$0xff] %vm1554, %v1540
        %1670 = vst.msk [vmem:[%s172 + $0x398] sm:$0xff] %vm1554, %v1541
        %1671 = vst.msk [vmem:[%s172 + $0x3a0] sm:$0xff] %vm1554, %v1542
        %1672 = vst.msk [vmem:[%s172 + $0x3a8] sm:$0xff] %vm1554, %v1543
        %1673 = vst.msk [vmem:[%s172 + $0x3b0] sm:$0xff] %vm1554, %v1544
        %1674 = vst.msk [vmem:[%s172 + $0x3b8] sm:$0xff] %vm1554, %v1545
        %1675 = vst.msk [vmem:[%s172 + $0x3c0] sm:$0xff] %vm1554, %v1546
        %1676 = vst.msk [vmem:[%s172 + $0x3c8] sm:$0xff] %vm1554, %v1547
        %1677 = vst.msk [vmem:[%s172 + $0x3d0] sm:$0xff] %vm1554, %v1548
        %1678 = vst.msk [vmem:[%s172 + $0x3d8] sm:$0xff] %vm1554, %v1549
        %1679 = vst.msk [vmem:[%s172 + $0x3e0] sm:$0xff] %vm1554, %v1550
        %1680 = vst.msk [vmem:[%s172 + $0x3e8] sm:$0xff] %vm1554, %v1551
        %1681 = vst.msk [vmem:[%s172 + $0x3f0] sm:$0xff] %vm1554, %v1552
        %1682 = vst.msk [vmem:[%s172 + $0x3f8] sm:$0xff] %vm1554, %v1553
        %s1683 = sand.u32 %s90, 1
        %s1684 = sand.u32 %s90, 1
        %s1685 = smul.addr %s1684, 1024
        %s1686 = scalar_lea.vmem [#allocation2], %s1685
        // Predicated region
        $region33: #{pupilnet_v2_forward.8} parent=31 // pred_check
          %p1687 = pneg %p100
        $region34: #{pupilnet_v2_forward.8} parent=31 // pred_check_branch
          %1689 = sbr.rel (%p1687) target = $region36
        $region35: #{pupilnet_v2_forward.8} parent=31 // pred_region
          %s1690 = smul.u32 128, %s14
          %s1691 = ssub.s32 929, %s1690
          %p1692 = scmp.lt.s32.totalorder %s1691, 128
          %s1693 = scalar_select %p1692, %s1691, 128
          %s1694 = smul.u32 128, %s1693
          %p1695 = scmp.ne.s32.totalorder 0, %s1694
          %s1696 = smul.addr %s1690, 8
          %s1697 = scalar_lea.vmem %s3, %s1696
          // Predicated region
          $region37: #{pupilnet_v2_forward.8} parent=35 // pred_check
            %p1698 = pneg %p1695
          $region38: #{pupilnet_v2_forward.8} parent=35 // pred_check_branch
            %1700 = sbr.rel (%p1698) target = $region40
          $region39: #{pupilnet_v2_forward.8} parent=35 // pred_region
            // Predicated region
            $region41: #{pupilnet_v2_forward.8} parent=39 // pred_check
              _
            $region42: #{pupilnet_v2_forward.8} parent=39 // pred_check_branch
              %1702 = sbr.rel (0) target = $region44
            $region43: #{pupilnet_v2_forward.8} parent=39 // pred_region
              // Predicated region
              $region63: #{pupilnet_v2_forward.8} parent=43 // pred_check
                _
              $region64: #{pupilnet_v2_forward.8} parent=43 // pred_check_branch
                %1877 = sbr.rel (0) target = $region66
              $region65: #{pupilnet_v2_forward.8} parent=43 // pred_region
                %s1878 = sshrl.u32 %s1693, 6
                // While loop
                $region67: #{pupilnet_v2_forward.8} parent=65 // loop_pre_header
                  _
                $region68: #{pupilnet_v2_forward.8} parent=65 // loop_header
                  %s1880 = sphi 0, %s1882
                  %p1881 = scmp.ge.s32.totalorder %s1880, %s1878
                  %s1885 = sphi 0, %s2018
                  %s1886 = sphi %s1686, %s2021
                  %s1887 = sphi %s1697, %s2022
                $region69: #{pupilnet_v2_forward.8} parent=65 // loop_header_branch
                  %1884 = sbr.rel (%p1881) target = $region73
                $region70: #{pupilnet_v2_forward.8} parent=65 // loop_body
                  %v1888 = vld [vmem:[%s1886] sm:$0xff]
                  %1889 = vst [vmem:[%s1887] sm:$0xff] %v1888
                  %v1890 = vld [vmem:[%s1886 + $0x8] sm:$0xff]
                  %1891 = vst [vmem:[%s1887 + $0x8] sm:$0xff] %v1890
                  %v1892 = vld [vmem:[%s1886 + $0x10] sm:$0xff]
                  %1893 = vst [vmem:[%s1887 + $0x10] sm:$0xff] %v1892
                  %v1894 = vld [vmem:[%s1886 + $0x18] sm:$0xff]
                  %1895 = vst [vmem:[%s1887 + $0x18] sm:$0xff] %v1894
                  %v1896 = vld [vmem:[%s1886 + $0x20] sm:$0xff]
                  %1897 = vst [vmem:[%s1887 + $0x20] sm:$0xff] %v1896
                  %v1898 = vld [vmem:[%s1886 + $0x28] sm:$0xff]
                  %1899 = vst [vmem:[%s1887 + $0x28] sm:$0xff] %v1898
                  %v1900 = vld [vmem:[%s1886 + $0x30] sm:$0xff]
                  %1901 = vst [vmem:[%s1887 + $0x30] sm:$0xff] %v1900
                  %v1902 = vld [vmem:[%s1886 + $0x38] sm:$0xff]
                  %1903 = vst [vmem:[%s1887 + $0x38] sm:$0xff] %v1902
                  %v1904 = vld [vmem:[%s1886 + $0x40] sm:$0xff]
                  %1905 = vst [vmem:[%s1887 + $0x40] sm:$0xff] %v1904
                  %v1906 = vld [vmem:[%s1886 + $0x48] sm:$0xff]
                  %1907 = vst [vmem:[%s1887 + $0x48] sm:$0xff] %v1906
                  %v1908 = vld [vmem:[%s1886 + $0x50] sm:$0xff]
                  %1909 = vst [vmem:[%s1887 + $0x50] sm:$0xff] %v1908
                  %v1910 = vld [vmem:[%s1886 + $0x58] sm:$0xff]
                  %1911 = vst [vmem:[%s1887 + $0x58] sm:$0xff] %v1910
                  %v1912 = vld [vmem:[%s1886 + $0x60] sm:$0xff]
                  %1913 = vst [vmem:[%s1887 + $0x60] sm:$0xff] %v1912
                  %v1914 = vld [vmem:[%s1886 + $0x68] sm:$0xff]
                  %1915 = vst [vmem:[%s1887 + $0x68] sm:$0xff] %v1914
                  %v1916 = vld [vmem:[%s1886 + $0x70] sm:$0xff]
                  %1917 = vst [vmem:[%s1887 + $0x70] sm:$0xff] %v1916
                  %v1918 = vld [vmem:[%s1886 + $0x78] sm:$0xff]
                  %1919 = vst [vmem:[%s1887 + $0x78] sm:$0xff] %v1918
                  %v1920 = vld [vmem:[%s1886 + $0x80] sm:$0xff]
                  %1921 = vst [vmem:[%s1887 + $0x80] sm:$0xff] %v1920
                  %v1922 = vld [vmem:[%s1886 + $0x88] sm:$0xff]
                  %1923 = vst [vmem:[%s1887 + $0x88] sm:$0xff] %v1922
                  %v1924 = vld [vmem:[%s1886 + $0x90] sm:$0xff]
                  %1925 = vst [vmem:[%s1887 + $0x90] sm:$0xff] %v1924
                  %v1926 = vld [vmem:[%s1886 + $0x98] sm:$0xff]
                  %1927 = vst [vmem:[%s1887 + $0x98] sm:$0xff] %v1926
                  %v1928 = vld [vmem:[%s1886 + $0xa0] sm:$0xff]
                  %1929 = vst [vmem:[%s1887 + $0xa0] sm:$0xff] %v1928
                  %v1930 = vld [vmem:[%s1886 + $0xa8] sm:$0xff]
                  %1931 = vst [vmem:[%s1887 + $0xa8] sm:$0xff] %v1930
                  %v1932 = vld [vmem:[%s1886 + $0xb0] sm:$0xff]
                  %1933 = vst [vmem:[%s1887 + $0xb0] sm:$0xff] %v1932
                  %v1934 = vld [vmem:[%s1886 + $0xb8] sm:$0xff]
                  %1935 = vst [vmem:[%s1887 + $0xb8] sm:$0xff] %v1934
                  %v1936 = vld [vmem:[%s1886 + $0xc0] sm:$0xff]
                  %1937 = vst [vmem:[%s1887 + $0xc0] sm:$0xff] %v1936
                  %v1938 = vld [vmem:[%s1886 + $0xc8] sm:$0xff]
                  %1939 = vst [vmem:[%s1887 + $0xc8] sm:$0xff] %v1938
                  %v1940 = vld [vmem:[%s1886 + $0xd0] sm:$0xff]
                  %1941 = vst [vmem:[%s1887 + $0xd0] sm:$0xff] %v1940
                  %v1942 = vld [vmem:[%s1886 + $0xd8] sm:$0xff]
                  %1943 = vst [vmem:[%s1887 + $0xd8] sm:$0xff] %v1942
                  %v1944 = vld [vmem:[%s1886 + $0xe0] sm:$0xff]
                  %1945 = vst [vmem:[%s1887 + $0xe0] sm:$0xff] %v1944
                  %v1946 = vld [vmem:[%s1886 + $0xe8] sm:$0xff]
                  %1947 = vst [vmem:[%s1887 + $0xe8] sm:$0xff] %v1946
                  %v1948 = vld [vmem:[%s1886 + $0xf0] sm:$0xff]
                  %1949 = vst [vmem:[%s1887 + $0xf0] sm:$0xff] %v1948
                  %v1950 = vld [vmem:[%s1886 + $0xf8] sm:$0xff]
                  %1951 = vst [vmem:[%s1887 + $0xf8] sm:$0xff] %v1950
                  %v1952 = vld [vmem:[%s1886 + $0x100] sm:$0xff]
                  %1953 = vst [vmem:[%s1887 + $0x100] sm:$0xff] %v1952
                  %v1954 = vld [vmem:[%s1886 + $0x108] sm:$0xff]
                  %1955 = vst [vmem:[%s1887 + $0x108] sm:$0xff] %v1954
                  %v1956 = vld [vmem:[%s1886 + $0x110] sm:$0xff]
                  %1957 = vst [vmem:[%s1887 + $0x110] sm:$0xff] %v1956
                  %v1958 = vld [vmem:[%s1886 + $0x118] sm:$0xff]
                  %1959 = vst [vmem:[%s1887 + $0x118] sm:$0xff] %v1958
                  %v1960 = vld [vmem:[%s1886 + $0x120] sm:$0xff]
                  %1961 = vst [vmem:[%s1887 + $0x120] sm:$0xff] %v1960
                  %v1962 = vld [vmem:[%s1886 + $0x128] sm:$0xff]
                  %1963 = vst [vmem:[%s1887 + $0x128] sm:$0xff] %v1962
                  %v1964 = vld [vmem:[%s1886 + $0x130] sm:$0xff]
                  %1965 = vst [vmem:[%s1887 + $0x130] sm:$0xff] %v1964
                  %v1966 = vld [vmem:[%s1886 + $0x138] sm:$0xff]
                  %1967 = vst [vmem:[%s1887 + $0x138] sm:$0xff] %v1966
                  %v1968 = vld [vmem:[%s1886 + $0x140] sm:$0xff]
                  %1969 = vst [vmem:[%s1887 + $0x140] sm:$0xff] %v1968
                  %v1970 = vld [vmem:[%s1886 + $0x148] sm:$0xff]
                  %1971 = vst [vmem:[%s1887 + $0x148] sm:$0xff] %v1970
                  %v1972 = vld [vmem:[%s1886 + $0x150] sm:$0xff]
                  %1973 = vst [vmem:[%s1887 + $0x150] sm:$0xff] %v1972
                  %v1974 = vld [vmem:[%s1886 + $0x158] sm:$0xff]
                  %1975 = vst [vmem:[%s1887 + $0x158] sm:$0xff] %v1974
                  %v1976 = vld [vmem:[%s1886 + $0x160] sm:$0xff]
                  %1977 = vst [vmem:[%s1887 + $0x160] sm:$0xff] %v1976
                  %v1978 = vld [vmem:[%s1886 + $0x168] sm:$0xff]
                  %1979 = vst [vmem:[%s1887 + $0x168] sm:$0xff] %v1978
                  %v1980 = vld [vmem:[%s1886 + $0x170] sm:$0xff]
                  %1981 = vst [vmem:[%s1887 + $0x170] sm:$0xff] %v1980
                  %v1982 = vld [vmem:[%s1886 + $0x178] sm:$0xff]
                  %1983 = vst [vmem:[%s1887 + $0x178] sm:$0xff] %v1982
                  %v1984 = vld [vmem:[%s1886 + $0x180] sm:$0xff]
                  %1985 = vst [vmem:[%s1887 + $0x180] sm:$0xff] %v1984
                  %v1986 = vld [vmem:[%s1886 + $0x188] sm:$0xff]
                  %1987 = vst [vmem:[%s1887 + $0x188] sm:$0xff] %v1986
                  %v1988 = vld [vmem:[%s1886 + $0x190] sm:$0xff]
                  %1989 = vst [vmem:[%s1887 + $0x190] sm:$0xff] %v1988
                  %v1990 = vld [vmem:[%s1886 + $0x198] sm:$0xff]
                  %1991 = vst [vmem:[%s1887 + $0x198] sm:$0xff] %v1990
                  %v1992 = vld [vmem:[%s1886 + $0x1a0] sm:$0xff]
                  %1993 = vst [vmem:[%s1887 + $0x1a0] sm:$0xff] %v1992
                  %v1994 = vld [vmem:[%s1886 + $0x1a8] sm:$0xff]
                  %1995 = vst [vmem:[%s1887 + $0x1a8] sm:$0xff] %v1994
                  %v1996 = vld [vmem:[%s1886 + $0x1b0] sm:$0xff]
                  %1997 = vst [vmem:[%s1887 + $0x1b0] sm:$0xff] %v1996
                  %v1998 = vld [vmem:[%s1886 + $0x1b8] sm:$0xff]
                  %1999 = vst [vmem:[%s1887 + $0x1b8] sm:$0xff] %v1998
                  %v2000 = vld [vmem:[%s1886 + $0x1c0] sm:$0xff]
                  %2001 = vst [vmem:[%s1887 + $0x1c0] sm:$0xff] %v2000
                  %v2002 = vld [vmem:[%s1886 + $0x1c8] sm:$0xff]
                  %2003 = vst [vmem:[%s1887 + $0x1c8] sm:$0xff] %v2002
                  %v2004 = vld [vmem:[%s1886 + $0x1d0] sm:$0xff]
                  %2005 = vst [vmem:[%s1887 + $0x1d0] sm:$0xff] %v2004
                  %v2006 = vld [vmem:[%s1886 + $0x1d8] sm:$0xff]
                  %2007 = vst [vmem:[%s1887 + $0x1d8] sm:$0xff] %v2006
                  %v2008 = vld [vmem:[%s1886 + $0x1e0] sm:$0xff]
                  %2009 = vst [vmem:[%s1887 + $0x1e0] sm:$0xff] %v2008
                  %v2010 = vld [vmem:[%s1886 + $0x1e8] sm:$0xff]
                  %2011 = vst [vmem:[%s1887 + $0x1e8] sm:$0xff] %v2010
                  %v2012 = vld [vmem:[%s1886 + $0x1f0] sm:$0xff]
                  %2013 = vst [vmem:[%s1887 + $0x1f0] sm:$0xff] %v2012
                  %v2014 = vld [vmem:[%s1886 + $0x1f8] sm:$0xff]
                  %2015 = vst [vmem:[%s1887 + $0x1f8] sm:$0xff] %v2014
                  %s2016 = sadd.s32 1, %s1885
                  %p2017 = scmp.ge.s32.totalorder %s2016, %s1878
                  %s2018 = scalar_select %p2017, 0, %s2016
                  %s2019 = smul.u32 %s2018, 512
                  %s2020 = smul.u32 %s2018, 512
                  %s2021 = scalar_lea.vmem %s1686, %s2019 [#allocation2]
                  %s2022 = scalar_lea.vmem %s1697, %s2020
                $region71: #{pupilnet_v2_forward.8} parent=65 // loop_footer
                  %s1882 = sadd.s32 %s1880, 1
                $region72: #{pupilnet_v2_forward.8} parent=65 // loop_footer_branch
                  %1879 = sbr.rel target = $region68
                $region73: #{pupilnet_v2_forward.8} parent=65 // loop_exit
                  _
                %s2023 = sshrl.u32 %s1693, 6
                %s2024 = sand.u32 %s1693, 63
                %s2025 = smul.u32 %s2023, 64
                %s2026 = smul.u32 8, %s2025
                %s2027 = scalar_lea.vmem %s1686, %s2026 [#allocation2]
                %s2028 = smul.u32 8, %s2025
                %s2029 = scalar_lea.vmem %s1697, %s2028
                // While loop
                $region74: #{pupilnet_v2_forward.8} parent=65 // loop_pre_header
                  _
                $region75: #{pupilnet_v2_forward.8} parent=65 // loop_header
                  %s2031 = sphi 0, %s2033
                  %p2032 = scmp.ge.s32.totalorder %s2031, %s2024
                  %s2036 = sphi 0, %s2043
                  %s2037 = sphi %s2027, %s2046
                  %s2038 = sphi %s2029, %s2047
                $region76: #{pupilnet_v2_forward.8} parent=65 // loop_header_branch
                  %2035 = sbr.rel (%p2032) target = $region80
                $region77: #{pupilnet_v2_forward.8} parent=65 // loop_body
                  %v2039 = vld [vmem:[%s2037] sm:$0xff]
                  %2040 = vst [vmem:[%s2038] sm:$0xff] %v2039
                  %s2041 = sadd.s32 1, %s2036
                  %p2042 = scmp.ge.s32.totalorder %s2041, %s2024
                  %s2043 = scalar_select %p2042, 0, %s2041
                  %s2044 = smul.u32 %s2043, 8
                  %s2045 = smul.u32 %s2043, 8
                  %s2046 = scalar_lea.vmem %s2027, %s2044 [#allocation2]
                  %s2047 = scalar_lea.vmem %s2029, %s2045
                $region78: #{pupilnet_v2_forward.8} parent=65 // loop_footer
                  %s2033 = sadd.s32 %s2031, 1
                $region79: #{pupilnet_v2_forward.8} parent=65 // loop_footer_branch
                  %2030 = sbr.rel target = $region75
                $region80: #{pupilnet_v2_forward.8} parent=65 // loop_exit
                  _
              $region66: #{pupilnet_v2_forward.8} parent=43 // pred_fallthru
                _
              // Predicated region
              $region81: #{pupilnet_v2_forward.8} parent=43 // pred_check
                _
              $region82: #{pupilnet_v2_forward.8} parent=43 // pred_check_branch
                %2049 = sbr.rel target = $region84
              $region83: #{pupilnet_v2_forward.8} parent=43 // pred_region
                _
              $region84: #{pupilnet_v2_forward.8} parent=43 // pred_fallthru
                _
            $region44: #{pupilnet_v2_forward.8} parent=39 // pred_fallthru
              _
            // Predicated region
            $region45: #{pupilnet_v2_forward.8} parent=39 // pred_check
              _
            $region46: #{pupilnet_v2_forward.8} parent=39 // pred_check_branch
              %1704 = sbr.rel target = $region48
            $region47: #{pupilnet_v2_forward.8} parent=39 // pred_region
              %s1706 = sshrl.u32 %s1693, 6
              // While loop
              $region49: #{pupilnet_v2_forward.8} parent=47 // loop_pre_header
                _
              $region50: #{pupilnet_v2_forward.8} parent=47 // loop_header
                %s1708 = sphi 0, %s1710
                %p1709 = scmp.ge.s32.totalorder %s1708, %s1706
                %s1713 = sphi 0, %s1846
                %s1714 = sphi %s1686, %s1849
                %s1715 = sphi %s1697, %s1850
              $region51: #{pupilnet_v2_forward.8} parent=47 // loop_header_branch
                %1712 = sbr.rel (%p1709) target = $region55
              $region52: #{pupilnet_v2_forward.8} parent=47 // loop_body
                %v1716 = vld [vmem:[%s1714] sm:$0xff]
                %1717 = vst [vmem:[%s1715] sm:$0xff] %v1716
                %v1718 = vld [vmem:[%s1714 + $0x8] sm:$0xff]
                %1719 = vst [vmem:[%s1715 + $0x8] sm:$0xff] %v1718
                %v1720 = vld [vmem:[%s1714 + $0x10] sm:$0xff]
                %1721 = vst [vmem:[%s1715 + $0x10] sm:$0xff] %v1720
                %v1722 = vld [vmem:[%s1714 + $0x18] sm:$0xff]
                %1723 = vst [vmem:[%s1715 + $0x18] sm:$0xff] %v1722
                %v1724 = vld [vmem:[%s1714 + $0x20] sm:$0xff]
                %1725 = vst [vmem:[%s1715 + $0x20] sm:$0xff] %v1724
                %v1726 = vld [vmem:[%s1714 + $0x28] sm:$0xff]
                %1727 = vst [vmem:[%s1715 + $0x28] sm:$0xff] %v1726
                %v1728 = vld [vmem:[%s1714 + $0x30] sm:$0xff]
                %1729 = vst [vmem:[%s1715 + $0x30] sm:$0xff] %v1728
                %v1730 = vld [vmem:[%s1714 + $0x38] sm:$0xff]
                %1731 = vst [vmem:[%s1715 + $0x38] sm:$0xff] %v1730
                %v1732 = vld [vmem:[%s1714 + $0x40] sm:$0xff]
                %1733 = vst [vmem:[%s1715 + $0x40] sm:$0xff] %v1732
                %v1734 = vld [vmem:[%s1714 + $0x48] sm:$0xff]
                %1735 = vst [vmem:[%s1715 + $0x48] sm:$0xff] %v1734
                %v1736 = vld [vmem:[%s1714 + $0x50] sm:$0xff]
                %1737 = vst [vmem:[%s1715 + $0x50] sm:$0xff] %v1736
                %v1738 = vld [vmem:[%s1714 + $0x58] sm:$0xff]
                %1739 = vst [vmem:[%s1715 + $0x58] sm:$0xff] %v1738
                %v1740 = vld [vmem:[%s1714 + $0x60] sm:$0xff]
                %1741 = vst [vmem:[%s1715 + $0x60] sm:$0xff] %v1740
                %v1742 = vld [vmem:[%s1714 + $0x68] sm:$0xff]
                %1743 = vst [vmem:[%s1715 + $0x68] sm:$0xff] %v1742
                %v1744 = vld [vmem:[%s1714 + $0x70] sm:$0xff]
                %1745 = vst [vmem:[%s1715 + $0x70] sm:$0xff] %v1744
                %v1746 = vld [vmem:[%s1714 + $0x78] sm:$0xff]
                %1747 = vst [vmem:[%s1715 + $0x78] sm:$0xff] %v1746
                %v1748 = vld [vmem:[%s1714 + $0x80] sm:$0xff]
                %1749 = vst [vmem:[%s1715 + $0x80] sm:$0xff] %v1748
                %v1750 = vld [vmem:[%s1714 + $0x88] sm:$0xff]
                %1751 = vst [vmem:[%s1715 + $0x88] sm:$0xff] %v1750
                %v1752 = vld [vmem:[%s1714 + $0x90] sm:$0xff]
                %1753 = vst [vmem:[%s1715 + $0x90] sm:$0xff] %v1752
                %v1754 = vld [vmem:[%s1714 + $0x98] sm:$0xff]
                %1755 = vst [vmem:[%s1715 + $0x98] sm:$0xff] %v1754
                %v1756 = vld [vmem:[%s1714 + $0xa0] sm:$0xff]
                %1757 = vst [vmem:[%s1715 + $0xa0] sm:$0xff] %v1756
                %v1758 = vld [vmem:[%s1714 + $0xa8] sm:$0xff]
                %1759 = vst [vmem:[%s1715 + $0xa8] sm:$0xff] %v1758
                %v1760 = vld [vmem:[%s1714 + $0xb0] sm:$0xff]
                %1761 = vst [vmem:[%s1715 + $0xb0] sm:$0xff] %v1760
                %v1762 = vld [vmem:[%s1714 + $0xb8] sm:$0xff]
                %1763 = vst [vmem:[%s1715 + $0xb8] sm:$0xff] %v1762
                %v1764 = vld [vmem:[%s1714 + $0xc0] sm:$0xff]
                %1765 = vst [vmem:[%s1715 + $0xc0] sm:$0xff] %v1764
                %v1766 = vld [vmem:[%s1714 + $0xc8] sm:$0xff]
                %1767 = vst [vmem:[%s1715 + $0xc8] sm:$0xff] %v1766
                %v1768 = vld [vmem:[%s1714 + $0xd0] sm:$0xff]
                %1769 = vst [vmem:[%s1715 + $0xd0] sm:$0xff] %v1768
                %v1770 = vld [vmem:[%s1714 + $0xd8] sm:$0xff]
                %1771 = vst [vmem:[%s1715 + $0xd8] sm:$0xff] %v1770
                %v1772 = vld [vmem:[%s1714 + $0xe0] sm:$0xff]
                %1773 = vst [vmem:[%s1715 + $0xe0] sm:$0xff] %v1772
                %v1774 = vld [vmem:[%s1714 + $0xe8] sm:$0xff]
                %1775 = vst [vmem:[%s1715 + $0xe8] sm:$0xff] %v1774
                %v1776 = vld [vmem:[%s1714 + $0xf0] sm:$0xff]
                %1777 = vst [vmem:[%s1715 + $0xf0] sm:$0xff] %v1776
                %v1778 = vld [vmem:[%s1714 + $0xf8] sm:$0xff]
                %1779 = vst [vmem:[%s1715 + $0xf8] sm:$0xff] %v1778
                %v1780 = vld [vmem:[%s1714 + $0x100] sm:$0xff]
                %1781 = vst [vmem:[%s1715 + $0x100] sm:$0xff] %v1780
                %v1782 = vld [vmem:[%s1714 + $0x108] sm:$0xff]
                %1783 = vst [vmem:[%s1715 + $0x108] sm:$0xff] %v1782
                %v1784 = vld [vmem:[%s1714 + $0x110] sm:$0xff]
                %1785 = vst [vmem:[%s1715 + $0x110] sm:$0xff] %v1784
                %v1786 = vld [vmem:[%s1714 + $0x118] sm:$0xff]
                %1787 = vst [vmem:[%s1715 + $0x118] sm:$0xff] %v1786
                %v1788 = vld [vmem:[%s1714 + $0x120] sm:$0xff]
                %1789 = vst [vmem:[%s1715 + $0x120] sm:$0xff] %v1788
                %v1790 = vld [vmem:[%s1714 + $0x128] sm:$0xff]
                %1791 = vst [vmem:[%s1715 + $0x128] sm:$0xff] %v1790
                %v1792 = vld [vmem:[%s1714 + $0x130] sm:$0xff]
                %1793 = vst [vmem:[%s1715 + $0x130] sm:$0xff] %v1792
                %v1794 = vld [vmem:[%s1714 + $0x138] sm:$0xff]
                %1795 = vst [vmem:[%s1715 + $0x138] sm:$0xff] %v1794
                %v1796 = vld [vmem:[%s1714 + $0x140] sm:$0xff]
                %1797 = vst [vmem:[%s1715 + $0x140] sm:$0xff] %v1796
                %v1798 = vld [vmem:[%s1714 + $0x148] sm:$0xff]
                %1799 = vst [vmem:[%s1715 + $0x148] sm:$0xff] %v1798
                %v1800 = vld [vmem:[%s1714 + $0x150] sm:$0xff]
                %1801 = vst [vmem:[%s1715 + $0x150] sm:$0xff] %v1800
                %v1802 = vld [vmem:[%s1714 + $0x158] sm:$0xff]
                %1803 = vst [vmem:[%s1715 + $0x158] sm:$0xff] %v1802
                %v1804 = vld [vmem:[%s1714 + $0x160] sm:$0xff]
                %1805 = vst [vmem:[%s1715 + $0x160] sm:$0xff] %v1804
                %v1806 = vld [vmem:[%s1714 + $0x168] sm:$0xff]
                %1807 = vst [vmem:[%s1715 + $0x168] sm:$0xff] %v1806
                %v1808 = vld [vmem:[%s1714 + $0x170] sm:$0xff]
                %1809 = vst [vmem:[%s1715 + $0x170] sm:$0xff] %v1808
                %v1810 = vld [vmem:[%s1714 + $0x178] sm:$0xff]
                %1811 = vst [vmem:[%s1715 + $0x178] sm:$0xff] %v1810
                %v1812 = vld [vmem:[%s1714 + $0x180] sm:$0xff]
                %1813 = vst [vmem:[%s1715 + $0x180] sm:$0xff] %v1812
                %v1814 = vld [vmem:[%s1714 + $0x188] sm:$0xff]
                %1815 = vst [vmem:[%s1715 + $0x188] sm:$0xff] %v1814
                %v1816 = vld [vmem:[%s1714 + $0x190] sm:$0xff]
                %1817 = vst [vmem:[%s1715 + $0x190] sm:$0xff] %v1816
                %v1818 = vld [vmem:[%s1714 + $0x198] sm:$0xff]
                %1819 = vst [vmem:[%s1715 + $0x198] sm:$0xff] %v1818
                %v1820 = vld [vmem:[%s1714 + $0x1a0] sm:$0xff]
                %1821 = vst [vmem:[%s1715 + $0x1a0] sm:$0xff] %v1820
                %v1822 = vld [vmem:[%s1714 + $0x1a8] sm:$0xff]
                %1823 = vst [vmem:[%s1715 + $0x1a8] sm:$0xff] %v1822
                %v1824 = vld [vmem:[%s1714 + $0x1b0] sm:$0xff]
                %1825 = vst [vmem:[%s1715 + $0x1b0] sm:$0xff] %v1824
                %v1826 = vld [vmem:[%s1714 + $0x1b8] sm:$0xff]
                %1827 = vst [vmem:[%s1715 + $0x1b8] sm:$0xff] %v1826
                %v1828 = vld [vmem:[%s1714 + $0x1c0] sm:$0xff]
                %1829 = vst [vmem:[%s1715 + $0x1c0] sm:$0xff] %v1828
                %v1830 = vld [vmem:[%s1714 + $0x1c8] sm:$0xff]
                %1831 = vst [vmem:[%s1715 + $0x1c8] sm:$0xff] %v1830
                %v1832 = vld [vmem:[%s1714 + $0x1d0] sm:$0xff]
                %1833 = vst [vmem:[%s1715 + $0x1d0] sm:$0xff] %v1832
                %v1834 = vld [vmem:[%s1714 + $0x1d8] sm:$0xff]
                %1835 = vst [vmem:[%s1715 + $0x1d8] sm:$0xff] %v1834
                %v1836 = vld [vmem:[%s1714 + $0x1e0] sm:$0xff]
                %1837 = vst [vmem:[%s1715 + $0x1e0] sm:$0xff] %v1836
                %v1838 = vld [vmem:[%s1714 + $0x1e8] sm:$0xff]
                %1839 = vst [vmem:[%s1715 + $0x1e8] sm:$0xff] %v1838
                %v1840 = vld [vmem:[%s1714 + $0x1f0] sm:$0xff]
                %1841 = vst [vmem:[%s1715 + $0x1f0] sm:$0xff] %v1840
                %v1842 = vld [vmem:[%s1714 + $0x1f8] sm:$0xff]
                %1843 = vst [vmem:[%s1715 + $0x1f8] sm:$0xff] %v1842
                %s1844 = sadd.s32 1, %s1713
                %p1845 = scmp.ge.s32.totalorder %s1844, %s1706
                %s1846 = scalar_select %p1845, 0, %s1844
                %s1847 = smul.u32 %s1846, 512
                %s1848 = smul.u32 %s1846, 512
                %s1849 = scalar_lea.vmem %s1686, %s1847 [#allocation2]
                %s1850 = scalar_lea.vmem %s1697, %s1848
              $region53: #{pupilnet_v2_forward.8} parent=47 // loop_footer
                %s1710 = sadd.s32 %s1708, 1
              $region54: #{pupilnet_v2_forward.8} parent=47 // loop_footer_branch
                %1707 = sbr.rel target = $region50
              $region55: #{pupilnet_v2_forward.8} parent=47 // loop_exit
                _
              %s1851 = sshrl.u32 %s1693, 6
              %s1852 = sand.u32 %s1693, 63
              %s1853 = smul.u32 %s1851, 64
              %s1854 = smul.u32 8, %s1853
              %s1855 = scalar_lea.vmem %s1686, %s1854 [#allocation2]
              %s1856 = smul.u32 8, %s1853
              %s1857 = scalar_lea.vmem %s1697, %s1856
              // While loop
              $region56: #{pupilnet_v2_forward.8} parent=47 // loop_pre_header
                _
              $region57: #{pupilnet_v2_forward.8} parent=47 // loop_header
                %s1859 = sphi 0, %s1861
                %p1860 = scmp.ge.s32.totalorder %s1859, %s1852
                %s1864 = sphi 0, %s1871
                %s1865 = sphi %s1855, %s1874
                %s1866 = sphi %s1857, %s1875
              $region58: #{pupilnet_v2_forward.8} parent=47 // loop_header_branch
                %1863 = sbr.rel (%p1860) target = $region62
              $region59: #{pupilnet_v2_forward.8} parent=47 // loop_body
                %v1867 = vld [vmem:[%s1865] sm:$0xff]
                %1868 = vst [vmem:[%s1866] sm:$0xff] %v1867
                %s1869 = sadd.s32 1, %s1864
                %p1870 = scmp.ge.s32.totalorder %s1869, %s1852
                %s1871 = scalar_select %p1870, 0, %s1869
                %s1872 = smul.u32 %s1871, 8
                %s1873 = smul.u32 %s1871, 8
                %s1874 = scalar_lea.vmem %s1855, %s1872 [#allocation2]
                %s1875 = scalar_lea.vmem %s1857, %s1873
              $region60: #{pupilnet_v2_forward.8} parent=47 // loop_footer
                %s1861 = sadd.s32 %s1859, 1
              $region61: #{pupilnet_v2_forward.8} parent=47 // loop_footer_branch
                %1858 = sbr.rel target = $region57
              $region62: #{pupilnet_v2_forward.8} parent=47 // loop_exit
                _
            $region48: #{pupilnet_v2_forward.8} parent=39 // pred_fallthru
              _
          $region40: #{pupilnet_v2_forward.8} parent=35 // pred_fallthru
            _
          %2050 = vnop
        $region36: #{pupilnet_v2_forward.8} parent=31 // pred_fallthru
          _
      $region32: #{pupilnet_v2_forward.8} parent=5 // pred_fallthru
        _
      %p2051 = scmp.le.s32.totalorder 2, %s9
      // Predicated region
      $region85: #{pupilnet_v2_forward.8} parent=5 // pred_check
        %p2052 = pneg %p2051
      $region86: #{pupilnet_v2_forward.8} parent=5 // pred_check_branch
        %2054 = sbr.rel (%p2052) target = $region88
      $region87: #{pupilnet_v2_forward.8} parent=5 // pred_region
        %s2055 = ssub.s32 %s9, 2
        // Predicated region
        $region89: #{pupilnet_v2_forward.8} parent=87 // pred_check
          %p2056 = pneg %p106
        $region90: #{pupilnet_v2_forward.8} parent=87 // pred_check_branch
          %2058 = sbr.rel (%p2056) target = $region92
        $region91: #{pupilnet_v2_forward.8} parent=87 // pred_region
          %s2059 = sand.u32 %s91, 1
          %s2060 = sand.u32 %s91, 1
          %s2061 = smul.addr %s2060, 1024
          %s2062 = scalar_lea.vmem [#allocation2], %s2061
        $region92: #{pupilnet_v2_forward.8} parent=87 // pred_fallthru
          _
      $region88: #{pupilnet_v2_forward.8} parent=5 // pred_fallthru
        _
    $region6: #{pupilnet_v2_forward.8} parent=1 // loop_footer
      %s13 = sadd.s32 1, %s9
    $region7: #{pupilnet_v2_forward.8} parent=1 // loop_footer_branch
      %8 = sbr.rel target = $region3
    $region8: #{pupilnet_v2_forward.8} parent=1 // loop_exit
      _

// kernel: pupilnet_v2_forward.9
$region0: #{pupilnet_v2_forward.9}
  #allocation0 [shape = 'u32[]', space=smem, size = 0x4, offset = 0x4, fixed_abs, tag = 'smem constant byte address 0x4 - core index']
  #allocation1 [shape = 'u32[144,128]{1,0:T(1,128)}', space=vmem, size = 0x12000, scoped, tag = 'internal scratch']
  %s0 = inlined_call_operand.vmem [shape: bf16[1794,144], index: 0, kind: input, shape index: {}]
  %s1 = inlined_call_operand.vmem [shape: bf16[144,32], index: 1, kind: input, shape index: {}]
  %s2 = inlined_call_operand.vmem [shape: f32[1,32], index: 2, kind: input, shape index: {}]
  %s3 = inlined_call_operand.vmem [shape: f32[1794,32], index: 3, kind: output, shape index: {}]
  %s4 = sld [smem:[#allocation0]]
  $region93: #{pupilnet_v2_forward.9} parent=0
    _
  %s6 = ssub.s32 1, %s4
  %s7 = scalar_select 0, %s6, %s4
  $region1: #{pupilnet_v2_forward.9} parent=0
    #allocation2 [shape = 'u8[933888]{0}', space=vmem, size = 0xe4000, scoped, tag = 'output window, operand 0']
    loop: start=0, step=1, limit=4
    $region2: #{pupilnet_v2_forward.9} parent=1 // loop_pre_header
      _
    $region3: #{pupilnet_v2_forward.9} parent=1 // loop_header
      %s9 = sphi 0, %s13
      %p10 = scmp.ge.s32.totalorder %s9, 4
      %s19 = sphi 0, %s21
      %s22 = sphi 0, %s19
      %s23 = sphi 0, %s22
      %s39 = sphi 0, %s23
      %s43 = sphi 0, %s43
      %s45 = sphi 0, %s43
      %s46 = sphi 0, %s45
      %s60 = sphi 0, %s46
      %s64 = sphi 0, %s64
      %s66 = sphi 0, %s64
      %s67 = sphi 0, %s66
      %s81 = sphi 0, %s67
      %s87 = sphi 0, %s89
      %s90 = sphi 0, %s87
      %s91 = sphi 0, %s90
      %s107 = sphi 0, %s91
    $region4: #{pupilnet_v2_forward.9} parent=1 // loop_header_branch
      %12 = sbr.rel (%p10) target = $region8
    $region5: #{pupilnet_v2_forward.9} parent=1 // loop_body
      %s14 = ssub.s32 %s9, 1
      %s15 = ssub.s32 %s9, 2
      %s16 = sadd.s32 %s9, 1
      %s17 = ssub.s32 %s9, %s16
      %p18 = scmp.eq.s32.totalorder %s17, 0
      %s20 = sadd.s32 %s19, 1
      %s21 = scalar_select %p18, %s19, %s20
      %p24 = pneg %p18
      %p25 = scmp.eq.s32.totalorder %s9, 1
      %p26 = por %p24, %p25
      %p27 = scmp.ne.s32.totalorder %s19, %s22
      %p28 = scmp.eq.s32.totalorder %s9, 0
      %p29 = por %p27, %p28
      %p30 = scmp.ne.s32.totalorder %s19, %s22
      %p31 = scmp.eq.s32.totalorder %s14, 1
      %p32 = por %p30, %p31
      %p33 = scmp.ne.s32.totalorder %s22, %s23
      %p34 = scmp.eq.s32.totalorder %s14, 0
      %p35 = por %p33, %p34
      %p36 = scmp.ne.s32.totalorder %s22, %s23
      %p37 = scmp.eq.s32.totalorder %s15, 1
      %p38 = por %p36, %p37
      %p40 = scmp.ne.s32.totalorder %s23, %s39
      %p41 = scmp.eq.s32.totalorder %s15, 0
      %p42 = por %p40, %p41
      %s44 = sadd.s32 %s43, 1
      %p47 = scmp.eq.s32.totalorder %s9, 1
      %p48 = scmp.ne.s32.totalorder %s43, %s45
      %p49 = scmp.eq.s32.totalorder %s9, 0
      %p50 = por %p48, %p49
      %p51 = scmp.ne.s32.totalorder %s43, %s45
      %p52 = scmp.eq.s32.totalorder %s14, 1
      %p53 = por %p51, %p52
      %p54 = scmp.ne.s32.totalorder %s45, %s46
      %p55 = scmp.eq.s32.totalorder %s14, 0
      %p56 = por %p54, %p55
      %p57 = scmp.ne.s32.totalorder %s45, %s46
      %p58 = scmp.eq.s32.totalorder %s15, 1
      %p59 = por %p57, %p58
      %p61 = scmp.ne.s32.totalorder %s46, %s60
      %p62 = scmp.eq.s32.totalorder %s15, 0
      %p63 = por %p61, %p62
      %s65 = sadd.s32 %s64, 1
      %p68 = scmp.eq.s32.totalorder %s9, 1
      %p69 = scmp.ne.s32.totalorder %s64, %s66
      %p70 = scmp.eq.s32.totalorder %s9, 0
      %p71 = por %p69, %p70
      %p72 = scmp.ne.s32.totalorder %s64, %s66
      %p73 = scmp.eq.s32.totalorder %s14, 1
      %p74 = por %p72, %p73
      %p75 = scmp.ne.s32.totalorder %s66, %s67
      %p76 = scmp.eq.s32.totalorder %s14, 0
      %p77 = por %p75, %p76
      %p78 = scmp.ne.s32.totalorder %s66, %s67
      %p79 = scmp.eq.s32.totalorder %s15, 1
      %p80 = por %p78, %p79
      %p82 = scmp.ne.s32.totalorder %s67, %s81
      %p83 = scmp.eq.s32.totalorder %s15, 0
      %p84 = por %p82, %p83
      %s85 = ssub.s32 %s9, %s16
      %p86 = scmp.eq.s32.totalorder %s85, 0
      %s88 = sadd.s32 %s87, 1
      %s89 = scalar_select %p86, %s87, %s88
      %p92 = pneg %p86
      %p93 = scmp.eq.s32.totalorder %s9, 1
      %p94 = por %p92, %p93
      %p95 = scmp.ne.s32.totalorder %s87, %s90
      %p96 = scmp.eq.s32.totalorder %s9, 0
      %p97 = por %p95, %p96
      %p98 = scmp.ne.s32.totalorder %s87, %s90
      %p99 = scmp.eq.s32.totalorder %s14, 1
      %p100 = por %p98, %p99
      %p101 = scmp.ne.s32.totalorder %s90, %s91
      %p102 = scmp.eq.s32.totalorder %s14, 0
      %p103 = por %p101, %p102
      %p104 = scmp.ne.s32.totalorder %s90, %s91
      %p105 = scmp.eq.s32.totalorder %s15, 1
      %p106 = por %p104, %p105
      %p108 = scmp.ne.s32.totalorder %s91, %s107
      %p109 = scmp.eq.s32.totalorder %s15, 0
      %p110 = por %p108, %p109
      %p111 = scmp.le.s32.totalorder 1, %s9
      %p112 = scmp.lt.s32.totalorder %s9, 3
      %p113 = pnand %p111, %p112
      %p114 = pneg %p113
      // Predicated region
      $region9: #{pupilnet_v2_forward.9} parent=5 // pred_check
        _
      $region10: #{pupilnet_v2_forward.9} parent=5 // pred_check_branch
        %116 = sbr.rel (%p113) target = $region12
      $region11: #{pupilnet_v2_forward.9} parent=5 // pred_region
        %s117 = ssub.s32 %s9, 1
        // Predicated region
        $region13: #{pupilnet_v2_forward.9} parent=11 // pred_check
          %p118 = pneg %p56
        $region14: #{pupilnet_v2_forward.9} parent=11 // pred_check_branch
          %120 = sbr.rel (%p118) target = $region16
        $region15: #{pupilnet_v2_forward.9} parent=11 // pred_region
          _
        $region16: #{pupilnet_v2_forward.9} parent=11 // pred_fallthru
          _
        // Predicated region
        $region17: #{pupilnet_v2_forward.9} parent=11 // pred_check
          %p121 = pneg %p77
        $region18: #{pupilnet_v2_forward.9} parent=11 // pred_check_branch
          %123 = sbr.rel (%p121) target = $region20
        $region19: #{pupilnet_v2_forward.9} parent=11 // pred_region
          _
        $region20: #{pupilnet_v2_forward.9} parent=11 // pred_fallthru
          _
      $region12: #{pupilnet_v2_forward.9} parent=5 // pred_fallthru
        _
      %p124 = scmp.lt.s32.totalorder %s9, 2
      // Predicated region
      $region21: #{pupilnet_v2_forward.9} parent=5 // pred_check
        %p125 = pneg %p124
      $region22: #{pupilnet_v2_forward.9} parent=5 // pred_check_branch
        %127 = sbr.rel (%p125) target = $region24
      $region23: #{pupilnet_v2_forward.9} parent=5 // pred_region
        // Predicated region
        $region25: #{pupilnet_v2_forward.9} parent=23 // pred_check
          %p128 = pneg %p29
        $region26: #{pupilnet_v2_forward.9} parent=23 // pred_check_branch
          %130 = sbr.rel (%p128) target = $region28
        $region27: #{pupilnet_v2_forward.9} parent=23 // pred_region
          %s131 = smul.u32 114, %s9
          %s132 = ssub.s32 225, %s131
          %p133 = scmp.lt.s32.totalorder %s132, 114
          %s134 = scalar_select %p133, %s132, 114
          %s135 = smul.u32 64, %s134
          %s136 = smul.u32 %s135, 2
          %p137 = scmp.lt.s32.totalorder %s131, 224
          %s138 = scalar_select %p137, %s131, 224
          %s139 = smul.addr %s138, 2
          %s140 = smul.addr %s139, 4
          %s141 = scalar_lea.vmem %s0, %s140
          %s142 = smul.u32 114, %s9
          %s143 = ssub.s32 225, %s142
          %p144 = scmp.lt.s32.totalorder %s143, 114
          %s145 = scalar_select %p144, %s143, 114
          %s146 = smul.u32 64, %s145
          %s147 = smul.u32 %s146, 2
        $region28: #{pupilnet_v2_forward.9} parent=23 // pred_fallthru
          _
      $region24: #{pupilnet_v2_forward.9} parent=5 // pred_fallthru
        _
      %p148 = scmp.le.s32.totalorder 1, %s9
      %p149 = scmp.lt.s32.totalorder %s9, 3
      %p150 = pnand %p148, %p149
      %p151 = pneg %p150
      // Predicated region
      $region29: #{pupilnet_v2_forward.9} parent=5 // pred_check
        _
      $region30: #{pupilnet_v2_forward.9} parent=5 // pred_check_branch
        %153 = sbr.rel (%p150) target = $region32
      $region31: #{pupilnet_v2_forward.9} parent=5 // pred_region
        %s154 = ssub.s32 %s9, 1
        %s155 = smul.u32 114, %s14
        %s156 = ssub.s32 225, %s155
        %p157 = scmp.lt.s32.totalorder %s156, 114
        %s158 = scalar_select %p157, %s156, 114
        %s159 = smul.u32 64, %s158
        %s160 = smul.u32 %s159, 2
        %p161 = scmp.lt.s32.totalorder %s155, 224
        %s162 = scalar_select %p161, %s155, 224
        %s163 = smul.addr %s162, 2
        %s164 = smul.addr %s163, 4
        %s165 = scalar_lea.vmem %s0, %s164
        %p166 = pneg %p35
        %p167 = pneg %p32
        %p168 = pneg %p56
        %p169 = pneg %p53
        %p170 = pneg %p77
        %p171 = pneg %p74
        %p172 = pneg %p103
        %p173 = pneg %p100
        %s174 = sand.u32 %s90, 1
        %s175 = sand.u32 %s90, 1
        %s176 = smul.addr %s175, 912
        %s177 = scalar_lea.vmem [#allocation2], %s176
        %s178 = smul.u32 114, %s14
        %s179 = ssub.s32 225, %s178
        %p180 = scmp.lt.s32.totalorder %s179, 114
        %s181 = scalar_select %p180, %s179, 114
        %s182 = smul.u32 64, %s181
        %s183 = smul.u32 %s182, 2
        %p184 = scmp.lt.s32.totalorder %s178, 224
        %s185 = scalar_select %p184, %s178, 224
        %s186 = smul.addr %s185, 2
        %s187 = smul.addr %s186, 4
        %s188 = scalar_lea.vmem %s0, %s187
        %s189 = smul.u32 114, %s14
        %s190 = ssub.s32 225, %s189
        %p191 = scmp.lt.s32.totalorder %s190, 114
        %s192 = scalar_select %p191, %s190, 114
        %s193 = smul.u32 64, %s192
        %s194 = smul.u32 %s193, 2
        %s195 = smul.u32 114, %s14
        %s196 = ssub.s32 225, %s195
        %p197 = scmp.lt.s32.totalorder %s196, 114
        %s198 = scalar_select %p197, %s196, 114
        %s199 = smul.u32 128, %s198
        %v201 = vld [vmem:[%s188] sm:$0xff]
        %v202 = vld [vmem:[%s188 + $0x8] sm:$0xff]
        %v203 = vld [vmem:[%s188 + $0x10] sm:$0xff]
        %v204 = vld [vmem:[%s188 + $0x18] sm:$0xff]
        %v205 = vld [vmem:[%s188 + $0x20] sm:$0xff]
        %v206 = vld [vmem:[%s188 + $0x28] sm:$0xff]
        %v207 = vld [vmem:[%s188 + $0x30] sm:$0xff]
        %v208 = vld [vmem:[%s188 + $0x38] sm:$0xff]
        %v209 = vld [vmem:[%s188 + $0x40] sm:$0xff]
        %v210 = vld [vmem:[%s188 + $0x48] sm:$0xff]
        %v211 = vld [vmem:[%s188 + $0x50] sm:$0xff]
        %v212 = vld [vmem:[%s188 + $0x58] sm:$0xff]
        %v213 = vld [vmem:[%s188 + $0x60] sm:$0xff]
        %v214 = vld [vmem:[%s188 + $0x68] sm:$0xff]
        %v215 = vld [vmem:[%s188 + $0x70] sm:$0xff]
        %v216 = vld [vmem:[%s188 + $0x78] sm:$0xff]
        %v217 = vld [vmem:[%s188 + $0x80] sm:$0xff]
        %v218 = vld [vmem:[%s188 + $0x88] sm:$0xff]
        %v219 = vld [vmem:[%s188 + $0x90] sm:$0xff]
        %v220 = vld [vmem:[%s188 + $0x98] sm:$0xff]
        %v221 = vld [vmem:[%s188 + $0xa0] sm:$0xff]
        %v222 = vld [vmem:[%s188 + $0xa8] sm:$0xff]
        %v223 = vld [vmem:[%s188 + $0xb0] sm:$0xff]
        %v224 = vld [vmem:[%s188 + $0xb8] sm:$0xff]
        %v225 = vld [vmem:[%s188 + $0xc0] sm:$0xff]
        %v226 = vld [vmem:[%s188 + $0xc8] sm:$0xff]
        %v227 = vld [vmem:[%s188 + $0xd0] sm:$0xff]
        %v228 = vld [vmem:[%s188 + $0xd8] sm:$0xff]
        %v229 = vld [vmem:[%s188 + $0xe0] sm:$0xff]
        %v230 = vld [vmem:[%s188 + $0xe8] sm:$0xff]
        %v231 = vld [vmem:[%s188 + $0xf0] sm:$0xff]
        %v232 = vld [vmem:[%s188 + $0xf8] sm:$0xff]
        %v233 = vld [vmem:[%s188 + $0x100] sm:$0xff]
        %v234 = vld [vmem:[%s188 + $0x108] sm:$0xff]
        %v235 = vld [vmem:[%s188 + $0x110] sm:$0xff]
        %v236 = vld [vmem:[%s188 + $0x118] sm:$0xff]
        %v237 = vld [vmem:[%s188 + $0x120] sm:$0xff]
        %v238 = vld [vmem:[%s188 + $0x128] sm:$0xff]
        %v239 = vld [vmem:[%s188 + $0x130] sm:$0xff]
        %v240 = vld [vmem:[%s188 + $0x138] sm:$0xff]
        %v241 = vld [vmem:[%s188 + $0x140] sm:$0xff]
        %v242 = vld [vmem:[%s188 + $0x148] sm:$0xff]
        %v243 = vld [vmem:[%s188 + $0x150] sm:$0xff]
        %v244 = vld [vmem:[%s188 + $0x158] sm:$0xff]
        %v245 = vld [vmem:[%s188 + $0x160] sm:$0xff]
        %v246 = vld [vmem:[%s188 + $0x168] sm:$0xff]
        %v247 = vld [vmem:[%s188 + $0x170] sm:$0xff]
        %v248 = vld [vmem:[%s188 + $0x178] sm:$0xff]
        %v249 = vld [vmem:[%s188 + $0x180] sm:$0xff]
        %v250 = vld [vmem:[%s188 + $0x188] sm:$0xff]
        %v251 = vld [vmem:[%s188 + $0x190] sm:$0xff]
        %v252 = vld [vmem:[%s188 + $0x198] sm:$0xff]
        %v253 = vld [vmem:[%s188 + $0x1a0] sm:$0xff]
        %v254 = vld [vmem:[%s188 + $0x1a8] sm:$0xff]
        %v255 = vld [vmem:[%s188 + $0x1b0] sm:$0xff]
        %v256 = vld [vmem:[%s188 + $0x1b8] sm:$0xff]
        %v257 = vld [vmem:[%s188 + $0x1c0] sm:$0xff]
        %v258 = vld [vmem:[%s188 + $0x1c8] sm:$0xff]
        %v259 = vld [vmem:[%s188 + $0x1d0] sm:$0xff]
        %v260 = vld [vmem:[%s188 + $0x1d8] sm:$0xff]
        %v261 = vld [vmem:[%s188 + $0x1e0] sm:$0xff]
        %v262 = vld [vmem:[%s188 + $0x1e8] sm:$0xff]
        %v263 = vld [vmem:[%s188 + $0x1f0] sm:$0xff]
        %v264 = vld [vmem:[%s188 + $0x1f8] sm:$0xff]
        %v265 = vld [vmem:[%s188 + $0x200] sm:$0xff]
        %v266 = vld [vmem:[%s188 + $0x208] sm:$0xff]
        %v267 = vld [vmem:[%s188 + $0x210] sm:$0xff]
        %v268 = vld [vmem:[%s188 + $0x218] sm:$0xff]
        %v269 = vld [vmem:[%s188 + $0x220] sm:$0xff]
        %v270 = vld [vmem:[%s188 + $0x228] sm:$0xff]
        %v271 = vld [vmem:[%s188 + $0x230] sm:$0xff]
        %v272 = vld [vmem:[%s188 + $0x238] sm:$0xff]
        %v273 = vld [vmem:[%s188 + $0x240] sm:$0xff]
        %v274 = vld [vmem:[%s188 + $0x248] sm:$0xff]
        %v275 = vld [vmem:[%s188 + $0x250] sm:$0xff]
        %v276 = vld [vmem:[%s188 + $0x258] sm:$0xff]
        %v277 = vld [vmem:[%s188 + $0x260] sm:$0xff]
        %v278 = vld [vmem:[%s188 + $0x268] sm:$0xff]
        %v279 = vld [vmem:[%s188 + $0x270] sm:$0xff]
        %v280 = vld [vmem:[%s188 + $0x278] sm:$0xff]
        %v281 = vld [vmem:[%s188 + $0x280] sm:$0xff]
        %v282 = vld [vmem:[%s188 + $0x288] sm:$0xff]
        %v283 = vld [vmem:[%s188 + $0x290] sm:$0xff]
        %v284 = vld [vmem:[%s188 + $0x298] sm:$0xff]
        %v285 = vld [vmem:[%s188 + $0x2a0] sm:$0xff]
        %v286 = vld [vmem:[%s188 + $0x2a8] sm:$0xff]
        %v287 = vld [vmem:[%s188 + $0x2b0] sm:$0xff]
        %v288 = vld [vmem:[%s188 + $0x2b8] sm:$0xff]
        %v289 = vld [vmem:[%s188 + $0x2c0] sm:$0xff]
        %v290 = vld [vmem:[%s188 + $0x2c8] sm:$0xff]
        %v291 = vld [vmem:[%s188 + $0x2d0] sm:$0xff]
        %v292 = vld [vmem:[%s188 + $0x2d8] sm:$0xff]
        %v293 = vld [vmem:[%s188 + $0x2e0] sm:$0xff]
        %v294 = vld [vmem:[%s188 + $0x2e8] sm:$0xff]
        %v295 = vld [vmem:[%s188 + $0x2f0] sm:$0xff]
        %v296 = vld [vmem:[%s188 + $0x2f8] sm:$0xff]
        %v297 = vld [vmem:[%s188 + $0x300] sm:$0xff]
        %v298 = vld [vmem:[%s188 + $0x308] sm:$0xff]
        %v299 = vld [vmem:[%s188 + $0x310] sm:$0xff]
        %v300 = vld [vmem:[%s188 + $0x318] sm:$0xff]
        %v301 = vld [vmem:[%s188 + $0x320] sm:$0xff]
        %v302 = vld [vmem:[%s188 + $0x328] sm:$0xff]
        %v303 = vld [vmem:[%s188 + $0x330] sm:$0xff]
        %v304 = vld [vmem:[%s188 + $0x338] sm:$0xff]
        %v305 = vld [vmem:[%s188 + $0x340] sm:$0xff]
        %v306 = vld [vmem:[%s188 + $0x348] sm:$0xff]
        %v307 = vld [vmem:[%s188 + $0x350] sm:$0xff]
        %v308 = vld [vmem:[%s188 + $0x358] sm:$0xff]
        %v309 = vld [vmem:[%s188 + $0x360] sm:$0xff]
        %v310 = vld [vmem:[%s188 + $0x368] sm:$0xff]
        %v311 = vld [vmem:[%s188 + $0x370] sm:$0xff]
        %v312 = vld [vmem:[%s188 + $0x378] sm:$0xff]
        %v313 = vld [vmem:[%s188 + $0x380] sm:$0xff]
        %v314 = vld [vmem:[%s188 + $0x388] sm:$0xff]
        %v315 = vld [vmem:[%s1] sm:$0xf]
        %v316 = vld [vmem:[%s1 + $0x4] sm:$0xf]
        %v317 = vld [vmem:[%s1 + $0x8] sm:$0xf]
        %v318 = vld [vmem:[%s1 + $0xc] sm:$0xf]
        %v319 = vld [vmem:[%s1 + $0x10] sm:$0xf]
        %v320 = vld [vmem:[%s1 + $0x14] sm:$0xf]
        %v321 = vld [vmem:[%s1 + $0x18] sm:$0xf]
        %v322 = vld [vmem:[%s1 + $0x1c] sm:$0xf]
        %v323 = vld [vmem:[%s1 + $0x20] sm:$0xf]
        %v324 = vld [vmem:[%s1 + $0x24] sm:$0xf]
        %v325 = vld [vmem:[%s1 + $0x28] sm:$0xf]
        %v326 = vld [vmem:[%s1 + $0x2c] sm:$0xf]
        %v327 = vld [vmem:[%s1 + $0x30] sm:$0xf]
        %v328 = vld [vmem:[%s1 + $0x34] sm:$0xf]
        %v329 = vld [vmem:[%s1 + $0x38] sm:$0xf]
        %v330 = vld [vmem:[%s1 + $0x3c] sm:$0xf]
        %v331 = vld [vmem:[%s1 + $0x40] sm:$0xf]
        %v332 = vld [vmem:[%s1 + $0x44] sm:$0xf]
        %v333 = vld [vmem:[%s2] sm:$0x1]
        %v335 = vlaneseq
        %v336 = vshrl.u32 %v335, 7
        %v337 = vsub.s32 0, %v336
        %v338 = vrot.slane %v333, %v337
        %v454 = vunpack.c.l.b16 %v201
        %v455 = vunpack.c.h.b16 %v201
        %v456 = vunpack.c.l.b16 %v202
        %v457 = vunpack.c.h.b16 %v202
        %v458 = vunpack.c.l.b16 %v203
        %v459 = vunpack.c.h.b16 %v203
        %v460 = vunpack.c.l.b16 %v204
        %v461 = vunpack.c.h.b16 %v204
        %v462 = vunpack.c.l.b16 %v205
        %v463 = vunpack.c.h.b16 %v205
        %v464 = vunpack.c.l.b16 %v206
        %v465 = vunpack.c.h.b16 %v206
        %v466 = vunpack.c.l.b16 %v207
        %v467 = vunpack.c.h.b16 %v207
        %v468 = vunpack.c.l.b16 %v208
        %v469 = vunpack.c.h.b16 %v208
        %v470 = vunpack.c.l.b16 %v209
        %v471 = vunpack.c.h.b16 %v209
        %v472 = vunpack.c.l.b16 %v210
        %v473 = vunpack.c.h.b16 %v210
        %v474 = vunpack.c.l.b16 %v211
        %v475 = vunpack.c.h.b16 %v211
        %v476 = vunpack.c.l.b16 %v212
        %v477 = vunpack.c.h.b16 %v212
        %v478 = vunpack.c.l.b16 %v213
        %v479 = vunpack.c.h.b16 %v213
        %v480 = vunpack.c.l.b16 %v214
        %v481 = vunpack.c.h.b16 %v214
        %v482 = vunpack.c.l.b16 %v215
        %v483 = vunpack.c.h.b16 %v215
        %v484 = vunpack.c.l.b16 %v216
        %v485 = vunpack.c.h.b16 %v216
        %v486 = vunpack.c.l.b16 %v217
        %v487 = vunpack.c.h.b16 %v217
        %v488 = vunpack.c.l.b16 %v218
        %v489 = vunpack.c.h.b16 %v218
        %v490 = vunpack.c.l.b16 %v219
        %v491 = vunpack.c.h.b16 %v219
        %v492 = vunpack.c.l.b16 %v220
        %v493 = vunpack.c.h.b16 %v220
        %v494 = vunpack.c.l.b16 %v221
        %v495 = vunpack.c.h.b16 %v221
        %v496 = vunpack.c.l.b16 %v222
        %v497 = vunpack.c.h.b16 %v222
        %v498 = vunpack.c.l.b16 %v223
        %v499 = vunpack.c.h.b16 %v223
        %v500 = vunpack.c.l.b16 %v224
        %v501 = vunpack.c.h.b16 %v224
        %v502 = vunpack.c.l.b16 %v225
        %v503 = vunpack.c.h.b16 %v225
        %v504 = vunpack.c.l.b16 %v226
        %v505 = vunpack.c.h.b16 %v226
        %v506 = vunpack.c.l.b16 %v227
        %v507 = vunpack.c.h.b16 %v227
        %v508 = vunpack.c.l.b16 %v228
        %v509 = vunpack.c.h.b16 %v228
        %v510 = vunpack.c.l.b16 %v229
        %v511 = vunpack.c.h.b16 %v229
        %v512 = vunpack.c.l.b16 %v230
        %v513 = vunpack.c.h.b16 %v230
        %v514 = vunpack.c.l.b16 %v231
        %v515 = vunpack.c.h.b16 %v231
        %v516 = vunpack.c.l.b16 %v232
        %v517 = vunpack.c.h.b16 %v232
        %v518 = vunpack.c.l.b16 %v233
        %v519 = vunpack.c.h.b16 %v233
        %v520 = vunpack.c.l.b16 %v234
        %v521 = vunpack.c.h.b16 %v234
        %v522 = vunpack.c.l.b16 %v235
        %v523 = vunpack.c.h.b16 %v235
        %v524 = vunpack.c.l.b16 %v236
        %v525 = vunpack.c.h.b16 %v236
        %v526 = vunpack.c.l.b16 %v237
        %v527 = vunpack.c.h.b16 %v237
        %v528 = vunpack.c.l.b16 %v238
        %v529 = vunpack.c.h.b16 %v238
        %v530 = vunpack.c.l.b16 %v239
        %v531 = vunpack.c.h.b16 %v239
        %v532 = vunpack.c.l.b16 %v240
        %v533 = vunpack.c.h.b16 %v240
        %v534 = vunpack.c.l.b16 %v241
        %v535 = vunpack.c.h.b16 %v241
        %v536 = vunpack.c.l.b16 %v242
        %v537 = vunpack.c.h.b16 %v242
        %v538 = vunpack.c.l.b16 %v243
        %v539 = vunpack.c.h.b16 %v243
        %v540 = vunpack.c.l.b16 %v244
        %v541 = vunpack.c.h.b16 %v244
        %v542 = vunpack.c.l.b16 %v245
        %v543 = vunpack.c.h.b16 %v245
        %v544 = vunpack.c.l.b16 %v246
        %v545 = vunpack.c.h.b16 %v246
        %v546 = vunpack.c.l.b16 %v247
        %v547 = vunpack.c.h.b16 %v247
        %v548 = vunpack.c.l.b16 %v248
        %v549 = vunpack.c.h.b16 %v248
        %v550 = vunpack.c.l.b16 %v249
        %v551 = vunpack.c.h.b16 %v249
        %v552 = vunpack.c.l.b16 %v250
        %v553 = vunpack.c.h.b16 %v250
        %v554 = vunpack.c.l.b16 %v251
        %v555 = vunpack.c.h.b16 %v251
        %v556 = vunpack.c.l.b16 %v252
        %v557 = vunpack.c.h.b16 %v252
        %v558 = vunpack.c.l.b16 %v253
        %v559 = vunpack.c.h.b16 %v253
        %v560 = vunpack.c.l.b16 %v254
        %v561 = vunpack.c.h.b16 %v254
        %v562 = vunpack.c.l.b16 %v255
        %v563 = vunpack.c.h.b16 %v255
        %v564 = vunpack.c.l.b16 %v256
        %v565 = vunpack.c.h.b16 %v256
        %v566 = vunpack.c.l.b16 %v257
        %v567 = vunpack.c.h.b16 %v257
        %v568 = vunpack.c.l.b16 %v258
        %v569 = vunpack.c.h.b16 %v258
        %v570 = vunpack.c.l.b16 %v259
        %v571 = vunpack.c.h.b16 %v259
        %v572 = vunpack.c.l.b16 %v260
        %v573 = vunpack.c.h.b16 %v260
        %v574 = vunpack.c.l.b16 %v261
        %v575 = vunpack.c.h.b16 %v261
        %v576 = vunpack.c.l.b16 %v262
        %v577 = vunpack.c.h.b16 %v262
        %v578 = vunpack.c.l.b16 %v263
        %v579 = vunpack.c.h.b16 %v263
        %v580 = vunpack.c.l.b16 %v264
        %v581 = vunpack.c.h.b16 %v264
        %v582 = vunpack.c.l.b16 %v265
        %v583 = vunpack.c.h.b16 %v265
        %v584 = vunpack.c.l.b16 %v266
        %v585 = vunpack.c.h.b16 %v266
        %v586 = vunpack.c.l.b16 %v267
        %v587 = vunpack.c.h.b16 %v267
        %v588 = vunpack.c.l.b16 %v268
        %v589 = vunpack.c.h.b16 %v268
        %v590 = vunpack.c.l.b16 %v269
        %v591 = vunpack.c.h.b16 %v269
        %v592 = vunpack.c.l.b16 %v270
        %v593 = vunpack.c.h.b16 %v270
        %v594 = vunpack.c.l.b16 %v271
        %v595 = vunpack.c.h.b16 %v271
        %v596 = vunpack.c.l.b16 %v272
        %v597 = vunpack.c.h.b16 %v272
        %v598 = vunpack.c.l.b16 %v273
        %v599 = vunpack.c.h.b16 %v273
        %v600 = vunpack.c.l.b16 %v274
        %v601 = vunpack.c.h.b16 %v274
        %v602 = vunpack.c.l.b16 %v275
        %v603 = vunpack.c.h.b16 %v275
        %v604 = vunpack.c.l.b16 %v276
        %v605 = vunpack.c.h.b16 %v276
        %v606 = vunpack.c.l.b16 %v277
        %v607 = vunpack.c.h.b16 %v277
        %v608 = vunpack.c.l.b16 %v278
        %v609 = vunpack.c.h.b16 %v278
        %v610 = vunpack.c.l.b16 %v279
        %v611 = vunpack.c.h.b16 %v279
        %v612 = vunpack.c.l.b16 %v280
        %v613 = vunpack.c.h.b16 %v280
        %v614 = vunpack.c.l.b16 %v281
        %v615 = vunpack.c.h.b16 %v281
        %v616 = vunpack.c.l.b16 %v282
        %v617 = vunpack.c.h.b16 %v282
        %v618 = vunpack.c.l.b16 %v283
        %v619 = vunpack.c.h.b16 %v283
        %v620 = vunpack.c.l.b16 %v284
        %v621 = vunpack.c.h.b16 %v284
        %v622 = vunpack.c.l.b16 %v285
        %v623 = vunpack.c.h.b16 %v285
        %v624 = vunpack.c.l.b16 %v286
        %v625 = vunpack.c.h.b16 %v286
        %v626 = vunpack.c.l.b16 %v287
        %v627 = vunpack.c.h.b16 %v287
        %v628 = vunpack.c.l.b16 %v288
        %v629 = vunpack.c.h.b16 %v288
        %v630 = vunpack.c.l.b16 %v289
        %v631 = vunpack.c.h.b16 %v289
        %v632 = vunpack.c.l.b16 %v290
        %v633 = vunpack.c.h.b16 %v290
        %v634 = vunpack.c.l.b16 %v291
        %v635 = vunpack.c.h.b16 %v291
        %v636 = vunpack.c.l.b16 %v292
        %v637 = vunpack.c.h.b16 %v292
        %v638 = vunpack.c.l.b16 %v293
        %v639 = vunpack.c.h.b16 %v293
        %v640 = vunpack.c.l.b16 %v294
        %v641 = vunpack.c.h.b16 %v294
        %v642 = vunpack.c.l.b16 %v295
        %v643 = vunpack.c.h.b16 %v295
        %v644 = vunpack.c.l.b16 %v296
        %v645 = vunpack.c.h.b16 %v296
        %v646 = vunpack.c.l.b16 %v297
        %v647 = vunpack.c.h.b16 %v297
        %v648 = vunpack.c.l.b16 %v298
        %v649 = vunpack.c.h.b16 %v298
        %v650 = vunpack.c.l.b16 %v299
        %v651 = vunpack.c.h.b16 %v299
        %v652 = vunpack.c.l.b16 %v300
        %v653 = vunpack.c.h.b16 %v300
        %v654 = vunpack.c.l.b16 %v301
        %v655 = vunpack.c.h.b16 %v301
        %v656 = vunpack.c.l.b16 %v302
        %v657 = vunpack.c.h.b16 %v302
        %v658 = vunpack.c.l.b16 %v303
        %v659 = vunpack.c.h.b16 %v303
        %v660 = vunpack.c.l.b16 %v304
        %v661 = vunpack.c.h.b16 %v304
        %v662 = vunpack.c.l.b16 %v305
        %v663 = vunpack.c.h.b16 %v305
        %v664 = vunpack.c.l.b16 %v306
        %v665 = vunpack.c.h.b16 %v306
        %v666 = vunpack.c.l.b16 %v307
        %v667 = vunpack.c.h.b16 %v307
        %v668 = vunpack.c.l.b16 %v308
        %v669 = vunpack.c.h.b16 %v308
        %v670 = vunpack.c.l.b16 %v309
        %v671 = vunpack.c.h.b16 %v309
        %v672 = vunpack.c.l.b16 %v310
        %v673 = vunpack.c.h.b16 %v310
        %v674 = vunpack.c.l.b16 %v311
        %v675 = vunpack.c.h.b16 %v311
        %v676 = vunpack.c.l.b16 %v312
        %v677 = vunpack.c.h.b16 %v312
        %v678 = vunpack.c.l.b16 %v313
        %v679 = vunpack.c.h.b16 %v313
        %v680 = vunpack.c.l.b16 %v314
        %v681 = vunpack.c.h.b16 %v314
        %v682 = vpack.c.b16 %v456, %v454
        %v683 = vpack.c.b16 %v457, %v455
        %v684 = vpack.c.b16 %v460, %v458
        %v685 = vpack.c.b16 %v461, %v459
        %v686 = vpack.c.b16 %v464, %v462
        %v687 = vpack.c.b16 %v465, %v463
        %v688 = vpack.c.b16 %v468, %v466
        %v689 = vpack.c.b16 %v469, %v467
        %v690 = vpack.c.b16 %v472, %v470
        %v691 = vpack.c.b16 %v473, %v471
        %v692 = vpack.c.b16 %v476, %v474
        %v693 = vpack.c.b16 %v477, %v475
        %v694 = vpack.c.b16 %v480, %v478
        %v695 = vpack.c.b16 %v481, %v479
        %v696 = vpack.c.b16 %v484, %v482
        %v697 = vpack.c.b16 %v485, %v483
        %v698 = vpack.c.b16 %v488, %v486
        %v699 = vpack.c.b16 %v489, %v487
        %v700 = vpack.c.b16 %v492, %v490
        %v701 = vpack.c.b16 %v493, %v491
        %v702 = vpack.c.b16 %v496, %v494
        %v703 = vpack.c.b16 %v497, %v495
        %v704 = vpack.c.b16 %v500, %v498
        %v705 = vpack.c.b16 %v501, %v499
        %v706 = vpack.c.b16 %v504, %v502
        %v707 = vpack.c.b16 %v505, %v503
        %v708 = vpack.c.b16 %v508, %v506
        %v709 = vpack.c.b16 %v509, %v507
        %v710 = vpack.c.b16 %v512, %v510
        %v711 = vpack.c.b16 %v513, %v511
        %v712 = vpack.c.b16 %v516, %v514
        %v713 = vpack.c.b16 %v517, %v515
        %v714 = vpack.c.b16 %v520, %v518
        %v715 = vpack.c.b16 %v521, %v519
        %v716 = vpack.c.b16 %v524, %v522
        %v717 = vpack.c.b16 %v525, %v523
        %v718 = vpack.c.b16 %v528, %v526
        %v719 = vpack.c.b16 %v529, %v527
        %v720 = vpack.c.b16 %v532, %v530
        %v721 = vpack.c.b16 %v533, %v531
        %v722 = vpack.c.b16 %v536, %v534
        %v723 = vpack.c.b16 %v537, %v535
        %v724 = vpack.c.b16 %v540, %v538
        %v725 = vpack.c.b16 %v541, %v539
        %v726 = vpack.c.b16 %v544, %v542
        %v727 = vpack.c.b16 %v545, %v543
        %v728 = vpack.c.b16 %v548, %v546
        %v729 = vpack.c.b16 %v549, %v547
        %v730 = vpack.c.b16 %v552, %v550
        %v731 = vpack.c.b16 %v553, %v551
        %v732 = vpack.c.b16 %v556, %v554
        %v733 = vpack.c.b16 %v557, %v555
        %v734 = vpack.c.b16 %v560, %v558
        %v735 = vpack.c.b16 %v561, %v559
        %v736 = vpack.c.b16 %v564, %v562
        %v737 = vpack.c.b16 %v565, %v563
        %v738 = vpack.c.b16 %v568, %v566
        %v739 = vpack.c.b16 %v569, %v567
        %v740 = vpack.c.b16 %v572, %v570
        %v741 = vpack.c.b16 %v573, %v571
        %v742 = vpack.c.b16 %v576, %v574
        %v743 = vpack.c.b16 %v577, %v575
        %v744 = vpack.c.b16 %v580, %v578
        %v745 = vpack.c.b16 %v581, %v579
        %v746 = vpack.c.b16 %v584, %v582
        %v747 = vpack.c.b16 %v585, %v583
        %v748 = vpack.c.b16 %v588, %v586
        %v749 = vpack.c.b16 %v589, %v587
        %v750 = vpack.c.b16 %v592, %v590
        %v751 = vpack.c.b16 %v593, %v591
        %v752 = vpack.c.b16 %v596, %v594
        %v753 = vpack.c.b16 %v597, %v595
        %v754 = vpack.c.b16 %v600, %v598
        %v755 = vpack.c.b16 %v601, %v599
        %v756 = vpack.c.b16 %v604, %v602
        %v757 = vpack.c.b16 %v605, %v603
        %v758 = vpack.c.b16 %v608, %v606
        %v759 = vpack.c.b16 %v609, %v607
        %v760 = vpack.c.b16 %v612, %v610
        %v761 = vpack.c.b16 %v613, %v611
        %v762 = vpack.c.b16 %v616, %v614
        %v763 = vpack.c.b16 %v617, %v615
        %v764 = vpack.c.b16 %v620, %v618
        %v765 = vpack.c.b16 %v621, %v619
        %v766 = vpack.c.b16 %v624, %v622
        %v767 = vpack.c.b16 %v625, %v623
        %v768 = vpack.c.b16 %v628, %v626
        %v769 = vpack.c.b16 %v629, %v627
        %v770 = vpack.c.b16 %v632, %v630
        %v771 = vpack.c.b16 %v633, %v631
        %v772 = vpack.c.b16 %v636, %v634
        %v773 = vpack.c.b16 %v637, %v635
        %v774 = vpack.c.b16 %v640, %v638
        %v775 = vpack.c.b16 %v641, %v639
        %v776 = vpack.c.b16 %v644, %v642
        %v777 = vpack.c.b16 %v645, %v643
        %v778 = vpack.c.b16 %v648, %v646
        %v779 = vpack.c.b16 %v649, %v647
        %v780 = vpack.c.b16 %v652, %v650
        %v781 = vpack.c.b16 %v653, %v651
        %v782 = vpack.c.b16 %v656, %v654
        %v783 = vpack.c.b16 %v657, %v655
        %v784 = vpack.c.b16 %v660, %v658
        %v785 = vpack.c.b16 %v661, %v659
        %v786 = vpack.c.b16 %v664, %v662
        %v787 = vpack.c.b16 %v665, %v663
        %v788 = vpack.c.b16 %v668, %v666
        %v789 = vpack.c.b16 %v669, %v667
        %v790 = vpack.c.b16 %v672, %v670
        %v791 = vpack.c.b16 %v673, %v671
        %v792 = vpack.c.b16 %v676, %v674
        %v793 = vpack.c.b16 %v677, %v675
        %v794 = vpack.c.b16 %v680, %v678
        %v795 = vpack.c.b16 %v681, %v679
        %v871 = vunpack.c.l.b16 %v315
        %v872 = vunpack.c.l.b16 %v316
        %v873 = vunpack.c.l.b16 %v317
        %v874 = vunpack.c.l.b16 %v318
        %v875 = vunpack.c.l.b16 %v319
        %v876 = vunpack.c.l.b16 %v320
        %v877 = vunpack.c.l.b16 %v321
        %v878 = vunpack.c.l.b16 %v322
        %v879 = vunpack.c.l.b16 %v323
        %v880 = vunpack.c.l.b16 %v324
        %v881 = vunpack.c.l.b16 %v325
        %v882 = vunpack.c.l.b16 %v326
        %v883 = vunpack.c.l.b16 %v327
        %v884 = vunpack.c.l.b16 %v328
        %v885 = vunpack.c.l.b16 %v329
        %v886 = vunpack.c.l.b16 %v330
        %v887 = vunpack.c.l.b16 %v331
        %v888 = vunpack.c.l.b16 %v332
        %v889 = vpack.c.b16 %v872, %v871
        %v890 = vpack.c.b16 %v874, %v873
        %v891 = vpack.c.b16 %v876, %v875
        %v892 = vpack.c.b16 %v878, %v877
        %v893 = vpack.c.b16 %v880, %v879
        %v894 = vpack.c.b16 %v882, %v881
        %v895 = vpack.c.b16 %v884, %v883
        %v896 = vpack.c.b16 %v886, %v885
        %v897 = vpack.c.b16 %v888, %v887
        %vm907 = vcmask 130048
        %v909 = vsel %vm907, %v683, 0
        %v912 = vsel %vm907, %v685, 0
        %v915 = vsel %vm907, %v687, 0
        %v918 = vsel %vm907, %v689, 0
        %v921 = vsel %vm907, %v691, 0
        %v924 = vsel %vm907, %v693, 0
        %v927 = vsel %vm907, %v695, 0
        %v930 = vsel %vm907, %v697, 0
        %v933 = vsel %vm907, %v699, 0
        %v936 = vsel %vm907, %v701, 0
        %v939 = vsel %vm907, %v703, 0
        %v942 = vsel %vm907, %v705, 0
        %v945 = vsel %vm907, %v707, 0
        %v948 = vsel %vm907, %v709, 0
        %v951 = vsel %vm907, %v711, 0
        %v954 = vsel %vm907, %v713, 0
        %v957 = vsel %vm907, %v715, 0
        %v960 = vsel %vm907, %v717, 0
        %v963 = vsel %vm907, %v719, 0
        %v966 = vsel %vm907, %v721, 0
        %v969 = vsel %vm907, %v723, 0
        %v972 = vsel %vm907, %v725, 0
        %v975 = vsel %vm907, %v727, 0
        %v978 = vsel %vm907, %v729, 0
        %v981 = vsel %vm907, %v731, 0
        %v984 = vsel %vm907, %v733, 0
        %v987 = vsel %vm907, %v735, 0
        %v990 = vsel %vm907, %v737, 0
        %v993 = vsel %vm907, %v739, 0
        %v996 = vsel %vm907, %v741, 0
        %v999 = vsel %vm907, %v743, 0
        %v1002 = vsel %vm907, %v745, 0
        %v1005 = vsel %vm907, %v747, 0
        %v1008 = vsel %vm907, %v749, 0
        %v1011 = vsel %vm907, %v751, 0
        %v1014 = vsel %vm907, %v753, 0
        %v1017 = vsel %vm907, %v755, 0
        %v1020 = vsel %vm907, %v757, 0
        %v1023 = vsel %vm907, %v759, 0
        %v1026 = vsel %vm907, %v761, 0
        %v1029 = vsel %vm907, %v763, 0
        %v1032 = vsel %vm907, %v765, 0
        %v1035 = vsel %vm907, %v767, 0
        %v1038 = vsel %vm907, %v769, 0
        %v1041 = vsel %vm907, %v771, 0
        %v1044 = vsel %vm907, %v773, 0
        %v1047 = vsel %vm907, %v775, 0
        %v1050 = vsel %vm907, %v777, 0
        %v1053 = vsel %vm907, %v779, 0
        %v1056 = vsel %vm907, %v781, 0
        %v1059 = vsel %vm907, %v783, 0
        %v1062 = vsel %vm907, %v785, 0
        %v1065 = vsel %vm907, %v787, 0
        %v1068 = vsel %vm907, %v789, 0
        %v1071 = vsel %vm907, %v791, 0
        %v1074 = vsel %vm907, %v793, 0
        %v1077 = vsel %vm907, %v795, 0
        %1079 = vmatprep.subr.bf16.mxu0 0
        %1080 = vmatpush1.bf16.msra.mxu0 %v889
        %1081 = vmatprep.subr.bf16.mxu0 0
        %1082 = vmatpush1.bf16.msra.mxu0 %v890
        %1083 = vmatprep.subr.bf16.mxu0 0
        %1084 = vmatpush1.bf16.msra.mxu0 %v891
        %1085 = vmatprep.subr.bf16.mxu0 0
        %1086 = vmatpush1.bf16.msra.mxu0 %v892
        %1087 = vmatprep.subr.bf16.mxu0 0
        %1088 = vmatpush1.bf16.msra.mxu0 %v893
        %1089 = vmatprep.subr.bf16.mxu0 0
        %1090 = vmatpush1.bf16.msra.mxu0 %v894
        %1091 = vmatprep.subr.bf16.mxu0 0
        %1092 = vmatpush1.bf16.msra.mxu0 %v895
        %1093 = vmatprep.subr.bf16.mxu0 0
        %1094 = vmatpush1.bf16.msra.mxu0 %v896
        %1095 = vmatprep.subr.bf16.mxu0 0
        %1096 = vmatpush1.bf16.msra.mxu0 %v897
        %1097 = vmatprep.subr.bf16.mxu0 0
        %1098 = vmatpush1.bf16.msra.mxu0 0
        %1099 = vmatprep.subr.bf16.mxu0 0
        %1100 = vmatpush1.bf16.msra.mxu0 0
        %1101 = vmatprep.subr.bf16.mxu0 0
        %1102 = vmatpush1.bf16.msra.mxu0 0
        %1103 = vmatprep.subr.bf16.mxu0 0
        %1104 = vmatpush1.bf16.msra.mxu0 0
        %1105 = vmatprep.subr.bf16.mxu0 0
        %1106 = vmatpush1.bf16.msra.mxu0 0
        %1107 = vmatprep.subr.bf16.mxu0 0
        %1108 = vmatpush1.bf16.msra.mxu0 0
        %1109 = vmatprep.subr.bf16.mxu0 0
        %1110 = vmatpush1.bf16.msra.mxu0 0
        %1111 = vmatprep.mubr.bf16.mxu0 %v909
        %1112 = vmatmul.mubr.bf16.gmra.mrb[0].mxu0 %v682
        %v1113 = vpop.f32.mrb[0].mxu0
        %v1114 = vadd.f32 %v338, %v1113
        %v1115 = vpop.f32.mrb[0].mxu0
        %v1116 = vpop.f32.mrb[0].mxu0
        %v1117 = vadd.f32 %v338, %v1116
        %v1118 = vpop.f32.mrb[0].mxu0
        %1119 = vmatprep.mubr.bf16.mxu0 %v912
        %1120 = vmatmul.mubr.bf16.gmra.mrb[0].mxu0 %v684
        %v1121 = vpop.f32.mrb[0].mxu0
        %v1122 = vadd.f32 %v338, %v1121
        %v1123 = vpop.f32.mrb[0].mxu0
        %v1124 = vpop.f32.mrb[0].mxu0
        %v1125 = vadd.f32 %v338, %v1124
        %v1126 = vpop.f32.mrb[0].mxu0
        %1127 = vmatprep.mubr.bf16.mxu0 %v915
        %1128 = vmatmul.mubr.bf16.gmra.mrb[0].mxu0 %v686
        %v1129 = vpop.f32.mrb[0].mxu0
        %v1130 = vadd.f32 %v338, %v1129
        %v1131 = vpop.f32.mrb[0].mxu0
        %v1132 = vpop.f32.mrb[0].mxu0
        %v1133 = vadd.f32 %v338, %v1132
        %v1134 = vpop.f32.mrb[0].mxu0
        %1135 = vmatprep.mubr.bf16.mxu0 %v918
        %1136 = vmatmul.mubr.bf16.gmra.mrb[0].mxu0 %v688
        %v1137 = vpop.f32.mrb[0].mxu0
        %v1138 = vadd.f32 %v338, %v1137
        %v1139 = vpop.f32.mrb[0].mxu0
        %v1140 = vpop.f32.mrb[0].mxu0
        %v1141 = vadd.f32 %v338, %v1140
        %v1142 = vpop.f32.mrb[0].mxu0
        %1143 = vmatprep.mubr.bf16.mxu0 %v921
        %1144 = vmatmul.mubr.bf16.gmra.mrb[0].mxu0 %v690
        %v1145 = vpop.f32.mrb[0].mxu0
        %v1146 = vadd.f32 %v338, %v1145
        %v1147 = vpop.f32.mrb[0].mxu0
        %v1148 = vpop.f32.mrb[0].mxu0
        %v1149 = vadd.f32 %v338, %v1148
        %v1150 = vpop.f32.mrb[0].mxu0
        %1151 = vmatprep.mubr.bf16.mxu0 %v924
        %1152 = vmatmul.mubr.bf16.gmra.mrb[0].mxu0 %v692
        %v1153 = vpop.f32.mrb[0].mxu0
        %v1154 = vadd.f32 %v338, %v1153
        %v1155 = vpop.f32.mrb[0].mxu0
        %v1156 = vpop.f32.mrb[0].mxu0
        %v1157 = vadd.f32 %v338, %v1156
        %v1158 = vpop.f32.mrb[0].mxu0
        %1159 = vmatprep.mubr.bf16.mxu0 %v927
        %1160 = vmatmul.mubr.bf16.gmra.mrb[0].mxu0 %v694
        %v1161 = vpop.f32.mrb[0].mxu0
        %v1162 = vadd.f32 %v338, %v1161
        %v1163 = vpop.f32.mrb[0].mxu0
        %v1164 = vpop.f32.mrb[0].mxu0
        %v1165 = vadd.f32 %v338, %v1164
        %v1166 = vpop.f32.mrb[0].mxu0
        %1167 = vmatprep.mubr.bf16.mxu0 %v930
        %1168 = vmatmul.mubr.bf16.gmra.mrb[0].mxu0 %v696
        %v1169 = vpop.f32.mrb[0].mxu0
        %v1170 = vadd.f32 %v338, %v1169
        %v1171 = vpop.f32.mrb[0].mxu0
        %v1172 = vpop.f32.mrb[0].mxu0
        %v1173 = vadd.f32 %v338, %v1172
        %v1174 = vpop.f32.mrb[0].mxu0
        %1175 = vmatprep.mubr.bf16.mxu0 %v933
        %1176 = vmatmul.mubr.bf16.gmra.mrb[0].mxu0 %v698
        %v1177 = vpop.f32.mrb[0].mxu0
        %v1178 = vadd.f32 %v338, %v1177
        %v1179 = vpop.f32.mrb[0].mxu0
        %v1180 = vpop.f32.mrb[0].mxu0
        %v1181 = vadd.f32 %v338, %v1180
        %v1182 = vpop.f32.mrb[0].mxu0
        %1183 = vmatprep.mubr.bf16.mxu0 %v936
        %1184 = vmatmul.mubr.bf16.gmra.mrb[0].mxu0 %v700
        %v1185 = vpop.f32.mrb[0].mxu0
        %v1186 = vadd.f32 %v338, %v1185
        %v1187 = vpop.f32.mrb[0].mxu0
        %v1188 = vpop.f32.mrb[0].mxu0
        %v1189 = vadd.f32 %v338, %v1188
        %v1190 = vpop.f32.mrb[0].mxu0
        %1191 = vmatprep.mubr.bf16.mxu0 %v939
        %1192 = vmatmul.mubr.bf16.gmra.mrb[0].mxu0 %v702
        %v1193 = vpop.f32.mrb[0].mxu0
        %v1194 = vadd.f32 %v338, %v1193
        %v1195 = vpop.f32.mrb[0].mxu0
        %v1196 = vpop.f32.mrb[0].mxu0
        %v1197 = vadd.f32 %v338, %v1196
        %v1198 = vpop.f32.mrb[0].mxu0
        %1199 = vmatprep.mubr.bf16.mxu0 %v942
        %1200 = vmatmul.mubr.bf16.gmra.mrb[0].mxu0 %v704
        %v1201 = vpop.f32.mrb[0].mxu0
        %v1202 = vadd.f32 %v338, %v1201
        %v1203 = vpop.f32.mrb[0].mxu0
        %v1204 = vpop.f32.mrb[0].mxu0
        %v1205 = vadd.f32 %v338, %v1204
        %v1206 = vpop.f32.mrb[0].mxu0
        %1207 = vmatprep.mubr.bf16.mxu0 %v945
        %1208 = vmatmul.mubr.bf16.gmra.mrb[0].mxu0 %v706
        %v1209 = vpop.f32.mrb[0].mxu0
        %v1210 = vadd.f32 %v338, %v1209
        %v1211 = vpop.f32.mrb[0].mxu0
        %v1212 = vpop.f32.mrb[0].mxu0
        %v1213 = vadd.f32 %v338, %v1212
        %v1214 = vpop.f32.mrb[0].mxu0
        %1215 = vmatprep.mubr.bf16.mxu0 %v948
        %1216 = vmatmul.mubr.bf16.gmra.mrb[0].mxu0 %v708
        %v1217 = vpop.f32.mrb[0].mxu0
        %v1218 = vadd.f32 %v338, %v1217
        %v1219 = vpop.f32.mrb[0].mxu0
        %v1220 = vpop.f32.mrb[0].mxu0
        %v1221 = vadd.f32 %v338, %v1220
        %v1222 = vpop.f32.mrb[0].mxu0
        %1223 = vmatprep.mubr.bf16.mxu0 %v951
        %1224 = vmatmul.mubr.bf16.gmra.mrb[0].mxu0 %v710
        %v1225 = vpop.f32.mrb[0].mxu0
        %v1226 = vadd.f32 %v338, %v1225
        %v1227 = vpop.f32.mrb[0].mxu0
        %v1228 = vpop.f32.mrb[0].mxu0
        %v1229 = vadd.f32 %v338, %v1228
        %v1230 = vpop.f32.mrb[0].mxu0
        %1231 = vmatprep.mubr.bf16.mxu0 %v954
        %1232 = vmatmul.mubr.bf16.gmra.mrb[0].mxu0 %v712
        %v1233 = vpop.f32.mrb[0].mxu0
        %v1234 = vadd.f32 %v338, %v1233
        %v1235 = vpop.f32.mrb[0].mxu0
        %v1236 = vpop.f32.mrb[0].mxu0
        %v1237 = vadd.f32 %v338, %v1236
        %v1238 = vpop.f32.mrb[0].mxu0
        %1239 = vmatprep.mubr.bf16.mxu0 %v957
        %1240 = vmatmul.mubr.bf16.gmra.mrb[0].mxu0 %v714
        %v1241 = vpop.f32.mrb[0].mxu0
        %v1242 = vadd.f32 %v338, %v1241
        %v1243 = vpop.f32.mrb[0].mxu0
        %v1244 = vpop.f32.mrb[0].mxu0
        %v1245 = vadd.f32 %v338, %v1244
        %v1246 = vpop.f32.mrb[0].mxu0
        %1247 = vmatprep.mubr.bf16.mxu0 %v960
        %1248 = vmatmul.mubr.bf16.gmra.mrb[0].mxu0 %v716
        %v1249 = vpop.f32.mrb[0].mxu0
        %v1250 = vadd.f32 %v338, %v1249
        %v1251 = vpop.f32.mrb[0].mxu0
        %v1252 = vpop.f32.mrb[0].mxu0
        %v1253 = vadd.f32 %v338, %v1252
        %v1254 = vpop.f32.mrb[0].mxu0
        %1255 = vmatprep.mubr.bf16.mxu0 %v963
        %1256 = vmatmul.mubr.bf16.gmra.mrb[0].mxu0 %v718
        %v1257 = vpop.f32.mrb[0].mxu0
        %v1258 = vadd.f32 %v338, %v1257
        %v1259 = vpop.f32.mrb[0].mxu0
        %v1260 = vpop.f32.mrb[0].mxu0
        %v1261 = vadd.f32 %v338, %v1260
        %v1262 = vpop.f32.mrb[0].mxu0
        %1263 = vmatprep.mubr.bf16.mxu0 %v966
        %1264 = vmatmul.mubr.bf16.gmra.mrb[0].mxu0 %v720
        %v1265 = vpop.f32.mrb[0].mxu0
        %v1266 = vadd.f32 %v338, %v1265
        %v1267 = vpop.f32.mrb[0].mxu0
        %v1268 = vpop.f32.mrb[0].mxu0
        %v1269 = vadd.f32 %v338, %v1268
        %v1270 = vpop.f32.mrb[0].mxu0
        %1271 = vmatprep.mubr.bf16.mxu0 %v969
        %1272 = vmatmul.mubr.bf16.gmra.mrb[0].mxu0 %v722
        %v1273 = vpop.f32.mrb[0].mxu0
        %v1274 = vadd.f32 %v338, %v1273
        %v1275 = vpop.f32.mrb[0].mxu0
        %v1276 = vpop.f32.mrb[0].mxu0
        %v1277 = vadd.f32 %v338, %v1276
        %v1278 = vpop.f32.mrb[0].mxu0
        %1279 = vmatprep.mubr.bf16.mxu0 %v972
        %1280 = vmatmul.mubr.bf16.gmra.mrb[0].mxu0 %v724
        %v1281 = vpop.f32.mrb[0].mxu0
        %v1282 = vadd.f32 %v338, %v1281
        %v1283 = vpop.f32.mrb[0].mxu0
        %v1284 = vpop.f32.mrb[0].mxu0
        %v1285 = vadd.f32 %v338, %v1284
        %v1286 = vpop.f32.mrb[0].mxu0
        %1287 = vmatprep.mubr.bf16.mxu0 %v975
        %1288 = vmatmul.mubr.bf16.gmra.mrb[0].mxu0 %v726
        %v1289 = vpop.f32.mrb[0].mxu0
        %v1290 = vadd.f32 %v338, %v1289
        %v1291 = vpop.f32.mrb[0].mxu0
        %v1292 = vpop.f32.mrb[0].mxu0
        %v1293 = vadd.f32 %v338, %v1292
        %v1294 = vpop.f32.mrb[0].mxu0
        %1295 = vmatprep.mubr.bf16.mxu0 %v978
        %1296 = vmatmul.mubr.bf16.gmra.mrb[0].mxu0 %v728
        %v1297 = vpop.f32.mrb[0].mxu0
        %v1298 = vadd.f32 %v338, %v1297
        %v1299 = vpop.f32.mrb[0].mxu0
        %v1300 = vpop.f32.mrb[0].mxu0
        %v1301 = vadd.f32 %v338, %v1300
        %v1302 = vpop.f32.mrb[0].mxu0
        %1303 = vmatprep.mubr.bf16.mxu0 %v981
        %1304 = vmatmul.mubr.bf16.gmra.mrb[0].mxu0 %v730
        %v1305 = vpop.f32.mrb[0].mxu0
        %v1306 = vadd.f32 %v338, %v1305
        %v1307 = vpop.f32.mrb[0].mxu0
        %v1308 = vpop.f32.mrb[0].mxu0
        %v1309 = vadd.f32 %v338, %v1308
        %v1310 = vpop.f32.mrb[0].mxu0
        %1311 = vmatprep.mubr.bf16.mxu0 %v984
        %1312 = vmatmul.mubr.bf16.gmra.mrb[0].mxu0 %v732
        %v1313 = vpop.f32.mrb[0].mxu0
        %v1314 = vadd.f32 %v338, %v1313
        %v1315 = vpop.f32.mrb[0].mxu0
        %v1316 = vpop.f32.mrb[0].mxu0
        %v1317 = vadd.f32 %v338, %v1316
        %v1318 = vpop.f32.mrb[0].mxu0
        %1319 = vmatprep.mubr.bf16.mxu0 %v987
        %1320 = vmatmul.mubr.bf16.gmra.mrb[0].mxu0 %v734
        %v1321 = vpop.f32.mrb[0].mxu0
        %v1322 = vadd.f32 %v338, %v1321
        %v1323 = vpop.f32.mrb[0].mxu0
        %v1324 = vpop.f32.mrb[0].mxu0
        %v1325 = vadd.f32 %v338, %v1324
        %v1326 = vpop.f32.mrb[0].mxu0
        %1327 = vmatprep.mubr.bf16.mxu0 %v990
        %1328 = vmatmul.mubr.bf16.gmra.mrb[0].mxu0 %v736
        %v1329 = vpop.f32.mrb[0].mxu0
        %v1330 = vadd.f32 %v338, %v1329
        %v1331 = vpop.f32.mrb[0].mxu0
        %v1332 = vpop.f32.mrb[0].mxu0
        %v1333 = vadd.f32 %v338, %v1332
        %v1334 = vpop.f32.mrb[0].mxu0
        %1335 = vmatprep.mubr.bf16.mxu0 %v993
        %1336 = vmatmul.mubr.bf16.gmra.mrb[0].mxu0 %v738
        %v1337 = vpop.f32.mrb[0].mxu0
        %v1338 = vadd.f32 %v338, %v1337
        %v1339 = vpop.f32.mrb[0].mxu0
        %v1340 = vpop.f32.mrb[0].mxu0
        %v1341 = vadd.f32 %v338, %v1340
        %v1342 = vpop.f32.mrb[0].mxu0
        %1343 = vmatprep.mubr.bf16.mxu0 %v996
        %1344 = vmatmul.mubr.bf16.gmra.mrb[0].mxu0 %v740
        %v1345 = vpop.f32.mrb[0].mxu0
        %v1346 = vadd.f32 %v338, %v1345
        %v1347 = vpop.f32.mrb[0].mxu0
        %v1348 = vpop.f32.mrb[0].mxu0
        %v1349 = vadd.f32 %v338, %v1348
        %v1350 = vpop.f32.mrb[0].mxu0
        %1351 = vmatprep.mubr.bf16.mxu0 %v999
        %1352 = vmatmul.mubr.bf16.gmra.mrb[0].mxu0 %v742
        %v1353 = vpop.f32.mrb[0].mxu0
        %v1354 = vadd.f32 %v338, %v1353
        %v1355 = vpop.f32.mrb[0].mxu0
        %v1356 = vpop.f32.mrb[0].mxu0
        %v1357 = vadd.f32 %v338, %v1356
        %v1358 = vpop.f32.mrb[0].mxu0
        %1359 = vmatprep.mubr.bf16.mxu0 %v1002
        %1360 = vmatmul.mubr.bf16.gmra.mrb[0].mxu0 %v744
        %v1361 = vpop.f32.mrb[0].mxu0
        %v1362 = vadd.f32 %v338, %v1361
        %v1363 = vpop.f32.mrb[0].mxu0
        %v1364 = vpop.f32.mrb[0].mxu0
        %v1365 = vadd.f32 %v338, %v1364
        %v1366 = vpop.f32.mrb[0].mxu0
        %1367 = vmatprep.mubr.bf16.mxu0 %v1005
        %1368 = vmatmul.mubr.bf16.gmra.mrb[0].mxu0 %v746
        %v1369 = vpop.f32.mrb[0].mxu0
        %v1370 = vadd.f32 %v338, %v1369
        %v1371 = vpop.f32.mrb[0].mxu0
        %v1372 = vpop.f32.mrb[0].mxu0
        %v1373 = vadd.f32 %v338, %v1372
        %v1374 = vpop.f32.mrb[0].mxu0
        %1375 = vmatprep.mubr.bf16.mxu0 %v1008
        %1376 = vmatmul.mubr.bf16.gmra.mrb[0].mxu0 %v748
        %v1377 = vpop.f32.mrb[0].mxu0
        %v1378 = vadd.f32 %v338, %v1377
        %v1379 = vpop.f32.mrb[0].mxu0
        %v1380 = vpop.f32.mrb[0].mxu0
        %v1381 = vadd.f32 %v338, %v1380
        %v1382 = vpop.f32.mrb[0].mxu0
        %1383 = vmatprep.mubr.bf16.mxu0 %v1011
        %1384 = vmatmul.mubr.bf16.gmra.mrb[0].mxu0 %v750
        %v1385 = vpop.f32.mrb[0].mxu0
        %v1386 = vadd.f32 %v338, %v1385
        %v1387 = vpop.f32.mrb[0].mxu0
        %v1388 = vpop.f32.mrb[0].mxu0
        %v1389 = vadd.f32 %v338, %v1388
        %v1390 = vpop.f32.mrb[0].mxu0
        %1391 = vmatprep.mubr.bf16.mxu0 %v1014
        %1392 = vmatmul.mubr.bf16.gmra.mrb[0].mxu0 %v752
        %v1393 = vpop.f32.mrb[0].mxu0
        %v1394 = vadd.f32 %v338, %v1393
        %v1395 = vpop.f32.mrb[0].mxu0
        %v1396 = vpop.f32.mrb[0].mxu0
        %v1397 = vadd.f32 %v338, %v1396
        %v1398 = vpop.f32.mrb[0].mxu0
        %1399 = vmatprep.mubr.bf16.mxu0 %v1017
        %1400 = vmatmul.mubr.bf16.gmra.mrb[0].mxu0 %v754
        %v1401 = vpop.f32.mrb[0].mxu0
        %v1402 = vadd.f32 %v338, %v1401
        %v1403 = vpop.f32.mrb[0].mxu0
        %v1404 = vpop.f32.mrb[0].mxu0
        %v1405 = vadd.f32 %v338, %v1404
        %v1406 = vpop.f32.mrb[0].mxu0
        %1407 = vmatprep.mubr.bf16.mxu0 %v1020
        %1408 = vmatmul.mubr.bf16.gmra.mrb[0].mxu0 %v756
        %v1409 = vpop.f32.mrb[0].mxu0
        %v1410 = vadd.f32 %v338, %v1409
        %v1411 = vpop.f32.mrb[0].mxu0
        %v1412 = vpop.f32.mrb[0].mxu0
        %v1413 = vadd.f32 %v338, %v1412
        %v1414 = vpop.f32.mrb[0].mxu0
        %1415 = vmatprep.mubr.bf16.mxu0 %v1023
        %1416 = vmatmul.mubr.bf16.gmra.mrb[0].mxu0 %v758
        %v1417 = vpop.f32.mrb[0].mxu0
        %v1418 = vadd.f32 %v338, %v1417
        %v1419 = vpop.f32.mrb[0].mxu0
        %v1420 = vpop.f32.mrb[0].mxu0
        %v1421 = vadd.f32 %v338, %v1420
        %v1422 = vpop.f32.mrb[0].mxu0
        %1423 = vmatprep.mubr.bf16.mxu0 %v1026
        %1424 = vmatmul.mubr.bf16.gmra.mrb[0].mxu0 %v760
        %v1425 = vpop.f32.mrb[0].mxu0
        %v1426 = vadd.f32 %v338, %v1425
        %v1427 = vpop.f32.mrb[0].mxu0
        %v1428 = vpop.f32.mrb[0].mxu0
        %v1429 = vadd.f32 %v338, %v1428
        %v1430 = vpop.f32.mrb[0].mxu0
        %1431 = vmatprep.mubr.bf16.mxu0 %v1029
        %1432 = vmatmul.mubr.bf16.gmra.mrb[0].mxu0 %v762
        %v1433 = vpop.f32.mrb[0].mxu0
        %v1434 = vadd.f32 %v338, %v1433
        %v1435 = vpop.f32.mrb[0].mxu0
        %v1436 = vpop.f32.mrb[0].mxu0
        %v1437 = vadd.f32 %v338, %v1436
        %v1438 = vpop.f32.mrb[0].mxu0
        %1439 = vmatprep.mubr.bf16.mxu0 %v1032
        %1440 = vmatmul.mubr.bf16.gmra.mrb[0].mxu0 %v764
        %v1441 = vpop.f32.mrb[0].mxu0
        %v1442 = vadd.f32 %v338, %v1441
        %v1443 = vpop.f32.mrb[0].mxu0
        %v1444 = vpop.f32.mrb[0].mxu0
        %v1445 = vadd.f32 %v338, %v1444
        %v1446 = vpop.f32.mrb[0].mxu0
        %1447 = vmatprep.mubr.bf16.mxu0 %v1035
        %1448 = vmatmul.mubr.bf16.gmra.mrb[0].mxu0 %v766
        %v1449 = vpop.f32.mrb[0].mxu0
        %v1450 = vadd.f32 %v338, %v1449
        %v1451 = vpop.f32.mrb[0].mxu0
        %v1452 = vpop.f32.mrb[0].mxu0
        %v1453 = vadd.f32 %v338, %v1452
        %v1454 = vpop.f32.mrb[0].mxu0
        %1455 = vmatprep.mubr.bf16.mxu0 %v1038
        %1456 = vmatmul.mubr.bf16.gmra.mrb[0].mxu0 %v768
        %v1457 = vpop.f32.mrb[0].mxu0
        %v1458 = vadd.f32 %v338, %v1457
        %v1459 = vpop.f32.mrb[0].mxu0
        %v1460 = vpop.f32.mrb[0].mxu0
        %v1461 = vadd.f32 %v338, %v1460
        %v1462 = vpop.f32.mrb[0].mxu0
        %1463 = vmatprep.mubr.bf16.mxu0 %v1041
        %1464 = vmatmul.mubr.bf16.gmra.mrb[0].mxu0 %v770
        %v1465 = vpop.f32.mrb[0].mxu0
        %v1466 = vadd.f32 %v338, %v1465
        %v1467 = vpop.f32.mrb[0].mxu0
        %v1468 = vpop.f32.mrb[0].mxu0
        %v1469 = vadd.f32 %v338, %v1468
        %v1470 = vpop.f32.mrb[0].mxu0
        %1471 = vmatprep.mubr.bf16.mxu0 %v1044
        %1472 = vmatmul.mubr.bf16.gmra.mrb[0].mxu0 %v772
        %v1473 = vpop.f32.mrb[0].mxu0
        %v1474 = vadd.f32 %v338, %v1473
        %v1475 = vpop.f32.mrb[0].mxu0
        %v1476 = vpop.f32.mrb[0].mxu0
        %v1477 = vadd.f32 %v338, %v1476
        %v1478 = vpop.f32.mrb[0].mxu0
        %1479 = vmatprep.mubr.bf16.mxu0 %v1047
        %1480 = vmatmul.mubr.bf16.gmra.mrb[0].mxu0 %v774
        %v1481 = vpop.f32.mrb[0].mxu0
        %v1482 = vadd.f32 %v338, %v1481
        %v1483 = vpop.f32.mrb[0].mxu0
        %v1484 = vpop.f32.mrb[0].mxu0
        %v1485 = vadd.f32 %v338, %v1484
        %v1486 = vpop.f32.mrb[0].mxu0
        %1487 = vmatprep.mubr.bf16.mxu0 %v1050
        %1488 = vmatmul.mubr.bf16.gmra.mrb[0].mxu0 %v776
        %v1489 = vpop.f32.mrb[0].mxu0
        %v1490 = vadd.f32 %v338, %v1489
        %v1491 = vpop.f32.mrb[0].mxu0
        %v1492 = vpop.f32.mrb[0].mxu0
        %v1493 = vadd.f32 %v338, %v1492
        %v1494 = vpop.f32.mrb[0].mxu0
        %1495 = vmatprep.mubr.bf16.mxu0 %v1053
        %1496 = vmatmul.mubr.bf16.gmra.mrb[0].mxu0 %v778
        %v1497 = vpop.f32.mrb[0].mxu0
        %v1498 = vadd.f32 %v338, %v1497
        %v1499 = vpop.f32.mrb[0].mxu0
        %v1500 = vpop.f32.mrb[0].mxu0
        %v1501 = vadd.f32 %v338, %v1500
        %v1502 = vpop.f32.mrb[0].mxu0
        %1503 = vmatprep.mubr.bf16.mxu0 %v1056
        %1504 = vmatmul.mubr.bf16.gmra.mrb[0].mxu0 %v780
        %v1505 = vpop.f32.mrb[0].mxu0
        %v1506 = vadd.f32 %v338, %v1505
        %v1507 = vpop.f32.mrb[0].mxu0
        %v1508 = vpop.f32.mrb[0].mxu0
        %v1509 = vadd.f32 %v338, %v1508
        %v1510 = vpop.f32.mrb[0].mxu0
        %1511 = vmatprep.mubr.bf16.mxu0 %v1059
        %1512 = vmatmul.mubr.bf16.gmra.mrb[0].mxu0 %v782
        %v1513 = vpop.f32.mrb[0].mxu0
        %v1514 = vadd.f32 %v338, %v1513
        %v1515 = vpop.f32.mrb[0].mxu0
        %v1516 = vpop.f32.mrb[0].mxu0
        %v1517 = vadd.f32 %v338, %v1516
        %v1518 = vpop.f32.mrb[0].mxu0
        %1519 = vmatprep.mubr.bf16.mxu0 %v1062
        %1520 = vmatmul.mubr.bf16.gmra.mrb[0].mxu0 %v784
        %v1521 = vpop.f32.mrb[0].mxu0
        %v1522 = vadd.f32 %v338, %v1521
        %v1523 = vpop.f32.mrb[0].mxu0
        %v1524 = vpop.f32.mrb[0].mxu0
        %v1525 = vadd.f32 %v338, %v1524
        %v1526 = vpop.f32.mrb[0].mxu0
        %1527 = vmatprep.mubr.bf16.mxu0 %v1065
        %1528 = vmatmul.mubr.bf16.gmra.mrb[0].mxu0 %v786
        %v1529 = vpop.f32.mrb[0].mxu0
        %v1530 = vadd.f32 %v338, %v1529
        %v1531 = vpop.f32.mrb[0].mxu0
        %v1532 = vpop.f32.mrb[0].mxu0
        %v1533 = vadd.f32 %v338, %v1532
        %v1534 = vpop.f32.mrb[0].mxu0
        %1535 = vmatprep.mubr.bf16.mxu0 %v1068
        %1536 = vmatmul.mubr.bf16.gmra.mrb[0].mxu0 %v788
        %v1537 = vpop.f32.mrb[0].mxu0
        %v1538 = vadd.f32 %v338, %v1537
        %v1539 = vpop.f32.mrb[0].mxu0
        %v1540 = vpop.f32.mrb[0].mxu0
        %v1541 = vadd.f32 %v338, %v1540
        %v1542 = vpop.f32.mrb[0].mxu0
        %1543 = vmatprep.mubr.bf16.mxu0 %v1071
        %1544 = vmatmul.mubr.bf16.gmra.mrb[0].mxu0 %v790
        %v1545 = vpop.f32.mrb[0].mxu0
        %v1546 = vadd.f32 %v338, %v1545
        %v1547 = vpop.f32.mrb[0].mxu0
        %v1548 = vpop.f32.mrb[0].mxu0
        %v1549 = vadd.f32 %v338, %v1548
        %v1550 = vpop.f32.mrb[0].mxu0
        %1551 = vmatprep.mubr.bf16.mxu0 %v1074
        %1552 = vmatmul.mubr.bf16.gmra.mrb[0].mxu0 %v792
        %v1553 = vpop.f32.mrb[0].mxu0
        %v1554 = vadd.f32 %v338, %v1553
        %v1555 = vpop.f32.mrb[0].mxu0
        %v1556 = vpop.f32.mrb[0].mxu0
        %v1557 = vadd.f32 %v338, %v1556
        %v1558 = vpop.f32.mrb[0].mxu0
        %1559 = vmatprep.mubr.bf16.mxu0 %v1077
        %1560 = vmatmul.mubr.bf16.gmra.mrb[0].mxu0 %v794
        %v1561 = vpop.f32.mrb[0].mxu0
        %v1562 = vadd.f32 %v338, %v1561
        %v1563 = vpop.f32.mrb[0].mxu0
        %v1564 = vpop.f32.mrb[0].mxu0
        %v1565 = vadd.f32 %v338, %v1564
        %v1566 = vpop.f32.mrb[0].mxu0
        %1567 = vdwg.mxu0
        %v1568 = vmax.f32 %v1114, 0.0
        %v1569 = vmax.f32 %v1117, 0.0
        %v1570 = vmax.f32 %v1122, 0.0
        %v1571 = vmax.f32 %v1125, 0.0
        %v1572 = vmax.f32 %v1130, 0.0
        %v1573 = vmax.f32 %v1133, 0.0
        %v1574 = vmax.f32 %v1138, 0.0
        %v1575 = vmax.f32 %v1141, 0.0
        %v1576 = vmax.f32 %v1146, 0.0
        %v1577 = vmax.f32 %v1149, 0.0
        %v1578 = vmax.f32 %v1154, 0.0
        %v1579 = vmax.f32 %v1157, 0.0
        %v1580 = vmax.f32 %v1162, 0.0
        %v1581 = vmax.f32 %v1165, 0.0
        %v1582 = vmax.f32 %v1170, 0.0
        %v1583 = vmax.f32 %v1173, 0.0
        %v1584 = vmax.f32 %v1178, 0.0
        %v1585 = vmax.f32 %v1181, 0.0
        %v1586 = vmax.f32 %v1186, 0.0
        %v1587 = vmax.f32 %v1189, 0.0
        %v1588 = vmax.f32 %v1194, 0.0
        %v1589 = vmax.f32 %v1197, 0.0
        %v1590 = vmax.f32 %v1202, 0.0
        %v1591 = vmax.f32 %v1205, 0.0
        %v1592 = vmax.f32 %v1210, 0.0
        %v1593 = vmax.f32 %v1213, 0.0
        %v1594 = vmax.f32 %v1218, 0.0
        %v1595 = vmax.f32 %v1221, 0.0
        %v1596 = vmax.f32 %v1226, 0.0
        %v1597 = vmax.f32 %v1229, 0.0
        %v1598 = vmax.f32 %v1234, 0.0
        %v1599 = vmax.f32 %v1237, 0.0
        %v1600 = vmax.f32 %v1242, 0.0
        %v1601 = vmax.f32 %v1245, 0.0
        %v1602 = vmax.f32 %v1250, 0.0
        %v1603 = vmax.f32 %v1253, 0.0
        %v1604 = vmax.f32 %v1258, 0.0
        %v1605 = vmax.f32 %v1261, 0.0
        %v1606 = vmax.f32 %v1266, 0.0
        %v1607 = vmax.f32 %v1269, 0.0
        %v1608 = vmax.f32 %v1274, 0.0
        %v1609 = vmax.f32 %v1277, 0.0
        %v1610 = vmax.f32 %v1282, 0.0
        %v1611 = vmax.f32 %v1285, 0.0
        %v1612 = vmax.f32 %v1290, 0.0
        %v1613 = vmax.f32 %v1293, 0.0
        %v1614 = vmax.f32 %v1298, 0.0
        %v1615 = vmax.f32 %v1301, 0.0
        %v1616 = vmax.f32 %v1306, 0.0
        %v1617 = vmax.f32 %v1309, 0.0
        %v1618 = vmax.f32 %v1314, 0.0
        %v1619 = vmax.f32 %v1317, 0.0
        %v1620 = vmax.f32 %v1322, 0.0
        %v1621 = vmax.f32 %v1325, 0.0
        %v1622 = vmax.f32 %v1330, 0.0
        %v1623 = vmax.f32 %v1333, 0.0
        %v1624 = vmax.f32 %v1338, 0.0
        %v1625 = vmax.f32 %v1341, 0.0
        %v1626 = vmax.f32 %v1346, 0.0
        %v1627 = vmax.f32 %v1349, 0.0
        %v1628 = vmax.f32 %v1354, 0.0
        %v1629 = vmax.f32 %v1357, 0.0
        %v1630 = vmax.f32 %v1362, 0.0
        %v1631 = vmax.f32 %v1365, 0.0
        %v1632 = vmax.f32 %v1370, 0.0
        %v1633 = vmax.f32 %v1373, 0.0
        %v1634 = vmax.f32 %v1378, 0.0
        %v1635 = vmax.f32 %v1381, 0.0
        %v1636 = vmax.f32 %v1386, 0.0
        %v1637 = vmax.f32 %v1389, 0.0
        %v1638 = vmax.f32 %v1394, 0.0
        %v1639 = vmax.f32 %v1397, 0.0
        %v1640 = vmax.f32 %v1402, 0.0
        %v1641 = vmax.f32 %v1405, 0.0
        %v1642 = vmax.f32 %v1410, 0.0
        %v1643 = vmax.f32 %v1413, 0.0
        %v1644 = vmax.f32 %v1418, 0.0
        %v1645 = vmax.f32 %v1421, 0.0
        %v1646 = vmax.f32 %v1426, 0.0
        %v1647 = vmax.f32 %v1429, 0.0
        %v1648 = vmax.f32 %v1434, 0.0
        %v1649 = vmax.f32 %v1437, 0.0
        %v1650 = vmax.f32 %v1442, 0.0
        %v1651 = vmax.f32 %v1445, 0.0
        %v1652 = vmax.f32 %v1450, 0.0
        %v1653 = vmax.f32 %v1453, 0.0
        %v1654 = vmax.f32 %v1458, 0.0
        %v1655 = vmax.f32 %v1461, 0.0
        %v1656 = vmax.f32 %v1466, 0.0
        %v1657 = vmax.f32 %v1469, 0.0
        %v1658 = vmax.f32 %v1474, 0.0
        %v1659 = vmax.f32 %v1477, 0.0
        %v1660 = vmax.f32 %v1482, 0.0
        %v1661 = vmax.f32 %v1485, 0.0
        %v1662 = vmax.f32 %v1490, 0.0
        %v1663 = vmax.f32 %v1493, 0.0
        %v1664 = vmax.f32 %v1498, 0.0
        %v1665 = vmax.f32 %v1501, 0.0
        %v1666 = vmax.f32 %v1506, 0.0
        %v1667 = vmax.f32 %v1509, 0.0
        %v1668 = vmax.f32 %v1514, 0.0
        %v1669 = vmax.f32 %v1517, 0.0
        %v1670 = vmax.f32 %v1522, 0.0
        %v1671 = vmax.f32 %v1525, 0.0
        %v1672 = vmax.f32 %v1530, 0.0
        %v1673 = vmax.f32 %v1533, 0.0
        %v1674 = vmax.f32 %v1538, 0.0
        %v1675 = vmax.f32 %v1541, 0.0
        %v1676 = vmax.f32 %v1546, 0.0
        %v1677 = vmax.f32 %v1549, 0.0
        %v1678 = vmax.f32 %v1554, 0.0
        %v1679 = vmax.f32 %v1557, 0.0
        %v1680 = vmax.f32 %v1562, 0.0
        %v1681 = vmax.f32 %v1565, 0.0
        %vm1682 = vcmask 261120
        %1683 = vst.msk [vmem:[%s177] sm:$0xff] %vm1682, %v1568
        %1684 = vst.msk [vmem:[%s177 + $0x8] sm:$0xff] %vm1682, %v1569
        %1685 = vst.msk [vmem:[%s177 + $0x10] sm:$0xff] %vm1682, %v1570
        %1686 = vst.msk [vmem:[%s177 + $0x18] sm:$0xff] %vm1682, %v1571
        %1687 = vst.msk [vmem:[%s177 + $0x20] sm:$0xff] %vm1682, %v1572
        %1688 = vst.msk [vmem:[%s177 + $0x28] sm:$0xff] %vm1682, %v1573
        %1689 = vst.msk [vmem:[%s177 + $0x30] sm:$0xff] %vm1682, %v1574
        %1690 = vst.msk [vmem:[%s177 + $0x38] sm:$0xff] %vm1682, %v1575
        %1691 = vst.msk [vmem:[%s177 + $0x40] sm:$0xff] %vm1682, %v1576
        %1692 = vst.msk [vmem:[%s177 + $0x48] sm:$0xff] %vm1682, %v1577
        %1693 = vst.msk [vmem:[%s177 + $0x50] sm:$0xff] %vm1682, %v1578
        %1694 = vst.msk [vmem:[%s177 + $0x58] sm:$0xff] %vm1682, %v1579
        %1695 = vst.msk [vmem:[%s177 + $0x60] sm:$0xff] %vm1682, %v1580
        %1696 = vst.msk [vmem:[%s177 + $0x68] sm:$0xff] %vm1682, %v1581
        %1697 = vst.msk [vmem:[%s177 + $0x70] sm:$0xff] %vm1682, %v1582
        %1698 = vst.msk [vmem:[%s177 + $0x78] sm:$0xff] %vm1682, %v1583
        %1699 = vst.msk [vmem:[%s177 + $0x80] sm:$0xff] %vm1682, %v1584
        %1700 = vst.msk [vmem:[%s177 + $0x88] sm:$0xff] %vm1682, %v1585
        %1701 = vst.msk [vmem:[%s177 + $0x90] sm:$0xff] %vm1682, %v1586
        %1702 = vst.msk [vmem:[%s177 + $0x98] sm:$0xff] %vm1682, %v1587
        %1703 = vst.msk [vmem:[%s177 + $0xa0] sm:$0xff] %vm1682, %v1588
        %1704 = vst.msk [vmem:[%s177 + $0xa8] sm:$0xff] %vm1682, %v1589
        %1705 = vst.msk [vmem:[%s177 + $0xb0] sm:$0xff] %vm1682, %v1590
        %1706 = vst.msk [vmem:[%s177 + $0xb8] sm:$0xff] %vm1682, %v1591
        %1707 = vst.msk [vmem:[%s177 + $0xc0] sm:$0xff] %vm1682, %v1592
        %1708 = vst.msk [vmem:[%s177 + $0xc8] sm:$0xff] %vm1682, %v1593
        %1709 = vst.msk [vmem:[%s177 + $0xd0] sm:$0xff] %vm1682, %v1594
        %1710 = vst.msk [vmem:[%s177 + $0xd8] sm:$0xff] %vm1682, %v1595
        %1711 = vst.msk [vmem:[%s177 + $0xe0] sm:$0xff] %vm1682, %v1596
        %1712 = vst.msk [vmem:[%s177 + $0xe8] sm:$0xff] %vm1682, %v1597
        %1713 = vst.msk [vmem:[%s177 + $0xf0] sm:$0xff] %vm1682, %v1598
        %1714 = vst.msk [vmem:[%s177 + $0xf8] sm:$0xff] %vm1682, %v1599
        %1715 = vst.msk [vmem:[%s177 + $0x100] sm:$0xff] %vm1682, %v1600
        %1716 = vst.msk [vmem:[%s177 + $0x108] sm:$0xff] %vm1682, %v1601
        %1717 = vst.msk [vmem:[%s177 + $0x110] sm:$0xff] %vm1682, %v1602
        %1718 = vst.msk [vmem:[%s177 + $0x118] sm:$0xff] %vm1682, %v1603
        %1719 = vst.msk [vmem:[%s177 + $0x120] sm:$0xff] %vm1682, %v1604
        %1720 = vst.msk [vmem:[%s177 + $0x128] sm:$0xff] %vm1682, %v1605
        %1721 = vst.msk [vmem:[%s177 + $0x130] sm:$0xff] %vm1682, %v1606
        %1722 = vst.msk [vmem:[%s177 + $0x138] sm:$0xff] %vm1682, %v1607
        %1723 = vst.msk [vmem:[%s177 + $0x140] sm:$0xff] %vm1682, %v1608
        %1724 = vst.msk [vmem:[%s177 + $0x148] sm:$0xff] %vm1682, %v1609
        %1725 = vst.msk [vmem:[%s177 + $0x150] sm:$0xff] %vm1682, %v1610
        %1726 = vst.msk [vmem:[%s177 + $0x158] sm:$0xff] %vm1682, %v1611
        %1727 = vst.msk [vmem:[%s177 + $0x160] sm:$0xff] %vm1682, %v1612
        %1728 = vst.msk [vmem:[%s177 + $0x168] sm:$0xff] %vm1682, %v1613
        %1729 = vst.msk [vmem:[%s177 + $0x170] sm:$0xff] %vm1682, %v1614
        %1730 = vst.msk [vmem:[%s177 + $0x178] sm:$0xff] %vm1682, %v1615
        %1731 = vst.msk [vmem:[%s177 + $0x180] sm:$0xff] %vm1682, %v1616
        %1732 = vst.msk [vmem:[%s177 + $0x188] sm:$0xff] %vm1682, %v1617
        %1733 = vst.msk [vmem:[%s177 + $0x190] sm:$0xff] %vm1682, %v1618
        %1734 = vst.msk [vmem:[%s177 + $0x198] sm:$0xff] %vm1682, %v1619
        %1735 = vst.msk [vmem:[%s177 + $0x1a0] sm:$0xff] %vm1682, %v1620
        %1736 = vst.msk [vmem:[%s177 + $0x1a8] sm:$0xff] %vm1682, %v1621
        %1737 = vst.msk [vmem:[%s177 + $0x1b0] sm:$0xff] %vm1682, %v1622
        %1738 = vst.msk [vmem:[%s177 + $0x1b8] sm:$0xff] %vm1682, %v1623
        %1739 = vst.msk [vmem:[%s177 + $0x1c0] sm:$0xff] %vm1682, %v1624
        %1740 = vst.msk [vmem:[%s177 + $0x1c8] sm:$0xff] %vm1682, %v1625
        %1741 = vst.msk [vmem:[%s177 + $0x1d0] sm:$0xff] %vm1682, %v1626
        %1742 = vst.msk [vmem:[%s177 + $0x1d8] sm:$0xff] %vm1682, %v1627
        %1743 = vst.msk [vmem:[%s177 + $0x1e0] sm:$0xff] %vm1682, %v1628
        %1744 = vst.msk [vmem:[%s177 + $0x1e8] sm:$0xff] %vm1682, %v1629
        %1745 = vst.msk [vmem:[%s177 + $0x1f0] sm:$0xff] %vm1682, %v1630
        %1746 = vst.msk [vmem:[%s177 + $0x1f8] sm:$0xff] %vm1682, %v1631
        %1747 = vst.msk [vmem:[%s177 + $0x200] sm:$0xff] %vm1682, %v1632
        %1748 = vst.msk [vmem:[%s177 + $0x208] sm:$0xff] %vm1682, %v1633
        %1749 = vst.msk [vmem:[%s177 + $0x210] sm:$0xff] %vm1682, %v1634
        %1750 = vst.msk [vmem:[%s177 + $0x218] sm:$0xff] %vm1682, %v1635
        %1751 = vst.msk [vmem:[%s177 + $0x220] sm:$0xff] %vm1682, %v1636
        %1752 = vst.msk [vmem:[%s177 + $0x228] sm:$0xff] %vm1682, %v1637
        %1753 = vst.msk [vmem:[%s177 + $0x230] sm:$0xff] %vm1682, %v1638
        %1754 = vst.msk [vmem:[%s177 + $0x238] sm:$0xff] %vm1682, %v1639
        %1755 = vst.msk [vmem:[%s177 + $0x240] sm:$0xff] %vm1682, %v1640
        %1756 = vst.msk [vmem:[%s177 + $0x248] sm:$0xff] %vm1682, %v1641
        %1757 = vst.msk [vmem:[%s177 + $0x250] sm:$0xff] %vm1682, %v1642
        %1758 = vst.msk [vmem:[%s177 + $0x258] sm:$0xff] %vm1682, %v1643
        %1759 = vst.msk [vmem:[%s177 + $0x260] sm:$0xff] %vm1682, %v1644
        %1760 = vst.msk [vmem:[%s177 + $0x268] sm:$0xff] %vm1682, %v1645
        %1761 = vst.msk [vmem:[%s177 + $0x270] sm:$0xff] %vm1682, %v1646
        %1762 = vst.msk [vmem:[%s177 + $0x278] sm:$0xff] %vm1682, %v1647
        %1763 = vst.msk [vmem:[%s177 + $0x280] sm:$0xff] %vm1682, %v1648
        %1764 = vst.msk [vmem:[%s177 + $0x288] sm:$0xff] %vm1682, %v1649
        %1765 = vst.msk [vmem:[%s177 + $0x290] sm:$0xff] %vm1682, %v1650
        %1766 = vst.msk [vmem:[%s177 + $0x298] sm:$0xff] %vm1682, %v1651
        %1767 = vst.msk [vmem:[%s177 + $0x2a0] sm:$0xff] %vm1682, %v1652
        %1768 = vst.msk [vmem:[%s177 + $0x2a8] sm:$0xff] %vm1682, %v1653
        %1769 = vst.msk [vmem:[%s177 + $0x2b0] sm:$0xff] %vm1682, %v1654
        %1770 = vst.msk [vmem:[%s177 + $0x2b8] sm:$0xff] %vm1682, %v1655
        %1771 = vst.msk [vmem:[%s177 + $0x2c0] sm:$0xff] %vm1682, %v1656
        %1772 = vst.msk [vmem:[%s177 + $0x2c8] sm:$0xff] %vm1682, %v1657
        %1773 = vst.msk [vmem:[%s177 + $0x2d0] sm:$0xff] %vm1682, %v1658
        %1774 = vst.msk [vmem:[%s177 + $0x2d8] sm:$0xff] %vm1682, %v1659
        %1775 = vst.msk [vmem:[%s177 + $0x2e0] sm:$0xff] %vm1682, %v1660
        %1776 = vst.msk [vmem:[%s177 + $0x2e8] sm:$0xff] %vm1682, %v1661
        %1777 = vst.msk [vmem:[%s177 + $0x2f0] sm:$0xff] %vm1682, %v1662
        %1778 = vst.msk [vmem:[%s177 + $0x2f8] sm:$0xff] %vm1682, %v1663
        %1779 = vst.msk [vmem:[%s177 + $0x300] sm:$0xff] %vm1682, %v1664
        %1780 = vst.msk [vmem:[%s177 + $0x308] sm:$0xff] %vm1682, %v1665
        %1781 = vst.msk [vmem:[%s177 + $0x310] sm:$0xff] %vm1682, %v1666
        %1782 = vst.msk [vmem:[%s177 + $0x318] sm:$0xff] %vm1682, %v1667
        %1783 = vst.msk [vmem:[%s177 + $0x320] sm:$0xff] %vm1682, %v1668
        %1784 = vst.msk [vmem:[%s177 + $0x328] sm:$0xff] %vm1682, %v1669
        %1785 = vst.msk [vmem:[%s177 + $0x330] sm:$0xff] %vm1682, %v1670
        %1786 = vst.msk [vmem:[%s177 + $0x338] sm:$0xff] %vm1682, %v1671
        %1787 = vst.msk [vmem:[%s177 + $0x340] sm:$0xff] %vm1682, %v1672
        %1788 = vst.msk [vmem:[%s177 + $0x348] sm:$0xff] %vm1682, %v1673
        %1789 = vst.msk [vmem:[%s177 + $0x350] sm:$0xff] %vm1682, %v1674
        %1790 = vst.msk [vmem:[%s177 + $0x358] sm:$0xff] %vm1682, %v1675
        %1791 = vst.msk [vmem:[%s177 + $0x360] sm:$0xff] %vm1682, %v1676
        %1792 = vst.msk [vmem:[%s177 + $0x368] sm:$0xff] %vm1682, %v1677
        %1793 = vst.msk [vmem:[%s177 + $0x370] sm:$0xff] %vm1682, %v1678
        %1794 = vst.msk [vmem:[%s177 + $0x378] sm:$0xff] %vm1682, %v1679
        %1795 = vst.msk [vmem:[%s177 + $0x380] sm:$0xff] %vm1682, %v1680
        %1796 = vst.msk [vmem:[%s177 + $0x388] sm:$0xff] %vm1682, %v1681
        %s1797 = sand.u32 %s90, 1
        %s1798 = sand.u32 %s90, 1
        %s1799 = smul.addr %s1798, 912
        %s1800 = scalar_lea.vmem [#allocation2], %s1799
        // Predicated region
        $region33: #{pupilnet_v2_forward.9} parent=31 // pred_check
          %p1801 = pneg %p100
        $region34: #{pupilnet_v2_forward.9} parent=31 // pred_check_branch
          %1803 = sbr.rel (%p1801) target = $region36
        $region35: #{pupilnet_v2_forward.9} parent=31 // pred_region
          %s1804 = smul.u32 114, %s14
          %s1805 = ssub.s32 225, %s1804
          %p1806 = scmp.lt.s32.totalorder %s1805, 114
          %s1807 = scalar_select %p1806, %s1805, 114
          %s1808 = smul.u32 128, %s1807
          %p1809 = scmp.ne.s32.totalorder 0, %s1808
          %s1810 = smul.addr %s1804, 8
          %s1811 = scalar_lea.vmem %s3, %s1810
          // Predicated region
          $region37: #{pupilnet_v2_forward.9} parent=35 // pred_check
            %p1812 = pneg %p1809
          $region38: #{pupilnet_v2_forward.9} parent=35 // pred_check_branch
            %1814 = sbr.rel (%p1812) target = $region40
          $region39: #{pupilnet_v2_forward.9} parent=35 // pred_region
            // Predicated region
            $region41: #{pupilnet_v2_forward.9} parent=39 // pred_check
              _
            $region42: #{pupilnet_v2_forward.9} parent=39 // pred_check_branch
              %1816 = sbr.rel (0) target = $region44
            $region43: #{pupilnet_v2_forward.9} parent=39 // pred_region
              // Predicated region
              $region63: #{pupilnet_v2_forward.9} parent=43 // pred_check
                _
              $region64: #{pupilnet_v2_forward.9} parent=43 // pred_check_branch
                %1991 = sbr.rel (0) target = $region66
              $region65: #{pupilnet_v2_forward.9} parent=43 // pred_region
                %s1992 = sshrl.u32 %s1807, 6
                // While loop
                $region67: #{pupilnet_v2_forward.9} parent=65 // loop_pre_header
                  _
                $region68: #{pupilnet_v2_forward.9} parent=65 // loop_header
                  %s1994 = sphi 0, %s1996
                  %p1995 = scmp.ge.s32.totalorder %s1994, %s1992
                  %s1999 = sphi 0, %s2132
                  %s2000 = sphi %s1800, %s2135
                  %s2001 = sphi %s1811, %s2136
                $region69: #{pupilnet_v2_forward.9} parent=65 // loop_header_branch
                  %1998 = sbr.rel (%p1995) target = $region73
                $region70: #{pupilnet_v2_forward.9} parent=65 // loop_body
                  %v2002 = vld [vmem:[%s2000] sm:$0xff]
                  %2003 = vst [vmem:[%s2001] sm:$0xff] %v2002
                  %v2004 = vld [vmem:[%s2000 + $0x8] sm:$0xff]
                  %2005 = vst [vmem:[%s2001 + $0x8] sm:$0xff] %v2004
                  %v2006 = vld [vmem:[%s2000 + $0x10] sm:$0xff]
                  %2007 = vst [vmem:[%s2001 + $0x10] sm:$0xff] %v2006
                  %v2008 = vld [vmem:[%s2000 + $0x18] sm:$0xff]
                  %2009 = vst [vmem:[%s2001 + $0x18] sm:$0xff] %v2008
                  %v2010 = vld [vmem:[%s2000 + $0x20] sm:$0xff]
                  %2011 = vst [vmem:[%s2001 + $0x20] sm:$0xff] %v2010
                  %v2012 = vld [vmem:[%s2000 + $0x28] sm:$0xff]
                  %2013 = vst [vmem:[%s2001 + $0x28] sm:$0xff] %v2012
                  %v2014 = vld [vmem:[%s2000 + $0x30] sm:$0xff]
                  %2015 = vst [vmem:[%s2001 + $0x30] sm:$0xff] %v2014
                  %v2016 = vld [vmem:[%s2000 + $0x38] sm:$0xff]
                  %2017 = vst [vmem:[%s2001 + $0x38] sm:$0xff] %v2016
                  %v2018 = vld [vmem:[%s2000 + $0x40] sm:$0xff]
                  %2019 = vst [vmem:[%s2001 + $0x40] sm:$0xff] %v2018
                  %v2020 = vld [vmem:[%s2000 + $0x48] sm:$0xff]
                  %2021 = vst [vmem:[%s2001 + $0x48] sm:$0xff] %v2020
                  %v2022 = vld [vmem:[%s2000 + $0x50] sm:$0xff]
                  %2023 = vst [vmem:[%s2001 + $0x50] sm:$0xff] %v2022
                  %v2024 = vld [vmem:[%s2000 + $0x58] sm:$0xff]
                  %2025 = vst [vmem:[%s2001 + $0x58] sm:$0xff] %v2024
                  %v2026 = vld [vmem:[%s2000 + $0x60] sm:$0xff]
                  %2027 = vst [vmem:[%s2001 + $0x60] sm:$0xff] %v2026
                  %v2028 = vld [vmem:[%s2000 + $0x68] sm:$0xff]
                  %2029 = vst [vmem:[%s2001 + $0x68] sm:$0xff] %v2028
                  %v2030 = vld [vmem:[%s2000 + $0x70] sm:$0xff]
                  %2031 = vst [vmem:[%s2001 + $0x70] sm:$0xff] %v2030
                  %v2032 = vld [vmem:[%s2000 + $0x78] sm:$0xff]
                  %2033 = vst [vmem:[%s2001 + $0x78] sm:$0xff] %v2032
                  %v2034 = vld [vmem:[%s2000 + $0x80] sm:$0xff]
                  %2035 = vst [vmem:[%s2001 + $0x80] sm:$0xff] %v2034
                  %v2036 = vld [vmem:[%s2000 + $0x88] sm:$0xff]
                  %2037 = vst [vmem:[%s2001 + $0x88] sm:$0xff] %v2036
                  %v2038 = vld [vmem:[%s2000 + $0x90] sm:$0xff]
                  %2039 = vst [vmem:[%s2001 + $0x90] sm:$0xff] %v2038
                  %v2040 = vld [vmem:[%s2000 + $0x98] sm:$0xff]
                  %2041 = vst [vmem:[%s2001 + $0x98] sm:$0xff] %v2040
                  %v2042 = vld [vmem:[%s2000 + $0xa0] sm:$0xff]
                  %2043 = vst [vmem:[%s2001 + $0xa0] sm:$0xff] %v2042
                  %v2044 = vld [vmem:[%s2000 + $0xa8] sm:$0xff]
                  %2045 = vst [vmem:[%s2001 + $0xa8] sm:$0xff] %v2044
                  %v2046 = vld [vmem:[%s2000 + $0xb0] sm:$0xff]
                  %2047 = vst [vmem:[%s2001 + $0xb0] sm:$0xff] %v2046
                  %v2048 = vld [vmem:[%s2000 + $0xb8] sm:$0xff]
                  %2049 = vst [vmem:[%s2001 + $0xb8] sm:$0xff] %v2048
                  %v2050 = vld [vmem:[%s2000 + $0xc0] sm:$0xff]
                  %2051 = vst [vmem:[%s2001 + $0xc0] sm:$0xff] %v2050
                  %v2052 = vld [vmem:[%s2000 + $0xc8] sm:$0xff]
                  %2053 = vst [vmem:[%s2001 + $0xc8] sm:$0xff] %v2052
                  %v2054 = vld [vmem:[%s2000 + $0xd0] sm:$0xff]
                  %2055 = vst [vmem:[%s2001 + $0xd0] sm:$0xff] %v2054
                  %v2056 = vld [vmem:[%s2000 + $0xd8] sm:$0xff]
                  %2057 = vst [vmem:[%s2001 + $0xd8] sm:$0xff] %v2056
                  %v2058 = vld [vmem:[%s2000 + $0xe0] sm:$0xff]
                  %2059 = vst [vmem:[%s2001 + $0xe0] sm:$0xff] %v2058
                  %v2060 = vld [vmem:[%s2000 + $0xe8] sm:$0xff]
                  %2061 = vst [vmem:[%s2001 + $0xe8] sm:$0xff] %v2060
                  %v2062 = vld [vmem:[%s2000 + $0xf0] sm:$0xff]
                  %2063 = vst [vmem:[%s2001 + $0xf0] sm:$0xff] %v2062
                  %v2064 = vld [vmem:[%s2000 + $0xf8] sm:$0xff]
                  %2065 = vst [vmem:[%s2001 + $0xf8] sm:$0xff] %v2064
                  %v2066 = vld [vmem:[%s2000 + $0x100] sm:$0xff]
                  %2067 = vst [vmem:[%s2001 + $0x100] sm:$0xff] %v2066
                  %v2068 = vld [vmem:[%s2000 + $0x108] sm:$0xff]
                  %2069 = vst [vmem:[%s2001 + $0x108] sm:$0xff] %v2068
                  %v2070 = vld [vmem:[%s2000 + $0x110] sm:$0xff]
                  %2071 = vst [vmem:[%s2001 + $0x110] sm:$0xff] %v2070
                  %v2072 = vld [vmem:[%s2000 + $0x118] sm:$0xff]
                  %2073 = vst [vmem:[%s2001 + $0x118] sm:$0xff] %v2072
                  %v2074 = vld [vmem:[%s2000 + $0x120] sm:$0xff]
                  %2075 = vst [vmem:[%s2001 + $0x120] sm:$0xff] %v2074
                  %v2076 = vld [vmem:[%s2000 + $0x128] sm:$0xff]
                  %2077 = vst [vmem:[%s2001 + $0x128] sm:$0xff] %v2076
                  %v2078 = vld [vmem:[%s2000 + $0x130] sm:$0xff]
                  %2079 = vst [vmem:[%s2001 + $0x130] sm:$0xff] %v2078
                  %v2080 = vld [vmem:[%s2000 + $0x138] sm:$0xff]
                  %2081 = vst [vmem:[%s2001 + $0x138] sm:$0xff] %v2080
                  %v2082 = vld [vmem:[%s2000 + $0x140] sm:$0xff]
                  %2083 = vst [vmem:[%s2001 + $0x140] sm:$0xff] %v2082
                  %v2084 = vld [vmem:[%s2000 + $0x148] sm:$0xff]
                  %2085 = vst [vmem:[%s2001 + $0x148] sm:$0xff] %v2084
                  %v2086 = vld [vmem:[%s2000 + $0x150] sm:$0xff]
                  %2087 = vst [vmem:[%s2001 + $0x150] sm:$0xff] %v2086
                  %v2088 = vld [vmem:[%s2000 + $0x158] sm:$0xff]
                  %2089 = vst [vmem:[%s2001 + $0x158] sm:$0xff] %v2088
                  %v2090 = vld [vmem:[%s2000 + $0x160] sm:$0xff]
                  %2091 = vst [vmem:[%s2001 + $0x160] sm:$0xff] %v2090
                  %v2092 = vld [vmem:[%s2000 + $0x168] sm:$0xff]
                  %2093 = vst [vmem:[%s2001 + $0x168] sm:$0xff] %v2092
                  %v2094 = vld [vmem:[%s2000 + $0x170] sm:$0xff]
                  %2095 = vst [vmem:[%s2001 + $0x170] sm:$0xff] %v2094
                  %v2096 = vld [vmem:[%s2000 + $0x178] sm:$0xff]
                  %2097 = vst [vmem:[%s2001 + $0x178] sm:$0xff] %v2096
                  %v2098 = vld [vmem:[%s2000 + $0x180] sm:$0xff]
                  %2099 = vst [vmem:[%s2001 + $0x180] sm:$0xff] %v2098
                  %v2100 = vld [vmem:[%s2000 + $0x188] sm:$0xff]
                  %2101 = vst [vmem:[%s2001 + $0x188] sm:$0xff] %v2100
                  %v2102 = vld [vmem:[%s2000 + $0x190] sm:$0xff]
                  %2103 = vst [vmem:[%s2001 + $0x190] sm:$0xff] %v2102
                  %v2104 = vld [vmem:[%s2000 + $0x198] sm:$0xff]
                  %2105 = vst [vmem:[%s2001 + $0x198] sm:$0xff] %v2104
                  %v2106 = vld [vmem:[%s2000 + $0x1a0] sm:$0xff]
                  %2107 = vst [vmem:[%s2001 + $0x1a0] sm:$0xff] %v2106
                  %v2108 = vld [vmem:[%s2000 + $0x1a8] sm:$0xff]
                  %2109 = vst [vmem:[%s2001 + $0x1a8] sm:$0xff] %v2108
                  %v2110 = vld [vmem:[%s2000 + $0x1b0] sm:$0xff]
                  %2111 = vst [vmem:[%s2001 + $0x1b0] sm:$0xff] %v2110
                  %v2112 = vld [vmem:[%s2000 + $0x1b8] sm:$0xff]
                  %2113 = vst [vmem:[%s2001 + $0x1b8] sm:$0xff] %v2112
                  %v2114 = vld [vmem:[%s2000 + $0x1c0] sm:$0xff]
                  %2115 = vst [vmem:[%s2001 + $0x1c0] sm:$0xff] %v2114
                  %v2116 = vld [vmem:[%s2000 + $0x1c8] sm:$0xff]
                  %2117 = vst [vmem:[%s2001 + $0x1c8] sm:$0xff] %v2116
                  %v2118 = vld [vmem:[%s2000 + $0x1d0] sm:$0xff]
                  %2119 = vst [vmem:[%s2001 + $0x1d0] sm:$0xff] %v2118
                  %v2120 = vld [vmem:[%s2000 + $0x1d8] sm:$0xff]
                  %2121 = vst [vmem:[%s2001 + $0x1d8] sm:$0xff] %v2120
                  %v2122 = vld [vmem:[%s2000 + $0x1e0] sm:$0xff]
                  %2123 = vst [vmem:[%s2001 + $0x1e0] sm:$0xff] %v2122
                  %v2124 = vld [vmem:[%s2000 + $0x1e8] sm:$0xff]
                  %2125 = vst [vmem:[%s2001 + $0x1e8] sm:$0xff] %v2124
                  %v2126 = vld [vmem:[%s2000 + $0x1f0] sm:$0xff]
                  %2127 = vst [vmem:[%s2001 + $0x1f0] sm:$0xff] %v2126
                  %v2128 = vld [vmem:[%s2000 + $0x1f8] sm:$0xff]
                  %2129 = vst [vmem:[%s2001 + $0x1f8] sm:$0xff] %v2128
                  %s2130 = sadd.s32 1, %s1999
                  %p2131 = scmp.ge.s32.totalorder %s2130, %s1992
                  %s2132 = scalar_select %p2131, 0, %s2130
                  %s2133 = smul.u32 %s2132, 512
                  %s2134 = smul.u32 %s2132, 512
                  %s2135 = scalar_lea.vmem %s1800, %s2133 [#allocation2]
                  %s2136 = scalar_lea.vmem %s1811, %s2134
                $region71: #{pupilnet_v2_forward.9} parent=65 // loop_footer
                  %s1996 = sadd.s32 %s1994, 1
                $region72: #{pupilnet_v2_forward.9} parent=65 // loop_footer_branch
                  %1993 = sbr.rel target = $region68
                $region73: #{pupilnet_v2_forward.9} parent=65 // loop_exit
                  _
                %s2137 = sshrl.u32 %s1807, 6
                %s2138 = sand.u32 %s1807, 63
                %s2139 = smul.u32 %s2137, 64
                %s2140 = smul.u32 8, %s2139
                %s2141 = scalar_lea.vmem %s1800, %s2140 [#allocation2]
                %s2142 = smul.u32 8, %s2139
                %s2143 = scalar_lea.vmem %s1811, %s2142
                // While loop
                $region74: #{pupilnet_v2_forward.9} parent=65 // loop_pre_header
                  _
                $region75: #{pupilnet_v2_forward.9} parent=65 // loop_header
                  %s2145 = sphi 0, %s2147
                  %p2146 = scmp.ge.s32.totalorder %s2145, %s2138
                  %s2150 = sphi 0, %s2157
                  %s2151 = sphi %s2141, %s2160
                  %s2152 = sphi %s2143, %s2161
                $region76: #{pupilnet_v2_forward.9} parent=65 // loop_header_branch
                  %2149 = sbr.rel (%p2146) target = $region80
                $region77: #{pupilnet_v2_forward.9} parent=65 // loop_body
                  %v2153 = vld [vmem:[%s2151] sm:$0xff]
                  %2154 = vst [vmem:[%s2152] sm:$0xff] %v2153
                  %s2155 = sadd.s32 1, %s2150
                  %p2156 = scmp.ge.s32.totalorder %s2155, %s2138
                  %s2157 = scalar_select %p2156, 0, %s2155
                  %s2158 = smul.u32 %s2157, 8
                  %s2159 = smul.u32 %s2157, 8
                  %s2160 = scalar_lea.vmem %s2141, %s2158 [#allocation2]
                  %s2161 = scalar_lea.vmem %s2143, %s2159
                $region78: #{pupilnet_v2_forward.9} parent=65 // loop_footer
                  %s2147 = sadd.s32 %s2145, 1
                $region79: #{pupilnet_v2_forward.9} parent=65 // loop_footer_branch
                  %2144 = sbr.rel target = $region75
                $region80: #{pupilnet_v2_forward.9} parent=65 // loop_exit
                  _
              $region66: #{pupilnet_v2_forward.9} parent=43 // pred_fallthru
                _
              // Predicated region
              $region81: #{pupilnet_v2_forward.9} parent=43 // pred_check
                _
              $region82: #{pupilnet_v2_forward.9} parent=43 // pred_check_branch
                %2163 = sbr.rel target = $region84
              $region83: #{pupilnet_v2_forward.9} parent=43 // pred_region
                _
              $region84: #{pupilnet_v2_forward.9} parent=43 // pred_fallthru
                _
            $region44: #{pupilnet_v2_forward.9} parent=39 // pred_fallthru
              _
            // Predicated region
            $region45: #{pupilnet_v2_forward.9} parent=39 // pred_check
              _
            $region46: #{pupilnet_v2_forward.9} parent=39 // pred_check_branch
              %1818 = sbr.rel target = $region48
            $region47: #{pupilnet_v2_forward.9} parent=39 // pred_region
              %s1820 = sshrl.u32 %s1807, 6
              // While loop
              $region49: #{pupilnet_v2_forward.9} parent=47 // loop_pre_header
                _
              $region50: #{pupilnet_v2_forward.9} parent=47 // loop_header
                %s1822 = sphi 0, %s1824
                %p1823 = scmp.ge.s32.totalorder %s1822, %s1820
                %s1827 = sphi 0, %s1960
                %s1828 = sphi %s1800, %s1963
                %s1829 = sphi %s1811, %s1964
              $region51: #{pupilnet_v2_forward.9} parent=47 // loop_header_branch
                %1826 = sbr.rel (%p1823) target = $region55
              $region52: #{pupilnet_v2_forward.9} parent=47 // loop_body
                %v1830 = vld [vmem:[%s1828] sm:$0xff]
                %1831 = vst [vmem:[%s1829] sm:$0xff] %v1830
                %v1832 = vld [vmem:[%s1828 + $0x8] sm:$0xff]
                %1833 = vst [vmem:[%s1829 + $0x8] sm:$0xff] %v1832
                %v1834 = vld [vmem:[%s1828 + $0x10] sm:$0xff]
                %1835 = vst [vmem:[%s1829 + $0x10] sm:$0xff] %v1834
                %v1836 = vld [vmem:[%s1828 + $0x18] sm:$0xff]
                %1837 = vst [vmem:[%s1829 + $0x18] sm:$0xff] %v1836
                %v1838 = vld [vmem:[%s1828 + $0x20] sm:$0xff]
                %1839 = vst [vmem:[%s1829 + $0x20] sm:$0xff] %v1838
                %v1840 = vld [vmem:[%s1828 + $0x28] sm:$0xff]
                %1841 = vst [vmem:[%s1829 + $0x28] sm:$0xff] %v1840
                %v1842 = vld [vmem:[%s1828 + $0x30] sm:$0xff]
                %1843 = vst [vmem:[%s1829 + $0x30] sm:$0xff] %v1842
                %v1844 = vld [vmem:[%s1828 + $0x38] sm:$0xff]
                %1845 = vst [vmem:[%s1829 + $0x38] sm:$0xff] %v1844
                %v1846 = vld [vmem:[%s1828 + $0x40] sm:$0xff]
                %1847 = vst [vmem:[%s1829 + $0x40] sm:$0xff] %v1846
                %v1848 = vld [vmem:[%s1828 + $0x48] sm:$0xff]
                %1849 = vst [vmem:[%s1829 + $0x48] sm:$0xff] %v1848
                %v1850 = vld [vmem:[%s1828 + $0x50] sm:$0xff]
                %1851 = vst [vmem:[%s1829 + $0x50] sm:$0xff] %v1850
                %v1852 = vld [vmem:[%s1828 + $0x58] sm:$0xff]
                %1853 = vst [vmem:[%s1829 + $0x58] sm:$0xff] %v1852
                %v1854 = vld [vmem:[%s1828 + $0x60] sm:$0xff]
                %1855 = vst [vmem:[%s1829 + $0x60] sm:$0xff] %v1854
                %v1856 = vld [vmem:[%s1828 + $0x68] sm:$0xff]
                %1857 = vst [vmem:[%s1829 + $0x68] sm:$0xff] %v1856
                %v1858 = vld [vmem:[%s1828 + $0x70] sm:$0xff]
                %1859 = vst [vmem:[%s1829 + $0x70] sm:$0xff] %v1858
                %v1860 = vld [vmem:[%s1828 + $0x78] sm:$0xff]
                %1861 = vst [vmem:[%s1829 + $0x78] sm:$0xff] %v1860
                %v1862 = vld [vmem:[%s1828 + $0x80] sm:$0xff]
                %1863 = vst [vmem:[%s1829 + $0x80] sm:$0xff] %v1862
                %v1864 = vld [vmem:[%s1828 + $0x88] sm:$0xff]
                %1865 = vst [vmem:[%s1829 + $0x88] sm:$0xff] %v1864
                %v1866 = vld [vmem:[%s1828 + $0x90] sm:$0xff]
                %1867 = vst [vmem:[%s1829 + $0x90] sm:$0xff] %v1866
                %v1868 = vld [vmem:[%s1828 + $0x98] sm:$0xff]
                %1869 = vst [vmem:[%s1829 + $0x98] sm:$0xff] %v1868
                %v1870 = vld [vmem:[%s1828 + $0xa0] sm:$0xff]
                %1871 = vst [vmem:[%s1829 + $0xa0] sm:$0xff] %v1870
                %v1872 = vld [vmem:[%s1828 + $0xa8] sm:$0xff]
                %1873 = vst [vmem:[%s1829 + $0xa8] sm:$0xff] %v1872
                %v1874 = vld [vmem:[%s1828 + $0xb0] sm:$0xff]
                %1875 = vst [vmem:[%s1829 + $0xb0] sm:$0xff] %v1874
                %v1876 = vld [vmem:[%s1828 + $0xb8] sm:$0xff]
                %1877 = vst [vmem:[%s1829 + $0xb8] sm:$0xff] %v1876
                %v1878 = vld [vmem:[%s1828 + $0xc0] sm:$0xff]
                %1879 = vst [vmem:[%s1829 + $0xc0] sm:$0xff] %v1878
                %v1880 = vld [vmem:[%s1828 + $0xc8] sm:$0xff]
                %1881 = vst [vmem:[%s1829 + $0xc8] sm:$0xff] %v1880
                %v1882 = vld [vmem:[%s1828 + $0xd0] sm:$0xff]
                %1883 = vst [vmem:[%s1829 + $0xd0] sm:$0xff] %v1882
                %v1884 = vld [vmem:[%s1828 + $0xd8] sm:$0xff]
                %1885 = vst [vmem:[%s1829 + $0xd8] sm:$0xff] %v1884
                %v1886 = vld [vmem:[%s1828 + $0xe0] sm:$0xff]
                %1887 = vst [vmem:[%s1829 + $0xe0] sm:$0xff] %v1886
                %v1888 = vld [vmem:[%s1828 + $0xe8] sm:$0xff]
                %1889 = vst [vmem:[%s1829 + $0xe8] sm:$0xff] %v1888
                %v1890 = vld [vmem:[%s1828 + $0xf0] sm:$0xff]
                %1891 = vst [vmem:[%s1829 + $0xf0] sm:$0xff] %v1890
                %v1892 = vld [vmem:[%s1828 + $0xf8] sm:$0xff]
                %1893 = vst [vmem:[%s1829 + $0xf8] sm:$0xff] %v1892
                %v1894 = vld [vmem:[%s1828 + $0x100] sm:$0xff]
                %1895 = vst [vmem:[%s1829 + $0x100] sm:$0xff] %v1894
                %v1896 = vld [vmem:[%s1828 + $0x108] sm:$0xff]
                %1897 = vst [vmem:[%s1829 + $0x108] sm:$0xff] %v1896
                %v1898 = vld [vmem:[%s1828 + $0x110] sm:$0xff]
                %1899 = vst [vmem:[%s1829 + $0x110] sm:$0xff] %v1898
                %v1900 = vld [vmem:[%s1828 + $0x118] sm:$0xff]
                %1901 = vst [vmem:[%s1829 + $0x118] sm:$0xff] %v1900
                %v1902 = vld [vmem:[%s1828 + $0x120] sm:$0xff]
                %1903 = vst [vmem:[%s1829 + $0x120] sm:$0xff] %v1902
                %v1904 = vld [vmem:[%s1828 + $0x128] sm:$0xff]
                %1905 = vst [vmem:[%s1829 + $0x128] sm:$0xff] %v1904
                %v1906 = vld [vmem:[%s1828 + $0x130] sm:$0xff]
                %1907 = vst [vmem:[%s1829 + $0x130] sm:$0xff] %v1906
                %v1908 = vld [vmem:[%s1828 + $0x138] sm:$0xff]
                %1909 = vst [vmem:[%s1829 + $0x138] sm:$0xff] %v1908
                %v1910 = vld [vmem:[%s1828 + $0x140] sm:$0xff]
                %1911 = vst [vmem:[%s1829 + $0x140] sm:$0xff] %v1910
                %v1912 = vld [vmem:[%s1828 + $0x148] sm:$0xff]
                %1913 = vst [vmem:[%s1829 + $0x148] sm:$0xff] %v1912
                %v1914 = vld [vmem:[%s1828 + $0x150] sm:$0xff]
                %1915 = vst [vmem:[%s1829 + $0x150] sm:$0xff] %v1914
                %v1916 = vld [vmem:[%s1828 + $0x158] sm:$0xff]
                %1917 = vst [vmem:[%s1829 + $0x158] sm:$0xff] %v1916
                %v1918 = vld [vmem:[%s1828 + $0x160] sm:$0xff]
                %1919 = vst [vmem:[%s1829 + $0x160] sm:$0xff] %v1918
                %v1920 = vld [vmem:[%s1828 + $0x168] sm:$0xff]
                %1921 = vst [vmem:[%s1829 + $0x168] sm:$0xff] %v1920
                %v1922 = vld [vmem:[%s1828 + $0x170] sm:$0xff]
                %1923 = vst [vmem:[%s1829 + $0x170] sm:$0xff] %v1922
                %v1924 = vld [vmem:[%s1828 + $0x178] sm:$0xff]
                %1925 = vst [vmem:[%s1829 + $0x178] sm:$0xff] %v1924
                %v1926 = vld [vmem:[%s1828 + $0x180] sm:$0xff]
                %1927 = vst [vmem:[%s1829 + $0x180] sm:$0xff] %v1926
                %v1928 = vld [vmem:[%s1828 + $0x188] sm:$0xff]
                %1929 = vst [vmem:[%s1829 + $0x188] sm:$0xff] %v1928
                %v1930 = vld [vmem:[%s1828 + $0x190] sm:$0xff]
                %1931 = vst [vmem:[%s1829 + $0x190] sm:$0xff] %v1930
                %v1932 = vld [vmem:[%s1828 + $0x198] sm:$0xff]
                %1933 = vst [vmem:[%s1829 + $0x198] sm:$0xff] %v1932
                %v1934 = vld [vmem:[%s1828 + $0x1a0] sm:$0xff]
                %1935 = vst [vmem:[%s1829 + $0x1a0] sm:$0xff] %v1934
                %v1936 = vld [vmem:[%s1828 + $0x1a8] sm:$0xff]
                %1937 = vst [vmem:[%s1829 + $0x1a8] sm:$0xff] %v1936
                %v1938 = vld [vmem:[%s1828 + $0x1b0] sm:$0xff]
                %1939 = vst [vmem:[%s1829 + $0x1b0] sm:$0xff] %v1938
                %v1940 = vld [vmem:[%s1828 + $0x1b8] sm:$0xff]
                %1941 = vst [vmem:[%s1829 + $0x1b8] sm:$0xff] %v1940
                %v1942 = vld [vmem:[%s1828 + $0x1c0] sm:$0xff]
                %1943 = vst [vmem:[%s1829 + $0x1c0] sm:$0xff] %v1942
                %v1944 = vld [vmem:[%s1828 + $0x1c8] sm:$0xff]
                %1945 = vst [vmem:[%s1829 + $0x1c8] sm:$0xff] %v1944
                %v1946 = vld [vmem:[%s1828 + $0x1d0] sm:$0xff]
                %1947 = vst [vmem:[%s1829 + $0x1d0] sm:$0xff] %v1946
                %v1948 = vld [vmem:[%s1828 + $0x1d8] sm:$0xff]
                %1949 = vst [vmem:[%s1829 + $0x1d8] sm:$0xff] %v1948
                %v1950 = vld [vmem:[%s1828 + $0x1e0] sm:$0xff]
                %1951 = vst [vmem:[%s1829 + $0x1e0] sm:$0xff] %v1950
                %v1952 = vld [vmem:[%s1828 + $0x1e8] sm:$0xff]
                %1953 = vst [vmem:[%s1829 + $0x1e8] sm:$0xff] %v1952
                %v1954 = vld [vmem:[%s1828 + $0x1f0] sm:$0xff]
                %1955 = vst [vmem:[%s1829 + $0x1f0] sm:$0xff] %v1954
                %v1956 = vld [vmem:[%s1828 + $0x1f8] sm:$0xff]
                %1957 = vst [vmem:[%s1829 + $0x1f8] sm:$0xff] %v1956
                %s1958 = sadd.s32 1, %s1827
                %p1959 = scmp.ge.s32.totalorder %s1958, %s1820
                %s1960 = scalar_select %p1959, 0, %s1958
                %s1961 = smul.u32 %s1960, 512
                %s1962 = smul.u32 %s1960, 512
                %s1963 = scalar_lea.vmem %s1800, %s1961 [#allocation2]
                %s1964 = scalar_lea.vmem %s1811, %s1962
              $region53: #{pupilnet_v2_forward.9} parent=47 // loop_footer
                %s1824 = sadd.s32 %s1822, 1
              $region54: #{pupilnet_v2_forward.9} parent=47 // loop_footer_branch
                %1821 = sbr.rel target = $region50
              $region55: #{pupilnet_v2_forward.9} parent=47 // loop_exit
                _
              %s1965 = sshrl.u32 %s1807, 6
              %s1966 = sand.u32 %s1807, 63
              %s1967 = smul.u32 %s1965, 64
              %s1968 = smul.u32 8, %s1967
              %s1969 = scalar_lea.vmem %s1800, %s1968 [#allocation2]
              %s1970 = smul.u32 8, %s1967
              %s1971 = scalar_lea.vmem %s1811, %s1970
              // While loop
              $region56: #{pupilnet_v2_forward.9} parent=47 // loop_pre_header
                _
              $region57: #{pupilnet_v2_forward.9} parent=47 // loop_header
                %s1973 = sphi 0, %s1975
                %p1974 = scmp.ge.s32.totalorder %s1973, %s1966
                %s1978 = sphi 0, %s1985
                %s1979 = sphi %s1969, %s1988
                %s1980 = sphi %s1971, %s1989
              $region58: #{pupilnet_v2_forward.9} parent=47 // loop_header_branch
                %1977 = sbr.rel (%p1974) target = $region62
              $region59: #{pupilnet_v2_forward.9} parent=47 // loop_body
                %v1981 = vld [vmem:[%s1979] sm:$0xff]
                %1982 = vst [vmem:[%s1980] sm:$0xff] %v1981
                %s1983 = sadd.s32 1, %s1978
                %p1984 = scmp.ge.s32.totalorder %s1983, %s1966
                %s1985 = scalar_select %p1984, 0, %s1983
                %s1986 = smul.u32 %s1985, 8
                %s1987 = smul.u32 %s1985, 8
                %s1988 = scalar_lea.vmem %s1969, %s1986 [#allocation2]
                %s1989 = scalar_lea.vmem %s1971, %s1987
              $region60: #{pupilnet_v2_forward.9} parent=47 // loop_footer
                %s1975 = sadd.s32 %s1973, 1
              $region61: #{pupilnet_v2_forward.9} parent=47 // loop_footer_branch
                %1972 = sbr.rel target = $region57
              $region62: #{pupilnet_v2_forward.9} parent=47 // loop_exit
                _
            $region48: #{pupilnet_v2_forward.9} parent=39 // pred_fallthru
              _
          $region40: #{pupilnet_v2_forward.9} parent=35 // pred_fallthru
            _
          %2164 = vnop
        $region36: #{pupilnet_v2_forward.9} parent=31 // pred_fallthru
          _
      $region32: #{pupilnet_v2_forward.9} parent=5 // pred_fallthru
        _
      %p2165 = scmp.le.s32.totalorder 2, %s9
      // Predicated region
      $region85: #{pupilnet_v2_forward.9} parent=5 // pred_check
        %p2166 = pneg %p2165
      $region86: #{pupilnet_v2_forward.9} parent=5 // pred_check_branch
        %2168 = sbr.rel (%p2166) target = $region88
      $region87: #{pupilnet_v2_forward.9} parent=5 // pred_region
        %s2169 = ssub.s32 %s9, 2
        // Predicated region
        $region89: #{pupilnet_v2_forward.9} parent=87 // pred_check
          %p2170 = pneg %p106
        $region90: #{pupilnet_v2_forward.9} parent=87 // pred_check_branch
          %2172 = sbr.rel (%p2170) target = $region92
        $region91: #{pupilnet_v2_forward.9} parent=87 // pred_region
          %s2173 = sand.u32 %s91, 1
          %s2174 = sand.u32 %s91, 1
          %s2175 = smul.addr %s2174, 912
          %s2176 = scalar_lea.vmem [#allocation2], %s2175
        $region92: #{pupilnet_v2_forward.9} parent=87 // pred_fallthru
          _
      $region88: #{pupilnet_v2_forward.9} parent=5 // pred_fallthru
        _
    $region6: #{pupilnet_v2_forward.9} parent=1 // loop_footer
      %s13 = sadd.s32 1, %s9
    $region7: #{pupilnet_v2_forward.9} parent=1 // loop_footer_branch
      %8 = sbr.rel target = $region3
    $region8: #{pupilnet_v2_forward.9} parent=1 // loop_exit
      _

// kernel: pupilnet_v2_forward.10
$region0: #{pupilnet_v2_forward.10}
  #allocation0 [shape = 'u32[]', space=smem, size = 0x4, offset = 0x4, fixed_abs, tag = 'smem constant byte address 0x4 - core index']
  #allocation1 [shape = 'u32[144,128]{1,0:T(1,128)}', space=vmem, size = 0x12000, scoped, tag = 'internal scratch']
  %s0 = inlined_call_operand.vmem [shape: bf16[418,288], index: 0, kind: input, shape index: {}]
  %s1 = inlined_call_operand.vmem [shape: bf16[288,64], index: 1, kind: input, shape index: {}]
  %s2 = inlined_call_operand.vmem [shape: f32[1,64], index: 2, kind: input, shape index: {}]
  %s3 = inlined_call_operand.vmem [shape: f32[418,64], index: 3, kind: output, shape index: {}]
  %s4 = sld [smem:[#allocation0]]
  $region93: #{pupilnet_v2_forward.10} parent=0
    _
  %s6 = ssub.s32 1, %s4
  %s7 = scalar_select 0, %s6, %s4
  $region1: #{pupilnet_v2_forward.10} parent=0
    #allocation2 [shape = 'u8[229376]{0}', space=vmem, size = 0x38000, scoped, tag = 'output window, operand 0']
    loop: start=0, step=1, limit=4
    $region2: #{pupilnet_v2_forward.10} parent=1 // loop_pre_header
      _
    $region3: #{pupilnet_v2_forward.10} parent=1 // loop_header
      %s9 = sphi 0, %s13
      %p10 = scmp.ge.s32.totalorder %s9, 4
      %s19 = sphi 0, %s21
      %s22 = sphi 0, %s19
      %s23 = sphi 0, %s22
      %s39 = sphi 0, %s23
      %s43 = sphi 0, %s43
      %s45 = sphi 0, %s43
      %s46 = sphi 0, %s45
      %s60 = sphi 0, %s46
      %s64 = sphi 0, %s64
      %s66 = sphi 0, %s64
      %s67 = sphi 0, %s66
      %s81 = sphi 0, %s67
      %s87 = sphi 0, %s89
      %s90 = sphi 0, %s87
      %s91 = sphi 0, %s90
      %s107 = sphi 0, %s91
    $region4: #{pupilnet_v2_forward.10} parent=1 // loop_header_branch
      %12 = sbr.rel (%p10) target = $region8
    $region5: #{pupilnet_v2_forward.10} parent=1 // loop_body
      %s14 = ssub.s32 %s9, 1
      %s15 = ssub.s32 %s9, 2
      %s16 = sadd.s32 %s9, 1
      %s17 = ssub.s32 %s9, %s16
      %p18 = scmp.eq.s32.totalorder %s17, 0
      %s20 = sadd.s32 %s19, 1
      %s21 = scalar_select %p18, %s19, %s20
      %p24 = pneg %p18
      %p25 = scmp.eq.s32.totalorder %s9, 1
      %p26 = por %p24, %p25
      %p27 = scmp.ne.s32.totalorder %s19, %s22
      %p28 = scmp.eq.s32.totalorder %s9, 0
      %p29 = por %p27, %p28
      %p30 = scmp.ne.s32.totalorder %s19, %s22
      %p31 = scmp.eq.s32.totalorder %s14, 1
      %p32 = por %p30, %p31
      %p33 = scmp.ne.s32.totalorder %s22, %s23
      %p34 = scmp.eq.s32.totalorder %s14, 0
      %p35 = por %p33, %p34
      %p36 = scmp.ne.s32.totalorder %s22, %s23
      %p37 = scmp.eq.s32.totalorder %s15, 1
      %p38 = por %p36, %p37
      %p40 = scmp.ne.s32.totalorder %s23, %s39
      %p41 = scmp.eq.s32.totalorder %s15, 0
      %p42 = por %p40, %p41
      %s44 = sadd.s32 %s43, 1
      %p47 = scmp.eq.s32.totalorder %s9, 1
      %p48 = scmp.ne.s32.totalorder %s43, %s45
      %p49 = scmp.eq.s32.totalorder %s9, 0
      %p50 = por %p48, %p49
      %p51 = scmp.ne.s32.totalorder %s43, %s45
      %p52 = scmp.eq.s32.totalorder %s14, 1
      %p53 = por %p51, %p52
      %p54 = scmp.ne.s32.totalorder %s45, %s46
      %p55 = scmp.eq.s32.totalorder %s14, 0
      %p56 = por %p54, %p55
      %p57 = scmp.ne.s32.totalorder %s45, %s46
      %p58 = scmp.eq.s32.totalorder %s15, 1
      %p59 = por %p57, %p58
      %p61 = scmp.ne.s32.totalorder %s46, %s60
      %p62 = scmp.eq.s32.totalorder %s15, 0
      %p63 = por %p61, %p62
      %s65 = sadd.s32 %s64, 1
      %p68 = scmp.eq.s32.totalorder %s9, 1
      %p69 = scmp.ne.s32.totalorder %s64, %s66
      %p70 = scmp.eq.s32.totalorder %s9, 0
      %p71 = por %p69, %p70
      %p72 = scmp.ne.s32.totalorder %s64, %s66
      %p73 = scmp.eq.s32.totalorder %s14, 1
      %p74 = por %p72, %p73
      %p75 = scmp.ne.s32.totalorder %s66, %s67
      %p76 = scmp.eq.s32.totalorder %s14, 0
      %p77 = por %p75, %p76
      %p78 = scmp.ne.s32.totalorder %s66, %s67
      %p79 = scmp.eq.s32.totalorder %s15, 1
      %p80 = por %p78, %p79
      %p82 = scmp.ne.s32.totalorder %s67, %s81
      %p83 = scmp.eq.s32.totalorder %s15, 0
      %p84 = por %p82, %p83
      %s85 = ssub.s32 %s9, %s16
      %p86 = scmp.eq.s32.totalorder %s85, 0
      %s88 = sadd.s32 %s87, 1
      %s89 = scalar_select %p86, %s87, %s88
      %p92 = pneg %p86
      %p93 = scmp.eq.s32.totalorder %s9, 1
      %p94 = por %p92, %p93
      %p95 = scmp.ne.s32.totalorder %s87, %s90
      %p96 = scmp.eq.s32.totalorder %s9, 0
      %p97 = por %p95, %p96
      %p98 = scmp.ne.s32.totalorder %s87, %s90
      %p99 = scmp.eq.s32.totalorder %s14, 1
      %p100 = por %p98, %p99
      %p101 = scmp.ne.s32.totalorder %s90, %s91
      %p102 = scmp.eq.s32.totalorder %s14, 0
      %p103 = por %p101, %p102
      %p104 = scmp.ne.s32.totalorder %s90, %s91
      %p105 = scmp.eq.s32.totalorder %s15, 1
      %p106 = por %p104, %p105
      %p108 = scmp.ne.s32.totalorder %s91, %s107
      %p109 = scmp.eq.s32.totalorder %s15, 0
      %p110 = por %p108, %p109
      %p111 = scmp.le.s32.totalorder 1, %s9
      %p112 = scmp.lt.s32.totalorder %s9, 3
      %p113 = pnand %p111, %p112
      %p114 = pneg %p113
      // Predicated region
      $region9: #{pupilnet_v2_forward.10} parent=5 // pred_check
        _
      $region10: #{pupilnet_v2_forward.10} parent=5 // pred_check_branch
        %116 = sbr.rel (%p113) target = $region12
      $region11: #{pupilnet_v2_forward.10} parent=5 // pred_region
        %s117 = ssub.s32 %s9, 1
        // Predicated region
        $region13: #{pupilnet_v2_forward.10} parent=11 // pred_check
          %p118 = pneg %p56
        $region14: #{pupilnet_v2_forward.10} parent=11 // pred_check_branch
          %120 = sbr.rel (%p118) target = $region16
        $region15: #{pupilnet_v2_forward.10} parent=11 // pred_region
          _
        $region16: #{pupilnet_v2_forward.10} parent=11 // pred_fallthru
          _
        // Predicated region
        $region17: #{pupilnet_v2_forward.10} parent=11 // pred_check
          %p121 = pneg %p77
        $region18: #{pupilnet_v2_forward.10} parent=11 // pred_check_branch
          %123 = sbr.rel (%p121) target = $region20
        $region19: #{pupilnet_v2_forward.10} parent=11 // pred_region
          _
        $region20: #{pupilnet_v2_forward.10} parent=11 // pred_fallthru
          _
      $region12: #{pupilnet_v2_forward.10} parent=5 // pred_fallthru
        _
      %p124 = scmp.lt.s32.totalorder %s9, 2
      // Predicated region
      $region21: #{pupilnet_v2_forward.10} parent=5 // pred_check
        %p125 = pneg %p124
      $region22: #{pupilnet_v2_forward.10} parent=5 // pred_check_branch
        %127 = sbr.rel (%p125) target = $region24
      $region23: #{pupilnet_v2_forward.10} parent=5 // pred_region
        // Predicated region
        $region25: #{pupilnet_v2_forward.10} parent=23 // pred_check
          %p128 = pneg %p29
        $region26: #{pupilnet_v2_forward.10} parent=23 // pred_check_branch
          %130 = sbr.rel (%p128) target = $region28
        $region27: #{pupilnet_v2_forward.10} parent=23 // pred_region
          %s131 = smul.u32 28, %s9
          %s132 = ssub.s32 53, %s131
          %p133 = scmp.lt.s32.totalorder %s132, 28
          %s134 = scalar_select %p133, %s132, 28
          %s135 = smul.u32 64, %s134
          %s136 = smul.u32 %s135, 3
          %p137 = scmp.lt.s32.totalorder %s131, 52
          %s138 = scalar_select %p137, %s131, 52
          %s139 = smul.addr %s138, 3
          %s140 = smul.addr %s139, 4
          %s141 = scalar_lea.vmem %s0, %s140
          %s142 = smul.u32 28, %s9
          %s143 = ssub.s32 53, %s142
          %p144 = scmp.lt.s32.totalorder %s143, 28
          %s145 = scalar_select %p144, %s143, 28
          %s146 = smul.u32 64, %s145
          %s147 = smul.u32 %s146, 3
        $region28: #{pupilnet_v2_forward.10} parent=23 // pred_fallthru
          _
      $region24: #{pupilnet_v2_forward.10} parent=5 // pred_fallthru
        _
      %p148 = scmp.le.s32.totalorder 1, %s9
      %p149 = scmp.lt.s32.totalorder %s9, 3
      %p150 = pnand %p148, %p149
      %p151 = pneg %p150
      // Predicated region
      $region29: #{pupilnet_v2_forward.10} parent=5 // pred_check
        _
      $region30: #{pupilnet_v2_forward.10} parent=5 // pred_check_branch
        %153 = sbr.rel (%p150) target = $region32
      $region31: #{pupilnet_v2_forward.10} parent=5 // pred_region
        %s154 = ssub.s32 %s9, 1
        %s155 = smul.u32 28, %s14
        %s156 = ssub.s32 53, %s155
        %p157 = scmp.lt.s32.totalorder %s156, 28
        %s158 = scalar_select %p157, %s156, 28
        %s159 = smul.u32 64, %s158
        %s160 = smul.u32 %s159, 3
        %p161 = scmp.lt.s32.totalorder %s155, 52
        %s162 = scalar_select %p161, %s155, 52
        %s163 = smul.addr %s162, 3
        %s164 = smul.addr %s163, 4
        %s165 = scalar_lea.vmem %s0, %s164
        %p166 = pneg %p35
        %p167 = pneg %p32
        %p168 = pneg %p56
        %p169 = pneg %p53
        %p170 = pneg %p77
        %p171 = pneg %p74
        %p172 = pneg %p103
        %p173 = pneg %p100
        %s174 = sand.u32 %s90, 1
        %s175 = sand.u32 %s90, 1
        %s176 = smul.addr %s175, 224
        %s177 = scalar_lea.vmem [#allocation2], %s176
        %s178 = smul.u32 28, %s14
        %s179 = ssub.s32 53, %s178
        %p180 = scmp.lt.s32.totalorder %s179, 28
        %s181 = scalar_select %p180, %s179, 28
        %s182 = smul.u32 64, %s181
        %s183 = smul.u32 %s182, 3
        %p184 = scmp.lt.s32.totalorder %s178, 52
        %s185 = scalar_select %p184, %s178, 52
        %s186 = smul.addr %s185, 3
        %s187 = smul.addr %s186, 4
        %s188 = scalar_lea.vmem %s0, %s187
        %s189 = smul.u32 28, %s14
        %s190 = ssub.s32 53, %s189
        %p191 = scmp.lt.s32.totalorder %s190, 28
        %s192 = scalar_select %p191, %s190, 28
        %s193 = smul.u32 64, %s192
        %s194 = smul.u32 %s193, 3
        %s195 = smul.u32 28, %s14
        %s196 = ssub.s32 53, %s195
        %p197 = scmp.lt.s32.totalorder %s196, 28
        %s198 = scalar_select %p197, %s196, 28
        %s199 = smul.u32 128, %s198
        %v201 = vld [vmem:[%s188] sm:$0xff]
        %v202 = vld [vmem:[%s188 + $0x8] sm:$0xf]
        %v203 = vld [vmem:[%s188 + $0xc] sm:$0xff]
        %v204 = vld [vmem:[%s188 + $0x14] sm:$0xf]
        %v205 = vld [vmem:[%s188 + $0x18] sm:$0xff]
        %v206 = vld [vmem:[%s188 + $0x20] sm:$0xf]
        %v207 = vld [vmem:[%s188 + $0x24] sm:$0xff]
        %v208 = vld [vmem:[%s188 + $0x2c] sm:$0xf]
        %v209 = vld [vmem:[%s188 + $0x30] sm:$0xff]
        %v210 = vld [vmem:[%s188 + $0x38] sm:$0xf]
        %v211 = vld [vmem:[%s188 + $0x3c] sm:$0xff]
        %v212 = vld [vmem:[%s188 + $0x44] sm:$0xf]
        %v213 = vld [vmem:[%s188 + $0x48] sm:$0xff]
        %v214 = vld [vmem:[%s188 + $0x50] sm:$0xf]
        %v215 = vld [vmem:[%s188 + $0x54] sm:$0xff]
        %v216 = vld [vmem:[%s188 + $0x5c] sm:$0xf]
        %v217 = vld [vmem:[%s188 + $0x60] sm:$0xff]
        %v218 = vld [vmem:[%s188 + $0x68] sm:$0xf]
        %v219 = vld [vmem:[%s188 + $0x6c] sm:$0xff]
        %v220 = vld [vmem:[%s188 + $0x74] sm:$0xf]
        %v221 = vld [vmem:[%s188 + $0x78] sm:$0xff]
        %v222 = vld [vmem:[%s188 + $0x80] sm:$0xf]
        %v223 = vld [vmem:[%s188 + $0x84] sm:$0xff]
        %v224 = vld [vmem:[%s188 + $0x8c] sm:$0xf]
        %v225 = vld [vmem:[%s188 + $0x90] sm:$0xff]
        %v226 = vld [vmem:[%s188 + $0x98] sm:$0xf]
        %v227 = vld [vmem:[%s188 + $0x9c] sm:$0xff]
        %v228 = vld [vmem:[%s188 + $0xa4] sm:$0xf]
        %v229 = vld [vmem:[%s188 + $0xa8] sm:$0xff]
        %v230 = vld [vmem:[%s188 + $0xb0] sm:$0xf]
        %v231 = vld [vmem:[%s188 + $0xb4] sm:$0xff]
        %v232 = vld [vmem:[%s188 + $0xbc] sm:$0xf]
        %v233 = vld [vmem:[%s188 + $0xc0] sm:$0xff]
        %v234 = vld [vmem:[%s188 + $0xc8] sm:$0xf]
        %v235 = vld [vmem:[%s188 + $0xcc] sm:$0xff]
        %v236 = vld [vmem:[%s188 + $0xd4] sm:$0xf]
        %v237 = vld [vmem:[%s188 + $0xd8] sm:$0xff]
        %v238 = vld [vmem:[%s188 + $0xe0] sm:$0xf]
        %v239 = vld [vmem:[%s188 + $0xe4] sm:$0xff]
        %v240 = vld [vmem:[%s188 + $0xec] sm:$0xf]
        %v241 = vld [vmem:[%s188 + $0xf0] sm:$0xff]
        %v242 = vld [vmem:[%s188 + $0xf8] sm:$0xf]
        %v243 = vld [vmem:[%s188 + $0xfc] sm:$0xff]
        %v244 = vld [vmem:[%s188 + $0x104] sm:$0xf]
        %v245 = vld [vmem:[%s188 + $0x108] sm:$0xff]
        %v246 = vld [vmem:[%s188 + $0x110] sm:$0xf]
        %v247 = vld [vmem:[%s188 + $0x114] sm:$0xff]
        %v248 = vld [vmem:[%s188 + $0x11c] sm:$0xf]
        %v249 = vld [vmem:[%s188 + $0x120] sm:$0xff]
        %v250 = vld [vmem:[%s188 + $0x128] sm:$0xf]
        %v251 = vld [vmem:[%s188 + $0x12c] sm:$0xff]
        %v252 = vld [vmem:[%s188 + $0x134] sm:$0xf]
        %v253 = vld [vmem:[%s188 + $0x138] sm:$0xff]
        %v254 = vld [vmem:[%s188 + $0x140] sm:$0xf]
        %v255 = vld [vmem:[%s188 + $0x144] sm:$0xff]
        %v256 = vld [vmem:[%s188 + $0x14c] sm:$0xf]
        %v257 = vld [vmem:[%s1] sm:$0xf]
        %v258 = vld [vmem:[%s1 + $0x4] sm:$0xf]
        %v259 = vld [vmem:[%s1 + $0x8] sm:$0xf]
        %v260 = vld [vmem:[%s1 + $0xc] sm:$0xf]
        %v261 = vld [vmem:[%s1 + $0x10] sm:$0xf]
        %v262 = vld [vmem:[%s1 + $0x14] sm:$0xf]
        %v263 = vld [vmem:[%s1 + $0x18] sm:$0xf]
        %v264 = vld [vmem:[%s1 + $0x1c] sm:$0xf]
        %v265 = vld [vmem:[%s1 + $0x20] sm:$0xf]
        %v266 = vld [vmem:[%s1 + $0x24] sm:$0xf]
        %v267 = vld [vmem:[%s1 + $0x28] sm:$0xf]
        %v268 = vld [vmem:[%s1 + $0x2c] sm:$0xf]
        %v269 = vld [vmem:[%s1 + $0x30] sm:$0xf]
        %v270 = vld [vmem:[%s1 + $0x34] sm:$0xf]
        %v271 = vld [vmem:[%s1 + $0x38] sm:$0xf]
        %v272 = vld [vmem:[%s1 + $0x3c] sm:$0xf]
        %v273 = vld [vmem:[%s1 + $0x40] sm:$0xf]
        %v274 = vld [vmem:[%s1 + $0x44] sm:$0xf]
        %v275 = vld [vmem:[%s1 + $0x48] sm:$0xf]
        %v276 = vld [vmem:[%s1 + $0x4c] sm:$0xf]
        %v277 = vld [vmem:[%s1 + $0x50] sm:$0xf]
        %v278 = vld [vmem:[%s1 + $0x54] sm:$0xf]
        %v279 = vld [vmem:[%s1 + $0x58] sm:$0xf]
        %v280 = vld [vmem:[%s1 + $0x5c] sm:$0xf]
        %v281 = vld [vmem:[%s1 + $0x60] sm:$0xf]
        %v282 = vld [vmem:[%s1 + $0x64] sm:$0xf]
        %v283 = vld [vmem:[%s1 + $0x68] sm:$0xf]
        %v284 = vld [vmem:[%s1 + $0x6c] sm:$0xf]
        %v285 = vld [vmem:[%s1 + $0x70] sm:$0xf]
        %v286 = vld [vmem:[%s1 + $0x74] sm:$0xf]
        %v287 = vld [vmem:[%s1 + $0x78] sm:$0xf]
        %v288 = vld [vmem:[%s1 + $0x7c] sm:$0xf]
        %v289 = vld [vmem:[%s1 + $0x80] sm:$0xf]
        %v290 = vld [vmem:[%s1 + $0x84] sm:$0xf]
        %v291 = vld [vmem:[%s1 + $0x88] sm:$0xf]
        %v292 = vld [vmem:[%s1 + $0x8c] sm:$0xf]
        %v293 = vld [vmem:[%s2] sm:$0x1]
        %v295 = vlaneseq
        %v296 = vshrl.u32 %v295, 7
        %v297 = vsub.s32 0, %v296
        %v298 = vrot.slane %v293, %v297
        %v356 = vunpack.c.l.b16 %v201
        %v357 = vunpack.c.h.b16 %v201
        %v358 = vunpack.c.l.b16 %v202
        %v359 = vunpack.c.l.b16 %v203
        %v360 = vunpack.c.h.b16 %v203
        %v361 = vunpack.c.l.b16 %v204
        %v362 = vunpack.c.l.b16 %v205
        %v363 = vunpack.c.h.b16 %v205
        %v364 = vunpack.c.l.b16 %v206
        %v365 = vunpack.c.l.b16 %v207
        %v366 = vunpack.c.h.b16 %v207
        %v367 = vunpack.c.l.b16 %v208
        %v368 = vunpack.c.l.b16 %v209
        %v369 = vunpack.c.h.b16 %v209
        %v370 = vunpack.c.l.b16 %v210
        %v371 = vunpack.c.l.b16 %v211
        %v372 = vunpack.c.h.b16 %v211
        %v373 = vunpack.c.l.b16 %v212
        %v374 = vunpack.c.l.b16 %v213
        %v375 = vunpack.c.h.b16 %v213
        %v376 = vunpack.c.l.b16 %v214
        %v377 = vunpack.c.l.b16 %v215
        %v378 = vunpack.c.h.b16 %v215
        %v379 = vunpack.c.l.b16 %v216
        %v380 = vunpack.c.l.b16 %v217
        %v381 = vunpack.c.h.b16 %v217
        %v382 = vunpack.c.l.b16 %v218
        %v383 = vunpack.c.l.b16 %v219
        %v384 = vunpack.c.h.b16 %v219
        %v385 = vunpack.c.l.b16 %v220
        %v386 = vunpack.c.l.b16 %v221
        %v387 = vunpack.c.h.b16 %v221
        %v388 = vunpack.c.l.b16 %v222
        %v389 = vunpack.c.l.b16 %v223
        %v390 = vunpack.c.h.b16 %v223
        %v391 = vunpack.c.l.b16 %v224
        %v392 = vunpack.c.l.b16 %v225
        %v393 = vunpack.c.h.b16 %v225
        %v394 = vunpack.c.l.b16 %v226
        %v395 = vunpack.c.l.b16 %v227
        %v396 = vunpack.c.h.b16 %v227
        %v397 = vunpack.c.l.b16 %v228
        %v398 = vunpack.c.l.b16 %v229
        %v399 = vunpack.c.h.b16 %v229
        %v400 = vunpack.c.l.b16 %v230
        %v401 = vunpack.c.l.b16 %v231
        %v402 = vunpack.c.h.b16 %v231
        %v403 = vunpack.c.l.b16 %v232
        %v404 = vunpack.c.l.b16 %v233
        %v405 = vunpack.c.h.b16 %v233
        %v406 = vunpack.c.l.b16 %v234
        %v407 = vunpack.c.l.b16 %v235
        %v408 = vunpack.c.h.b16 %v235
        %v409 = vunpack.c.l.b16 %v236
        %v410 = vunpack.c.l.b16 %v237
        %v411 = vunpack.c.h.b16 %v237
        %v412 = vunpack.c.l.b16 %v238
        %v413 = vunpack.c.l.b16 %v239
        %v414 = vunpack.c.h.b16 %v239
        %v415 = vunpack.c.l.b16 %v240
        %v416 = vunpack.c.l.b16 %v241
        %v417 = vunpack.c.h.b16 %v241
        %v418 = vunpack.c.l.b16 %v242
        %v419 = vunpack.c.l.b16 %v243
        %v420 = vunpack.c.h.b16 %v243
        %v421 = vunpack.c.l.b16 %v244
        %v422 = vunpack.c.l.b16 %v245
        %v423 = vunpack.c.h.b16 %v245
        %v424 = vunpack.c.l.b16 %v246
        %v425 = vunpack.c.l.b16 %v247
        %v426 = vunpack.c.h.b16 %v247
        %v427 = vunpack.c.l.b16 %v248
        %v428 = vunpack.c.l.b16 %v249
        %v429 = vunpack.c.h.b16 %v249
        %v430 = vunpack.c.l.b16 %v250
        %v431 = vunpack.c.l.b16 %v251
        %v432 = vunpack.c.h.b16 %v251
        %v433 = vunpack.c.l.b16 %v252
        %v434 = vunpack.c.l.b16 %v253
        %v435 = vunpack.c.h.b16 %v253
        %v436 = vunpack.c.l.b16 %v254
        %v437 = vunpack.c.l.b16 %v255
        %v438 = vunpack.c.h.b16 %v255
        %v439 = vunpack.c.l.b16 %v256
        %v440 = vpack.c.b16 %v359, %v356
        %v441 = vpack.c.b16 %v360, %v357
        %v442 = vpack.c.b16 %v361, %v358
        %v443 = vpack.c.b16 %v365, %v362
        %v444 = vpack.c.b16 %v366, %v363
        %v445 = vpack.c.b16 %v367, %v364
        %v446 = vpack.c.b16 %v371, %v368
        %v447 = vpack.c.b16 %v372, %v369
        %v448 = vpack.c.b16 %v373, %v370
        %v449 = vpack.c.b16 %v377, %v374
        %v450 = vpack.c.b16 %v378, %v375
        %v451 = vpack.c.b16 %v379, %v376
        %v452 = vpack.c.b16 %v383, %v380
        %v453 = vpack.c.b16 %v384, %v381
        %v454 = vpack.c.b16 %v385, %v382
        %v455 = vpack.c.b16 %v389, %v386
        %v456 = vpack.c.b16 %v390, %v387
        %v457 = vpack.c.b16 %v391, %v388
        %v458 = vpack.c.b16 %v395, %v392
        %v459 = vpack.c.b16 %v396, %v393
        %v460 = vpack.c.b16 %v397, %v394
        %v461 = vpack.c.b16 %v401, %v398
        %v462 = vpack.c.b16 %v402, %v399
        %v463 = vpack.c.b16 %v403, %v400
        %v464 = vpack.c.b16 %v407, %v404
        %v465 = vpack.c.b16 %v408, %v405
        %v466 = vpack.c.b16 %v409, %v406
        %v467 = vpack.c.b16 %v413, %v410
        %v468 = vpack.c.b16 %v414, %v411
        %v469 = vpack.c.b16 %v415, %v412
        %v470 = vpack.c.b16 %v419, %v416
        %v471 = vpack.c.b16 %v420, %v417
        %v472 = vpack.c.b16 %v421, %v418
        %v473 = vpack.c.b16 %v425, %v422
        %v474 = vpack.c.b16 %v426, %v423
        %v475 = vpack.c.b16 %v427, %v424
        %v476 = vpack.c.b16 %v431, %v428
        %v477 = vpack.c.b16 %v432, %v429
        %v478 = vpack.c.b16 %v433, %v430
        %v479 = vpack.c.b16 %v437, %v434
        %v480 = vpack.c.b16 %v438, %v435
        %v481 = vpack.c.b16 %v439, %v436
        %v546 = vunpack.c.l.b16 %v257
        %v547 = vunpack.c.l.b16 %v258
        %v548 = vunpack.c.l.b16 %v259
        %v549 = vunpack.c.l.b16 %v260
        %v550 = vunpack.c.l.b16 %v261
        %v551 = vunpack.c.l.b16 %v262
        %v552 = vunpack.c.l.b16 %v263
        %v553 = vunpack.c.l.b16 %v264
        %v554 = vunpack.c.l.b16 %v265
        %v555 = vunpack.c.l.b16 %v266
        %v556 = vunpack.c.l.b16 %v267
        %v557 = vunpack.c.l.b16 %v268
        %v558 = vunpack.c.l.b16 %v269
        %v559 = vunpack.c.l.b16 %v270
        %v560 = vunpack.c.l.b16 %v271
        %v561 = vunpack.c.l.b16 %v272
        %v562 = vunpack.c.l.b16 %v273
        %v563 = vunpack.c.l.b16 %v274
        %v564 = vunpack.c.l.b16 %v275
        %v565 = vunpack.c.l.b16 %v276
        %v566 = vunpack.c.l.b16 %v277
        %v567 = vunpack.c.l.b16 %v278
        %v568 = vunpack.c.l.b16 %v279
        %v569 = vunpack.c.l.b16 %v280
        %v570 = vunpack.c.l.b16 %v281
        %v571 = vunpack.c.l.b16 %v282
        %v572 = vunpack.c.l.b16 %v283
        %v573 = vunpack.c.l.b16 %v284
        %v574 = vunpack.c.l.b16 %v285
        %v575 = vunpack.c.l.b16 %v286
        %v576 = vunpack.c.l.b16 %v287
        %v577 = vunpack.c.l.b16 %v288
        %v578 = vunpack.c.l.b16 %v289
        %v579 = vunpack.c.l.b16 %v290
        %v580 = vunpack.c.l.b16 %v291
        %v581 = vunpack.c.l.b16 %v292
        %v582 = vpack.c.b16 %v547, %v546
        %v583 = vpack.c.b16 %v549, %v548
        %v584 = vpack.c.b16 %v551, %v550
        %v585 = vpack.c.b16 %v553, %v552
        %v586 = vpack.c.b16 %v555, %v554
        %v587 = vpack.c.b16 %v557, %v556
        %v588 = vpack.c.b16 %v559, %v558
        %v589 = vpack.c.b16 %v561, %v560
        %v590 = vpack.c.b16 %v563, %v562
        %v591 = vpack.c.b16 %v565, %v564
        %v592 = vpack.c.b16 %v567, %v566
        %v593 = vpack.c.b16 %v569, %v568
        %v594 = vpack.c.b16 %v571, %v570
        %v595 = vpack.c.b16 %v573, %v572
        %v596 = vpack.c.b16 %v575, %v574
        %v597 = vpack.c.b16 %v577, %v576
        %v598 = vpack.c.b16 %v579, %v578
        %v599 = vpack.c.b16 %v581, %v580
        %vm618 = vcmask 261120
        %v620 = vsel %vm618, %v442, 0
        %v623 = vsel %vm618, %v445, 0
        %v626 = vsel %vm618, %v448, 0
        %v629 = vsel %vm618, %v451, 0
        %v632 = vsel %vm618, %v454, 0
        %v635 = vsel %vm618, %v457, 0
        %v638 = vsel %vm618, %v460, 0
        %v641 = vsel %vm618, %v463, 0
        %v644 = vsel %vm618, %v466, 0
        %v647 = vsel %vm618, %v469, 0
        %v650 = vsel %vm618, %v472, 0
        %v653 = vsel %vm618, %v475, 0
        %v656 = vsel %vm618, %v478, 0
        %v659 = vsel %vm618, %v481, 0
        %661 = vmatprep.subr.bf16.mxu0 0
        %662 = vmatpush1.bf16.msra.mxu0 %v582
        %663 = vmatprep.subr.bf16.mxu0 0
        %664 = vmatpush1.bf16.msra.mxu0 %v583
        %665 = vmatprep.subr.bf16.mxu0 0
        %666 = vmatpush1.bf16.msra.mxu0 %v584
        %667 = vmatprep.subr.bf16.mxu0 0
        %668 = vmatpush1.bf16.msra.mxu0 %v585
        %669 = vmatprep.subr.bf16.mxu0 0
        %670 = vmatpush1.bf16.msra.mxu0 %v586
        %671 = vmatprep.subr.bf16.mxu0 0
        %672 = vmatpush1.bf16.msra.mxu0 %v587
        %673 = vmatprep.subr.bf16.mxu0 0
        %674 = vmatpush1.bf16.msra.mxu0 %v588
        %675 = vmatprep.subr.bf16.mxu0 0
        %676 = vmatpush1.bf16.msra.mxu0 %v589
        %677 = vmatprep.subr.bf16.mxu0 0
        %678 = vmatpush1.bf16.msra.mxu0 %v590
        %679 = vmatprep.subr.bf16.mxu0 0
        %680 = vmatpush1.bf16.msra.mxu0 %v591
        %681 = vmatprep.subr.bf16.mxu0 0
        %682 = vmatpush1.bf16.msra.mxu0 %v592
        %683 = vmatprep.subr.bf16.mxu0 0
        %684 = vmatpush1.bf16.msra.mxu0 %v593
        %685 = vmatprep.subr.bf16.mxu0 0
        %686 = vmatpush1.bf16.msra.mxu0 %v594
        %687 = vmatprep.subr.bf16.mxu0 0
        %688 = vmatpush1.bf16.msra.mxu0 %v595
        %689 = vmatprep.subr.bf16.mxu0 0
        %690 = vmatpush1.bf16.msra.mxu0 %v596
        %691 = vmatprep.subr.bf16.mxu0 0
        %692 = vmatpush1.bf16.msra.mxu0 %v597
        %693 = vmatprep.mubr.bf16.mxu0 %v441
        %694 = vmatmul.mubr.bf16.gmra.mrb[0].mxu0 %v440
        %v695 = vpop.f32.mrb[0].mxu0
        %v696 = vadd.f32 %v298, %v695
        %v697 = vpop.f32.mrb[0].mxu0
        %v698 = vpop.f32.mrb[0].mxu0
        %v699 = vadd.f32 %v298, %v698
        %v700 = vpop.f32.mrb[0].mxu0
        %701 = vmatprep.mubr.bf16.mxu0 %v444
        %702 = vmatmul.mubr.bf16.gmra.mrb[0].mxu0 %v443
        %v703 = vpop.f32.mrb[0].mxu0
        %v704 = vadd.f32 %v298, %v703
        %v705 = vpop.f32.mrb[0].mxu0
        %v706 = vpop.f32.mrb[0].mxu0
        %v707 = vadd.f32 %v298, %v706
        %v708 = vpop.f32.mrb[0].mxu0
        %709 = vmatprep.mubr.bf16.mxu0 %v447
        %710 = vmatmul.mubr.bf16.gmra.mrb[0].mxu0 %v446
        %v711 = vpop.f32.mrb[0].mxu0
        %v712 = vadd.f32 %v298, %v711
        %v713 = vpop.f32.mrb[0].mxu0
        %v714 = vpop.f32.mrb[0].mxu0
        %v715 = vadd.f32 %v298, %v714
        %v716 = vpop.f32.mrb[0].mxu0
        %717 = vmatprep.mubr.bf16.mxu0 %v450
        %718 = vmatmul.mubr.bf16.gmra.mrb[0].mxu0 %v449
        %v719 = vpop.f32.mrb[0].mxu0
        %v720 = vadd.f32 %v298, %v719
        %v721 = vpop.f32.mrb[0].mxu0
        %v722 = vpop.f32.mrb[0].mxu0
        %v723 = vadd.f32 %v298, %v722
        %v724 = vpop.f32.mrb[0].mxu0
        %725 = vmatprep.mubr.bf16.mxu0 %v453
        %726 = vmatmul.mubr.bf16.gmra.mrb[0].mxu0 %v452
        %v727 = vpop.f32.mrb[0].mxu0
        %v728 = vadd.f32 %v298, %v727
        %v729 = vpop.f32.mrb[0].mxu0
        %v730 = vpop.f32.mrb[0].mxu0
        %v731 = vadd.f32 %v298, %v730
        %v732 = vpop.f32.mrb[0].mxu0
        %733 = vmatprep.mubr.bf16.mxu0 %v456
        %734 = vmatmul.mubr.bf16.gmra.mrb[0].mxu0 %v455
        %v735 = vpop.f32.mrb[0].mxu0
        %v736 = vadd.f32 %v298, %v735
        %v737 = vpop.f32.mrb[0].mxu0
        %v738 = vpop.f32.mrb[0].mxu0
        %v739 = vadd.f32 %v298, %v738
        %v740 = vpop.f32.mrb[0].mxu0
        %741 = vmatprep.mubr.bf16.mxu0 %v459
        %742 = vmatmul.mubr.bf16.gmra.mrb[0].mxu0 %v458
        %v743 = vpop.f32.mrb[0].mxu0
        %v744 = vadd.f32 %v298, %v743
        %v745 = vpop.f32.mrb[0].mxu0
        %v746 = vpop.f32.mrb[0].mxu0
        %v747 = vadd.f32 %v298, %v746
        %v748 = vpop.f32.mrb[0].mxu0
        %749 = vmatprep.mubr.bf16.mxu0 %v462
        %750 = vmatmul.mubr.bf16.gmra.mrb[0].mxu0 %v461
        %v751 = vpop.f32.mrb[0].mxu0
        %v752 = vadd.f32 %v298, %v751
        %v753 = vpop.f32.mrb[0].mxu0
        %v754 = vpop.f32.mrb[0].mxu0
        %v755 = vadd.f32 %v298, %v754
        %v756 = vpop.f32.mrb[0].mxu0
        %757 = vmatprep.mubr.bf16.mxu0 %v465
        %758 = vmatmul.mubr.bf16.gmra.mrb[0].mxu0 %v464
        %v759 = vpop.f32.mrb[0].mxu0
        %v760 = vadd.f32 %v298, %v759
        %v761 = vpop.f32.mrb[0].mxu0
        %v762 = vpop.f32.mrb[0].mxu0
        %v763 = vadd.f32 %v298, %v762
        %v764 = vpop.f32.mrb[0].mxu0
        %765 = vmatprep.mubr.bf16.mxu0 %v468
        %766 = vmatmul.mubr.bf16.gmra.mrb[0].mxu0 %v467
        %v767 = vpop.f32.mrb[0].mxu0
        %v768 = vadd.f32 %v298, %v767
        %v769 = vpop.f32.mrb[0].mxu0
        %v770 = vpop.f32.mrb[0].mxu0
        %v771 = vadd.f32 %v298, %v770
        %v772 = vpop.f32.mrb[0].mxu0
        %773 = vmatprep.mubr.bf16.mxu0 %v471
        %774 = vmatmul.mubr.bf16.gmra.mrb[0].mxu0 %v470
        %v775 = vpop.f32.mrb[0].mxu0
        %v776 = vadd.f32 %v298, %v775
        %v777 = vpop.f32.mrb[0].mxu0
        %v778 = vpop.f32.mrb[0].mxu0
        %v779 = vadd.f32 %v298, %v778
        %v780 = vpop.f32.mrb[0].mxu0
        %781 = vmatprep.mubr.bf16.mxu0 %v474
        %782 = vmatmul.mubr.bf16.gmra.mrb[0].mxu0 %v473
        %v783 = vpop.f32.mrb[0].mxu0
        %v784 = vadd.f32 %v298, %v783
        %v785 = vpop.f32.mrb[0].mxu0
        %v786 = vpop.f32.mrb[0].mxu0
        %v787 = vadd.f32 %v298, %v786
        %v788 = vpop.f32.mrb[0].mxu0
        %789 = vmatprep.mubr.bf16.mxu0 %v477
        %790 = vmatmul.mubr.bf16.gmra.mrb[0].mxu0 %v476
        %v791 = vpop.f32.mrb[0].mxu0
        %v792 = vadd.f32 %v298, %v791
        %v793 = vpop.f32.mrb[0].mxu0
        %v794 = vpop.f32.mrb[0].mxu0
        %v795 = vadd.f32 %v298, %v794
        %v796 = vpop.f32.mrb[0].mxu0
        %797 = vmatprep.mubr.bf16.mxu0 %v480
        %798 = vmatmul.mubr.bf16.gmra.mrb[0].mxu0 %v479
        %v799 = vpop.f32.mrb[0].mxu0
        %v800 = vadd.f32 %v298, %v799
        %v801 = vpop.f32.mrb[0].mxu0
        %v802 = vpop.f32.mrb[0].mxu0
        %v803 = vadd.f32 %v298, %v802
        %v804 = vpop.f32.mrb[0].mxu0
        %805 = vdwg.mxu0
        %806 = vmatprep.subr.bf16.mxu0 0
        %807 = vmatpush1.bf16.msra.mxu0 %v598
        %808 = vmatprep.subr.bf16.mxu0 0
        %809 = vmatpush1.bf16.msra.mxu0 %v599
        %810 = vmatprep.subr.bf16.mxu0 0
        %811 = vmatpush1.bf16.msra.mxu0 0
        %812 = vmatprep.subr.bf16.mxu0 0
        %813 = vmatpush1.bf16.msra.mxu0 0
        %814 = vmatprep.subr.bf16.mxu0 0
        %815 = vmatpush1.bf16.msra.mxu0 0
        %816 = vmatprep.subr.bf16.mxu0 0
        %817 = vmatpush1.bf16.msra.mxu0 0
        %818 = vmatprep.subr.bf16.mxu0 0
        %819 = vmatpush1.bf16.msra.mxu0 0
        %820 = vmatprep.subr.bf16.mxu0 0
        %821 = vmatpush1.bf16.msra.mxu0 0
        %822 = vmatprep.subr.bf16.mxu0 0
        %823 = vmatpush1.bf16.msra.mxu0 0
        %824 = vmatprep.subr.bf16.mxu0 0
        %825 = vmatpush1.bf16.msra.mxu0 0
        %826 = vmatprep.subr.bf16.mxu0 0
        %827 = vmatpush1.bf16.msra.mxu0 0
        %828 = vmatprep.subr.bf16.mxu0 0
        %829 = vmatpush1.bf16.msra.mxu0 0
        %830 = vmatprep.subr.bf16.mxu0 0
        %831 = vmatpush1.bf16.msra.mxu0 0
        %832 = vmatprep.subr.bf16.mxu0 0
        %833 = vmatpush1.bf16.msra.mxu0 0
        %834 = vmatprep.subr.bf16.mxu0 0
        %835 = vmatpush1.bf16.msra.mxu0 0
        %836 = vmatprep.subr.bf16.mxu0 0
        %837 = vmatpush1.bf16.msra.mxu0 0
        %838 = vmatprep.mubr.bf16.mxu0 0
        %839 = vmatmul.mubr.bf16.gmra.mrb[0].mxu0 %v620
        %v840 = vpop.f32.mrb[0].mxu0
        %v841 = vadd.f32 %v696, %v840
        %v842 = vpop.f32.mrb[0].mxu0
        %v843 = vpop.f32.mrb[0].mxu0
        %v844 = vadd.f32 %v699, %v843
        %v845 = vpop.f32.mrb[0].mxu0
        %846 = vmatprep.mubr.bf16.mxu0 0
        %847 = vmatmul.mubr.bf16.gmra.mrb[0].mxu0 %v623
        %v848 = vpop.f32.mrb[0].mxu0
        %v849 = vadd.f32 %v704, %v848
        %v850 = vpop.f32.mrb[0].mxu0
        %v851 = vpop.f32.mrb[0].mxu0
        %v852 = vadd.f32 %v707, %v851
        %v853 = vpop.f32.mrb[0].mxu0
        %854 = vmatprep.mubr.bf16.mxu0 0
        %855 = vmatmul.mubr.bf16.gmra.mrb[0].mxu0 %v626
        %v856 = vpop.f32.mrb[0].mxu0
        %v857 = vadd.f32 %v712, %v856
        %v858 = vpop.f32.mrb[0].mxu0
        %v859 = vpop.f32.mrb[0].mxu0
        %v860 = vadd.f32 %v715, %v859
        %v861 = vpop.f32.mrb[0].mxu0
        %862 = vmatprep.mubr.bf16.mxu0 0
        %863 = vmatmul.mubr.bf16.gmra.mrb[0].mxu0 %v629
        %v864 = vpop.f32.mrb[0].mxu0
        %v865 = vadd.f32 %v720, %v864
        %v866 = vpop.f32.mrb[0].mxu0
        %v867 = vpop.f32.mrb[0].mxu0
        %v868 = vadd.f32 %v723, %v867
        %v869 = vpop.f32.mrb[0].mxu0
        %870 = vmatprep.mubr.bf16.mxu0 0
        %871 = vmatmul.mubr.bf16.gmra.mrb[0].mxu0 %v632
        %v872 = vpop.f32.mrb[0].mxu0
        %v873 = vadd.f32 %v728, %v872
        %v874 = vpop.f32.mrb[0].mxu0
        %v875 = vpop.f32.mrb[0].mxu0
        %v876 = vadd.f32 %v731, %v875
        %v877 = vpop.f32.mrb[0].mxu0
        %878 = vmatprep.mubr.bf16.mxu0 0
        %879 = vmatmul.mubr.bf16.gmra.mrb[0].mxu0 %v635
        %v880 = vpop.f32.mrb[0].mxu0
        %v881 = vadd.f32 %v736, %v880
        %v882 = vpop.f32.mrb[0].mxu0
        %v883 = vpop.f32.mrb[0].mxu0
        %v884 = vadd.f32 %v739, %v883
        %v885 = vpop.f32.mrb[0].mxu0
        %886 = vmatprep.mubr.bf16.mxu0 0
        %887 = vmatmul.mubr.bf16.gmra.mrb[0].mxu0 %v638
        %v888 = vpop.f32.mrb[0].mxu0
        %v889 = vadd.f32 %v744, %v888
        %v890 = vpop.f32.mrb[0].mxu0
        %v891 = vpop.f32.mrb[0].mxu0
        %v892 = vadd.f32 %v747, %v891
        %v893 = vpop.f32.mrb[0].mxu0
        %894 = vmatprep.mubr.bf16.mxu0 0
        %895 = vmatmul.mubr.bf16.gmra.mrb[0].mxu0 %v641
        %v896 = vpop.f32.mrb[0].mxu0
        %v897 = vadd.f32 %v752, %v896
        %v898 = vpop.f32.mrb[0].mxu0
        %v899 = vpop.f32.mrb[0].mxu0
        %v900 = vadd.f32 %v755, %v899
        %v901 = vpop.f32.mrb[0].mxu0
        %902 = vmatprep.mubr.bf16.mxu0 0
        %903 = vmatmul.mubr.bf16.gmra.mrb[0].mxu0 %v644
        %v904 = vpop.f32.mrb[0].mxu0
        %v905 = vadd.f32 %v760, %v904
        %v906 = vpop.f32.mrb[0].mxu0
        %v907 = vpop.f32.mrb[0].mxu0
        %v908 = vadd.f32 %v763, %v907
        %v909 = vpop.f32.mrb[0].mxu0
        %910 = vmatprep.mubr.bf16.mxu0 0
        %911 = vmatmul.mubr.bf16.gmra.mrb[0].mxu0 %v647
        %v912 = vpop.f32.mrb[0].mxu0
        %v913 = vadd.f32 %v768, %v912
        %v914 = vpop.f32.mrb[0].mxu0
        %v915 = vpop.f32.mrb[0].mxu0
        %v916 = vadd.f32 %v771, %v915
        %v917 = vpop.f32.mrb[0].mxu0
        %918 = vmatprep.mubr.bf16.mxu0 0
        %919 = vmatmul.mubr.bf16.gmra.mrb[0].mxu0 %v650
        %v920 = vpop.f32.mrb[0].mxu0
        %v921 = vadd.f32 %v776, %v920
        %v922 = vpop.f32.mrb[0].mxu0
        %v923 = vpop.f32.mrb[0].mxu0
        %v924 = vadd.f32 %v779, %v923
        %v925 = vpop.f32.mrb[0].mxu0
        %926 = vmatprep.mubr.bf16.mxu0 0
        %927 = vmatmul.mubr.bf16.gmra.mrb[0].mxu0 %v653
        %v928 = vpop.f32.mrb[0].mxu0
        %v929 = vadd.f32 %v784, %v928
        %v930 = vpop.f32.mrb[0].mxu0
        %v931 = vpop.f32.mrb[0].mxu0
        %v932 = vadd.f32 %v787, %v931
        %v933 = vpop.f32.mrb[0].mxu0
        %934 = vmatprep.mubr.bf16.mxu0 0
        %935 = vmatmul.mubr.bf16.gmra.mrb[0].mxu0 %v656
        %v936 = vpop.f32.mrb[0].mxu0
        %v937 = vadd.f32 %v792, %v936
        %v938 = vpop.f32.mrb[0].mxu0
        %v939 = vpop.f32.mrb[0].mxu0
        %v940 = vadd.f32 %v795, %v939
        %v941 = vpop.f32.mrb[0].mxu0
        %942 = vmatprep.mubr.bf16.mxu0 0
        %943 = vmatmul.mubr.bf16.gmra.mrb[0].mxu0 %v659
        %v944 = vpop.f32.mrb[0].mxu0
        %v945 = vadd.f32 %v800, %v944
        %v946 = vpop.f32.mrb[0].mxu0
        %v947 = vpop.f32.mrb[0].mxu0
        %v948 = vadd.f32 %v803, %v947
        %v949 = vpop.f32.mrb[0].mxu0
        %950 = vdwg.mxu0
        %v951 = vmax.f32 %v841, 0.0
        %v952 = vmax.f32 %v844, 0.0
        %v953 = vmax.f32 %v849, 0.0
        %v954 = vmax.f32 %v852, 0.0
        %v955 = vmax.f32 %v857, 0.0
        %v956 = vmax.f32 %v860, 0.0
        %v957 = vmax.f32 %v865, 0.0
        %v958 = vmax.f32 %v868, 0.0
        %v959 = vmax.f32 %v873, 0.0
        %v960 = vmax.f32 %v876, 0.0
        %v961 = vmax.f32 %v881, 0.0
        %v962 = vmax.f32 %v884, 0.0
        %v963 = vmax.f32 %v889, 0.0
        %v964 = vmax.f32 %v892, 0.0
        %v965 = vmax.f32 %v897, 0.0
        %v966 = vmax.f32 %v900, 0.0
        %v967 = vmax.f32 %v905, 0.0
        %v968 = vmax.f32 %v908, 0.0
        %v969 = vmax.f32 %v913, 0.0
        %v970 = vmax.f32 %v916, 0.0
        %v971 = vmax.f32 %v921, 0.0
        %v972 = vmax.f32 %v924, 0.0
        %v973 = vmax.f32 %v929, 0.0
        %v974 = vmax.f32 %v932, 0.0
        %v975 = vmax.f32 %v937, 0.0
        %v976 = vmax.f32 %v940, 0.0
        %v977 = vmax.f32 %v945, 0.0
        %v978 = vmax.f32 %v948, 0.0
        %vm979 = vcmask 523264
        %980 = vst.msk [vmem:[%s177] sm:$0xff] %vm979, %v951
        %981 = vst.msk [vmem:[%s177 + $0x8] sm:$0xff] %vm979, %v952
        %982 = vst.msk [vmem:[%s177 + $0x10] sm:$0xff] %vm979, %v953
        %983 = vst.msk [vmem:[%s177 + $0x18] sm:$0xff] %vm979, %v954
        %984 = vst.msk [vmem:[%s177 + $0x20] sm:$0xff] %vm979, %v955
        %985 = vst.msk [vmem:[%s177 + $0x28] sm:$0xff] %vm979, %v956
        %986 = vst.msk [vmem:[%s177 + $0x30] sm:$0xff] %vm979, %v957
        %987 = vst.msk [vmem:[%s177 + $0x38] sm:$0xff] %vm979, %v958
        %988 = vst.msk [vmem:[%s177 + $0x40] sm:$0xff] %vm979, %v959
        %989 = vst.msk [vmem:[%s177 + $0x48] sm:$0xff] %vm979, %v960
        %990 = vst.msk [vmem:[%s177 + $0x50] sm:$0xff] %vm979, %v961
        %991 = vst.msk [vmem:[%s177 + $0x58] sm:$0xff] %vm979, %v962
        %992 = vst.msk [vmem:[%s177 + $0x60] sm:$0xff] %vm979, %v963
        %993 = vst.msk [vmem:[%s177 + $0x68] sm:$0xff] %vm979, %v964
        %994 = vst.msk [vmem:[%s177 + $0x70] sm:$0xff] %vm979, %v965
        %995 = vst.msk [vmem:[%s177 + $0x78] sm:$0xff] %vm979, %v966
        %996 = vst.msk [vmem:[%s177 + $0x80] sm:$0xff] %vm979, %v967
        %997 = vst.msk [vmem:[%s177 + $0x88] sm:$0xff] %vm979, %v968
        %998 = vst.msk [vmem:[%s177 + $0x90] sm:$0xff] %vm979, %v969
        %999 = vst.msk [vmem:[%s177 + $0x98] sm:$0xff] %vm979, %v970
        %1000 = vst.msk [vmem:[%s177 + $0xa0] sm:$0xff] %vm979, %v971
        %1001 = vst.msk [vmem:[%s177 + $0xa8] sm:$0xff] %vm979, %v972
        %1002 = vst.msk [vmem:[%s177 + $0xb0] sm:$0xff] %vm979, %v973
        %1003 = vst.msk [vmem:[%s177 + $0xb8] sm:$0xff] %vm979, %v974
        %1004 = vst.msk [vmem:[%s177 + $0xc0] sm:$0xff] %vm979, %v975
        %1005 = vst.msk [vmem:[%s177 + $0xc8] sm:$0xff] %vm979, %v976
        %1006 = vst.msk [vmem:[%s177 + $0xd0] sm:$0xff] %vm979, %v977
        %1007 = vst.msk [vmem:[%s177 + $0xd8] sm:$0xff] %vm979, %v978
        %s1008 = sand.u32 %s90, 1
        %s1009 = sand.u32 %s90, 1
        %s1010 = smul.addr %s1009, 224
        %s1011 = scalar_lea.vmem [#allocation2], %s1010
        // Predicated region
        $region33: #{pupilnet_v2_forward.10} parent=31 // pred_check
          %p1012 = pneg %p100
        $region34: #{pupilnet_v2_forward.10} parent=31 // pred_check_branch
          %1014 = sbr.rel (%p1012) target = $region36
        $region35: #{pupilnet_v2_forward.10} parent=31 // pred_region
          %s1015 = smul.u32 28, %s14
          %s1016 = ssub.s32 53, %s1015
          %p1017 = scmp.lt.s32.totalorder %s1016, 28
          %s1018 = scalar_select %p1017, %s1016, 28
          %s1019 = smul.u32 128, %s1018
          %p1020 = scmp.ne.s32.totalorder 0, %s1019
          %s1021 = smul.addr %s1015, 8
          %s1022 = scalar_lea.vmem %s3, %s1021
          // Predicated region
          $region37: #{pupilnet_v2_forward.10} parent=35 // pred_check
            %p1023 = pneg %p1020
          $region38: #{pupilnet_v2_forward.10} parent=35 // pred_check_branch
            %1025 = sbr.rel (%p1023) target = $region40
          $region39: #{pupilnet_v2_forward.10} parent=35 // pred_region
            // Predicated region
            $region41: #{pupilnet_v2_forward.10} parent=39 // pred_check
              _
            $region42: #{pupilnet_v2_forward.10} parent=39 // pred_check_branch
              %1027 = sbr.rel (0) target = $region44
            $region43: #{pupilnet_v2_forward.10} parent=39 // pred_region
              // Predicated region
              $region63: #{pupilnet_v2_forward.10} parent=43 // pred_check
                _
              $region64: #{pupilnet_v2_forward.10} parent=43 // pred_check_branch
                %1131 = sbr.rel (0) target = $region66
              $region65: #{pupilnet_v2_forward.10} parent=43 // pred_region
                %s1132 = sdiv.u32.pop %s1018, 28
                %s1133 = srem.u32.pop %s1018, 28
                // While loop
                $region67: #{pupilnet_v2_forward.10} parent=65 // loop_pre_header
                  _
                $region68: #{pupilnet_v2_forward.10} parent=65 // loop_header
                  %s1135 = sphi 0, %s1137
                  %p1136 = scmp.ge.s32.totalorder %s1135, %s1132
                  %s1140 = sphi 0, %s1201
                  %s1141 = sphi %s1011, %s1204
                  %s1142 = sphi %s1022, %s1205
                $region69: #{pupilnet_v2_forward.10} parent=65 // loop_header_branch
                  %1139 = sbr.rel (%p1136) target = $region73
                $region70: #{pupilnet_v2_forward.10} parent=65 // loop_body
                  %v1143 = vld [vmem:[%s1141] sm:$0xff]
                  %1144 = vst [vmem:[%s1142] sm:$0xff] %v1143
                  %v1145 = vld [vmem:[%s1141 + $0x8] sm:$0xff]
                  %1146 = vst [vmem:[%s1142 + $0x8] sm:$0xff] %v1145
                  %v1147 = vld [vmem:[%s1141 + $0x10] sm:$0xff]
                  %1148 = vst [vmem:[%s1142 + $0x10] sm:$0xff] %v1147
                  %v1149 = vld [vmem:[%s1141 + $0x18] sm:$0xff]
                  %1150 = vst [vmem:[%s1142 + $0x18] sm:$0xff] %v1149
                  %v1151 = vld [vmem:[%s1141 + $0x20] sm:$0xff]
                  %1152 = vst [vmem:[%s1142 + $0x20] sm:$0xff] %v1151
                  %v1153 = vld [vmem:[%s1141 + $0x28] sm:$0xff]
                  %1154 = vst [vmem:[%s1142 + $0x28] sm:$0xff] %v1153
                  %v1155 = vld [vmem:[%s1141 + $0x30] sm:$0xff]
                  %1156 = vst [vmem:[%s1142 + $0x30] sm:$0xff] %v1155
                  %v1157 = vld [vmem:[%s1141 + $0x38] sm:$0xff]
                  %1158 = vst [vmem:[%s1142 + $0x38] sm:$0xff] %v1157
                  %v1159 = vld [vmem:[%s1141 + $0x40] sm:$0xff]
                  %1160 = vst [vmem:[%s1142 + $0x40] sm:$0xff] %v1159
                  %v1161 = vld [vmem:[%s1141 + $0x48] sm:$0xff]
                  %1162 = vst [vmem:[%s1142 + $0x48] sm:$0xff] %v1161
                  %v1163 = vld [vmem:[%s1141 + $0x50] sm:$0xff]
                  %1164 = vst [vmem:[%s1142 + $0x50] sm:$0xff] %v1163
                  %v1165 = vld [vmem:[%s1141 + $0x58] sm:$0xff]
                  %1166 = vst [vmem:[%s1142 + $0x58] sm:$0xff] %v1165
                  %v1167 = vld [vmem:[%s1141 + $0x60] sm:$0xff]
                  %1168 = vst [vmem:[%s1142 + $0x60] sm:$0xff] %v1167
                  %v1169 = vld [vmem:[%s1141 + $0x68] sm:$0xff]
                  %1170 = vst [vmem:[%s1142 + $0x68] sm:$0xff] %v1169
                  %v1171 = vld [vmem:[%s1141 + $0x70] sm:$0xff]
                  %1172 = vst [vmem:[%s1142 + $0x70] sm:$0xff] %v1171
                  %v1173 = vld [vmem:[%s1141 + $0x78] sm:$0xff]
                  %1174 = vst [vmem:[%s1142 + $0x78] sm:$0xff] %v1173
                  %v1175 = vld [vmem:[%s1141 + $0x80] sm:$0xff]
                  %1176 = vst [vmem:[%s1142 + $0x80] sm:$0xff] %v1175
                  %v1177 = vld [vmem:[%s1141 + $0x88] sm:$0xff]
                  %1178 = vst [vmem:[%s1142 + $0x88] sm:$0xff] %v1177
                  %v1179 = vld [vmem:[%s1141 + $0x90] sm:$0xff]
                  %1180 = vst [vmem:[%s1142 + $0x90] sm:$0xff] %v1179
                  %v1181 = vld [vmem:[%s1141 + $0x98] sm:$0xff]
                  %1182 = vst [vmem:[%s1142 + $0x98] sm:$0xff] %v1181
                  %v1183 = vld [vmem:[%s1141 + $0xa0] sm:$0xff]
                  %1184 = vst [vmem:[%s1142 + $0xa0] sm:$0xff] %v1183
                  %v1185 = vld [vmem:[%s1141 + $0xa8] sm:$0xff]
                  %1186 = vst [vmem:[%s1142 + $0xa8] sm:$0xff] %v1185
                  %v1187 = vld [vmem:[%s1141 + $0xb0] sm:$0xff]
                  %1188 = vst [vmem:[%s1142 + $0xb0] sm:$0xff] %v1187
                  %v1189 = vld [vmem:[%s1141 + $0xb8] sm:$0xff]
                  %1190 = vst [vmem:[%s1142 + $0xb8] sm:$0xff] %v1189
                  %v1191 = vld [vmem:[%s1141 + $0xc0] sm:$0xff]
                  %1192 = vst [vmem:[%s1142 + $0xc0] sm:$0xff] %v1191
                  %v1193 = vld [vmem:[%s1141 + $0xc8] sm:$0xff]
                  %1194 = vst [vmem:[%s1142 + $0xc8] sm:$0xff] %v1193
                  %v1195 = vld [vmem:[%s1141 + $0xd0] sm:$0xff]
                  %1196 = vst [vmem:[%s1142 + $0xd0] sm:$0xff] %v1195
                  %v1197 = vld [vmem:[%s1141 + $0xd8] sm:$0xff]
                  %1198 = vst [vmem:[%s1142 + $0xd8] sm:$0xff] %v1197
                  %s1199 = sadd.s32 1, %s1140
                  %p1200 = scmp.ge.s32.totalorder %s1199, %s1132
                  %s1201 = scalar_select %p1200, 0, %s1199
                  %s1202 = smul.u32 %s1201, 224
                  %s1203 = smul.u32 %s1201, 224
                  %s1204 = scalar_lea.vmem %s1011, %s1202 [#allocation2]
                  %s1205 = scalar_lea.vmem %s1022, %s1203
                $region71: #{pupilnet_v2_forward.10} parent=65 // loop_footer
                  %s1137 = sadd.s32 %s1135, 1
                $region72: #{pupilnet_v2_forward.10} parent=65 // loop_footer_branch
                  %1134 = sbr.rel target = $region68
                $region73: #{pupilnet_v2_forward.10} parent=65 // loop_exit
                  _
                %s1206 = sdiv.u32.pop %s1018, 28
                %s1207 = srem.u32.pop %s1018, 28
                %s1208 = smul.u32 %s1206, 28
                %s1209 = smul.u32 8, %s1208
                %s1210 = scalar_lea.vmem %s1011, %s1209 [#allocation2]
                %s1211 = smul.u32 8, %s1208
                %s1212 = scalar_lea.vmem %s1022, %s1211
                // While loop
                $region74: #{pupilnet_v2_forward.10} parent=65 // loop_pre_header
                  _
                $region75: #{pupilnet_v2_forward.10} parent=65 // loop_header
                  %s1214 = sphi 0, %s1216
                  %p1215 = scmp.ge.s32.totalorder %s1214, %s1207
                  %s1219 = sphi 0, %s1226
                  %s1220 = sphi %s1210, %s1229
                  %s1221 = sphi %s1212, %s1230
                $region76: #{pupilnet_v2_forward.10} parent=65 // loop_header_branch
                  %1218 = sbr.rel (%p1215) target = $region80
                $region77: #{pupilnet_v2_forward.10} parent=65 // loop_body
                  %v1222 = vld [vmem:[%s1220] sm:$0xff]
                  %1223 = vst [vmem:[%s1221] sm:$0xff] %v1222
                  %s1224 = sadd.s32 1, %s1219
                  %p1225 = scmp.ge.s32.totalorder %s1224, %s1207
                  %s1226 = scalar_select %p1225, 0, %s1224
                  %s1227 = smul.u32 %s1226, 8
                  %s1228 = smul.u32 %s1226, 8
                  %s1229 = scalar_lea.vmem %s1210, %s1227 [#allocation2]
                  %s1230 = scalar_lea.vmem %s1212, %s1228
                $region78: #{pupilnet_v2_forward.10} parent=65 // loop_footer
                  %s1216 = sadd.s32 %s1214, 1
                $region79: #{pupilnet_v2_forward.10} parent=65 // loop_footer_branch
                  %1213 = sbr.rel target = $region75
                $region80: #{pupilnet_v2_forward.10} parent=65 // loop_exit
                  _
              $region66: #{pupilnet_v2_forward.10} parent=43 // pred_fallthru
                _
              // Predicated region
              $region81: #{pupilnet_v2_forward.10} parent=43 // pred_check
                _
              $region82: #{pupilnet_v2_forward.10} parent=43 // pred_check_branch
                %1232 = sbr.rel target = $region84
              $region83: #{pupilnet_v2_forward.10} parent=43 // pred_region
                _
              $region84: #{pupilnet_v2_forward.10} parent=43 // pred_fallthru
                _
            $region44: #{pupilnet_v2_forward.10} parent=39 // pred_fallthru
              _
            // Predicated region
            $region45: #{pupilnet_v2_forward.10} parent=39 // pred_check
              _
            $region46: #{pupilnet_v2_forward.10} parent=39 // pred_check_branch
              %1029 = sbr.rel target = $region48
            $region47: #{pupilnet_v2_forward.10} parent=39 // pred_region
              %s1031 = sdiv.u32.pop %s1018, 28
              %s1032 = srem.u32.pop %s1018, 28
              // While loop
              $region49: #{pupilnet_v2_forward.10} parent=47 // loop_pre_header
                _
              $region50: #{pupilnet_v2_forward.10} parent=47 // loop_header
                %s1034 = sphi 0, %s1036
                %p1035 = scmp.ge.s32.totalorder %s1034, %s1031
                %s1039 = sphi 0, %s1100
                %s1040 = sphi %s1011, %s1103
                %s1041 = sphi %s1022, %s1104
              $region51: #{pupilnet_v2_forward.10} parent=47 // loop_header_branch
                %1038 = sbr.rel (%p1035) target = $region55
              $region52: #{pupilnet_v2_forward.10} parent=47 // loop_body
                %v1042 = vld [vmem:[%s1040] sm:$0xff]
                %1043 = vst [vmem:[%s1041] sm:$0xff] %v1042
                %v1044 = vld [vmem:[%s1040 + $0x8] sm:$0xff]
                %1045 = vst [vmem:[%s1041 + $0x8] sm:$0xff] %v1044
                %v1046 = vld [vmem:[%s1040 + $0x10] sm:$0xff]
                %1047 = vst [vmem:[%s1041 + $0x10] sm:$0xff] %v1046
                %v1048 = vld [vmem:[%s1040 + $0x18] sm:$0xff]
                %1049 = vst [vmem:[%s1041 + $0x18] sm:$0xff] %v1048
                %v1050 = vld [vmem:[%s1040 + $0x20] sm:$0xff]
                %1051 = vst [vmem:[%s1041 + $0x20] sm:$0xff] %v1050
                %v1052 = vld [vmem:[%s1040 + $0x28] sm:$0xff]
                %1053 = vst [vmem:[%s1041 + $0x28] sm:$0xff] %v1052
                %v1054 = vld [vmem:[%s1040 + $0x30] sm:$0xff]
                %1055 = vst [vmem:[%s1041 + $0x30] sm:$0xff] %v1054
                %v1056 = vld [vmem:[%s1040 + $0x38] sm:$0xff]
                %1057 = vst [vmem:[%s1041 + $0x38] sm:$0xff] %v1056
                %v1058 = vld [vmem:[%s1040 + $0x40] sm:$0xff]
                %1059 = vst [vmem:[%s1041 + $0x40] sm:$0xff] %v1058
                %v1060 = vld [vmem:[%s1040 + $0x48] sm:$0xff]
                %1061 = vst [vmem:[%s1041 + $0x48] sm:$0xff] %v1060
                %v1062 = vld [vmem:[%s1040 + $0x50] sm:$0xff]
                %1063 = vst [vmem:[%s1041 + $0x50] sm:$0xff] %v1062
                %v1064 = vld [vmem:[%s1040 + $0x58] sm:$0xff]
                %1065 = vst [vmem:[%s1041 + $0x58] sm:$0xff] %v1064
                %v1066 = vld [vmem:[%s1040 + $0x60] sm:$0xff]
                %1067 = vst [vmem:[%s1041 + $0x60] sm:$0xff] %v1066
                %v1068 = vld [vmem:[%s1040 + $0x68] sm:$0xff]
                %1069 = vst [vmem:[%s1041 + $0x68] sm:$0xff] %v1068
                %v1070 = vld [vmem:[%s1040 + $0x70] sm:$0xff]
                %1071 = vst [vmem:[%s1041 + $0x70] sm:$0xff] %v1070
                %v1072 = vld [vmem:[%s1040 + $0x78] sm:$0xff]
                %1073 = vst [vmem:[%s1041 + $0x78] sm:$0xff] %v1072
                %v1074 = vld [vmem:[%s1040 + $0x80] sm:$0xff]
                %1075 = vst [vmem:[%s1041 + $0x80] sm:$0xff] %v1074
                %v1076 = vld [vmem:[%s1040 + $0x88] sm:$0xff]
                %1077 = vst [vmem:[%s1041 + $0x88] sm:$0xff] %v1076
                %v1078 = vld [vmem:[%s1040 + $0x90] sm:$0xff]
                %1079 = vst [vmem:[%s1041 + $0x90] sm:$0xff] %v1078
                %v1080 = vld [vmem:[%s1040 + $0x98] sm:$0xff]
                %1081 = vst [vmem:[%s1041 + $0x98] sm:$0xff] %v1080
                %v1082 = vld [vmem:[%s1040 + $0xa0] sm:$0xff]
                %1083 = vst [vmem:[%s1041 + $0xa0] sm:$0xff] %v1082
                %v1084 = vld [vmem:[%s1040 + $0xa8] sm:$0xff]
                %1085 = vst [vmem:[%s1041 + $0xa8] sm:$0xff] %v1084
                %v1086 = vld [vmem:[%s1040 + $0xb0] sm:$0xff]
                %1087 = vst [vmem:[%s1041 + $0xb0] sm:$0xff] %v1086
                %v1088 = vld [vmem:[%s1040 + $0xb8] sm:$0xff]
                %1089 = vst [vmem:[%s1041 + $0xb8] sm:$0xff] %v1088
                %v1090 = vld [vmem:[%s1040 + $0xc0] sm:$0xff]
                %1091 = vst [vmem:[%s1041 + $0xc0] sm:$0xff] %v1090
                %v1092 = vld [vmem:[%s1040 + $0xc8] sm:$0xff]
                %1093 = vst [vmem:[%s1041 + $0xc8] sm:$0xff] %v1092
                %v1094 = vld [vmem:[%s1040 + $0xd0] sm:$0xff]
                %1095 = vst [vmem:[%s1041 + $0xd0] sm:$0xff] %v1094
                %v1096 = vld [vmem:[%s1040 + $0xd8] sm:$0xff]
                %1097 = vst [vmem:[%s1041 + $0xd8] sm:$0xff] %v1096
                %s1098 = sadd.s32 1, %s1039
                %p1099 = scmp.ge.s32.totalorder %s1098, %s1031
                %s1100 = scalar_select %p1099, 0, %s1098
                %s1101 = smul.u32 %s1100, 224
                %s1102 = smul.u32 %s1100, 224
                %s1103 = scalar_lea.vmem %s1011, %s1101 [#allocation2]
                %s1104 = scalar_lea.vmem %s1022, %s1102
              $region53: #{pupilnet_v2_forward.10} parent=47 // loop_footer
                %s1036 = sadd.s32 %s1034, 1
              $region54: #{pupilnet_v2_forward.10} parent=47 // loop_footer_branch
                %1033 = sbr.rel target = $region50
              $region55: #{pupilnet_v2_forward.10} parent=47 // loop_exit
                _
              %s1105 = sdiv.u32.pop %s1018, 28
              %s1106 = srem.u32.pop %s1018, 28
              %s1107 = smul.u32 %s1105, 28
              %s1108 = smul.u32 8, %s1107
              %s1109 = scalar_lea.vmem %s1011, %s1108 [#allocation2]
              %s1110 = smul.u32 8, %s1107
              %s1111 = scalar_lea.vmem %s1022, %s1110
              // While loop
              $region56: #{pupilnet_v2_forward.10} parent=47 // loop_pre_header
                _
              $region57: #{pupilnet_v2_forward.10} parent=47 // loop_header
                %s1113 = sphi 0, %s1115
                %p1114 = scmp.ge.s32.totalorder %s1113, %s1106
                %s1118 = sphi 0, %s1125
                %s1119 = sphi %s1109, %s1128
                %s1120 = sphi %s1111, %s1129
              $region58: #{pupilnet_v2_forward.10} parent=47 // loop_header_branch
                %1117 = sbr.rel (%p1114) target = $region62
              $region59: #{pupilnet_v2_forward.10} parent=47 // loop_body
                %v1121 = vld [vmem:[%s1119] sm:$0xff]
                %1122 = vst [vmem:[%s1120] sm:$0xff] %v1121
                %s1123 = sadd.s32 1, %s1118
                %p1124 = scmp.ge.s32.totalorder %s1123, %s1106
                %s1125 = scalar_select %p1124, 0, %s1123
                %s1126 = smul.u32 %s1125, 8
                %s1127 = smul.u32 %s1125, 8
                %s1128 = scalar_lea.vmem %s1109, %s1126 [#allocation2]
                %s1129 = scalar_lea.vmem %s1111, %s1127
              $region60: #{pupilnet_v2_forward.10} parent=47 // loop_footer
                %s1115 = sadd.s32 %s1113, 1
              $region61: #{pupilnet_v2_forward.10} parent=47 // loop_footer_branch
                %1112 = sbr.rel target = $region57
              $region62: #{pupilnet_v2_forward.10} parent=47 // loop_exit
                _
            $region48: #{pupilnet_v2_forward.10} parent=39 // pred_fallthru
              _
          $region40: #{pupilnet_v2_forward.10} parent=35 // pred_fallthru
            _
          %1233 = vnop
        $region36: #{pupilnet_v2_forward.10} parent=31 // pred_fallthru
          _
      $region32: #{pupilnet_v2_forward.10} parent=5 // pred_fallthru
        _
      %p1234 = scmp.le.s32.totalorder 2, %s9
      // Predicated region
      $region85: #{pupilnet_v2_forward.10} parent=5 // pred_check
        %p1235 = pneg %p1234
      $region86: #{pupilnet_v2_forward.10} parent=5 // pred_check_branch
        %1237 = sbr.rel (%p1235) target = $region88
      $region87: #{pupilnet_v2_forward.10} parent=5 // pred_region
        %s1238 = ssub.s32 %s9, 2
        // Predicated region
        $region89: #{pupilnet_v2_forward.10} parent=87 // pred_check
          %p1239 = pneg %p106
        $region90: #{pupilnet_v2_forward.10} parent=87 // pred_check_branch
          %1241 = sbr.rel (%p1239) target = $region92
        $region91: #{pupilnet_v2_forward.10} parent=87 // pred_region
          %s1242 = sand.u32 %s91, 1
          %s1243 = sand.u32 %s91, 1
          %s1244 = smul.addr %s1243, 224
          %s1245 = scalar_lea.vmem [#allocation2], %s1244
        $region92: #{pupilnet_v2_forward.10} parent=87 // pred_fallthru
          _
      $region88: #{pupilnet_v2_forward.10} parent=5 // pred_fallthru
        _
    $region6: #{pupilnet_v2_forward.10} parent=1 // loop_footer
      %s13 = sadd.s32 1, %s9
    $region7: #{pupilnet_v2_forward.10} parent=1 // loop_footer_branch
      %8 = sbr.rel target = $region3
    $region8: #{pupilnet_v2_forward.10} parent=1 // loop_exit
      _

// kernel: pupilnet_v2_forward.11
$region0: #{pupilnet_v2_forward.11}
  #allocation0 [shape = 'u32[]', space=smem, size = 0x4, offset = 0x4, fixed_abs, tag = 'smem constant byte address 0x4 - core index']
  #allocation1 [shape = 'u32[144,128]{1,0:T(1,128)}', space=vmem, size = 0x12000, scoped, tag = 'internal scratch']
  %s0 = inlined_call_operand.vmem [shape: bf16[90,576], index: 0, kind: input, shape index: {}]
  %s1 = inlined_call_operand.vmem [shape: bf16[576,128], index: 1, kind: input, shape index: {}]
  %s2 = inlined_call_operand.vmem [shape: f32[1,128], index: 2, kind: input, shape index: {}]
  %s3 = inlined_call_operand.vmem [shape: f32[90,128], index: 3, kind: output, shape index: {}]
  %s4 = sld [smem:[#allocation0]]
  $region45: #{pupilnet_v2_forward.11} parent=0
    _
  %s6 = ssub.s32 1, %s4
  %s7 = scalar_select 0, %s6, %s4
  loop: start=0, step=1, limit=4
  $region2: #{pupilnet_v2_forward.11} parent=0 // loop_pre_header
    _
  $region3: #{pupilnet_v2_forward.11} parent=0 // loop_header
    %s9 = sphi 0, %s13
    %p10 = scmp.ge.s32.totalorder %s9, 4
    %s19 = sphi 0, %s21
    %s22 = sphi 0, %s19
    %s23 = sphi 0, %s22
    %s39 = sphi 0, %s23
    %s43 = sphi 0, %s43
    %s45 = sphi 0, %s43
    %s46 = sphi 0, %s45
    %s60 = sphi 0, %s46
    %s64 = sphi 0, %s64
    %s66 = sphi 0, %s64
    %s67 = sphi 0, %s66
    %s81 = sphi 0, %s67
    %s87 = sphi 0, %s89
    %s90 = sphi 0, %s87
    %s91 = sphi 0, %s90
    %s107 = sphi 0, %s91
  $region4: #{pupilnet_v2_forward.11} parent=0 // loop_header_branch
    %12 = sbr.rel (%p10) target = $region8
  $region5: #{pupilnet_v2_forward.11} parent=0 // loop_body
    %s14 = ssub.s32 %s9, 1
    %s15 = ssub.s32 %s9, 2
    %s16 = sadd.s32 %s9, 1
    %s17 = ssub.s32 %s9, %s16
    %p18 = scmp.eq.s32.totalorder %s17, 0
    %s20 = sadd.s32 %s19, 1
    %s21 = scalar_select %p18, %s19, %s20
    %p24 = pneg %p18
    %p25 = scmp.eq.s32.totalorder %s9, 1
    %p26 = por %p24, %p25
    %p27 = scmp.ne.s32.totalorder %s19, %s22
    %p28 = scmp.eq.s32.totalorder %s9, 0
    %p29 = por %p27, %p28
    %p30 = scmp.ne.s32.totalorder %s19, %s22
    %p31 = scmp.eq.s32.totalorder %s14, 1
    %p32 = por %p30, %p31
    %p33 = scmp.ne.s32.totalorder %s22, %s23
    %p34 = scmp.eq.s32.totalorder %s14, 0
    %p35 = por %p33, %p34
    %p36 = scmp.ne.s32.totalorder %s22, %s23
    %p37 = scmp.eq.s32.totalorder %s15, 1
    %p38 = por %p36, %p37
    %p40 = scmp.ne.s32.totalorder %s23, %s39
    %p41 = scmp.eq.s32.totalorder %s15, 0
    %p42 = por %p40, %p41
    %s44 = sadd.s32 %s43, 1
    %p47 = scmp.eq.s32.totalorder %s9, 1
    %p48 = scmp.ne.s32.totalorder %s43, %s45
    %p49 = scmp.eq.s32.totalorder %s9, 0
    %p50 = por %p48, %p49
    %p51 = scmp.ne.s32.totalorder %s43, %s45
    %p52 = scmp.eq.s32.totalorder %s14, 1
    %p53 = por %p51, %p52
    %p54 = scmp.ne.s32.totalorder %s45, %s46
    %p55 = scmp.eq.s32.totalorder %s14, 0
    %p56 = por %p54, %p55
    %p57 = scmp.ne.s32.totalorder %s45, %s46
    %p58 = scmp.eq.s32.totalorder %s15, 1
    %p59 = por %p57, %p58
    %p61 = scmp.ne.s32.totalorder %s46, %s60
    %p62 = scmp.eq.s32.totalorder %s15, 0
    %p63 = por %p61, %p62
    %s65 = sadd.s32 %s64, 1
    %p68 = scmp.eq.s32.totalorder %s9, 1
    %p69 = scmp.ne.s32.totalorder %s64, %s66
    %p70 = scmp.eq.s32.totalorder %s9, 0
    %p71 = por %p69, %p70
    %p72 = scmp.ne.s32.totalorder %s64, %s66
    %p73 = scmp.eq.s32.totalorder %s14, 1
    %p74 = por %p72, %p73
    %p75 = scmp.ne.s32.totalorder %s66, %s67
    %p76 = scmp.eq.s32.totalorder %s14, 0
    %p77 = por %p75, %p76
    %p78 = scmp.ne.s32.totalorder %s66, %s67
    %p79 = scmp.eq.s32.totalorder %s15, 1
    %p80 = por %p78, %p79
    %p82 = scmp.ne.s32.totalorder %s67, %s81
    %p83 = scmp.eq.s32.totalorder %s15, 0
    %p84 = por %p82, %p83
    %s85 = ssub.s32 %s9, %s16
    %p86 = scmp.eq.s32.totalorder %s85, 0
    %s88 = sadd.s32 %s87, 1
    %s89 = scalar_select %p86, %s87, %s88
    %p92 = pneg %p86
    %p93 = scmp.eq.s32.totalorder %s9, 1
    %p94 = por %p92, %p93
    %p95 = scmp.ne.s32.totalorder %s87, %s90
    %p96 = scmp.eq.s32.totalorder %s9, 0
    %p97 = por %p95, %p96
    %p98 = scmp.ne.s32.totalorder %s87, %s90
    %p99 = scmp.eq.s32.totalorder %s14, 1
    %p100 = por %p98, %p99
    %p101 = scmp.ne.s32.totalorder %s90, %s91
    %p102 = scmp.eq.s32.totalorder %s14, 0
    %p103 = por %p101, %p102
    %p104 = scmp.ne.s32.totalorder %s90, %s91
    %p105 = scmp.eq.s32.totalorder %s15, 1
    %p106 = por %p104, %p105
    %p108 = scmp.ne.s32.totalorder %s91, %s107
    %p109 = scmp.eq.s32.totalorder %s15, 0
    %p110 = por %p108, %p109
    %p111 = scmp.le.s32.totalorder 1, %s9
    %p112 = scmp.lt.s32.totalorder %s9, 3
    %p113 = pnand %p111, %p112
    %p114 = pneg %p113
    // Predicated region
    $region9: #{pupilnet_v2_forward.11} parent=5 // pred_check
      _
    $region10: #{pupilnet_v2_forward.11} parent=5 // pred_check_branch
      %116 = sbr.rel (%p113) target = $region12
    $region11: #{pupilnet_v2_forward.11} parent=5 // pred_region
      %s117 = ssub.s32 %s9, 1
      // Predicated region
      $region13: #{pupilnet_v2_forward.11} parent=11 // pred_check
        %p118 = pneg %p56
      $region14: #{pupilnet_v2_forward.11} parent=11 // pred_check_branch
        %120 = sbr.rel (%p118) target = $region16
      $region15: #{pupilnet_v2_forward.11} parent=11 // pred_region
        _
      $region16: #{pupilnet_v2_forward.11} parent=11 // pred_fallthru
        _
      // Predicated region
      $region17: #{pupilnet_v2_forward.11} parent=11 // pred_check
        %p121 = pneg %p77
      $region18: #{pupilnet_v2_forward.11} parent=11 // pred_check_branch
        %123 = sbr.rel (%p121) target = $region20
      $region19: #{pupilnet_v2_forward.11} parent=11 // pred_region
        _
      $region20: #{pupilnet_v2_forward.11} parent=11 // pred_fallthru
        _
    $region12: #{pupilnet_v2_forward.11} parent=5 // pred_fallthru
      _
    %p124 = scmp.lt.s32.totalorder %s9, 2
    // Predicated region
    $region21: #{pupilnet_v2_forward.11} parent=5 // pred_check
      %p125 = pneg %p124
    $region22: #{pupilnet_v2_forward.11} parent=5 // pred_check_branch
      %127 = sbr.rel (%p125) target = $region24
    $region23: #{pupilnet_v2_forward.11} parent=5 // pred_region
      // Predicated region
      $region25: #{pupilnet_v2_forward.11} parent=23 // pred_check
        %p128 = pneg %p29
      $region26: #{pupilnet_v2_forward.11} parent=23 // pred_check_branch
        %130 = sbr.rel (%p128) target = $region28
      $region27: #{pupilnet_v2_forward.11} parent=23 // pred_region
        %s131 = smul.u32 6, %s9
        %p132 = scmp.lt.s32.totalorder %s131, 11
        %s133 = scalar_select %p132, %s131, 11
        %s134 = smul.addr %s133, 5
        %s135 = smul.addr %s134, 4
        %s136 = scalar_lea.vmem %s0, %s135
        %s137 = smul.u32 6, %s9
      $region28: #{pupilnet_v2_forward.11} parent=23 // pred_fallthru
        _
    $region24: #{pupilnet_v2_forward.11} parent=5 // pred_fallthru
      _
    %p138 = scmp.le.s32.totalorder 1, %s9
    %p139 = scmp.lt.s32.totalorder %s9, 3
    %p140 = pnand %p138, %p139
    %p141 = pneg %p140
    // Predicated region
    $region29: #{pupilnet_v2_forward.11} parent=5 // pred_check
      _
    $region30: #{pupilnet_v2_forward.11} parent=5 // pred_check_branch
      %143 = sbr.rel (%p140) target = $region32
    $region31: #{pupilnet_v2_forward.11} parent=5 // pred_region
      %s144 = ssub.s32 %s9, 1
      %s145 = smul.u32 6, %s14
      %p146 = scmp.lt.s32.totalorder %s145, 11
      %s147 = scalar_select %p146, %s145, 11
      %s148 = smul.addr %s147, 5
      %s149 = smul.addr %s148, 4
      %s150 = scalar_lea.vmem %s0, %s149
      %p151 = pneg %p35
      %p152 = pneg %p32
      %p153 = pneg %p56
      %p154 = pneg %p53
      %p155 = pneg %p77
      %p156 = pneg %p74
      %p157 = pneg %p103
      %p158 = pneg %p100
      %s159 = smul.u32 6, %s14
      %p160 = scmp.lt.s32.totalorder %s159, 11
      %s161 = scalar_select %p160, %s159, 11
      %s162 = smul.addr %s161, 8
      %s163 = scalar_lea.vmem %s3, %s162
      %s164 = smul.u32 6, %s14
      %p165 = scmp.lt.s32.totalorder %s164, 11
      %s166 = scalar_select %p165, %s164, 11
      %s167 = smul.addr %s166, 5
      %s168 = smul.addr %s167, 4
      %s169 = scalar_lea.vmem %s0, %s168
      %s170 = smul.u32 6, %s14
      %s171 = smul.u32 6, %s14
      %p172 = scmp.lt.s32.totalorder %s171, 11
      %s173 = scalar_select %p172, %s171, 11
      %s174 = smul.addr %s173, 8
      %s175 = scalar_lea.vmem %s3, %s174
      %s176 = smul.u32 6, %s14
      %v178 = vld [vmem:[%s169] sm:$0xff]
      %v179 = vld [vmem:[%s169 + $0x8] sm:$0xff]
      %v180 = vld [vmem:[%s169 + $0x10] sm:$0xf]
      %v181 = vld [vmem:[%s169 + $0x14] sm:$0xff]
      %v182 = vld [vmem:[%s169 + $0x1c] sm:$0xff]
      %v183 = vld [vmem:[%s169 + $0x24] sm:$0xf]
      %v184 = vld [vmem:[%s169 + $0x28] sm:$0xff]
      %v185 = vld [vmem:[%s169 + $0x30] sm:$0xff]
      %v186 = vld [vmem:[%s169 + $0x38] sm:$0xf]
      %v187 = vld [vmem:[%s169 + $0x3c] sm:$0xff]
      %v188 = vld [vmem:[%s169 + $0x44] sm:$0xff]
      %v189 = vld [vmem:[%s169 + $0x4c] sm:$0xf]
      %v190 = vld [vmem:[%s169 + $0x50] sm:$0xff]
      %v191 = vld [vmem:[%s169 + $0x58] sm:$0xff]
      %v192 = vld [vmem:[%s169 + $0x60] sm:$0xf]
      %v193 = vld [vmem:[%s169 + $0x64] sm:$0xff]
      %v194 = vld [vmem:[%s169 + $0x6c] sm:$0xff]
      %v195 = vld [vmem:[%s169 + $0x74] sm:$0xf]
      %v196 = vld [vmem:[%s1] sm:$0xf]
      %v197 = vld [vmem:[%s1 + $0x4] sm:$0xf]
      %v198 = vld [vmem:[%s1 + $0x8] sm:$0xf]
      %v199 = vld [vmem:[%s1 + $0xc] sm:$0xf]
      %v200 = vld [vmem:[%s1 + $0x10] sm:$0xf]
      %v201 = vld [vmem:[%s1 + $0x14] sm:$0xf]
      %v202 = vld [vmem:[%s1 + $0x18] sm:$0xf]
      %v203 = vld [vmem:[%s1 + $0x1c] sm:$0xf]
      %v204 = vld [vmem:[%s1 + $0x20] sm:$0xf]
      %v205 = vld [vmem:[%s1 + $0x24] sm:$0xf]
      %v206 = vld [vmem:[%s1 + $0x28] sm:$0xf]
      %v207 = vld [vmem:[%s1 + $0x2c] sm:$0xf]
      %v208 = vld [vmem:[%s1 + $0x30] sm:$0xf]
      %v209 = vld [vmem:[%s1 + $0x34] sm:$0xf]
      %v210 = vld [vmem:[%s1 + $0x38] sm:$0xf]
      %v211 = vld [vmem:[%s1 + $0x3c] sm:$0xf]
      %v212 = vld [vmem:[%s1 + $0x40] sm:$0xf]
      %v213 = vld [vmem:[%s1 + $0x44] sm:$0xf]
      %v214 = vld [vmem:[%s1 + $0x48] sm:$0xf]
      %v215 = vld [vmem:[%s1 + $0x4c] sm:$0xf]
      %v216 = vld [vmem:[%s1 + $0x50] sm:$0xf]
      %v217 = vld [vmem:[%s1 + $0x54] sm:$0xf]
      %v218 = vld [vmem:[%s1 + $0x58] sm:$0xf]
      %v219 = vld [vmem:[%s1 + $0x5c] sm:$0xf]
      %v220 = vld [vmem:[%s1 + $0x60] sm:$0xf]
      %v221 = vld [vmem:[%s1 + $0x64] sm:$0xf]
      %v222 = vld [vmem:[%s1 + $0x68] sm:$0xf]
      %v223 = vld [vmem:[%s1 + $0x6c] sm:$0xf]
      %v224 = vld [vmem:[%s1 + $0x70] sm:$0xf]
      %v225 = vld [vmem:[%s1 + $0x74] sm:$0xf]
      %v226 = vld [vmem:[%s1 + $0x78] sm:$0xf]
      %v227 = vld [vmem:[%s1 + $0x7c] sm:$0xf]
      %v228 = vld [vmem:[%s1 + $0x80] sm:$0xf]
      %v229 = vld [vmem:[%s1 + $0x84] sm:$0xf]
      %v230 = vld [vmem:[%s1 + $0x88] sm:$0xf]
      %v231 = vld [vmem:[%s1 + $0x8c] sm:$0xf]
      %v232 = vld [vmem:[%s1 + $0x90] sm:$0xf]
      %v233 = vld [vmem:[%s1 + $0x94] sm:$0xf]
      %v234 = vld [vmem:[%s1 + $0x98] sm:$0xf]
      %v235 = vld [vmem:[%s1 + $0x9c] sm:$0xf]
      %v236 = vld [vmem:[%s1 + $0xa0] sm:$0xf]
      %v237 = vld [vmem:[%s1 + $0xa4] sm:$0xf]
      %v238 = vld [vmem:[%s1 + $0xa8] sm:$0xf]
      %v239 = vld [vmem:[%s1 + $0xac] sm:$0xf]
      %v240 = vld [vmem:[%s1 + $0xb0] sm:$0xf]
      %v241 = vld [vmem:[%s1 + $0xb4] sm:$0xf]
      %v242 = vld [vmem:[%s1 + $0xb8] sm:$0xf]
      %v243 = vld [vmem:[%s1 + $0xbc] sm:$0xf]
      %v244 = vld [vmem:[%s1 + $0xc0] sm:$0xf]
      %v245 = vld [vmem:[%s1 + $0xc4] sm:$0xf]
      %v246 = vld [vmem:[%s1 + $0xc8] sm:$0xf]
      %v247 = vld [vmem:[%s1 + $0xcc] sm:$0xf]
      %v248 = vld [vmem:[%s1 + $0xd0] sm:$0xf]
      %v249 = vld [vmem:[%s1 + $0xd4] sm:$0xf]
      %v250 = vld [vmem:[%s1 + $0xd8] sm:$0xf]
      %v251 = vld [vmem:[%s1 + $0xdc] sm:$0xf]
      %v252 = vld [vmem:[%s1 + $0xe0] sm:$0xf]
      %v253 = vld [vmem:[%s1 + $0xe4] sm:$0xf]
      %v254 = vld [vmem:[%s1 + $0xe8] sm:$0xf]
      %v255 = vld [vmem:[%s1 + $0xec] sm:$0xf]
      %v256 = vld [vmem:[%s1 + $0xf0] sm:$0xf]
      %v257 = vld [vmem:[%s1 + $0xf4] sm:$0xf]
      %v258 = vld [vmem:[%s1 + $0xf8] sm:$0xf]
      %v259 = vld [vmem:[%s1 + $0xfc] sm:$0xf]
      %v260 = vld [vmem:[%s1 + $0x100] sm:$0xf]
      %v261 = vld [vmem:[%s1 + $0x104] sm:$0xf]
      %v262 = vld [vmem:[%s1 + $0x108] sm:$0xf]
      %v263 = vld [vmem:[%s1 + $0x10c] sm:$0xf]
      %v264 = vld [vmem:[%s1 + $0x110] sm:$0xf]
      %v265 = vld [vmem:[%s1 + $0x114] sm:$0xf]
      %v266 = vld [vmem:[%s1 + $0x118] sm:$0xf]
      %v267 = vld [vmem:[%s1 + $0x11c] sm:$0xf]
      %v268 = vld [vmem:[%s2] sm:$0x1]
      %v270 = vlaneseq
      %v271 = vshrl.u32 %v270, 7
      %v272 = vsub.s32 0, %v271
      %v273 = vrot.slane %v268, %v272
      %v293 = vunpack.c.l.b16 %v178
      %v294 = vunpack.c.h.b16 %v178
      %v295 = vunpack.c.l.b16 %v179
      %v296 = vunpack.c.h.b16 %v179
      %v297 = vunpack.c.l.b16 %v180
      %v298 = vunpack.c.l.b16 %v181
      %v299 = vunpack.c.h.b16 %v181
      %v300 = vunpack.c.l.b16 %v182
      %v301 = vunpack.c.h.b16 %v182
      %v302 = vunpack.c.l.b16 %v183
      %v303 = vunpack.c.l.b16 %v184
      %v304 = vunpack.c.h.b16 %v184
      %v305 = vunpack.c.l.b16 %v185
      %v306 = vunpack.c.h.b16 %v185
      %v307 = vunpack.c.l.b16 %v186
      %v308 = vunpack.c.l.b16 %v187
      %v309 = vunpack.c.h.b16 %v187
      %v310 = vunpack.c.l.b16 %v188
      %v311 = vunpack.c.h.b16 %v188
      %v312 = vunpack.c.l.b16 %v189
      %v313 = vunpack.c.l.b16 %v190
      %v314 = vunpack.c.h.b16 %v190
      %v315 = vunpack.c.l.b16 %v191
      %v316 = vunpack.c.h.b16 %v191
      %v317 = vunpack.c.l.b16 %v192
      %v318 = vunpack.c.l.b16 %v193
      %v319 = vunpack.c.h.b16 %v193
      %v320 = vunpack.c.l.b16 %v194
      %v321 = vunpack.c.h.b16 %v194
      %v322 = vunpack.c.l.b16 %v195
      %v323 = vpack.c.b16 %v298, %v293
      %v324 = vpack.c.b16 %v299, %v294
      %v325 = vpack.c.b16 %v300, %v295
      %v326 = vpack.c.b16 %v301, %v296
      %v327 = vpack.c.b16 %v302, %v297
      %v328 = vpack.c.b16 %v308, %v303
      %v329 = vpack.c.b16 %v309, %v304
      %v330 = vpack.c.b16 %v310, %v305
      %v331 = vpack.c.b16 %v311, %v306
      %v332 = vpack.c.b16 %v312, %v307
      %v333 = vpack.c.b16 %v318, %v313
      %v334 = vpack.c.b16 %v319, %v314
      %v335 = vpack.c.b16 %v320, %v315
      %v336 = vpack.c.b16 %v321, %v316
      %v337 = vpack.c.b16 %v322, %v317
      %v422 = vunpack.c.l.b16 %v196
      %v423 = vunpack.c.l.b16 %v197
      %v424 = vunpack.c.l.b16 %v198
      %v425 = vunpack.c.l.b16 %v199
      %v426 = vunpack.c.l.b16 %v200
      %v427 = vunpack.c.l.b16 %v201
      %v428 = vunpack.c.l.b16 %v202
      %v429 = vunpack.c.l.b16 %v203
      %v430 = vunpack.c.l.b16 %v204
      %v431 = vunpack.c.l.b16 %v205
      %v432 = vunpack.c.l.b16 %v206
      %v433 = vunpack.c.l.b16 %v207
      %v434 = vunpack.c.l.b16 %v208
      %v435 = vunpack.c.l.b16 %v209
      %v436 = vunpack.c.l.b16 %v210
      %v437 = vunpack.c.l.b16 %v211
      %v438 = vunpack.c.l.b16 %v212
      %v439 = vunpack.c.l.b16 %v213
      %v440 = vunpack.c.l.b16 %v214
      %v441 = vunpack.c.l.b16 %v215
      %v442 = vunpack.c.l.b16 %v216
      %v443 = vunpack.c.l.b16 %v217
      %v444 = vunpack.c.l.b16 %v218
      %v445 = vunpack.c.l.b16 %v219
      %v446 = vunpack.c.l.b16 %v220
      %v447 = vunpack.c.l.b16 %v221
      %v448 = vunpack.c.l.b16 %v222
      %v449 = vunpack.c.l.b16 %v223
      %v450 = vunpack.c.l.b16 %v224
      %v451 = vunpack.c.l.b16 %v225
      %v452 = vunpack.c.l.b16 %v226
      %v453 = vunpack.c.l.b16 %v227
      %v454 = vunpack.c.l.b16 %v228
      %v455 = vunpack.c.l.b16 %v229
      %v456 = vunpack.c.l.b16 %v230
      %v457 = vunpack.c.l.b16 %v231
      %v458 = vunpack.c.l.b16 %v232
      %v459 = vunpack.c.l.b16 %v233
      %v460 = vunpack.c.l.b16 %v234
      %v461 = vunpack.c.l.b16 %v235
      %v462 = vunpack.c.l.b16 %v236
      %v463 = vunpack.c.l.b16 %v237
      %v464 = vunpack.c.l.b16 %v238
      %v465 = vunpack.c.l.b16 %v239
      %v466 = vunpack.c.l.b16 %v240
      %v467 = vunpack.c.l.b16 %v241
      %v468 = vunpack.c.l.b16 %v242
      %v469 = vunpack.c.l.b16 %v243
      %v470 = vunpack.c.l.b16 %v244
      %v471 = vunpack.c.l.b16 %v245
      %v472 = vunpack.c.l.b16 %v246
      %v473 = vunpack.c.l.b16 %v247
      %v474 = vunpack.c.l.b16 %v248
      %v475 = vunpack.c.l.b16 %v249
      %v476 = vunpack.c.l.b16 %v250
      %v477 = vunpack.c.l.b16 %v251
      %v478 = vunpack.c.l.b16 %v252
      %v479 = vunpack.c.l.b16 %v253
      %v480 = vunpack.c.l.b16 %v254
      %v481 = vunpack.c.l.b16 %v255
      %v482 = vunpack.c.l.b16 %v256
      %v483 = vunpack.c.l.b16 %v257
      %v484 = vunpack.c.l.b16 %v258
      %v485 = vunpack.c.l.b16 %v259
      %v486 = vunpack.c.l.b16 %v260
      %v487 = vunpack.c.l.b16 %v261
      %v488 = vunpack.c.l.b16 %v262
      %v489 = vunpack.c.l.b16 %v263
      %v490 = vunpack.c.l.b16 %v264
      %v491 = vunpack.c.l.b16 %v265
      %v492 = vunpack.c.l.b16 %v266
      %v493 = vunpack.c.l.b16 %v267
      %v494 = vpack.c.b16 %v423, %v422
      %v495 = vpack.c.b16 %v425, %v424
      %v496 = vpack.c.b16 %v427, %v426
      %v497 = vpack.c.b16 %v429, %v428
      %v498 = vpack.c.b16 %v431, %v430
      %v499 = vpack.c.b16 %v433, %v432
      %v500 = vpack.c.b16 %v435, %v434
      %v501 = vpack.c.b16 %v437, %v436
      %v502 = vpack.c.b16 %v439, %v438
      %v503 = vpack.c.b16 %v441, %v440
      %v504 = vpack.c.b16 %v443, %v442
      %v505 = vpack.c.b16 %v445, %v444
      %v506 = vpack.c.b16 %v447, %v446
      %v507 = vpack.c.b16 %v449, %v448
      %v508 = vpack.c.b16 %v451, %v450
      %v509 = vpack.c.b16 %v453, %v452
      %v510 = vpack.c.b16 %v455, %v454
      %v511 = vpack.c.b16 %v457, %v456
      %v512 = vpack.c.b16 %v459, %v458
      %v513 = vpack.c.b16 %v461, %v460
      %v514 = vpack.c.b16 %v463, %v462
      %v515 = vpack.c.b16 %v465, %v464
      %v516 = vpack.c.b16 %v467, %v466
      %v517 = vpack.c.b16 %v469, %v468
      %v518 = vpack.c.b16 %v471, %v470
      %v519 = vpack.c.b16 %v473, %v472
      %v520 = vpack.c.b16 %v475, %v474
      %v521 = vpack.c.b16 %v477, %v476
      %v522 = vpack.c.b16 %v479, %v478
      %v523 = vpack.c.b16 %v481, %v480
      %v524 = vpack.c.b16 %v483, %v482
      %v525 = vpack.c.b16 %v485, %v484
      %v526 = vpack.c.b16 %v487, %v486
      %v527 = vpack.c.b16 %v489, %v488
      %v528 = vpack.c.b16 %v491, %v490
      %v529 = vpack.c.b16 %v493, %v492
      %vm566 = vcmask 523264
      %v568 = vsel %vm566, %v327, 0
      %v571 = vsel %vm566, %v332, 0
      %v574 = vsel %vm566, %v337, 0
      %576 = vmatprep.subr.bf16.mxu0 0
      %577 = vmatpush1.bf16.msra.mxu0 %v494
      %578 = vmatprep.subr.bf16.mxu0 0
      %579 = vmatpush1.bf16.msra.mxu0 %v495
      %580 = vmatprep.subr.bf16.mxu0 0
      %581 = vmatpush1.bf16.msra.mxu0 %v496
      %582 = vmatprep.subr.bf16.mxu0 0
      %583 = vmatpush1.bf16.msra.mxu0 %v497
      %584 = vmatprep.subr.bf16.mxu0 0
      %585 = vmatpush1.bf16.msra.mxu0 %v498
      %586 = vmatprep.subr.bf16.mxu0 0
      %587 = vmatpush1.bf16.msra.mxu0 %v499
      %588 = vmatprep.subr.bf16.mxu0 0
      %589 = vmatpush1.bf16.msra.mxu0 %v500
      %590 = vmatprep.subr.bf16.mxu0 0
      %591 = vmatpush1.bf16.msra.mxu0 %v501
      %592 = vmatprep.subr.bf16.mxu0 0
      %593 = vmatpush1.bf16.msra.mxu0 %v502
      %594 = vmatprep.subr.bf16.mxu0 0
      %595 = vmatpush1.bf16.msra.mxu0 %v503
      %596 = vmatprep.subr.bf16.mxu0 0
      %597 = vmatpush1.bf16.msra.mxu0 %v504
      %598 = vmatprep.subr.bf16.mxu0 0
      %599 = vmatpush1.bf16.msra.mxu0 %v505
      %600 = vmatprep.subr.bf16.mxu0 0
      %601 = vmatpush1.bf16.msra.mxu0 %v506
      %602 = vmatprep.subr.bf16.mxu0 0
      %603 = vmatpush1.bf16.msra.mxu0 %v507
      %604 = vmatprep.subr.bf16.mxu0 0
      %605 = vmatpush1.bf16.msra.mxu0 %v508
      %606 = vmatprep.subr.bf16.mxu0 0
      %607 = vmatpush1.bf16.msra.mxu0 %v509
      %608 = vmatprep.mubr.bf16.mxu0 %v324
      %609 = vmatmul.mubr.bf16.gmra.mrb[0].mxu0 %v323
      %v610 = vpop.f32.mrb[0].mxu0
      %v611 = vadd.f32 %v273, %v610
      %v612 = vpop.f32.mrb[0].mxu0
      %v613 = vpop.f32.mrb[0].mxu0
      %v614 = vadd.f32 %v273, %v613
      %v615 = vpop.f32.mrb[0].mxu0
      %616 = vmatprep.mubr.bf16.mxu0 %v329
      %617 = vmatmul.mubr.bf16.gmra.mrb[0].mxu0 %v328
      %v618 = vpop.f32.mrb[0].mxu0
      %v619 = vadd.f32 %v273, %v618
      %v620 = vpop.f32.mrb[0].mxu0
      %v621 = vpop.f32.mrb[0].mxu0
      %v622 = vadd.f32 %v273, %v621
      %v623 = vpop.f32.mrb[0].mxu0
      %624 = vmatprep.mubr.bf16.mxu0 %v334
      %625 = vmatmul.mubr.bf16.gmra.mrb[0].mxu0 %v333
      %v626 = vpop.f32.mrb[0].mxu0
      %v627 = vadd.f32 %v273, %v626
      %v628 = vpop.f32.mrb[0].mxu0
      %v629 = vpop.f32.mrb[0].mxu0
      %v630 = vadd.f32 %v273, %v629
      %v631 = vpop.f32.mrb[0].mxu0
      %632 = vdwg.mxu0
      %633 = vmatprep.subr.bf16.mxu0 0
      %634 = vmatpush1.bf16.msra.mxu0 %v510
      %635 = vmatprep.subr.bf16.mxu0 0
      %636 = vmatpush1.bf16.msra.mxu0 %v511
      %637 = vmatprep.subr.bf16.mxu0 0
      %638 = vmatpush1.bf16.msra.mxu0 %v512
      %639 = vmatprep.subr.bf16.mxu0 0
      %640 = vmatpush1.bf16.msra.mxu0 %v513
      %641 = vmatprep.subr.bf16.mxu0 0
      %642 = vmatpush1.bf16.msra.mxu0 %v514
      %643 = vmatprep.subr.bf16.mxu0 0
      %644 = vmatpush1.bf16.msra.mxu0 %v515
      %645 = vmatprep.subr.bf16.mxu0 0
      %646 = vmatpush1.bf16.msra.mxu0 %v516
      %647 = vmatprep.subr.bf16.mxu0 0
      %648 = vmatpush1.bf16.msra.mxu0 %v517
      %649 = vmatprep.subr.bf16.mxu0 0
      %650 = vmatpush1.bf16.msra.mxu0 %v518
      %651 = vmatprep.subr.bf16.mxu0 0
      %652 = vmatpush1.bf16.msra.mxu0 %v519
      %653 = vmatprep.subr.bf16.mxu0 0
      %654 = vmatpush1.bf16.msra.mxu0 %v520
      %655 = vmatprep.subr.bf16.mxu0 0
      %656 = vmatpush1.bf16.msra.mxu0 %v521
      %657 = vmatprep.subr.bf16.mxu0 0
      %658 = vmatpush1.bf16.msra.mxu0 %v522
      %659 = vmatprep.subr.bf16.mxu0 0
      %660 = vmatpush1.bf16.msra.mxu0 %v523
      %661 = vmatprep.subr.bf16.mxu0 0
      %662 = vmatpush1.bf16.msra.mxu0 %v524
      %663 = vmatprep.subr.bf16.mxu0 0
      %664 = vmatpush1.bf16.msra.mxu0 %v525
      %665 = vmatprep.mubr.bf16.mxu0 %v326
      %666 = vmatmul.mubr.bf16.gmra.mrb[0].mxu0 %v325
      %v667 = vpop.f32.mrb[0].mxu0
      %v668 = vadd.f32 %v611, %v667
      %v669 = vpop.f32.mrb[0].mxu0
      %v670 = vpop.f32.mrb[0].mxu0
      %v671 = vadd.f32 %v614, %v670
      %v672 = vpop.f32.mrb[0].mxu0
      %673 = vmatprep.mubr.bf16.mxu0 %v331
      %674 = vmatmul.mubr.bf16.gmra.mrb[0].mxu0 %v330
      %v675 = vpop.f32.mrb[0].mxu0
      %v676 = vadd.f32 %v619, %v675
      %v677 = vpop.f32.mrb[0].mxu0
      %v678 = vpop.f32.mrb[0].mxu0
      %v679 = vadd.f32 %v622, %v678
      %v680 = vpop.f32.mrb[0].mxu0
      %681 = vmatprep.mubr.bf16.mxu0 %v336
      %682 = vmatmul.mubr.bf16.gmra.mrb[0].mxu0 %v335
      %v683 = vpop.f32.mrb[0].mxu0
      %v684 = vadd.f32 %v627, %v683
      %v685 = vpop.f32.mrb[0].mxu0
      %v686 = vpop.f32.mrb[0].mxu0
      %v687 = vadd.f32 %v630, %v686
      %v688 = vpop.f32.mrb[0].mxu0
      %689 = vdwg.mxu0
      %690 = vmatprep.subr.bf16.mxu0 0
      %691 = vmatpush1.bf16.msra.mxu0 %v526
      %692 = vmatprep.subr.bf16.mxu0 0
      %693 = vmatpush1.bf16.msra.mxu0 %v527
      %694 = vmatprep.subr.bf16.mxu0 0
      %695 = vmatpush1.bf16.msra.mxu0 %v528
      %696 = vmatprep.subr.bf16.mxu0 0
      %697 = vmatpush1.bf16.msra.mxu0 %v529
      %698 = vmatprep.subr.bf16.mxu0 0
      %699 = vmatpush1.bf16.msra.mxu0 0
      %700 = vmatprep.subr.bf16.mxu0 0
      %701 = vmatpush1.bf16.msra.mxu0 0
      %702 = vmatprep.subr.bf16.mxu0 0
      %703 = vmatpush1.bf16.msra.mxu0 0
      %704 = vmatprep.subr.bf16.mxu0 0
      %705 = vmatpush1.bf16.msra.mxu0 0
      %706 = vmatprep.subr.bf16.mxu0 0
      %707 = vmatpush1.bf16.msra.mxu0 0
      %708 = vmatprep.subr.bf16.mxu0 0
      %709 = vmatpush1.bf16.msra.mxu0 0
      %710 = vmatprep.subr.bf16.mxu0 0
      %711 = vmatpush1.bf16.msra.mxu0 0
      %712 = vmatprep.subr.bf16.mxu0 0
      %713 = vmatpush1.bf16.msra.mxu0 0
      %714 = vmatprep.subr.bf16.mxu0 0
      %715 = vmatpush1.bf16.msra.mxu0 0
      %716 = vmatprep.subr.bf16.mxu0 0
      %717 = vmatpush1.bf16.msra.mxu0 0
      %718 = vmatprep.subr.bf16.mxu0 0
      %719 = vmatpush1.bf16.msra.mxu0 0
      %720 = vmatprep.subr.bf16.mxu0 0
      %721 = vmatpush1.bf16.msra.mxu0 0
      %722 = vmatprep.mubr.bf16.mxu0 0
      %723 = vmatmul.mubr.bf16.gmra.mrb[0].mxu0 %v568
      %v724 = vpop.f32.mrb[0].mxu0
      %v725 = vadd.f32 %v668, %v724
      %v726 = vpop.f32.mrb[0].mxu0
      %v727 = vpop.f32.mrb[0].mxu0
      %v728 = vadd.f32 %v671, %v727
      %v729 = vpop.f32.mrb[0].mxu0
      %730 = vmatprep.mubr.bf16.mxu0 0
      %731 = vmatmul.mubr.bf16.gmra.mrb[0].mxu0 %v571
      %v732 = vpop.f32.mrb[0].mxu0
      %v733 = vadd.f32 %v676, %v732
      %v734 = vpop.f32.mrb[0].mxu0
      %v735 = vpop.f32.mrb[0].mxu0
      %v736 = vadd.f32 %v679, %v735
      %v737 = vpop.f32.mrb[0].mxu0
      %738 = vmatprep.mubr.bf16.mxu0 0
      %739 = vmatmul.mubr.bf16.gmra.mrb[0].mxu0 %v574
      %v740 = vpop.f32.mrb[0].mxu0
      %v741 = vadd.f32 %v684, %v740
      %v742 = vpop.f32.mrb[0].mxu0
      %v743 = vpop.f32.mrb[0].mxu0
      %v744 = vadd.f32 %v687, %v743
      %v745 = vpop.f32.mrb[0].mxu0
      %746 = vdwg.mxu0
      %v747 = vmax.f32 %v725, 0.0
      %v748 = vmax.f32 %v728, 0.0
      %v749 = vmax.f32 %v733, 0.0
      %v750 = vmax.f32 %v736, 0.0
      %v751 = vmax.f32 %v741, 0.0
      %v752 = vmax.f32 %v744, 0.0
      %753 = vst [vmem:[%s175] sm:$0xff] %v747
      %754 = vst [vmem:[%s175 + $0x8] sm:$0xff] %v748
      %755 = vst [vmem:[%s175 + $0x10] sm:$0xff] %v749
      %756 = vst [vmem:[%s175 + $0x18] sm:$0xff] %v750
      %757 = vst [vmem:[%s175 + $0x20] sm:$0xff] %v751
      %758 = vst [vmem:[%s175 + $0x28] sm:$0xff] %v752
      %s759 = smul.u32 6, %s14
      %p760 = scmp.lt.s32.totalorder %s759, 11
      %s761 = scalar_select %p760, %s759, 11
      %s762 = smul.addr %s761, 8
      %s763 = scalar_lea.vmem %s3, %s762
      // Predicated region
      $region33: #{pupilnet_v2_forward.11} parent=31 // pred_check
        %p764 = pneg %p100
      $region34: #{pupilnet_v2_forward.11} parent=31 // pred_check_branch
        %766 = sbr.rel (%p764) target = $region36
      $region35: #{pupilnet_v2_forward.11} parent=31 // pred_region
        %s767 = smul.u32 6, %s14
      $region36: #{pupilnet_v2_forward.11} parent=31 // pred_fallthru
        _
    $region32: #{pupilnet_v2_forward.11} parent=5 // pred_fallthru
      _
    %p768 = scmp.le.s32.totalorder 2, %s9
    // Predicated region
    $region37: #{pupilnet_v2_forward.11} parent=5 // pred_check
      %p769 = pneg %p768
    $region38: #{pupilnet_v2_forward.11} parent=5 // pred_check_branch
      %771 = sbr.rel (%p769) target = $region40
    $region39: #{pupilnet_v2_forward.11} parent=5 // pred_region
      %s772 = ssub.s32 %s9, 2
      // Predicated region
      $region41: #{pupilnet_v2_forward.11} parent=39 // pred_check
        %p773 = pneg %p106
      $region42: #{pupilnet_v2_forward.11} parent=39 // pred_check_branch
        %775 = sbr.rel (%p773) target = $region44
      $region43: #{pupilnet_v2_forward.11} parent=39 // pred_region
        %s776 = smul.u32 6, %s15
        %p777 = scmp.lt.s32.totalorder %s776, 11
        %s778 = scalar_select %p777, %s776, 11
        %s779 = smul.addr %s778, 8
        %s780 = scalar_lea.vmem %s3, %s779
      $region44: #{pupilnet_v2_forward.11} parent=39 // pred_fallthru
        _
    $region40: #{pupilnet_v2_forward.11} parent=5 // pred_fallthru
      _
  $region6: #{pupilnet_v2_forward.11} parent=0 // loop_footer
    %s13 = sadd.s32 1, %s9
  $region7: #{pupilnet_v2_forward.11} parent=0 // loop_footer_branch
    %8 = sbr.rel target = $region3
  $region8: #{pupilnet_v2_forward.11} parent=0 // loop_exit
    _

// kernel: pupilnet_v2_forward.12
$region0: #{pupilnet_v2_forward.12}
  #allocation0 [shape = 'u32[]', space=smem, size = 0x4, offset = 0x4, fixed_abs, tag = 'smem constant byte address 0x4 - core index']
  #allocation1 [shape = 'u32[144,128]{1,0:T(1,128)}', space=vmem, size = 0x12000, scoped, tag = 'internal scratch']
  %s0 = inlined_call_operand.vmem [shape: bf16[16,1152], index: 0, kind: input, shape index: {}]
  %s1 = inlined_call_operand.vmem [shape: bf16[1152,256], index: 1, kind: input, shape index: {}]
  %s2 = inlined_call_operand.vmem [shape: f32[1,256], index: 2, kind: input, shape index: {}]
  %s3 = inlined_call_operand.vmem [shape: f32[16,256], index: 3, kind: output, shape index: {}]
  %s4 = sld [smem:[#allocation0]]
  $region22: #{pupilnet_v2_forward.12} parent=0
    _
  %s6 = ssub.s32 1, %s4
  %s7 = scalar_select 0, %s6, %s4
  // Predicated region
  $region2: #{pupilnet_v2_forward.12} parent=0 // pred_check
    _
  $region3: #{pupilnet_v2_forward.12} parent=0 // pred_check_branch
    %9 = sbr.rel (0) target = $region5
  $region4: #{pupilnet_v2_forward.12} parent=0 // pred_region
    _
  $region5: #{pupilnet_v2_forward.12} parent=0 // pred_fallthru
    _
  // Predicated region
  $region6: #{pupilnet_v2_forward.12} parent=0 // pred_check
    _
  $region7: #{pupilnet_v2_forward.12} parent=0 // pred_check_branch
    %11 = sbr.rel (0) target = $region9
  $region8: #{pupilnet_v2_forward.12} parent=0 // pred_region
    _
  $region9: #{pupilnet_v2_forward.12} parent=0 // pred_fallthru
    _
  // Predicated region
  $region10: #{pupilnet_v2_forward.12} parent=0 // pred_check
    _
  $region11: #{pupilnet_v2_forward.12} parent=0 // pred_check_branch
    %13 = sbr.rel (0) target = $region13
  $region12: #{pupilnet_v2_forward.12} parent=0 // pred_region
    _
  $region13: #{pupilnet_v2_forward.12} parent=0 // pred_fallthru
    _
  %v15 = vld [vmem:[%s0] sm:$0xff]
  %v16 = vld [vmem:[%s0 + $0x8] sm:$0xff]
  %v17 = vld [vmem:[%s0 + $0x10] sm:$0xff]
  %v18 = vld [vmem:[%s0 + $0x18] sm:$0xff]
  %v19 = vld [vmem:[%s0 + $0x20] sm:$0xf]
  %v20 = vld [vmem:[%s0 + $0x24] sm:$0xff]
  %v21 = vld [vmem:[%s0 + $0x2c] sm:$0xff]
  %v22 = vld [vmem:[%s0 + $0x34] sm:$0xff]
  %v23 = vld [vmem:[%s0 + $0x3c] sm:$0xff]
  %v24 = vld [vmem:[%s0 + $0x44] sm:$0xf]
  %v25 = vld [vmem:[%s1] sm:$0xff]
  %v26 = vld [vmem:[%s1 + $0x8] sm:$0xff]
  %v27 = vld [vmem:[%s1 + $0x10] sm:$0xff]
  %v28 = vld [vmem:[%s1 + $0x18] sm:$0xff]
  %v29 = vld [vmem:[%s1 + $0x20] sm:$0xff]
  %v30 = vld [vmem:[%s1 + $0x28] sm:$0xff]
  %v31 = vld [vmem:[%s1 + $0x30] sm:$0xff]
  %v32 = vld [vmem:[%s1 + $0x38] sm:$0xff]
  %v33 = vld [vmem:[%s1 + $0x40] sm:$0xff]
  %v34 = vld [vmem:[%s1 + $0x48] sm:$0xff]
  %v35 = vld [vmem:[%s1 + $0x50] sm:$0xff]
  %v36 = vld [vmem:[%s1 + $0x58] sm:$0xff]
  %v37 = vld [vmem:[%s1 + $0x60] sm:$0xff]
  %v38 = vld [vmem:[%s1 + $0x68] sm:$0xff]
  %v39 = vld [vmem:[%s1 + $0x70] sm:$0xff]
  %v40 = vld [vmem:[%s1 + $0x78] sm:$0xff]
  %v41 = vld [vmem:[%s1 + $0x80] sm:$0xff]
  %v42 = vld [vmem:[%s1 + $0x88] sm:$0xff]
  %v43 = vld [vmem:[%s1 + $0x90] sm:$0xff]
  %v44 = vld [vmem:[%s1 + $0x98] sm:$0xff]
  %v45 = vld [vmem:[%s1 + $0xa0] sm:$0xff]
  %v46 = vld [vmem:[%s1 + $0xa8] sm:$0xff]
  %v47 = vld [vmem:[%s1 + $0xb0] sm:$0xff]
  %v48 = vld [vmem:[%s1 + $0xb8] sm:$0xff]
  %v49 = vld [vmem:[%s1 + $0xc0] sm:$0xff]
  %v50 = vld [vmem:[%s1 + $0xc8] sm:$0xff]
  %v51 = vld [vmem:[%s1 + $0xd0] sm:$0xff]
  %v52 = vld [vmem:[%s1 + $0xd8] sm:$0xff]
  %v53 = vld [vmem:[%s1 + $0xe0] sm:$0xff]
  %v54 = vld [vmem:[%s1 + $0xe8] sm:$0xff]
  %v55 = vld [vmem:[%s1 + $0xf0] sm:$0xff]
  %v56 = vld [vmem:[%s1 + $0xf8] sm:$0xff]
  %v57 = vld [vmem:[%s1 + $0x100] sm:$0xff]
  %v58 = vld [vmem:[%s1 + $0x108] sm:$0xff]
  %v59 = vld [vmem:[%s1 + $0x110] sm:$0xff]
  %v60 = vld [vmem:[%s1 + $0x118] sm:$0xff]
  %v61 = vld [vmem:[%s1 + $0x120] sm:$0xff]
  %v62 = vld [vmem:[%s1 + $0x128] sm:$0xff]
  %v63 = vld [vmem:[%s1 + $0x130] sm:$0xff]
  %v64 = vld [vmem:[%s1 + $0x138] sm:$0xff]
  %v65 = vld [vmem:[%s1 + $0x140] sm:$0xff]
  %v66 = vld [vmem:[%s1 + $0x148] sm:$0xff]
  %v67 = vld [vmem:[%s1 + $0x150] sm:$0xff]
  %v68 = vld [vmem:[%s1 + $0x158] sm:$0xff]
  %v69 = vld [vmem:[%s1 + $0x160] sm:$0xff]
  %v70 = vld [vmem:[%s1 + $0x168] sm:$0xff]
  %v71 = vld [vmem:[%s1 + $0x170] sm:$0xff]
  %v72 = vld [vmem:[%s1 + $0x178] sm:$0xff]
  %v73 = vld [vmem:[%s1 + $0x180] sm:$0xff]
  %v74 = vld [vmem:[%s1 + $0x188] sm:$0xff]
  %v75 = vld [vmem:[%s1 + $0x190] sm:$0xff]
  %v76 = vld [vmem:[%s1 + $0x198] sm:$0xff]
  %v77 = vld [vmem:[%s1 + $0x1a0] sm:$0xff]
  %v78 = vld [vmem:[%s1 + $0x1a8] sm:$0xff]
  %v79 = vld [vmem:[%s1 + $0x1b0] sm:$0xff]
  %v80 = vld [vmem:[%s1 + $0x1b8] sm:$0xff]
  %v81 = vld [vmem:[%s1 + $0x1c0] sm:$0xff]
  %v82 = vld [vmem:[%s1 + $0x1c8] sm:$0xff]
  %v83 = vld [vmem:[%s1 + $0x1d0] sm:$0xff]
  %v84 = vld [vmem:[%s1 + $0x1d8] sm:$0xff]
  %v85 = vld [vmem:[%s1 + $0x1e0] sm:$0xff]
  %v86 = vld [vmem:[%s1 + $0x1e8] sm:$0xff]
  %v87 = vld [vmem:[%s1 + $0x1f0] sm:$0xff]
  %v88 = vld [vmem:[%s1 + $0x1f8] sm:$0xff]
  %v89 = vld [vmem:[%s1 + $0x200] sm:$0xff]
  %v90 = vld [vmem:[%s1 + $0x208] sm:$0xff]
  %v91 = vld [vmem:[%s1 + $0x210] sm:$0xff]
  %v92 = vld [vmem:[%s1 + $0x218] sm:$0xff]
  %v93 = vld [vmem:[%s1 + $0x220] sm:$0xff]
  %v94 = vld [vmem:[%s1 + $0x228] sm:$0xff]
  %v95 = vld [vmem:[%s1 + $0x230] sm:$0xff]
  %v96 = vld [vmem:[%s1 + $0x238] sm:$0xff]
  %v97 = vld [vmem:[%s1 + $0x240] sm:$0xff]
  %v98 = vld [vmem:[%s1 + $0x248] sm:$0xff]
  %v99 = vld [vmem:[%s1 + $0x250] sm:$0xff]
  %v100 = vld [vmem:[%s1 + $0x258] sm:$0xff]
  %v101 = vld [vmem:[%s1 + $0x260] sm:$0xff]
  %v102 = vld [vmem:[%s1 + $0x268] sm:$0xff]
  %v103 = vld [vmem:[%s1 + $0x270] sm:$0xff]
  %v104 = vld [vmem:[%s1 + $0x278] sm:$0xff]
  %v105 = vld [vmem:[%s1 + $0x280] sm:$0xff]
  %v106 = vld [vmem:[%s1 + $0x288] sm:$0xff]
  %v107 = vld [vmem:[%s1 + $0x290] sm:$0xff]
  %v108 = vld [vmem:[%s1 + $0x298] sm:$0xff]
  %v109 = vld [vmem:[%s1 + $0x2a0] sm:$0xff]
  %v110 = vld [vmem:[%s1 + $0x2a8] sm:$0xff]
  %v111 = vld [vmem:[%s1 + $0x2b0] sm:$0xff]
  %v112 = vld [vmem:[%s1 + $0x2b8] sm:$0xff]
  %v113 = vld [vmem:[%s1 + $0x2c0] sm:$0xff]
  %v114 = vld [vmem:[%s1 + $0x2c8] sm:$0xff]
  %v115 = vld [vmem:[%s1 + $0x2d0] sm:$0xff]
  %v116 = vld [vmem:[%s1 + $0x2d8] sm:$0xff]
  %v117 = vld [vmem:[%s1 + $0x2e0] sm:$0xff]
  %v118 = vld [vmem:[%s1 + $0x2e8] sm:$0xff]
  %v119 = vld [vmem:[%s1 + $0x2f0] sm:$0xff]
  %v120 = vld [vmem:[%s1 + $0x2f8] sm:$0xff]
  %v121 = vld [vmem:[%s1 + $0x300] sm:$0xff]
  %v122 = vld [vmem:[%s1 + $0x308] sm:$0xff]
  %v123 = vld [vmem:[%s1 + $0x310] sm:$0xff]
  %v124 = vld [vmem:[%s1 + $0x318] sm:$0xff]
  %v125 = vld [vmem:[%s1 + $0x320] sm:$0xff]
  %v126 = vld [vmem:[%s1 + $0x328] sm:$0xff]
  %v127 = vld [vmem:[%s1 + $0x330] sm:$0xff]
  %v128 = vld [vmem:[%s1 + $0x338] sm:$0xff]
  %v129 = vld [vmem:[%s1 + $0x340] sm:$0xff]
  %v130 = vld [vmem:[%s1 + $0x348] sm:$0xff]
  %v131 = vld [vmem:[%s1 + $0x350] sm:$0xff]
  %v132 = vld [vmem:[%s1 + $0x358] sm:$0xff]
  %v133 = vld [vmem:[%s1 + $0x360] sm:$0xff]
  %v134 = vld [vmem:[%s1 + $0x368] sm:$0xff]
  %v135 = vld [vmem:[%s1 + $0x370] sm:$0xff]
  %v136 = vld [vmem:[%s1 + $0x378] sm:$0xff]
  %v137 = vld [vmem:[%s1 + $0x380] sm:$0xff]
  %v138 = vld [vmem:[%s1 + $0x388] sm:$0xff]
  %v139 = vld [vmem:[%s1 + $0x390] sm:$0xff]
  %v140 = vld [vmem:[%s1 + $0x398] sm:$0xff]
  %v141 = vld [vmem:[%s1 + $0x3a0] sm:$0xff]
  %v142 = vld [vmem:[%s1 + $0x3a8] sm:$0xff]
  %v143 = vld [vmem:[%s1 + $0x3b0] sm:$0xff]
  %v144 = vld [vmem:[%s1 + $0x3b8] sm:$0xff]
  %v145 = vld [vmem:[%s1 + $0x3c0] sm:$0xff]
  %v146 = vld [vmem:[%s1 + $0x3c8] sm:$0xff]
  %v147 = vld [vmem:[%s1 + $0x3d0] sm:$0xff]
  %v148 = vld [vmem:[%s1 + $0x3d8] sm:$0xff]
  %v149 = vld [vmem:[%s1 + $0x3e0] sm:$0xff]
  %v150 = vld [vmem:[%s1 + $0x3e8] sm:$0xff]
  %v151 = vld [vmem:[%s1 + $0x3f0] sm:$0xff]
  %v152 = vld [vmem:[%s1 + $0x3f8] sm:$0xff]
  %v153 = vld [vmem:[%s1 + $0x400] sm:$0xff]
  %v154 = vld [vmem:[%s1 + $0x408] sm:$0xff]
  %v155 = vld [vmem:[%s1 + $0x410] sm:$0xff]
  %v156 = vld [vmem:[%s1 + $0x418] sm:$0xff]
  %v157 = vld [vmem:[%s1 + $0x420] sm:$0xff]
  %v158 = vld [vmem:[%s1 + $0x428] sm:$0xff]
  %v159 = vld [vmem:[%s1 + $0x430] sm:$0xff]
  %v160 = vld [vmem:[%s1 + $0x438] sm:$0xff]
  %v161 = vld [vmem:[%s1 + $0x440] sm:$0xff]
  %v162 = vld [vmem:[%s1 + $0x448] sm:$0xff]
  %v163 = vld [vmem:[%s1 + $0x450] sm:$0xff]
  %v164 = vld [vmem:[%s1 + $0x458] sm:$0xff]
  %v165 = vld [vmem:[%s1 + $0x460] sm:$0xff]
  %v166 = vld [vmem:[%s1 + $0x468] sm:$0xff]
  %v167 = vld [vmem:[%s1 + $0x470] sm:$0xff]
  %v168 = vld [vmem:[%s1 + $0x478] sm:$0xff]
  %v169 = vld [vmem:[%s2] sm:$0x3]
  %v171 = vlaneseq
  %v172 = vshrl.u32 %v171, 7
  %v173 = vsub.s32 0, %v172
  %v174 = vrot.slane %v169, %v173
  %v175 = vlaneseq
  %v176 = vshrl.u32 %v175, 7
  %v177 = vsub.s32 1, %v176
  %v178 = vrot.slane %v169, %v177
  %v191 = vunpack.c.l.b16 %v15
  %v192 = vunpack.c.h.b16 %v15
  %v193 = vunpack.c.l.b16 %v16
  %v194 = vunpack.c.h.b16 %v16
  %v195 = vunpack.c.l.b16 %v17
  %v196 = vunpack.c.h.b16 %v17
  %v197 = vunpack.c.l.b16 %v18
  %v198 = vunpack.c.h.b16 %v18
  %v199 = vunpack.c.l.b16 %v19
  %v200 = vunpack.c.l.b16 %v20
  %v201 = vunpack.c.h.b16 %v20
  %v202 = vunpack.c.l.b16 %v21
  %v203 = vunpack.c.h.b16 %v21
  %v204 = vunpack.c.l.b16 %v22
  %v205 = vunpack.c.h.b16 %v22
  %v206 = vunpack.c.l.b16 %v23
  %v207 = vunpack.c.h.b16 %v23
  %v208 = vunpack.c.l.b16 %v24
  %v209 = vpack.c.b16 %v200, %v191
  %v210 = vpack.c.b16 %v201, %v192
  %v211 = vpack.c.b16 %v202, %v193
  %v212 = vpack.c.b16 %v203, %v194
  %v213 = vpack.c.b16 %v204, %v195
  %v214 = vpack.c.b16 %v205, %v196
  %v215 = vpack.c.b16 %v206, %v197
  %v216 = vpack.c.b16 %v207, %v198
  %v217 = vpack.c.b16 %v208, %v199
  %v371 = vunpack.c.l.b16 %v25
  %v372 = vunpack.c.h.b16 %v25
  %v373 = vunpack.c.l.b16 %v26
  %v374 = vunpack.c.h.b16 %v26
  %v375 = vunpack.c.l.b16 %v27
  %v376 = vunpack.c.h.b16 %v27
  %v377 = vunpack.c.l.b16 %v28
  %v378 = vunpack.c.h.b16 %v28
  %v379 = vunpack.c.l.b16 %v29
  %v380 = vunpack.c.h.b16 %v29
  %v381 = vunpack.c.l.b16 %v30
  %v382 = vunpack.c.h.b16 %v30
  %v383 = vunpack.c.l.b16 %v31
  %v384 = vunpack.c.h.b16 %v31
  %v385 = vunpack.c.l.b16 %v32
  %v386 = vunpack.c.h.b16 %v32
  %v387 = vunpack.c.l.b16 %v33
  %v388 = vunpack.c.h.b16 %v33
  %v389 = vunpack.c.l.b16 %v34
  %v390 = vunpack.c.h.b16 %v34
  %v391 = vunpack.c.l.b16 %v35
  %v392 = vunpack.c.h.b16 %v35
  %v393 = vunpack.c.l.b16 %v36
  %v394 = vunpack.c.h.b16 %v36
  %v395 = vunpack.c.l.b16 %v37
  %v396 = vunpack.c.h.b16 %v37
  %v397 = vunpack.c.l.b16 %v38
  %v398 = vunpack.c.h.b16 %v38
  %v399 = vunpack.c.l.b16 %v39
  %v400 = vunpack.c.h.b16 %v39
  %v401 = vunpack.c.l.b16 %v40
  %v402 = vunpack.c.h.b16 %v40
  %v403 = vunpack.c.l.b16 %v41
  %v404 = vunpack.c.h.b16 %v41
  %v405 = vunpack.c.l.b16 %v42
  %v406 = vunpack.c.h.b16 %v42
  %v407 = vunpack.c.l.b16 %v43
  %v408 = vunpack.c.h.b16 %v43
  %v409 = vunpack.c.l.b16 %v44
  %v410 = vunpack.c.h.b16 %v44
  %v411 = vunpack.c.l.b16 %v45
  %v412 = vunpack.c.h.b16 %v45
  %v413 = vunpack.c.l.b16 %v46
  %v414 = vunpack.c.h.b16 %v46
  %v415 = vunpack.c.l.b16 %v47
  %v416 = vunpack.c.h.b16 %v47
  %v417 = vunpack.c.l.b16 %v48
  %v418 = vunpack.c.h.b16 %v48
  %v419 = vunpack.c.l.b16 %v49
  %v420 = vunpack.c.h.b16 %v49
  %v421 = vunpack.c.l.b16 %v50
  %v422 = vunpack.c.h.b16 %v50
  %v423 = vunpack.c.l.b16 %v51
  %v424 = vunpack.c.h.b16 %v51
  %v425 = vunpack.c.l.b16 %v52
  %v426 = vunpack.c.h.b16 %v52
  %v427 = vunpack.c.l.b16 %v53
  %v428 = vunpack.c.h.b16 %v53
  %v429 = vunpack.c.l.b16 %v54
  %v430 = vunpack.c.h.b16 %v54
  %v431 = vunpack.c.l.b16 %v55
  %v432 = vunpack.c.h.b16 %v55
  %v433 = vunpack.c.l.b16 %v56
  %v434 = vunpack.c.h.b16 %v56
  %v435 = vunpack.c.l.b16 %v57
  %v436 = vunpack.c.h.b16 %v57
  %v437 = vunpack.c.l.b16 %v58
  %v438 = vunpack.c.h.b16 %v58
  %v439 = vunpack.c.l.b16 %v59
  %v440 = vunpack.c.h.b16 %v59
  %v441 = vunpack.c.l.b16 %v60
  %v442 = vunpack.c.h.b16 %v60
  %v443 = vunpack.c.l.b16 %v61
  %v444 = vunpack.c.h.b16 %v61
  %v445 = vunpack.c.l.b16 %v62
  %v446 = vunpack.c.h.b16 %v62
  %v447 = vunpack.c.l.b16 %v63
  %v448 = vunpack.c.h.b16 %v63
  %v449 = vunpack.c.l.b16 %v64
  %v450 = vunpack.c.h.b16 %v64
  %v451 = vunpack.c.l.b16 %v65
  %v452 = vunpack.c.h.b16 %v65
  %v453 = vunpack.c.l.b16 %v66
  %v454 = vunpack.c.h.b16 %v66
  %v455 = vunpack.c.l.b16 %v67
  %v456 = vunpack.c.h.b16 %v67
  %v457 = vunpack.c.l.b16 %v68
  %v458 = vunpack.c.h.b16 %v68
  %v459 = vunpack.c.l.b16 %v69
  %v460 = vunpack.c.h.b16 %v69
  %v461 = vunpack.c.l.b16 %v70
  %v462 = vunpack.c.h.b16 %v70
  %v463 = vunpack.c.l.b16 %v71
  %v464 = vunpack.c.h.b16 %v71
  %v465 = vunpack.c.l.b16 %v72
  %v466 = vunpack.c.h.b16 %v72
  %v467 = vunpack.c.l.b16 %v73
  %v468 = vunpack.c.h.b16 %v73
  %v469 = vunpack.c.l.b16 %v74
  %v470 = vunpack.c.h.b16 %v74
  %v471 = vunpack.c.l.b16 %v75
  %v472 = vunpack.c.h.b16 %v75
  %v473 = vunpack.c.l.b16 %v76
  %v474 = vunpack.c.h.b16 %v76
  %v475 = vunpack.c.l.b16 %v77
  %v476 = vunpack.c.h.b16 %v77
  %v477 = vunpack.c.l.b16 %v78
  %v478 = vunpack.c.h.b16 %v78
  %v479 = vunpack.c.l.b16 %v79
  %v480 = vunpack.c.h.b16 %v79
  %v481 = vunpack.c.l.b16 %v80
  %v482 = vunpack.c.h.b16 %v80
  %v483 = vunpack.c.l.b16 %v81
  %v484 = vunpack.c.h.b16 %v81
  %v485 = vunpack.c.l.b16 %v82
  %v486 = vunpack.c.h.b16 %v82
  %v487 = vunpack.c.l.b16 %v83
  %v488 = vunpack.c.h.b16 %v83
  %v489 = vunpack.c.l.b16 %v84
  %v490 = vunpack.c.h.b16 %v84
  %v491 = vunpack.c.l.b16 %v85
  %v492 = vunpack.c.h.b16 %v85
  %v493 = vunpack.c.l.b16 %v86
  %v494 = vunpack.c.h.b16 %v86
  %v495 = vunpack.c.l.b16 %v87
  %v496 = vunpack.c.h.b16 %v87
  %v497 = vunpack.c.l.b16 %v88
  %v498 = vunpack.c.h.b16 %v88
  %v499 = vunpack.c.l.b16 %v89
  %v500 = vunpack.c.h.b16 %v89
  %v501 = vunpack.c.l.b16 %v90
  %v502 = vunpack.c.h.b16 %v90
  %v503 = vunpack.c.l.b16 %v91
  %v504 = vunpack.c.h.b16 %v91
  %v505 = vunpack.c.l.b16 %v92
  %v506 = vunpack.c.h.b16 %v92
  %v507 = vunpack.c.l.b16 %v93
  %v508 = vunpack.c.h.b16 %v93
  %v509 = vunpack.c.l.b16 %v94
  %v510 = vunpack.c.h.b16 %v94
  %v511 = vunpack.c.l.b16 %v95
  %v512 = vunpack.c.h.b16 %v95
  %v513 = vunpack.c.l.b16 %v96
  %v514 = vunpack.c.h.b16 %v96
  %v515 = vunpack.c.l.b16 %v97
  %v516 = vunpack.c.h.b16 %v97
  %v517 = vunpack.c.l.b16 %v98
  %v518 = vunpack.c.h.b16 %v98
  %v519 = vunpack.c.l.b16 %v99
  %v520 = vunpack.c.h.b16 %v99
  %v521 = vunpack.c.l.b16 %v100
  %v522 = vunpack.c.h.b16 %v100
  %v523 = vunpack.c.l.b16 %v101
  %v524 = vunpack.c.h.b16 %v101
  %v525 = vunpack.c.l.b16 %v102
  %v526 = vunpack.c.h.b16 %v102
  %v527 = vunpack.c.l.b16 %v103
  %v528 = vunpack.c.h.b16 %v103
  %v529 = vunpack.c.l.b16 %v104
  %v530 = vunpack.c.h.b16 %v104
  %v531 = vunpack.c.l.b16 %v105
  %v532 = vunpack.c.h.b16 %v105
  %v533 = vunpack.c.l.b16 %v106
  %v534 = vunpack.c.h.b16 %v106
  %v535 = vunpack.c.l.b16 %v107
  %v536 = vunpack.c.h.b16 %v107
  %v537 = vunpack.c.l.b16 %v108
  %v538 = vunpack.c.h.b16 %v108
  %v539 = vunpack.c.l.b16 %v109
  %v540 = vunpack.c.h.b16 %v109
  %v541 = vunpack.c.l.b16 %v110
  %v542 = vunpack.c.h.b16 %v110
  %v543 = vunpack.c.l.b16 %v111
  %v544 = vunpack.c.h.b16 %v111
  %v545 = vunpack.c.l.b16 %v112
  %v546 = vunpack.c.h.b16 %v112
  %v547 = vunpack.c.l.b16 %v113
  %v548 = vunpack.c.h.b16 %v113
  %v549 = vunpack.c.l.b16 %v114
  %v550 = vunpack.c.h.b16 %v114
  %v551 = vunpack.c.l.b16 %v115
  %v552 = vunpack.c.h.b16 %v115
  %v553 = vunpack.c.l.b16 %v116
  %v554 = vunpack.c.h.b16 %v116
  %v555 = vunpack.c.l.b16 %v117
  %v556 = vunpack.c.h.b16 %v117
  %v557 = vunpack.c.l.b16 %v118
  %v558 = vunpack.c.h.b16 %v118
  %v559 = vunpack.c.l.b16 %v119
  %v560 = vunpack.c.h.b16 %v119
  %v561 = vunpack.c.l.b16 %v120
  %v562 = vunpack.c.h.b16 %v120
  %v563 = vunpack.c.l.b16 %v121
  %v564 = vunpack.c.h.b16 %v121
  %v565 = vunpack.c.l.b16 %v122
  %v566 = vunpack.c.h.b16 %v122
  %v567 = vunpack.c.l.b16 %v123
  %v568 = vunpack.c.h.b16 %v123
  %v569 = vunpack.c.l.b16 %v124
  %v570 = vunpack.c.h.b16 %v124
  %v571 = vunpack.c.l.b16 %v125
  %v572 = vunpack.c.h.b16 %v125
  %v573 = vunpack.c.l.b16 %v126
  %v574 = vunpack.c.h.b16 %v126
  %v575 = vunpack.c.l.b16 %v127
  %v576 = vunpack.c.h.b16 %v127
  %v577 = vunpack.c.l.b16 %v128
  %v578 = vunpack.c.h.b16 %v128
  %v579 = vunpack.c.l.b16 %v129
  %v580 = vunpack.c.h.b16 %v129
  %v581 = vunpack.c.l.b16 %v130
  %v582 = vunpack.c.h.b16 %v130
  %v583 = vunpack.c.l.b16 %v131
  %v584 = vunpack.c.h.b16 %v131
  %v585 = vunpack.c.l.b16 %v132
  %v586 = vunpack.c.h.b16 %v132
  %v587 = vunpack.c.l.b16 %v133
  %v588 = vunpack.c.h.b16 %v133
  %v589 = vunpack.c.l.b16 %v134
  %v590 = vunpack.c.h.b16 %v134
  %v591 = vunpack.c.l.b16 %v135
  %v592 = vunpack.c.h.b16 %v135
  %v593 = vunpack.c.l.b16 %v136
  %v594 = vunpack.c.h.b16 %v136
  %v595 = vunpack.c.l.b16 %v137
  %v596 = vunpack.c.h.b16 %v137
  %v597 = vunpack.c.l.b16 %v138
  %v598 = vunpack.c.h.b16 %v138
  %v599 = vunpack.c.l.b16 %v139
  %v600 = vunpack.c.h.b16 %v139
  %v601 = vunpack.c.l.b16 %v140
  %v602 = vunpack.c.h.b16 %v140
  %v603 = vunpack.c.l.b16 %v141
  %v604 = vunpack.c.h.b16 %v141
  %v605 = vunpack.c.l.b16 %v142
  %v606 = vunpack.c.h.b16 %v142
  %v607 = vunpack.c.l.b16 %v143
  %v608 = vunpack.c.h.b16 %v143
  %v609 = vunpack.c.l.b16 %v144
  %v610 = vunpack.c.h.b16 %v144
  %v611 = vunpack.c.l.b16 %v145
  %v612 = vunpack.c.h.b16 %v145
  %v613 = vunpack.c.l.b16 %v146
  %v614 = vunpack.c.h.b16 %v146
  %v615 = vunpack.c.l.b16 %v147
  %v616 = vunpack.c.h.b16 %v147
  %v617 = vunpack.c.l.b16 %v148
  %v618 = vunpack.c.h.b16 %v148
  %v619 = vunpack.c.l.b16 %v149
  %v620 = vunpack.c.h.b16 %v149
  %v621 = vunpack.c.l.b16 %v150
  %v622 = vunpack.c.h.b16 %v150
  %v623 = vunpack.c.l.b16 %v151
  %v624 = vunpack.c.h.b16 %v151
  %v625 = vunpack.c.l.b16 %v152
  %v626 = vunpack.c.h.b16 %v152
  %v627 = vunpack.c.l.b16 %v153
  %v628 = vunpack.c.h.b16 %v153
  %v629 = vunpack.c.l.b16 %v154
  %v630 = vunpack.c.h.b16 %v154
  %v631 = vunpack.c.l.b16 %v155
  %v632 = vunpack.c.h.b16 %v155
  %v633 = vunpack.c.l.b16 %v156
  %v634 = vunpack.c.h.b16 %v156
  %v635 = vunpack.c.l.b16 %v157
  %v636 = vunpack.c.h.b16 %v157
  %v637 = vunpack.c.l.b16 %v158
  %v638 = vunpack.c.h.b16 %v158
  %v639 = vunpack.c.l.b16 %v159
  %v640 = vunpack.c.h.b16 %v159
  %v641 = vunpack.c.l.b16 %v160
  %v642 = vunpack.c.h.b16 %v160
  %v643 = vunpack.c.l.b16 %v161
  %v644 = vunpack.c.h.b16 %v161
  %v645 = vunpack.c.l.b16 %v162
  %v646 = vunpack.c.h.b16 %v162
  %v647 = vunpack.c.l.b16 %v163
  %v648 = vunpack.c.h.b16 %v163
  %v649 = vunpack.c.l.b16 %v164
  %v650 = vunpack.c.h.b16 %v164
  %v651 = vunpack.c.l.b16 %v165
  %v652 = vunpack.c.h.b16 %v165
  %v653 = vunpack.c.l.b16 %v166
  %v654 = vunpack.c.h.b16 %v166
  %v655 = vunpack.c.l.b16 %v167
  %v656 = vunpack.c.h.b16 %v167
  %v657 = vunpack.c.l.b16 %v168
  %v658 = vunpack.c.h.b16 %v168
  %v659 = vpack.c.b16 %v373, %v371
  %v660 = vpack.c.b16 %v374, %v372
  %v661 = vpack.c.b16 %v377, %v375
  %v662 = vpack.c.b16 %v378, %v376
  %v663 = vpack.c.b16 %v381, %v379
  %v664 = vpack.c.b16 %v382, %v380
  %v665 = vpack.c.b16 %v385, %v383
  %v666 = vpack.c.b16 %v386, %v384
  %v667 = vpack.c.b16 %v389, %v387
  %v668 = vpack.c.b16 %v390, %v388
  %v669 = vpack.c.b16 %v393, %v391
  %v670 = vpack.c.b16 %v394, %v392
  %v671 = vpack.c.b16 %v397, %v395
  %v672 = vpack.c.b16 %v398, %v396
  %v673 = vpack.c.b16 %v401, %v399
  %v674 = vpack.c.b16 %v402, %v400
  %v675 = vpack.c.b16 %v405, %v403
  %v676 = vpack.c.b16 %v406, %v404
  %v677 = vpack.c.b16 %v409, %v407
  %v678 = vpack.c.b16 %v410, %v408
  %v679 = vpack.c.b16 %v413, %v411
  %v680 = vpack.c.b16 %v414, %v412
  %v681 = vpack.c.b16 %v417, %v415
  %v682 = vpack.c.b16 %v418, %v416
  %v683 = vpack.c.b16 %v421, %v419
  %v684 = vpack.c.b16 %v422, %v420
  %v685 = vpack.c.b16 %v425, %v423
  %v686 = vpack.c.b16 %v426, %v424
  %v687 = vpack.c.b16 %v429, %v427
  %v688 = vpack.c.b16 %v430, %v428
  %v689 = vpack.c.b16 %v433, %v431
  %v690 = vpack.c.b16 %v434, %v432
  %v691 = vpack.c.b16 %v437, %v435
  %v692 = vpack.c.b16 %v438, %v436
  %v693 = vpack.c.b16 %v441, %v439
  %v694 = vpack.c.b16 %v442, %v440
  %v695 = vpack.c.b16 %v445, %v443
  %v696 = vpack.c.b16 %v446, %v444
  %v697 = vpack.c.b16 %v449, %v447
  %v698 = vpack.c.b16 %v450, %v448
  %v699 = vpack.c.b16 %v453, %v451
  %v700 = vpack.c.b16 %v454, %v452
  %v701 = vpack.c.b16 %v457, %v455
  %v702 = vpack.c.b16 %v458, %v456
  %v703 = vpack.c.b16 %v461, %v459
  %v704 = vpack.c.b16 %v462, %v460
  %v705 = vpack.c.b16 %v465, %v463
  %v706 = vpack.c.b16 %v466, %v464
  %v707 = vpack.c.b16 %v469, %v467
  %v708 = vpack.c.b16 %v470, %v468
  %v709 = vpack.c.b16 %v473, %v471
  %v710 = vpack.c.b16 %v474, %v472
  %v711 = vpack.c.b16 %v477, %v475
  %v712 = vpack.c.b16 %v478, %v476
  %v713 = vpack.c.b16 %v481, %v479
  %v714 = vpack.c.b16 %v482, %v480
  %v715 = vpack.c.b16 %v485, %v483
  %v716 = vpack.c.b16 %v486, %v484
  %v717 = vpack.c.b16 %v489, %v487
  %v718 = vpack.c.b16 %v490, %v488
  %v719 = vpack.c.b16 %v493, %v491
  %v720 = vpack.c.b16 %v494, %v492
  %v721 = vpack.c.b16 %v497, %v495
  %v722 = vpack.c.b16 %v498, %v496
  %v723 = vpack.c.b16 %v501, %v499
  %v724 = vpack.c.b16 %v502, %v500
  %v725 = vpack.c.b16 %v505, %v503
  %v726 = vpack.c.b16 %v506, %v504
  %v727 = vpack.c.b16 %v509, %v507
  %v728 = vpack.c.b16 %v510, %v508
  %v729 = vpack.c.b16 %v513, %v511
  %v730 = vpack.c.b16 %v514, %v512
  %v731 = vpack.c.b16 %v517, %v515
  %v732 = vpack.c.b16 %v518, %v516
  %v733 = vpack.c.b16 %v521, %v519
  %v734 = vpack.c.b16 %v522, %v520
  %v735 = vpack.c.b16 %v525, %v523
  %v736 = vpack.c.b16 %v526, %v524
  %v737 = vpack.c.b16 %v529, %v527
  %v738 = vpack.c.b16 %v530, %v528
  %v739 = vpack.c.b16 %v533, %v531
  %v740 = vpack.c.b16 %v534, %v532
  %v741 = vpack.c.b16 %v537, %v535
  %v742 = vpack.c.b16 %v538, %v536
  %v743 = vpack.c.b16 %v541, %v539
  %v744 = vpack.c.b16 %v542, %v540
  %v745 = vpack.c.b16 %v545, %v543
  %v746 = vpack.c.b16 %v546, %v544
  %v747 = vpack.c.b16 %v549, %v547
  %v748 = vpack.c.b16 %v550, %v548
  %v749 = vpack.c.b16 %v553, %v551
  %v750 = vpack.c.b16 %v554, %v552
  %v751 = vpack.c.b16 %v557, %v555
  %v752 = vpack.c.b16 %v558, %v556
  %v753 = vpack.c.b16 %v561, %v559
  %v754 = vpack.c.b16 %v562, %v560
  %v755 = vpack.c.b16 %v565, %v563
  %v756 = vpack.c.b16 %v566, %v564
  %v757 = vpack.c.b16 %v569, %v567
  %v758 = vpack.c.b16 %v570, %v568
  %v759 = vpack.c.b16 %v573, %v571
  %v760 = vpack.c.b16 %v574, %v572
  %v761 = vpack.c.b16 %v577, %v575
  %v762 = vpack.c.b16 %v578, %v576
  %v763 = vpack.c.b16 %v581, %v579
  %v764 = vpack.c.b16 %v582, %v580
  %v765 = vpack.c.b16 %v585, %v583
  %v766 = vpack.c.b16 %v586, %v584
  %v767 = vpack.c.b16 %v589, %v587
  %v768 = vpack.c.b16 %v590, %v588
  %v769 = vpack.c.b16 %v593, %v591
  %v770 = vpack.c.b16 %v594, %v592
  %v771 = vpack.c.b16 %v597, %v595
  %v772 = vpack.c.b16 %v598, %v596
  %v773 = vpack.c.b16 %v601, %v599
  %v774 = vpack.c.b16 %v602, %v600
  %v775 = vpack.c.b16 %v605, %v603
  %v776 = vpack.c.b16 %v606, %v604
  %v777 = vpack.c.b16 %v609, %v607
  %v778 = vpack.c.b16 %v610, %v608
  %v779 = vpack.c.b16 %v613, %v611
  %v780 = vpack.c.b16 %v614, %v612
  %v781 = vpack.c.b16 %v617, %v615
  %v782 = vpack.c.b16 %v618, %v616
  %v783 = vpack.c.b16 %v621, %v619
  %v784 = vpack.c.b16 %v622, %v620
  %v785 = vpack.c.b16 %v625, %v623
  %v786 = vpack.c.b16 %v626, %v624
  %v787 = vpack.c.b16 %v629, %v627
  %v788 = vpack.c.b16 %v630, %v628
  %v789 = vpack.c.b16 %v633, %v631
  %v790 = vpack.c.b16 %v634, %v632
  %v791 = vpack.c.b16 %v637, %v635
  %v792 = vpack.c.b16 %v638, %v636
  %v793 = vpack.c.b16 %v641, %v639
  %v794 = vpack.c.b16 %v642, %v640
  %v795 = vpack.c.b16 %v645, %v643
  %v796 = vpack.c.b16 %v646, %v644
  %v797 = vpack.c.b16 %v649, %v647
  %v798 = vpack.c.b16 %v650, %v648
  %v799 = vpack.c.b16 %v653, %v651
  %v800 = vpack.c.b16 %v654, %v652
  %v801 = vpack.c.b16 %v657, %v655
  %v802 = vpack.c.b16 %v658, %v656
  %947 = vmatprep.subr.bf16.mxu0 %v660
  %948 = vmatpush1.bf16.msra.mxu0 %v659
  %949 = vmatprep.subr.bf16.mxu0 %v662
  %950 = vmatpush1.bf16.msra.mxu0 %v661
  %951 = vmatprep.subr.bf16.mxu0 %v664
  %952 = vmatpush1.bf16.msra.mxu0 %v663
  %953 = vmatprep.subr.bf16.mxu0 %v666
  %954 = vmatpush1.bf16.msra.mxu0 %v665
  %955 = vmatprep.subr.bf16.mxu0 %v668
  %956 = vmatpush1.bf16.msra.mxu0 %v667
  %957 = vmatprep.subr.bf16.mxu0 %v670
  %958 = vmatpush1.bf16.msra.mxu0 %v669
  %959 = vmatprep.subr.bf16.mxu0 %v672
  %960 = vmatpush1.bf16.msra.mxu0 %v671
  %961 = vmatprep.subr.bf16.mxu0 %v674
  %962 = vmatpush1.bf16.msra.mxu0 %v673
  %963 = vmatprep.subr.bf16.mxu0 %v676
  %964 = vmatpush1.bf16.msra.mxu0 %v675
  %965 = vmatprep.subr.bf16.mxu0 %v678
  %966 = vmatpush1.bf16.msra.mxu0 %v677
  %967 = vmatprep.subr.bf16.mxu0 %v680
  %968 = vmatpush1.bf16.msra.mxu0 %v679
  %969 = vmatprep.subr.bf16.mxu0 %v682
  %970 = vmatpush1.bf16.msra.mxu0 %v681
  %971 = vmatprep.subr.bf16.mxu0 %v684
  %972 = vmatpush1.bf16.msra.mxu0 %v683
  %973 = vmatprep.subr.bf16.mxu0 %v686
  %974 = vmatpush1.bf16.msra.mxu0 %v685
  %975 = vmatprep.subr.bf16.mxu0 %v688
  %976 = vmatpush1.bf16.msra.mxu0 %v687
  %977 = vmatprep.subr.bf16.mxu0 %v690
  %978 = vmatpush1.bf16.msra.mxu0 %v689
  %979 = vmatprep.mubr.bf16.mxu0 %v210
  %980 = vmatmul.mubr.bf16.gmra.mrb[0].mxu0 %v209
  %v981 = vpop.f32.mrb[0].mxu0
  %v982 = vadd.f32 %v174, %v981
  %v983 = vpop.f32.mrb[0].mxu0
  %v984 = vadd.f32 %v178, %v983
  %v985 = vpop.f32.mrb[0].mxu0
  %v986 = vadd.f32 %v174, %v985
  %v987 = vpop.f32.mrb[0].mxu0
  %v988 = vadd.f32 %v178, %v987
  %989 = vdwg.mxu0
  %990 = vmatprep.subr.bf16.mxu0 %v692
  %991 = vmatpush1.bf16.msra.mxu0 %v691
  %992 = vmatprep.subr.bf16.mxu0 %v694
  %993 = vmatpush1.bf16.msra.mxu0 %v693
  %994 = vmatprep.subr.bf16.mxu0 %v696
  %995 = vmatpush1.bf16.msra.mxu0 %v695
  %996 = vmatprep.subr.bf16.mxu0 %v698
  %997 = vmatpush1.bf16.msra.mxu0 %v697
  %998 = vmatprep.subr.bf16.mxu0 %v700
  %999 = vmatpush1.bf16.msra.mxu0 %v699
  %1000 = vmatprep.subr.bf16.mxu0 %v702
  %1001 = vmatpush1.bf16.msra.mxu0 %v701
  %1002 = vmatprep.subr.bf16.mxu0 %v704
  %1003 = vmatpush1.bf16.msra.mxu0 %v703
  %1004 = vmatprep.subr.bf16.mxu0 %v706
  %1005 = vmatpush1.bf16.msra.mxu0 %v705
  %1006 = vmatprep.subr.bf16.mxu0 %v708
  %1007 = vmatpush1.bf16.msra.mxu0 %v707
  %1008 = vmatprep.subr.bf16.mxu0 %v710
  %1009 = vmatpush1.bf16.msra.mxu0 %v709
  %1010 = vmatprep.subr.bf16.mxu0 %v712
  %1011 = vmatpush1.bf16.msra.mxu0 %v711
  %1012 = vmatprep.subr.bf16.mxu0 %v714
  %1013 = vmatpush1.bf16.msra.mxu0 %v713
  %1014 = vmatprep.subr.bf16.mxu0 %v716
  %1015 = vmatpush1.bf16.msra.mxu0 %v715
  %1016 = vmatprep.subr.bf16.mxu0 %v718
  %1017 = vmatpush1.bf16.msra.mxu0 %v717
  %1018 = vmatprep.subr.bf16.mxu0 %v720
  %1019 = vmatpush1.bf16.msra.mxu0 %v719
  %1020 = vmatprep.subr.bf16.mxu0 %v722
  %1021 = vmatpush1.bf16.msra.mxu0 %v721
  %1022 = vmatprep.mubr.bf16.mxu0 %v212
  %1023 = vmatmul.mubr.bf16.gmra.mrb[0].mxu0 %v211
  %v1024 = vpop.f32.mrb[0].mxu0
  %v1025 = vadd.f32 %v982, %v1024
  %v1026 = vpop.f32.mrb[0].mxu0
  %v1027 = vadd.f32 %v984, %v1026
  %v1028 = vpop.f32.mrb[0].mxu0
  %v1029 = vadd.f32 %v986, %v1028
  %v1030 = vpop.f32.mrb[0].mxu0
  %v1031 = vadd.f32 %v988, %v1030
  %1032 = vdwg.mxu0
  %1033 = vmatprep.subr.bf16.mxu0 %v724
  %1034 = vmatpush1.bf16.msra.mxu0 %v723
  %1035 = vmatprep.subr.bf16.mxu0 %v726
  %1036 = vmatpush1.bf16.msra.mxu0 %v725
  %1037 = vmatprep.subr.bf16.mxu0 %v728
  %1038 = vmatpush1.bf16.msra.mxu0 %v727
  %1039 = vmatprep.subr.bf16.mxu0 %v730
  %1040 = vmatpush1.bf16.msra.mxu0 %v729
  %1041 = vmatprep.subr.bf16.mxu0 %v732
  %1042 = vmatpush1.bf16.msra.mxu0 %v731
  %1043 = vmatprep.subr.bf16.mxu0 %v734
  %1044 = vmatpush1.bf16.msra.mxu0 %v733
  %1045 = vmatprep.subr.bf16.mxu0 %v736
  %1046 = vmatpush1.bf16.msra.mxu0 %v735
  %1047 = vmatprep.subr.bf16.mxu0 %v738
  %1048 = vmatpush1.bf16.msra.mxu0 %v737
  %1049 = vmatprep.subr.bf16.mxu0 %v740
  %1050 = vmatpush1.bf16.msra.mxu0 %v739
  %1051 = vmatprep.subr.bf16.mxu0 %v742
  %1052 = vmatpush1.bf16.msra.mxu0 %v741
  %1053 = vmatprep.subr.bf16.mxu0 %v744
  %1054 = vmatpush1.bf16.msra.mxu0 %v743
  %1055 = vmatprep.subr.bf16.mxu0 %v746
  %1056 = vmatpush1.bf16.msra.mxu0 %v745
  %1057 = vmatprep.subr.bf16.mxu0 %v748
  %1058 = vmatpush1.bf16.msra.mxu0 %v747
  %1059 = vmatprep.subr.bf16.mxu0 %v750
  %1060 = vmatpush1.bf16.msra.mxu0 %v749
  %1061 = vmatprep.subr.bf16.mxu0 %v752
  %1062 = vmatpush1.bf16.msra.mxu0 %v751
  %1063 = vmatprep.subr.bf16.mxu0 %v754
  %1064 = vmatpush1.bf16.msra.mxu0 %v753
  %1065 = vmatprep.mubr.bf16.mxu0 %v214
  %1066 = vmatmul.mubr.bf16.gmra.mrb[0].mxu0 %v213
  %v1067 = vpop.f32.mrb[0].mxu0
  %v1068 = vadd.f32 %v1025, %v1067
  %v1069 = vpop.f32.mrb[0].mxu0
  %v1070 = vadd.f32 %v1027, %v1069
  %v1071 = vpop.f32.mrb[0].mxu0
  %v1072 = vadd.f32 %v1029, %v1071
  %v1073 = vpop.f32.mrb[0].mxu0
  %v1074 = vadd.f32 %v1031, %v1073
  %1075 = vdwg.mxu0
  %1076 = vmatprep.subr.bf16.mxu0 %v756
  %1077 = vmatpush1.bf16.msra.mxu0 %v755
  %1078 = vmatprep.subr.bf16.mxu0 %v758
  %1079 = vmatpush1.bf16.msra.mxu0 %v757
  %1080 = vmatprep.subr.bf16.mxu0 %v760
  %1081 = vmatpush1.bf16.msra.mxu0 %v759
  %1082 = vmatprep.subr.bf16.mxu0 %v762
  %1083 = vmatpush1.bf16.msra.mxu0 %v761
  %1084 = vmatprep.subr.bf16.mxu0 %v764
  %1085 = vmatpush1.bf16.msra.mxu0 %v763
  %1086 = vmatprep.subr.bf16.mxu0 %v766
  %1087 = vmatpush1.bf16.msra.mxu0 %v765
  %1088 = vmatprep.subr.bf16.mxu0 %v768
  %1089 = vmatpush1.bf16.msra.mxu0 %v767
  %1090 = vmatprep.subr.bf16.mxu0 %v770
  %1091 = vmatpush1.bf16.msra.mxu0 %v769
  %1092 = vmatprep.subr.bf16.mxu0 %v772
  %1093 = vmatpush1.bf16.msra.mxu0 %v771
  %1094 = vmatprep.subr.bf16.mxu0 %v774
  %1095 = vmatpush1.bf16.msra.mxu0 %v773
  %1096 = vmatprep.subr.bf16.mxu0 %v776
  %1097 = vmatpush1.bf16.msra.mxu0 %v775
  %1098 = vmatprep.subr.bf16.mxu0 %v778
  %1099 = vmatpush1.bf16.msra.mxu0 %v777
  %1100 = vmatprep.subr.bf16.mxu0 %v780
  %1101 = vmatpush1.bf16.msra.mxu0 %v779
  %1102 = vmatprep.subr.bf16.mxu0 %v782
  %1103 = vmatpush1.bf16.msra.mxu0 %v781
  %1104 = vmatprep.subr.bf16.mxu0 %v784
  %1105 = vmatpush1.bf16.msra.mxu0 %v783
  %1106 = vmatprep.subr.bf16.mxu0 %v786
  %1107 = vmatpush1.bf16.msra.mxu0 %v785
  %1108 = vmatprep.mubr.bf16.mxu0 %v216
  %1109 = vmatmul.mubr.bf16.gmra.mrb[0].mxu0 %v215
  %v1110 = vpop.f32.mrb[0].mxu0
  %v1111 = vadd.f32 %v1068, %v1110
  %v1112 = vpop.f32.mrb[0].mxu0
  %v1113 = vadd.f32 %v1070, %v1112
  %v1114 = vpop.f32.mrb[0].mxu0
  %v1115 = vadd.f32 %v1072, %v1114
  %v1116 = vpop.f32.mrb[0].mxu0
  %v1117 = vadd.f32 %v1074, %v1116
  %1118 = vdwg.mxu0
  %1119 = vmatprep.subr.bf16.mxu0 %v788
  %1120 = vmatpush1.bf16.msra.mxu0 %v787
  %1121 = vmatprep.subr.bf16.mxu0 %v790
  %1122 = vmatpush1.bf16.msra.mxu0 %v789
  %1123 = vmatprep.subr.bf16.mxu0 %v792
  %1124 = vmatpush1.bf16.msra.mxu0 %v791
  %1125 = vmatprep.subr.bf16.mxu0 %v794
  %1126 = vmatpush1.bf16.msra.mxu0 %v793
  %1127 = vmatprep.subr.bf16.mxu0 %v796
  %1128 = vmatpush1.bf16.msra.mxu0 %v795
  %1129 = vmatprep.subr.bf16.mxu0 %v798
  %1130 = vmatpush1.bf16.msra.mxu0 %v797
  %1131 = vmatprep.subr.bf16.mxu0 %v800
  %1132 = vmatpush1.bf16.msra.mxu0 %v799
  %1133 = vmatprep.subr.bf16.mxu0 %v802
  %1134 = vmatpush1.bf16.msra.mxu0 %v801
  %1135 = vmatprep.subr.bf16.mxu0 0
  %1136 = vmatpush1.bf16.msra.mxu0 0
  %1137 = vmatprep.subr.bf16.mxu0 0
  %1138 = vmatpush1.bf16.msra.mxu0 0
  %1139 = vmatprep.subr.bf16.mxu0 0
  %1140 = vmatpush1.bf16.msra.mxu0 0
  %1141 = vmatprep.subr.bf16.mxu0 0
  %1142 = vmatpush1.bf16.msra.mxu0 0
  %1143 = vmatprep.subr.bf16.mxu0 0
  %1144 = vmatpush1.bf16.msra.mxu0 0
  %1145 = vmatprep.subr.bf16.mxu0 0
  %1146 = vmatpush1.bf16.msra.mxu0 0
  %1147 = vmatprep.subr.bf16.mxu0 0
  %1148 = vmatpush1.bf16.msra.mxu0 0
  %1149 = vmatprep.subr.bf16.mxu0 0
  %1150 = vmatpush1.bf16.msra.mxu0 0
  %1151 = vmatprep.mubr.bf16.mxu0 0
  %1152 = vmatmul.mubr.bf16.gmra.mrb[0].mxu0 %v217
  %v1153 = vpop.f32.mrb[0].mxu0
  %v1154 = vadd.f32 %v1111, %v1153
  %v1155 = vpop.f32.mrb[0].mxu0
  %v1156 = vadd.f32 %v1113, %v1155
  %v1157 = vpop.f32.mrb[0].mxu0
  %v1158 = vadd.f32 %v1115, %v1157
  %v1159 = vpop.f32.mrb[0].mxu0
  %v1160 = vadd.f32 %v1117, %v1159
  %1161 = vdwg.mxu0
  %v1162 = vmax.f32 %v1154, 0.0
  %v1163 = vmax.f32 %v1156, 0.0
  %v1164 = vmax.f32 %v1158, 0.0
  %v1165 = vmax.f32 %v1160, 0.0
  %1166 = vst [vmem:[%s3] sm:$0xff] %v1162
  %1167 = vst [vmem:[%s3 + $0x8] sm:$0xff] %v1163
  %1168 = vst [vmem:[%s3 + $0x10] sm:$0xff] %v1164
  %1169 = vst [vmem:[%s3 + $0x18] sm:$0xff] %v1165
  // Predicated region
  $region14: #{pupilnet_v2_forward.12} parent=0 // pred_check
    _
  $region15: #{pupilnet_v2_forward.12} parent=0 // pred_check_branch
    %1171 = sbr.rel (0) target = $region17
  $region16: #{pupilnet_v2_forward.12} parent=0 // pred_region
    _
  $region17: #{pupilnet_v2_forward.12} parent=0 // pred_fallthru
    _
  // Predicated region
  $region18: #{pupilnet_v2_forward.12} parent=0 // pred_check
    _
  $region19: #{pupilnet_v2_forward.12} parent=0 // pred_check_branch
    %1173 = sbr.rel (0) target = $region21
  $region20: #{pupilnet_v2_forward.12} parent=0 // pred_region
    _
  $region21: #{pupilnet_v2_forward.12} parent=0 // pred_fallthru
    _

// kernel: pupilnet_v2_forward.13
$region0: #{pupilnet_v2_forward.13}
  #allocation0 [shape = 'u32[]', space=smem, size = 0x4, offset = 0x4, fixed_abs, tag = 'smem constant byte address 0x4 - core index']
  #allocation1 [shape = 'u32[144,128]{1,0:T(1,128)}', space=vmem, size = 0x12000, scoped, tag = 'internal scratch']
  %s0 = inlined_call_operand.vmem [shape: f32[2,8,256], index: 0, kind: input, shape index: {}]
  %s1 = inlined_call_operand.vmem [shape: f32[256,64], index: 1, kind: input, shape index: {}]
  %s2 = inlined_call_operand.vmem [shape: f32[1,64], index: 2, kind: input, shape index: {}]
  %s3 = inlined_call_operand.vmem [shape: f32[64,2], index: 3, kind: input, shape index: {}]
  %s4 = inlined_call_operand.vmem [shape: f32[1,2], index: 4, kind: input, shape index: {}]
  %s5 = inlined_call_operand.hbm [shape: f32[2,2], index: 5, kind: output, shape index: {}]
  %s6 = sld [smem:[#allocation0]]
  $region30: #{pupilnet_v2_forward.13} parent=0
    _
  %s8 = ssub.s32 1, %s6
  %s9 = scalar_select 0, %s8, %s6
  $region1: #{pupilnet_v2_forward.13} parent=0
    #allocation2 [shape = 'u8[1024]{0}', space=vmem, size = 0x400, scoped, tag = 'output window, operand 0, single buffered']
    #allocation3 [shape = 's32[1]{0}', space=sflag, size = 0x4, scoped, tag = 'scoped memory for pupilnet_v2_forward.13']
    %10 = vsyncpa [#allocation3], 0
    // Predicated region
    $region2: #{pupilnet_v2_forward.13} parent=1 // pred_check
      _
    $region3: #{pupilnet_v2_forward.13} parent=1 // pred_check_branch
      %12 = sbr.rel (0) target = $region5
    $region4: #{pupilnet_v2_forward.13} parent=1 // pred_region
      _
    $region5: #{pupilnet_v2_forward.13} parent=1 // pred_fallthru
      _
    // Predicated region
    $region6: #{pupilnet_v2_forward.13} parent=1 // pred_check
      _
    $region7: #{pupilnet_v2_forward.13} parent=1 // pred_check_branch
      %14 = sbr.rel (0) target = $region9
    $region8: #{pupilnet_v2_forward.13} parent=1 // pred_region
      _
    $region9: #{pupilnet_v2_forward.13} parent=1 // pred_fallthru
      _
    // Predicated region
    $region10: #{pupilnet_v2_forward.13} parent=1 // pred_check
      _
    $region11: #{pupilnet_v2_forward.13} parent=1 // pred_check_branch
      %16 = sbr.rel (0) target = $region13
    $region12: #{pupilnet_v2_forward.13} parent=1 // pred_region
      _
    $region13: #{pupilnet_v2_forward.13} parent=1 // pred_fallthru
      _
    // Predicated region
    $region14: #{pupilnet_v2_forward.13} parent=1 // pred_check
      _
    $region15: #{pupilnet_v2_forward.13} parent=1 // pred_check_branch
      %18 = sbr.rel (0) target = $region17
    $region16: #{pupilnet_v2_forward.13} parent=1 // pred_region
      _
    $region17: #{pupilnet_v2_forward.13} parent=1 // pred_fallthru
      _
    // Predicated region
    $region18: #{pupilnet_v2_forward.13} parent=1 // pred_check
      _
    $region19: #{pupilnet_v2_forward.13} parent=1 // pred_check_branch
      %20 = sbr.rel (0) target = $region21
    $region20: #{pupilnet_v2_forward.13} parent=1 // pred_region
      _
    $region21: #{pupilnet_v2_forward.13} parent=1 // pred_fallthru
      _
    %v21 = vld [vmem:[%s0] sm:$0xff]
    %v22 = vld [vmem:[%s0 + $0x8] sm:$0xff]
    %v23 = vld [vmem:[%s0 + $0x10] sm:$0xff]
    %v24 = vld [vmem:[%s0 + $0x18] sm:$0xff]
    %v25 = vrot.slane %v21, 4
    %v26 = vadd.f32 %v21, %v25
    %v27 = vrot.slane %v26, 2
    %v28 = vadd.f32 %v26, %v27
    %v29 = vrot.slane %v28, 1
    %v30 = vadd.f32 %v28, %v29
    %v31 = vrot.slane %v22, 4
    %v32 = vadd.f32 %v22, %v31
    %v33 = vrot.slane %v32, 2
    %v34 = vadd.f32 %v32, %v33
    %v35 = vrot.slane %v34, 1
    %v36 = vadd.f32 %v34, %v35
    %v37 = vrot.slane %v23, 4
    %v38 = vadd.f32 %v23, %v37
    %v39 = vrot.slane %v38, 2
    %v40 = vadd.f32 %v38, %v39
    %v41 = vrot.slane %v40, 1
    %v42 = vadd.f32 %v40, %v41
    %v43 = vrot.slane %v24, 4
    %v44 = vadd.f32 %v24, %v43
    %v45 = vrot.slane %v44, 2
    %v46 = vadd.f32 %v44, %v45
    %v47 = vrot.slane %v46, 1
    %v48 = vadd.f32 %v46, %v47
    %v49 = vrcp.pop 8.0
    %v50 = vmul.f32 %v30, %v49
    %v51 = vmul.f32 %v36, %v49
    %v52 = vmul.f32 %v42, %v49
    %v53 = vmul.f32 %v48, %v49
    %v54 = vld [vmem:[%s1] sm:$0xff]
    %v55 = vld [vmem:[%s1 + $0x8] sm:$0xff]
    %v56 = vld [vmem:[%s1 + $0x10] sm:$0xff]
    %v57 = vld [vmem:[%s1 + $0x18] sm:$0xff]
    %v58 = vld [vmem:[%s1 + $0x20] sm:$0xff]
    %v59 = vld [vmem:[%s1 + $0x28] sm:$0xff]
    %v60 = vld [vmem:[%s1 + $0x30] sm:$0xff]
    %v61 = vld [vmem:[%s1 + $0x38] sm:$0xff]
    %v62 = vld [vmem:[%s1 + $0x40] sm:$0xff]
    %v63 = vld [vmem:[%s1 + $0x48] sm:$0xff]
    %v64 = vld [vmem:[%s1 + $0x50] sm:$0xff]
    %v65 = vld [vmem:[%s1 + $0x58] sm:$0xff]
    %v66 = vld [vmem:[%s1 + $0x60] sm:$0xff]
    %v67 = vld [vmem:[%s1 + $0x68] sm:$0xff]
    %v68 = vld [vmem:[%s1 + $0x70] sm:$0xff]
    %v69 = vld [vmem:[%s1 + $0x78] sm:$0xff]
    %v70 = vld [vmem:[%s1 + $0x80] sm:$0xff]
    %v71 = vld [vmem:[%s1 + $0x88] sm:$0xff]
    %v72 = vld [vmem:[%s1 + $0x90] sm:$0xff]
    %v73 = vld [vmem:[%s1 + $0x98] sm:$0xff]
    %v74 = vld [vmem:[%s1 + $0xa0] sm:$0xff]
    %v75 = vld [vmem:[%s1 + $0xa8] sm:$0xff]
    %v76 = vld [vmem:[%s1 + $0xb0] sm:$0xff]
    %v77 = vld [vmem:[%s1 + $0xb8] sm:$0xff]
    %v78 = vld [vmem:[%s1 + $0xc0] sm:$0xff]
    %v79 = vld [vmem:[%s1 + $0xc8] sm:$0xff]
    %v80 = vld [vmem:[%s1 + $0xd0] sm:$0xff]
    %v81 = vld [vmem:[%s1 + $0xd8] sm:$0xff]
    %v82 = vld [vmem:[%s1 + $0xe0] sm:$0xff]
    %v83 = vld [vmem:[%s1 + $0xe8] sm:$0xff]
    %v84 = vld [vmem:[%s1 + $0xf0] sm:$0xff]
    %v85 = vld [vmem:[%s1 + $0xf8] sm:$0xff]
    %v86 = vld [vmem:[%s2] sm:$0x1]
    %v88 = vlaneseq
    %v89 = vshrl.u32 %v88, 7
    %v90 = vsub.s32 0, %v89
    %v91 = vrot.slane %v86, %v90
    %vm97 = vcmask 1041409
    %v98 = vsel %vm97, %v52, %v50
    %v99 = vsel %vm97, %v53, %v51
    %102 = vmatprep.subr.mxu0 0.0
    %103 = vmatpush1.msra.mxu0 %v54
    %104 = vmatprep.subr.mxu0 0.0
    %105 = vmatpush1.msra.mxu0 %v55
    %106 = vmatprep.subr.mxu0 0.0
    %107 = vmatpush1.msra.mxu0 %v56
    %108 = vmatprep.subr.mxu0 0.0
    %109 = vmatpush1.msra.mxu0 %v57
    %110 = vmatprep.subr.mxu0 0.0
    %111 = vmatpush1.msra.mxu0 %v58
    %112 = vmatprep.subr.mxu0 0.0
    %113 = vmatpush1.msra.mxu0 %v59
    %114 = vmatprep.subr.mxu0 0.0
    %115 = vmatpush1.msra.mxu0 %v60
    %116 = vmatprep.subr.mxu0 0.0
    %117 = vmatpush1.msra.mxu0 %v61
    %118 = vmatprep.subr.mxu0 0.0
    %119 = vmatpush1.msra.mxu0 %v62
    %120 = vmatprep.subr.mxu0 0.0
    %121 = vmatpush1.msra.mxu0 %v63
    %122 = vmatprep.subr.mxu0 0.0
    %123 = vmatpush1.msra.mxu0 %v64
    %124 = vmatprep.subr.mxu0 0.0
    %125 = vmatpush1.msra.mxu0 %v65
    %126 = vmatprep.subr.mxu0 0.0
    %127 = vmatpush1.msra.mxu0 %v66
    %128 = vmatprep.subr.mxu0 0.0
    %129 = vmatpush1.msra.mxu0 %v67
    %130 = vmatprep.subr.mxu0 0.0
    %131 = vmatpush1.msra.mxu0 %v68
    %132 = vmatprep.subr.mxu0 0.0
    %133 = vmatpush1.msra.mxu0 %v69
    %134 = vmatprep.subr.mxu0 0.0
    %135 = vmatpush1.msra.mxu0 %v70
    %136 = vmatprep.subr.mxu0 0.0
    %137 = vmatpush1.msra.mxu0 %v71
    %138 = vmatprep.subr.mxu0 0.0
    %139 = vmatpush1.msra.mxu0 %v72
    %140 = vmatprep.subr.mxu0 0.0
    %141 = vmatpush1.msra.mxu0 %v73
    %142 = vmatprep.subr.mxu0 0.0
    %143 = vmatpush1.msra.mxu0 %v74
    %144 = vmatprep.subr.mxu0 0.0
    %145 = vmatpush1.msra.mxu0 %v75
    %146 = vmatprep.subr.mxu0 0.0
    %147 = vmatpush1.msra.mxu0 %v76
    %148 = vmatprep.subr.mxu0 0.0
    %149 = vmatpush1.msra.mxu0 %v77
    %150 = vmatprep.subr.mxu0 0.0
    %151 = vmatpush1.msra.mxu0 %v78
    %152 = vmatprep.subr.mxu0 0.0
    %153 = vmatpush1.msra.mxu0 %v79
    %154 = vmatprep.subr.mxu0 0.0
    %155 = vmatpush1.msra.mxu0 %v80
    %156 = vmatprep.subr.mxu0 0.0
    %157 = vmatpush1.msra.mxu0 %v81
    %158 = vmatprep.subr.mxu0 0.0
    %159 = vmatpush1.msra.mxu0 %v82
    %160 = vmatprep.subr.mxu0 0.0
    %161 = vmatpush1.msra.mxu0 %v83
    %162 = vmatprep.subr.mxu0 0.0
    %163 = vmatpush1.msra.mxu0 %v84
    %164 = vmatprep.subr.mxu0 0.0
    %165 = vmatpush1.msra.mxu0 %v85
    %166 = vmatprep.mubr.f32.mxu0 %v99
    %167 = vmatmul.mubr.f32.gmra.mrb[0].mxu0 %v98
    %v168 = vpop.f32.mrb[0].mxu0
    %v169 = vadd.f32 %v91, %v168
    %v170 = vpop.f32.mrb[0].mxu0
    %171 = vdwg.mxu0
    %v172 = vmax.f32 %v169, 0.0
    %v173 = vld [vmem:[%s3] sm:$0xff]
    %v174 = vld [vmem:[%s3 + $0x8] sm:$0xff]
    %v175 = vld [vmem:[%s3 + $0x10] sm:$0xff]
    %v176 = vld [vmem:[%s3 + $0x18] sm:$0xff]
    %v177 = vld [vmem:[%s3 + $0x20] sm:$0xff]
    %v178 = vld [vmem:[%s3 + $0x28] sm:$0xff]
    %v179 = vld [vmem:[%s3 + $0x30] sm:$0xff]
    %v180 = vld [vmem:[%s3 + $0x38] sm:$0xff]
    %v181 = vld [vmem:[%s4] sm:$0x1]
    %v183 = vlaneseq
    %v184 = vshrl.u32 %v183, 7
    %v185 = vsub.s32 0, %v184
    %v186 = vrot.slane %v181, %v185
    %vm188 = vcmask 523264
    %v190 = vsel %vm188, %v172, 0
    %192 = vmatprep.subr.mxu0 0.0
    %193 = vmatpush1.msra.mxu0 %v173
    %194 = vmatprep.subr.mxu0 0.0
    %195 = vmatpush1.msra.mxu0 %v174
    %196 = vmatprep.subr.mxu0 0.0
    %197 = vmatpush1.msra.mxu0 %v175
    %198 = vmatprep.subr.mxu0 0.0
    %199 = vmatpush1.msra.mxu0 %v176
    %200 = vmatprep.subr.mxu0 0.0
    %201 = vmatpush1.msra.mxu0 %v177
    %202 = vmatprep.subr.mxu0 0.0
    %203 = vmatpush1.msra.mxu0 %v178
    %204 = vmatprep.subr.mxu0 0.0
    %205 = vmatpush1.msra.mxu0 %v179
    %206 = vmatprep.subr.mxu0 0.0
    %207 = vmatpush1.msra.mxu0 %v180
    %208 = vmatprep.subr.mxu0 0.0
    %209 = vmatpush1.msra.mxu0 0.0
    %210 = vmatprep.subr.mxu0 0.0
    %211 = vmatpush1.msra.mxu0 0.0
    %212 = vmatprep.subr.mxu0 0.0
    %213 = vmatpush1.msra.mxu0 0.0
    %214 = vmatprep.subr.mxu0 0.0
    %215 = vmatpush1.msra.mxu0 0.0
    %216 = vmatprep.subr.mxu0 0.0
    %217 = vmatpush1.msra.mxu0 0.0
    %218 = vmatprep.subr.mxu0 0.0
    %219 = vmatpush1.msra.mxu0 0.0
    %220 = vmatprep.subr.mxu0 0.0
    %221 = vmatpush1.msra.mxu0 0.0
    %222 = vmatprep.subr.mxu0 0.0
    %223 = vmatpush1.msra.mxu0 0.0
    %224 = vmatprep.subr.mxu0 0.0
    %225 = vmatpush1.msra.mxu0 0.0
    %226 = vmatprep.subr.mxu0 0.0
    %227 = vmatpush1.msra.mxu0 0.0
    %228 = vmatprep.subr.mxu0 0.0
    %229 = vmatpush1.msra.mxu0 0.0
    %230 = vmatprep.subr.mxu0 0.0
    %231 = vmatpush1.msra.mxu0 0.0
    %232 = vmatprep.subr.mxu0 0.0
    %233 = vmatpush1.msra.mxu0 0.0
    %234 = vmatprep.subr.mxu0 0.0
    %235 = vmatpush1.msra.mxu0 0.0
    %236 = vmatprep.subr.mxu0 0.0
    %237 = vmatpush1.msra.mxu0 0.0
    %238 = vmatprep.subr.mxu0 0.0
    %239 = vmatpush1.msra.mxu0 0.0
    %240 = vmatprep.subr.mxu0 0.0
    %241 = vmatpush1.msra.mxu0 0.0
    %242 = vmatprep.subr.mxu0 0.0
    %243 = vmatpush1.msra.mxu0 0.0
    %244 = vmatprep.subr.mxu0 0.0
    %245 = vmatpush1.msra.mxu0 0.0
    %246 = vmatprep.subr.mxu0 0.0
    %247 = vmatpush1.msra.mxu0 0.0
    %248 = vmatprep.subr.mxu0 0.0
    %249 = vmatpush1.msra.mxu0 0.0
    %250 = vmatprep.subr.mxu0 0.0
    %251 = vmatpush1.msra.mxu0 0.0
    %252 = vmatprep.subr.mxu0 0.0
    %253 = vmatpush1.msra.mxu0 0.0
    %254 = vmatprep.subr.mxu0 0.0
    %255 = vmatpush1.msra.mxu0 0.0
    %256 = vmatprep.mubr.f32.mxu0 0.0
    %257 = vmatmul.mubr.f32.gmra.mrb[0].mxu0 %v190
    %v258 = vpop.f32.mrb[0].mxu0
    %v259 = vadd.f32 %v186, %v258
    %v260 = vpop.f32.mrb[0].mxu0
    %261 = vdwg.mxu0
    %vm262 = vcmask 9216
    %263 = vst.msk [vmem:[#allocation2] sm:$0x3] %vm262, %v259
    // Predicated region
    $region22: #{pupilnet_v2_forward.13} parent=1 // pred_check
      _
    $region23: #{pupilnet_v2_forward.13} parent=1 // pred_check_branch
      %265 = sbr.rel (0) target = $region25
    $region24: #{pupilnet_v2_forward.13} parent=1 // pred_region
      %s267 = ssub.s32 32, 32
      %268 = vsyncadd [#allocation3], %s267
      %s270 = sshll.u32 [#allocation2], 4
      %s271 = int_to_ptr.vmem [resolvable:$true] %s270
      %273 = dma.vmem_to_hbm [thread:$0]  %s271, 32, %s5, [#allocation3]
    $region25: #{pupilnet_v2_forward.13} parent=1 // pred_fallthru
      _
    // Predicated region
    $region26: #{pupilnet_v2_forward.13} parent=1 // pred_check
      _
    $region27: #{pupilnet_v2_forward.13} parent=1 // pred_check_branch
      %275 = sbr.rel (0) target = $region29
    $region28: #{pupilnet_v2_forward.13} parent=1 // pred_region
      %276 = dma.done [#allocation3], 32
    $region29: #{pupilnet_v2_forward.13} parent=1 // pred_fallthru
      _
    %277 = vsyncpa [#allocation3], 1

</llo_original>
